<compile_context>
chip_gen: v6e
topology: v6e:2x2x1
jax: 0.10.0
libtpu: 0.0.40
codegen_flags: <defaults>
</compile_context>

<pallas_src>
import functools

import jax
import jax.numpy as jnp
from jax.experimental import pallas as pl
from jax.experimental.pallas import tpu as pltpu

EPS = 1e-5
LANES = 128


def _round_up(v, m):
    return (v + m - 1) // m * m


def _vmem_budget_bytes():
    """Per-TensorCore VMEM capacity minus headroom for compiler scratch."""
    cap = None
    try:
        info = pltpu.get_tpu_info()
        cap = int(getattr(info, "vmem_capacity_bytes", 0)) or None
    except Exception:
        cap = None
    if cap is None:
        cap = 64 << 20                       # conservative fallback (v7x per-TC)
    return max(cap - (16 << 20), 32 << 20)   # leave headroom, never below 32 MiB


def _largest_divisor_tile(n, bytes_fn, budget):
    best = 1
    for d in range(1, n + 1):
        if n % d == 0 and bytes_fn(d) <= budget:
            best = d
    return best


# ---------------------------------------------------------------------------
# Passes 1 & 2: (optional per-channel affine + ReLU) -> 3x3 conv as 9
# accumulating MXU matmuls over shifted windows of a zero-padded VMEM scratch
# -> per-grid-step partial (sum, sum_sq) channel statistics.
# ---------------------------------------------------------------------------
def conv_stats_kernel(scale_ref, shift_ref, src_ref, w_ref,
                      y_ref, stats_ref, pad_ref,
                      *, apply_affine, apply_relu):
    # scale/shift: (1, Cp)       folded BN affine of the previous stage
    # src_ref    : (Nb,H,W,Cp)   input batch tile (f32 or bf16)
    # w_ref      : (9*Cp, Cp)    conv weights, tap-major rows
    # y_ref      : (Nb,H,W,Cp)   conv output tile
    # stats_ref  : (1, 2, Cp)    this grid step's [sum, sum_sq] (summed outside)
    # pad_ref    : (Nb,H+2,W+2,Cp) VMEM scratch with 1-pixel zero halo
    Nb, H, W, Cp = src_ref.shape
    M = Nb * H * W
    cdt = pad_ref.dtype                       # matmul-operand dtype

    # Previous-stage BN affine (+ReLU) applied in f32, written into the
    # padded scratch in the compute dtype.  Pass 1 skips the identity affine.
    if apply_affine:
        h = (src_ref[...].astype(jnp.float32)
             * scale_ref[...].reshape(1, 1, 1, Cp)
             + shift_ref[...].reshape(1, 1, 1, Cp))
        if apply_relu:
            h = jnp.maximum(h, 0.0)
        pad_ref[:, 1:H + 1, 1:W + 1, :] = h.astype(cdt)
    else:
        pad_ref[:, 1:H + 1, 1:W + 1, :] = src_ref[...].astype(cdt)

    # Zero only the halo strips, unconditionally every step (no program_id
    # dependence, so the grid axis can be "parallel"/megacore-sharded).
    zrow = jnp.zeros((Nb, 1, W + 2, Cp), cdt)
    zcol = jnp.zeros((Nb, H, 1, Cp), cdt)
    pad_ref[:, 0:1, :, :] = zrow
    pad_ref[:, H + 1:H + 2, :, :] = zrow
    pad_ref[:, 1:H + 1, 0:1, :] = zcol
    pad_ref[:, 1:H + 1, W + 1:W + 2, :] = zcol

    # 3x3 conv = 9 accumulating MXU matmuls over lane-dense shifted windows.
    acc = None
    for dy in range(3):
        for dx in range(3):
            j = dy * 3 + dx
            lhs = pad_ref[:, dy:dy + H, dx:dx + W, :].reshape(M, Cp)
            part = jnp.dot(lhs, w_ref[j * Cp:(j + 1) * Cp, :],
                           preferred_element_type=jnp.float32)
            acc = part if acc is None else acc + part

    y_ref[...] = acc.reshape(Nb, H, W, Cp).astype(y_ref.dtype)

    # Per-step partial BatchNorm statistics (reduced in the JAX wrapper so no
    # revisited output block is needed -> grid stays fully parallel).
    stats_ref[0] = jnp.concatenate(
        [jnp.sum(acc, axis=0, keepdims=True),
         jnp.sum(acc * acc, axis=0, keepdims=True)], axis=0)


# ---------------------------------------------------------------------------
# Pass 3: out = relu(bn2(y2) + residual)   (BN folded into scale/shift)
# ---------------------------------------------------------------------------
def bn_add_relu_kernel(scale_ref, shift_ref, y_ref, x_ref, o_ref):
    Cp = y_ref.shape[-1]
    o_ref[...] = jnp.maximum(
        y_ref[...].astype(jnp.float32) * scale_ref[...].reshape(1, 1, 1, Cp)
        + shift_ref[...].reshape(1, 1, 1, Cp)
        + x_ref[...], 0.0)


# ---------------------------------------------------------------------------
# pallas_call wrappers
# ---------------------------------------------------------------------------
def _conv_call(scale, shift, src, w_col, *, batch_tile, apply_affine,
               apply_relu, out_dtype, compute_dtype, vmem_limit):
    N, H, W, Cp = src.shape
    Nb = batch_tile
    grid = (N // Nb,)

    kern = functools.partial(conv_stats_kernel, apply_affine=apply_affine,
                             apply_relu=apply_relu)
    y, stats = pl.pallas_call(
        kern,
        out_shape=(jax.ShapeDtypeStruct((N, H, W, Cp), out_dtype),
                   jax.ShapeDtypeStruct((N // Nb, 2, Cp), jnp.float32)),
        grid_spec=pltpu.PrefetchScalarGridSpec(
            num_scalar_prefetch=0,
            grid=grid,
            in_specs=[pl.BlockSpec((1, Cp), lambda b: (0, 0)),
                      pl.BlockSpec((1, Cp), lambda b: (0, 0)),
                      pl.BlockSpec((Nb, H, W, Cp), lambda b: (b, 0, 0, 0)),
                      pl.BlockSpec((9 * Cp, Cp), lambda b: (0, 0))],
            out_specs=[pl.BlockSpec((Nb, H, W, Cp), lambda b: (b, 0, 0, 0)),
                       pl.BlockSpec((1, 2, Cp), lambda b: (b, 0, 0))],
            scratch_shapes=[pltpu.VMEM((Nb, H + 2, W + 2, Cp), compute_dtype)]),
        compiler_params=pltpu.CompilerParams(
            dimension_semantics=("parallel",),   # megacore-shardable on v7x
            vmem_limit_bytes=vmem_limit),
    )(scale, shift, src, w_col)
    return y, jnp.sum(stats, axis=0)             # tiny (grid, 2, Cp) reduction


def _bn_add_relu_call(scale, shift, y, x, *, batch_tile, vmem_limit):
    N, H, W, Cp = y.shape
    Nb = batch_tile
    return pl.pallas_call(
        bn_add_relu_kernel,
        out_shape=jax.ShapeDtypeStruct((N, H, W, Cp), jnp.float32),
        grid_spec=pltpu.PrefetchScalarGridSpec(
            num_scalar_prefetch=0,
            grid=(N // Nb,),
            in_specs=[pl.BlockSpec((1, Cp), lambda b: (0, 0)),
                      pl.BlockSpec((1, Cp), lambda b: (0, 0)),
                      pl.BlockSpec((Nb, H, W, Cp), lambda b: (b, 0, 0, 0)),
                      pl.BlockSpec((Nb, H, W, Cp), lambda b: (b, 0, 0, 0))],
            out_specs=pl.BlockSpec((Nb, H, W, Cp), lambda b: (b, 0, 0, 0))),
        compiler_params=pltpu.CompilerParams(
            dimension_semantics=("parallel",),
            vmem_limit_bytes=vmem_limit),
    )(scale, shift, y, x)


def _fold_bn(stats, gamma, beta, m_total, cp):
    # stats = [sum, sum_sq] per channel -> training-mode BN as a per-channel
    # affine (scale, shift) applied by the next pass.
    mean = stats[0] / m_total
    var = stats[1] / m_total - mean * mean
    rstd = jax.lax.rsqrt(var + EPS)
    scale = gamma * rstd
    shift = beta - mean * scale
    return scale.reshape(1, cp), shift.reshape(1, cp)


@functools.partial(jax.jit, static_argnames=("use_bf16",))
def residual_block(x_nchw, params, *, use_bf16=True):
    x = jnp.transpose(x_nchw, (0, 2, 3, 1)).astype(jnp.float32)   # NCHW -> NHWC
    N, H, W, C = x.shape
    Cp = _round_up(max(C, LANES), LANES)          # lane-dense channel count
    m_total = N * H * W

    cdt = jnp.bfloat16 if use_bf16 else jnp.float32   # matmul operands + y1/y2
    csz = 2 if use_bf16 else 4

    # Lane-dense channel padding (no-op when C is already a multiple of 128).
    xp = jnp.pad(x, ((0, 0), (0, 0), (0, 0), (0, Cp - C)))

    def pack_w(w):        # (3, 3, C, C) HWIO -> (9*Cp, Cp), tap-major rows
        wp = jnp.zeros((3, 3, Cp, Cp), jnp.float32).at[:, :, :C, :C].set(w)
        return wp.reshape(9 * Cp, Cp).astype(cdt)

    def pack_v(v, fill):  # (C,) -> (Cp,)
        return jnp.full((Cp,), fill, jnp.float32).at[:C].set(v)

    w1, w2 = pack_w(params["w1"]), pack_w(params["w2"])
    g1, be1 = pack_v(params["g1"], 1.0), pack_v(params["be1"], 0.0)
    g2, be2 = pack_v(params["g2"], 1.0), pack_v(params["be2"], 0.0)
    # Conv biases b1/b2 are folded away exactly: training-mode BatchNorm's
    # mean subtraction cancels any per-channel bias.

    budget = _vmem_budget_bytes()

    def conv_step_bytes(nb, src_sz):
        act = nb * H * W * Cp
        return (2 * act * src_sz                        # src block (double-buffered)
                + 2 * act * csz                         # y block (double-buffered)
                + nb * (H + 2) * (W + 2) * Cp * csz     # padded-activation scratch
                + act * 4                               # f32 accumulator
                + 9 * Cp * Cp * csz                     # weights (constant map: 1 copy)
                + 8 * Cp * 4)                           # scale / shift / stats

    def ew_step_bytes(nb):
        act = nb * H * W * Cp
        return 2 * act * (csz + 4 + 4) + 4 * Cp * 4     # y(bf16/f32) + x + out

    nb1 = _largest_divisor_tile(N, lambda nb: conv_step_bytes(nb, 4),
                                int(0.7 * budget))
    nb2 = _largest_divisor_tile(N, lambda nb: conv_step_bytes(nb, csz),
                                int(0.7 * budget))
    nb3 = _largest_divisor_tile(N, ew_step_bytes, int(0.7 * budget))
    vmem1 = min(budget, conv_step_bytes(nb1, 4) + (8 << 20))
    vmem2 = min(budget, conv_step_bytes(nb2, csz) + (8 << 20))
    vmem3 = min(budget, ew_step_bytes(nb3) + (8 << 20))

    ident = jnp.ones((1, Cp), jnp.float32)
    zero = jnp.zeros((1, Cp), jnp.float32)

    # Pass 1: y1 = conv1(x), partial stats of y1 (identity affine skipped).
    y1, stats1 = _conv_call(ident, zero, xp, w1, batch_tile=nb1,
                            apply_affine=False, apply_relu=False,
                            out_dtype=cdt, compute_dtype=cdt, vmem_limit=vmem1)
    s1, sh1 = _fold_bn(stats1, g1, be1, m_total, Cp)

    # Pass 2: y2 = conv2(relu(bn1(y1))), partial stats of y2.
    y2, stats2 = _conv_call(s1, sh1, y1, w2, batch_tile=nb2,
                            apply_affine=True, apply_relu=True,
                            out_dtype=cdt, compute_dtype=cdt, vmem_limit=vmem2)
    s2, sh2 = _fold_bn(stats2, g2, be2, m_total, Cp)

    # Pass 3: out = relu(bn2(y2) + x).
    out = _bn_add_relu_call(s2, sh2, y2, xp, batch_tile=nb3, vmem_limit=vmem3)

    return jnp.transpose(out[..., :C], (0, 3, 1, 2))              # NHWC -> NCHW


# ---------------------------------------------------------------------------
# Pure-JAX reference (mirrors the PyTorch module in training mode) and params
# ---------------------------------------------------------------------------
def reference(x_nchw, params):
    x = jnp.transpose(x_nchw, (0, 2, 3, 1)).astype(jnp.float32)

    def conv(h, w, b):
        y = jax.lax.conv_general_dilated(
            h, w, (1, 1), "SAME",
            dimension_numbers=("NHWC", "HWIO", "NHWC"))
        return y + b.reshape(1, 1, 1, -1)

    def bn(y, g, be):
        mu = jnp.mean(y, axis=(0, 1, 2), keepdims=True)
        var = jnp.mean((y - mu) ** 2, axis=(0, 1, 2), keepdims=True)
        return (y - mu) * jax.lax.rsqrt(var + EPS) * g.reshape(1, 1, 1, -1) \
            + be.reshape(1, 1, 1, -1)

    h = jax.nn.relu(bn(conv(x, params["w1"], params["b1"]),
                       params["g1"], params["be1"]))
    h = bn(conv(h, params["w2"], params["b2"]), params["g2"], params["be2"])
    return jnp.transpose(jax.nn.relu(h + x), (0, 3, 1, 2))


def init_params(key, num_filters):
    k1, k2, k3, k4 = jax.random.split(key, 4)
    c = num_filters
    bound = 1.0 / jnp.sqrt(c * 9.0)
    return {
        "w1": jax.random.uniform(k1, (3, 3, c, c), jnp.float32, -bound, bound),
        "b1": jax.random.uniform(k2, (c,), jnp.float32, -bound, bound),
        "w2": jax.random.uniform(k3, (3, 3, c, c), jnp.float32, -bound, bound),
        "b2": jax.random.uniform(k4, (c,), jnp.float32, -bound, bound),
        "g1": jnp.ones((c,), jnp.float32),
        "be1": jnp.zeros((c,), jnp.float32),
        "g2": jnp.ones((c,), jnp.float32),
        "be2": jnp.zeros((c,), jnp.float32),
    }


if __name__ == "__main__":
    key = jax.random.PRNGKey(0)
    kx, kp = jax.random.split(key)

    num_filters = 4
    x = jax.random.normal(kx, (2, num_filters, 16, 16), jnp.float32)  # NCHW
    params = init_params(kp, num_filters)

    ref = jax.block_until_ready(reference(x, params))

    # Exact-precision path (f32 MXU operands / f32 intermediates).
    out_f32 = jax.block_until_ready(residual_block(x, params, use_bf16=False))
    assert out_f32.shape == x.shape and out_f32.dtype == jnp.float32
    err_f32 = float(jnp.max(jnp.abs(out_f32 - ref)))
    assert err_f32 < 1e-4, f"f32 path max abs err {err_f32}"

    # Fast path (bf16 MXU operands + bf16 HBM intermediates), relaxed tolerance.
    out_bf16 = jax.block_until_ready(residual_block(x, params, use_bf16=True))
    assert out_bf16.shape == x.shape and out_bf16.dtype == jnp.float32
    err_bf16 = float(jnp.max(jnp.abs(out_bf16 - ref)))
    assert err_bf16 < 5e-2, f"bf16 path max abs err {err_bf16}"

    print("KERNEL_OK")
</pallas_src>

<mosaic_0001>
module attributes {stable_mosaic.version = 11 : i64} {
  func.func @bn_add_relu_kernel(%arg0: i32, %arg1: memref<1x128xf32, #tpu.memory_space<vmem>>, %arg2: memref<1x128xf32, #tpu.memory_space<vmem>>, %arg3: memref<2x16x16x128xf32, #tpu.memory_space<vmem>>, %arg4: memref<2x16x16x128xf32, #tpu.memory_space<vmem>>, %arg5: memref<2x16x16x128xf32, #tpu.memory_space<vmem>>) attributes {dimension_semantics = [#tpu.dimension_semantics<parallel>], iteration_bounds = array<i64: 1>, scalar_prefetch = 0 : i64, scratch_operands = 0 : i64, tpu.core_type = #tpu.core_type<tc>, window_params = [{pipeline_mode = #tpu.pipeline_mode<synchronous>, transform_indices = @transform_0, window_bounds = array<i64: 1, 128>}, {pipeline_mode = #tpu.pipeline_mode<synchronous>, transform_indices = @transform_1, window_bounds = array<i64: 1, 128>}, {transform_indices = @transform_2, window_bounds = array<i64: 2, 16, 16, 128>}, {transform_indices = @transform_3, window_bounds = array<i64: 2, 16, 16, 128>}, {transform_indices = @transform_4, window_bounds = array<i64: 2, 16, 16, 128>}]} {
    %c0 = arith.constant 0 : index
    %c0_0 = arith.constant 0 : index
    %c0_1 = arith.constant 0 : index
    %c0_2 = arith.constant 0 : index
    %0 = vector.load %arg3[%c0, %c0_0, %c0_1, %c0_2] : memref<2x16x16x128xf32, #tpu.memory_space<vmem>>, vector<2x16x16x128xf32>
    %c0_3 = arith.constant 0 : index
    %c0_4 = arith.constant 0 : index
    %1 = vector.load %arg1[%c0_3, %c0_4] : memref<1x128xf32, #tpu.memory_space<vmem>>, vector<1x128xf32>
    %2 = vector.shape_cast %1 : vector<1x128xf32> to vector<1x1x1x128xf32>
    %3 = vector.broadcast %2 : vector<1x1x1x128xf32> to vector<2x16x16x128xf32>
    %4 = arith.mulf %0, %3 : vector<2x16x16x128xf32>
    %c0_5 = arith.constant 0 : index
    %c0_6 = arith.constant 0 : index
    %5 = vector.load %arg2[%c0_5, %c0_6] : memref<1x128xf32, #tpu.memory_space<vmem>>, vector<1x128xf32>
    %6 = vector.shape_cast %5 : vector<1x128xf32> to vector<1x1x1x128xf32>
    %7 = vector.broadcast %6 : vector<1x1x1x128xf32> to vector<2x16x16x128xf32>
    %8 = arith.addf %4, %7 : vector<2x16x16x128xf32>
    %c0_7 = arith.constant 0 : index
    %c0_8 = arith.constant 0 : index
    %c0_9 = arith.constant 0 : index
    %c0_10 = arith.constant 0 : index
    %9 = vector.load %arg4[%c0_7, %c0_8, %c0_9, %c0_10] : memref<2x16x16x128xf32, #tpu.memory_space<vmem>>, vector<2x16x16x128xf32>
    %10 = arith.addf %8, %9 : vector<2x16x16x128xf32>
    %cst = arith.constant 0.000000e+00 : f32
    %11 = vector.broadcast %cst : f32 to vector<2x16x16x128xf32>
    %12 = arith.maximumf %10, %11 : vector<2x16x16x128xf32>
    %c0_11 = arith.constant 0 : index
    %c0_12 = arith.constant 0 : index
    %c0_13 = arith.constant 0 : index
    %c0_14 = arith.constant 0 : index
    %13 = vector.load %arg5[%c0_11, %c0_12, %c0_13, %c0_14] : memref<2x16x16x128xf32, #tpu.memory_space<vmem>>, vector<2x16x16x128xf32>
    tpu.vector_store %arg5[%c0_11, %c0_12, %c0_13, %c0_14], %12 {strides = array<i32>} : memref<2x16x16x128xf32, #tpu.memory_space<vmem>>, vector<2x16x16x128xf32>,
    return
  }
  func.func @transform_0(%arg0: i32) -> (i32, i32) {
    %c0_i32 = arith.constant 0 : i32
    %c0_i32_0 = arith.constant 0 : i32
    %c0_i32_1 = arith.constant 0 : i32
    return %c0_i32, %c0_i32_0 : i32, i32
  }
  func.func @transform_1(%arg0: i32) -> (i32, i32) {
    %c0_i32 = arith.constant 0 : i32
    %c0_i32_0 = arith.constant 0 : i32
    %c0_i32_1 = arith.constant 0 : i32
    return %c0_i32, %c0_i32_0 : i32, i32
  }
  func.func @transform_2(%arg0: i32) -> (i32, i32, i32, i32) {
    %c0_i32 = arith.constant 0 : i32
    %c0_i32_0 = arith.constant 0 : i32
    %c0_i32_1 = arith.constant 0 : i32
    %c0_i32_2 = arith.constant 0 : i32
    return %arg0, %c0_i32, %c0_i32_0, %c0_i32_1 : i32, i32, i32, i32
  }
  func.func @transform_3(%arg0: i32) -> (i32, i32, i32, i32) {
    %c0_i32 = arith.constant 0 : i32
    %c0_i32_0 = arith.constant 0 : i32
    %c0_i32_1 = arith.constant 0 : i32
    %c0_i32_2 = arith.constant 0 : i32
    return %arg0, %c0_i32, %c0_i32_0, %c0_i32_1 : i32, i32, i32, i32
  }
  func.func @transform_4(%arg0: i32) -> (i32, i32, i32, i32) {
    %c0_i32 = arith.constant 0 : i32
    %c0_i32_0 = arith.constant 0 : i32
    %c0_i32_1 = arith.constant 0 : i32
    %c0_i32_2 = arith.constant 0 : i32
    return %arg0, %c0_i32, %c0_i32_0, %c0_i32_1 : i32, i32, i32, i32
  }
}

module attributes {stable_mosaic.version = 11 : i64} {
  func.func @conv_stats_kernel(%arg0: i32, %arg1: memref<1x128xf32, #tpu.memory_space<vmem>>, %arg2: memref<1x128xf32, #tpu.memory_space<vmem>>, %arg3: memref<2x16x16x128xf32, #tpu.memory_space<vmem>>, %arg4: memref<1152x128xf32, #tpu.memory_space<vmem>>, %arg5: memref<2x16x16x128xf32, #tpu.memory_space<vmem>>, %arg6: memref<1x2x128xf32, #tpu.memory_space<vmem>>, %arg7: memref<2x18x18x128xf32, #tpu.memory_space<vmem>>) attributes {dimension_semantics = [#tpu.dimension_semantics<parallel>], iteration_bounds = array<i64: 1>, scalar_prefetch = 0 : i64, scratch_operands = 1 : i64, tpu.core_type = #tpu.core_type<tc>, window_params = [{pipeline_mode = #tpu.pipeline_mode<synchronous>, transform_indices = @transform_0, window_bounds = array<i64: 1, 128>}, {pipeline_mode = #tpu.pipeline_mode<synchronous>, transform_indices = @transform_1, window_bounds = array<i64: 1, 128>}, {transform_indices = @transform_2, window_bounds = array<i64: 2, 16, 16, 128>}, {pipeline_mode = #tpu.pipeline_mode<synchronous>, transform_indices = @transform_3, window_bounds = array<i64: 1152, 128>}, {transform_indices = @transform_4, window_bounds = array<i64: 2, 16, 16, 128>}, {transform_indices = @transform_5, window_bounds = array<i64: 1, 2, 128>}]} {
    %c0 = arith.constant 0 : index
    %c0_0 = arith.constant 0 : index
    %c0_1 = arith.constant 0 : index
    %c0_2 = arith.constant 0 : index
    %0 = vector.load %arg3[%c0, %c0_0, %c0_1, %c0_2] : memref<2x16x16x128xf32, #tpu.memory_space<vmem>>, vector<2x16x16x128xf32>
    %c0_3 = arith.constant 0 : index
    %c0_4 = arith.constant 0 : index
    %1 = vector.load %arg1[%c0_3, %c0_4] : memref<1x128xf32, #tpu.memory_space<vmem>>, vector<1x128xf32>
    %2 = vector.shape_cast %1 : vector<1x128xf32> to vector<1x1x1x128xf32>
    %3 = vector.broadcast %2 : vector<1x1x1x128xf32> to vector<2x16x16x128xf32>
    %4 = arith.mulf %0, %3 : vector<2x16x16x128xf32>
    %c0_5 = arith.constant 0 : index
    %c0_6 = arith.constant 0 : index
    %5 = vector.load %arg2[%c0_5, %c0_6] : memref<1x128xf32, #tpu.memory_space<vmem>>, vector<1x128xf32>
    %6 = vector.shape_cast %5 : vector<1x128xf32> to vector<1x1x1x128xf32>
    %7 = vector.broadcast %6 : vector<1x1x1x128xf32> to vector<2x16x16x128xf32>
    %8 = arith.addf %4, %7 : vector<2x16x16x128xf32>
    %cst = arith.constant 0.000000e+00 : f32
    %9 = vector.broadcast %cst : f32 to vector<2x16x16x128xf32>
    %10 = arith.maximumf %8, %9 : vector<2x16x16x128xf32>
    %c0_7 = arith.constant 0 : index
    %c1 = arith.constant 1 : index
    %c1_8 = arith.constant 1 : index
    %c0_9 = arith.constant 0 : index
    %11 = vector.load %arg7[%c0_7, %c1, %c1_8, %c0_9] : memref<2x18x18x128xf32, #tpu.memory_space<vmem>>, vector<2x16x16x128xf32>
    tpu.vector_store %arg7[%c0_7, %c1, %c1_8, %c0_9], %10 {strides = array<i32>} : memref<2x18x18x128xf32, #tpu.memory_space<vmem>>, vector<2x16x16x128xf32>,
    %cst_10 = arith.constant 0.000000e+00 : f32
    %12 = vector.broadcast %cst_10 : f32 to vector<2x1x18x128xf32>
    %cst_11 = arith.constant 0.000000e+00 : f32
    %13 = vector.broadcast %cst_11 : f32 to vector<2x16x1x128xf32>
    %c0_12 = arith.constant 0 : index
    %c0_13 = arith.constant 0 : index
    %c0_14 = arith.constant 0 : index
    %c0_15 = arith.constant 0 : index
    %14 = vector.load %arg7[%c0_12, %c0_13, %c0_14, %c0_15] : memref<2x18x18x128xf32, #tpu.memory_space<vmem>>, vector<2x1x18x128xf32>
    tpu.vector_store %arg7[%c0_12, %c0_13, %c0_14, %c0_15], %12 {strides = array<i32>} : memref<2x18x18x128xf32, #tpu.memory_space<vmem>>, vector<2x1x18x128xf32>,
    %c0_16 = arith.constant 0 : index
    %c17 = arith.constant 17 : index
    %c0_17 = arith.constant 0 : index
    %c0_18 = arith.constant 0 : index
    %15 = vector.load %arg7[%c0_16, %c17, %c0_17, %c0_18] : memref<2x18x18x128xf32, #tpu.memory_space<vmem>>, vector<2x1x18x128xf32>
    tpu.vector_store %arg7[%c0_16, %c17, %c0_17, %c0_18], %12 {strides = array<i32>} : memref<2x18x18x128xf32, #tpu.memory_space<vmem>>, vector<2x1x18x128xf32>,
    %c0_19 = arith.constant 0 : index
    %c1_20 = arith.constant 1 : index
    %c0_21 = arith.constant 0 : index
    %c0_22 = arith.constant 0 : index
    %16 = vector.load %arg7[%c0_19, %c1_20, %c0_21, %c0_22] : memref<2x18x18x128xf32, #tpu.memory_space<vmem>>, vector<2x16x1x128xf32>
    tpu.vector_store %arg7[%c0_19, %c1_20, %c0_21, %c0_22], %13 {strides = array<i32>} : memref<2x18x18x128xf32, #tpu.memory_space<vmem>>, vector<2x16x1x128xf32>,
    %c0_23 = arith.constant 0 : index
    %c1_24 = arith.constant 1 : index
    %c17_25 = arith.constant 17 : index
    %c0_26 = arith.constant 0 : index
    %17 = vector.load %arg7[%c0_23, %c1_24, %c17_25, %c0_26] : memref<2x18x18x128xf32, #tpu.memory_space<vmem>>, vector<2x16x1x128xf32>
    tpu.vector_store %arg7[%c0_23, %c1_24, %c17_25, %c0_26], %13 {strides = array<i32>} : memref<2x18x18x128xf32, #tpu.memory_space<vmem>>, vector<2x16x1x128xf32>,
    %c0_27 = arith.constant 0 : index
    %c0_28 = arith.constant 0 : index
    %c0_29 = arith.constant 0 : index
    %c0_30 = arith.constant 0 : index
    %18 = vector.load %arg7[%c0_27, %c0_28, %c0_29, %c0_30] : memref<2x18x18x128xf32, #tpu.memory_space<vmem>>, vector<2x16x16x128xf32>
    %19 = vector.shape_cast %18 : vector<2x16x16x128xf32> to vector<512x128xf32>
    %c0_31 = arith.constant 0 : index
    %c0_32 = arith.constant 0 : index
    %20 = vector.load %arg4[%c0_31, %c0_32] : memref<1152x128xf32, #tpu.memory_space<vmem>>, vector<128x128xf32>
    %cst_33 = arith.constant dense<0.000000e+00> : vector<512x128xf32>
    %21 = tpu.matmul %19, %20, %cst_33 {dimension_numbers = #tpu.dot_dimension_numbers<[1], [0], [0], [1], [0, 0, 1, 1], [], []>} : vector<512x128xf32>, vector<128x128xf32>, vector<512x128xf32> -> vector<512x128xf32>
    %c0_34 = arith.constant 0 : index
    %c0_35 = arith.constant 0 : index
    %c1_36 = arith.constant 1 : index
    %c0_37 = arith.constant 0 : index
    %22 = vector.load %arg7[%c0_34, %c0_35, %c1_36, %c0_37] : memref<2x18x18x128xf32, #tpu.memory_space<vmem>>, vector<2x16x16x128xf32>
    %23 = vector.shape_cast %22 : vector<2x16x16x128xf32> to vector<512x128xf32>
    %c128 = arith.constant 128 : index
    %c0_38 = arith.constant 0 : index
    %24 = vector.load %arg4[%c128, %c0_38] : memref<1152x128xf32, #tpu.memory_space<vmem>>, vector<128x128xf32>
    %cst_39 = arith.constant dense<0.000000e+00> : vector<512x128xf32>
    %25 = tpu.matmul %23, %24, %cst_39 {dimension_numbers = #tpu.dot_dimension_numbers<[1], [0], [0], [1], [0, 0, 1, 1], [], []>} : vector<512x128xf32>, vector<128x128xf32>, vector<512x128xf32> -> vector<512x128xf32>
    %26 = arith.addf %21, %25 : vector<512x128xf32>
    %c0_40 = arith.constant 0 : index
    %c0_41 = arith.constant 0 : index
    %c2 = arith.constant 2 : index
    %c0_42 = arith.constant 0 : index
    %27 = vector.load %arg7[%c0_40, %c0_41, %c2, %c0_42] : memref<2x18x18x128xf32, #tpu.memory_space<vmem>>, vector<2x16x16x128xf32>
    %28 = vector.shape_cast %27 : vector<2x16x16x128xf32> to vector<512x128xf32>
    %c256 = arith.constant 256 : index
    %c0_43 = arith.constant 0 : index
    %29 = vector.load %arg4[%c256, %c0_43] : memref<1152x128xf32, #tpu.memory_space<vmem>>, vector<128x128xf32>
    %cst_44 = arith.constant dense<0.000000e+00> : vector<512x128xf32>
    %30 = tpu.matmul %28, %29, %cst_44 {dimension_numbers = #tpu.dot_dimension_numbers<[1], [0], [0], [1], [0, 0, 1, 1], [], []>} : vector<512x128xf32>, vector<128x128xf32>, vector<512x128xf32> -> vector<512x128xf32>
    %31 = arith.addf %26, %30 : vector<512x128xf32>
    %c0_45 = arith.constant 0 : index
    %c1_46 = arith.constant 1 : index
    %c0_47 = arith.constant 0 : index
    %c0_48 = arith.constant 0 : index
    %32 = vector.load %arg7[%c0_45, %c1_46, %c0_47, %c0_48] : memref<2x18x18x128xf32, #tpu.memory_space<vmem>>, vector<2x16x16x128xf32>
    %33 = vector.shape_cast %32 : vector<2x16x16x128xf32> to vector<512x128xf32>
    %c384 = arith.constant 384 : index
    %c0_49 = arith.constant 0 : index
    %34 = vector.load %arg4[%c384, %c0_49] : memref<1152x128xf32, #tpu.memory_space<vmem>>, vector<128x128xf32>
    %cst_50 = arith.constant dense<0.000000e+00> : vector<512x128xf32>
    %35 = tpu.matmul %33, %34, %cst_50 {dimension_numbers = #tpu.dot_dimension_numbers<[1], [0], [0], [1], [0, 0, 1, 1], [], []>} : vector<512x128xf32>, vector<128x128xf32>, vector<512x128xf32> -> vector<512x128xf32>
    %36 = arith.addf %31, %35 : vector<512x128xf32>
    %c0_51 = arith.constant 0 : index
    %c1_52 = arith.constant 1 : index
    %c1_53 = arith.constant 1 : index
    %c0_54 = arith.constant 0 : index
    %37 = vector.load %arg7[%c0_51, %c1_52, %c1_53, %c0_54] : memref<2x18x18x128xf32, #tpu.memory_space<vmem>>, vector<2x16x16x128xf32>
    %38 = vector.shape_cast %37 : vector<2x16x16x128xf32> to vector<512x128xf32>
    %c512 = arith.constant 512 : index
    %c0_55 = arith.constant 0 : index
    %39 = vector.load %arg4[%c512, %c0_55] : memref<1152x128xf32, #tpu.memory_space<vmem>>, vector<128x128xf32>
    %cst_56 = arith.constant dense<0.000000e+00> : vector<512x128xf32>
    %40 = tpu.matmul %38, %39, %cst_56 {dimension_numbers = #tpu.dot_dimension_numbers<[1], [0], [0], [1], [0, 0, 1, 1], [], []>} : vector<512x128xf32>, vector<128x128xf32>, vector<512x128xf32> -> vector<512x128xf32>
    %41 = arith.addf %36, %40 : vector<512x128xf32>
    %c0_57 = arith.constant 0 : index
    %c1_58 = arith.constant 1 : index
    %c2_59 = arith.constant 2 : index
    %c0_60 = arith.constant 0 : index
    %42 = vector.load %arg7[%c0_57, %c1_58, %c2_59, %c0_60] : memref<2x18x18x128xf32, #tpu.memory_space<vmem>>, vector<2x16x16x128xf32>
    %43 = vector.shape_cast %42 : vector<2x16x16x128xf32> to vector<512x128xf32>
    %c640 = arith.constant 640 : index
    %c0_61 = arith.constant 0 : index
    %44 = vector.load %arg4[%c640, %c0_61] : memref<1152x128xf32, #tpu.memory_space<vmem>>, vector<128x128xf32>
    %cst_62 = arith.constant dense<0.000000e+00> : vector<512x128xf32>
    %45 = tpu.matmul %43, %44, %cst_62 {dimension_numbers = #tpu.dot_dimension_numbers<[1], [0], [0], [1], [0, 0, 1, 1], [], []>} : vector<512x128xf32>, vector<128x128xf32>, vector<512x128xf32> -> vector<512x128xf32>
    %46 = arith.addf %41, %45 : vector<512x128xf32>
    %c0_63 = arith.constant 0 : index
    %c2_64 = arith.constant 2 : index
    %c0_65 = arith.constant 0 : index
    %c0_66 = arith.constant 0 : index
    %47 = vector.load %arg7[%c0_63, %c2_64, %c0_65, %c0_66] : memref<2x18x18x128xf32, #tpu.memory_space<vmem>>, vector<2x16x16x128xf32>
    %48 = vector.shape_cast %47 : vector<2x16x16x128xf32> to vector<512x128xf32>
    %c768 = arith.constant 768 : index
    %c0_67 = arith.constant 0 : index
    %49 = vector.load %arg4[%c768, %c0_67] : memref<1152x128xf32, #tpu.memory_space<vmem>>, vector<128x128xf32>
    %cst_68 = arith.constant dense<0.000000e+00> : vector<512x128xf32>
    %50 = tpu.matmul %48, %49, %cst_68 {dimension_numbers = #tpu.dot_dimension_numbers<[1], [0], [0], [1], [0, 0, 1, 1], [], []>} : vector<512x128xf32>, vector<128x128xf32>, vector<512x128xf32> -> vector<512x128xf32>
    %51 = arith.addf %46, %50 : vector<512x128xf32>
    %c0_69 = arith.constant 0 : index
    %c2_70 = arith.constant 2 : index
    %c1_71 = arith.constant 1 : index
    %c0_72 = arith.constant 0 : index
    %52 = vector.load %arg7[%c0_69, %c2_70, %c1_71, %c0_72] : memref<2x18x18x128xf32, #tpu.memory_space<vmem>>, vector<2x16x16x128xf32>
    %53 = vector.shape_cast %52 : vector<2x16x16x128xf32> to vector<512x128xf32>
    %c896 = arith.constant 896 : index
    %c0_73 = arith.constant 0 : index
    %54 = vector.load %arg4[%c896, %c0_73] : memref<1152x128xf32, #tpu.memory_space<vmem>>, vector<128x128xf32>
    %cst_74 = arith.constant dense<0.000000e+00> : vector<512x128xf32>
    %55 = tpu.matmul %53, %54, %cst_74 {dimension_numbers = #tpu.dot_dimension_numbers<[1], [0], [0], [1], [0, 0, 1, 1], [], []>} : vector<512x128xf32>, vector<128x128xf32>, vector<512x128xf32> -> vector<512x128xf32>
    %56 = arith.addf %51, %55 : vector<512x128xf32>
    %c0_75 = arith.constant 0 : index
    %c2_76 = arith.constant 2 : index
    %c2_77 = arith.constant 2 : index
    %c0_78 = arith.constant 0 : index
    %57 = vector.load %arg7[%c0_75, %c2_76, %c2_77, %c0_78] : memref<2x18x18x128xf32, #tpu.memory_space<vmem>>, vector<2x16x16x128xf32>
    %58 = vector.shape_cast %57 : vector<2x16x16x128xf32> to vector<512x128xf32>
    %c1024 = arith.constant 1024 : index
    %c0_79 = arith.constant 0 : index
    %59 = vector.load %arg4[%c1024, %c0_79] : memref<1152x128xf32, #tpu.memory_space<vmem>>, vector<128x128xf32>
    %cst_80 = arith.constant dense<0.000000e+00> : vector<512x128xf32>
    %60 = tpu.matmul %58, %59, %cst_80 {dimension_numbers = #tpu.dot_dimension_numbers<[1], [0], [0], [1], [0, 0, 1, 1], [], []>} : vector<512x128xf32>, vector<128x128xf32>, vector<512x128xf32> -> vector<512x128xf32>
    %61 = arith.addf %56, %60 : vector<512x128xf32>
    %62 = vector.shape_cast %61 : vector<512x128xf32> to vector<2x16x16x128xf32>
    %c0_81 = arith.constant 0 : index
    %c0_82 = arith.constant 0 : index
    %c0_83 = arith.constant 0 : index
    %c0_84 = arith.constant 0 : index
    %63 = vector.load %arg5[%c0_81, %c0_82, %c0_83, %c0_84] : memref<2x16x16x128xf32, #tpu.memory_space<vmem>>, vector<2x16x16x128xf32>
    tpu.vector_store %arg5[%c0_81, %c0_82, %c0_83, %c0_84], %62 {strides = array<i32>} : memref<2x16x16x128xf32, #tpu.memory_space<vmem>>, vector<2x16x16x128xf32>,
    %cst_85 = arith.constant dense<0.000000e+00> : vector<128xf32>
    %64 = vector.multi_reduction <add>, %61, %cst_85 [0] : vector<512x128xf32> to vector<128xf32>
    %65 = vector.shape_cast %64 : vector<128xf32> to vector<1x128xf32>
    %66 = arith.mulf %61, %61 : vector<512x128xf32>
    %cst_86 = arith.constant dense<0.000000e+00> : vector<128xf32>
    %67 = vector.multi_reduction <add>, %66, %cst_86 [0] : vector<512x128xf32> to vector<128xf32>
    %68 = vector.shape_cast %67 : vector<128xf32> to vector<1x128xf32>
    %69 = tpu.concatenate %65, %68 in 0 : vector<1x128xf32>, vector<1x128xf32> -> vector<2x128xf32>
    %c0_87 = arith.constant 0 : index
    %c0_88 = arith.constant 0 : index
    %c0_89 = arith.constant 0 : index
    %70 = vector.load %arg6[%c0_87, %c0_88, %c0_89] : memref<1x2x128xf32, #tpu.memory_space<vmem>>, vector<1x2x128xf32>
    %71 = vector.shape_cast %70 : vector<1x2x128xf32> to vector<2x128xf32>
    %72 = vector.shape_cast %69 : vector<2x128xf32> to vector<1x2x128xf32>
    tpu.vector_store %arg6[%c0_87, %c0_88, %c0_89], %72 {strides = array<i32>} : memref<1x2x128xf32, #tpu.memory_space<vmem>>, vector<1x2x128xf32>,
    return
  }
  func.func @transform_0(%arg0: i32) -> (i32, i32) {
    %c0_i32 = arith.constant 0 : i32
    %c0_i32_0 = arith.constant 0 : i32
    %c0_i32_1 = arith.constant 0 : i32
    return %c0_i32, %c0_i32_0 : i32, i32
  }
  func.func @transform_1(%arg0: i32) -> (i32, i32) {
    %c0_i32 = arith.constant 0 : i32
    %c0_i32_0 = arith.constant 0 : i32
    %c0_i32_1 = arith.constant 0 : i32
    return %c0_i32, %c0_i32_0 : i32, i32
  }
  func.func @transform_2(%arg0: i32) -> (i32, i32, i32, i32) {
    %c0_i32 = arith.constant 0 : i32
    %c0_i32_0 = arith.constant 0 : i32
    %c0_i32_1 = arith.constant 0 : i32
    %c0_i32_2 = arith.constant 0 : i32
    return %arg0, %c0_i32, %c0_i32_0, %c0_i32_1 : i32, i32, i32, i32
  }
  func.func @transform_3(%arg0: i32) -> (i32, i32) {
    %c0_i32 = arith.constant 0 : i32
    %c0_i32_0 = arith.constant 0 : i32
    %c0_i32_1 = arith.constant 0 : i32
    return %c0_i32, %c0_i32_0 : i32, i32
  }
  func.func @transform_4(%arg0: i32) -> (i32, i32, i32, i32) {
    %c0_i32 = arith.constant 0 : i32
    %c0_i32_0 = arith.constant 0 : i32
    %c0_i32_1 = arith.constant 0 : i32
    %c0_i32_2 = arith.constant 0 : i32
    return %arg0, %c0_i32, %c0_i32_0, %c0_i32_1 : i32, i32, i32, i32
  }
  func.func @transform_5(%arg0: i32) -> (i32, i32, i32) {
    %c0_i32 = arith.constant 0 : i32
    %c0_i32_0 = arith.constant 0 : i32
    %c0_i32_1 = arith.constant 0 : i32
    return %arg0, %c0_i32, %c0_i32_0 : i32, i32, i32
  }
}

module attributes {stable_mosaic.version = 11 : i64} {
  func.func @conv_stats_kernel(%arg0: i32, %arg1: memref<1x128xf32, #tpu.memory_space<vmem>>, %arg2: memref<1x128xf32, #tpu.memory_space<vmem>>, %arg3: memref<2x16x16x128xf32, #tpu.memory_space<vmem>>, %arg4: memref<1152x128xf32, #tpu.memory_space<vmem>>, %arg5: memref<2x16x16x128xf32, #tpu.memory_space<vmem>>, %arg6: memref<1x2x128xf32, #tpu.memory_space<vmem>>, %arg7: memref<2x18x18x128xf32, #tpu.memory_space<vmem>>) attributes {dimension_semantics = [#tpu.dimension_semantics<parallel>], iteration_bounds = array<i64: 1>, scalar_prefetch = 0 : i64, scratch_operands = 1 : i64, tpu.core_type = #tpu.core_type<tc>, window_params = [{pipeline_mode = #tpu.pipeline_mode<synchronous>, transform_indices = @transform_0, window_bounds = array<i64: 1, 128>}, {pipeline_mode = #tpu.pipeline_mode<synchronous>, transform_indices = @transform_1, window_bounds = array<i64: 1, 128>}, {transform_indices = @transform_2, window_bounds = array<i64: 2, 16, 16, 128>}, {pipeline_mode = #tpu.pipeline_mode<synchronous>, transform_indices = @transform_3, window_bounds = array<i64: 1152, 128>}, {transform_indices = @transform_4, window_bounds = array<i64: 2, 16, 16, 128>}, {transform_indices = @transform_5, window_bounds = array<i64: 1, 2, 128>}]} {
    %c0 = arith.constant 0 : index
    %c0_0 = arith.constant 0 : index
    %c0_1 = arith.constant 0 : index
    %c0_2 = arith.constant 0 : index
    %0 = vector.load %arg3[%c0, %c0_0, %c0_1, %c0_2] : memref<2x16x16x128xf32, #tpu.memory_space<vmem>>, vector<2x16x16x128xf32>
    %c0_3 = arith.constant 0 : index
    %c1 = arith.constant 1 : index
    %c1_4 = arith.constant 1 : index
    %c0_5 = arith.constant 0 : index
    %1 = vector.load %arg7[%c0_3, %c1, %c1_4, %c0_5] : memref<2x18x18x128xf32, #tpu.memory_space<vmem>>, vector<2x16x16x128xf32>
    tpu.vector_store %arg7[%c0_3, %c1, %c1_4, %c0_5], %0 {strides = array<i32>} : memref<2x18x18x128xf32, #tpu.memory_space<vmem>>, vector<2x16x16x128xf32>,
    %cst = arith.constant 0.000000e+00 : f32
    %2 = vector.broadcast %cst : f32 to vector<2x1x18x128xf32>
    %cst_6 = arith.constant 0.000000e+00 : f32
    %3 = vector.broadcast %cst_6 : f32 to vector<2x16x1x128xf32>
    %c0_7 = arith.constant 0 : index
    %c0_8 = arith.constant 0 : index
    %c0_9 = arith.constant 0 : index
    %c0_10 = arith.constant 0 : index
    %4 = vector.load %arg7[%c0_7, %c0_8, %c0_9, %c0_10] : memref<2x18x18x128xf32, #tpu.memory_space<vmem>>, vector<2x1x18x128xf32>
    tpu.vector_store %arg7[%c0_7, %c0_8, %c0_9, %c0_10], %2 {strides = array<i32>} : memref<2x18x18x128xf32, #tpu.memory_space<vmem>>, vector<2x1x18x128xf32>,
    %c0_11 = arith.constant 0 : index
    %c17 = arith.constant 17 : index
    %c0_12 = arith.constant 0 : index
    %c0_13 = arith.constant 0 : index
    %5 = vector.load %arg7[%c0_11, %c17, %c0_12, %c0_13] : memref<2x18x18x128xf32, #tpu.memory_space<vmem>>, vector<2x1x18x128xf32>
    tpu.vector_store %arg7[%c0_11, %c17, %c0_12, %c0_13], %2 {strides = array<i32>} : memref<2x18x18x128xf32, #tpu.memory_space<vmem>>, vector<2x1x18x128xf32>,
    %c0_14 = arith.constant 0 : index
    %c1_15 = arith.constant 1 : index
    %c0_16 = arith.constant 0 : index
    %c0_17 = arith.constant 0 : index
    %6 = vector.load %arg7[%c0_14, %c1_15, %c0_16, %c0_17] : memref<2x18x18x128xf32, #tpu.memory_space<vmem>>, vector<2x16x1x128xf32>
    tpu.vector_store %arg7[%c0_14, %c1_15, %c0_16, %c0_17], %3 {strides = array<i32>} : memref<2x18x18x128xf32, #tpu.memory_space<vmem>>, vector<2x16x1x128xf32>,
    %c0_18 = arith.constant 0 : index
    %c1_19 = arith.constant 1 : index
    %c17_20 = arith.constant 17 : index
    %c0_21 = arith.constant 0 : index
    %7 = vector.load %arg7[%c0_18, %c1_19, %c17_20, %c0_21] : memref<2x18x18x128xf32, #tpu.memory_space<vmem>>, vector<2x16x1x128xf32>
    tpu.vector_store %arg7[%c0_18, %c1_19, %c17_20, %c0_21], %3 {strides = array<i32>} : memref<2x18x18x128xf32, #tpu.memory_space<vmem>>, vector<2x16x1x128xf32>,
    %c0_22 = arith.constant 0 : index
    %c0_23 = arith.constant 0 : index
    %c0_24 = arith.constant 0 : index
    %c0_25 = arith.constant 0 : index
    %8 = vector.load %arg7[%c0_22, %c0_23, %c0_24, %c0_25] : memref<2x18x18x128xf32, #tpu.memory_space<vmem>>, vector<2x16x16x128xf32>
    %9 = vector.shape_cast %8 : vector<2x16x16x128xf32> to vector<512x128xf32>
    %c0_26 = arith.constant 0 : index
    %c0_27 = arith.constant 0 : index
    %10 = vector.load %arg4[%c0_26, %c0_27] : memref<1152x128xf32, #tpu.memory_space<vmem>>, vector<128x128xf32>
    %cst_28 = arith.constant dense<0.000000e+00> : vector<512x128xf32>
    %11 = tpu.matmul %9, %10, %cst_28 {dimension_numbers = #tpu.dot_dimension_numbers<[1], [0], [0], [1], [0, 0, 1, 1], [], []>} : vector<512x128xf32>, vector<128x128xf32>, vector<512x128xf32> -> vector<512x128xf32>
    %c0_29 = arith.constant 0 : index
    %c0_30 = arith.constant 0 : index
    %c1_31 = arith.constant 1 : index
    %c0_32 = arith.constant 0 : index
    %12 = vector.load %arg7[%c0_29, %c0_30, %c1_31, %c0_32] : memref<2x18x18x128xf32, #tpu.memory_space<vmem>>, vector<2x16x16x128xf32>
    %13 = vector.shape_cast %12 : vector<2x16x16x128xf32> to vector<512x128xf32>
    %c128 = arith.constant 128 : index
    %c0_33 = arith.constant 0 : index
    %14 = vector.load %arg4[%c128, %c0_33] : memref<1152x128xf32, #tpu.memory_space<vmem>>, vector<128x128xf32>
    %cst_34 = arith.constant dense<0.000000e+00> : vector<512x128xf32>
    %15 = tpu.matmul %13, %14, %cst_34 {dimension_numbers = #tpu.dot_dimension_numbers<[1], [0], [0], [1], [0, 0, 1, 1], [], []>} : vector<512x128xf32>, vector<128x128xf32>, vector<512x128xf32> -> vector<512x128xf32>
    %16 = arith.addf %11, %15 : vector<512x128xf32>
    %c0_35 = arith.constant 0 : index
    %c0_36 = arith.constant 0 : index
    %c2 = arith.constant 2 : index
    %c0_37 = arith.constant 0 : index
    %17 = vector.load %arg7[%c0_35, %c0_36, %c2, %c0_37] : memref<2x18x18x128xf32, #tpu.memory_space<vmem>>, vector<2x16x16x128xf32>
    %18 = vector.shape_cast %17 : vector<2x16x16x128xf32> to vector<512x128xf32>
    %c256 = arith.constant 256 : index
    %c0_38 = arith.constant 0 : index
    %19 = vector.load %arg4[%c256, %c0_38] : memref<1152x128xf32, #tpu.memory_space<vmem>>, vector<128x128xf32>
    %cst_39 = arith.constant dense<0.000000e+00> : vector<512x128xf32>
    %20 = tpu.matmul %18, %19, %cst_39 {dimension_numbers = #tpu.dot_dimension_numbers<[1], [0], [0], [1], [0, 0, 1, 1], [], []>} : vector<512x128xf32>, vector<128x128xf32>, vector<512x128xf32> -> vector<512x128xf32>
    %21 = arith.addf %16, %20 : vector<512x128xf32>
    %c0_40 = arith.constant 0 : index
    %c1_41 = arith.constant 1 : index
    %c0_42 = arith.constant 0 : index
    %c0_43 = arith.constant 0 : index
    %22 = vector.load %arg7[%c0_40, %c1_41, %c0_42, %c0_43] : memref<2x18x18x128xf32, #tpu.memory_space<vmem>>, vector<2x16x16x128xf32>
    %23 = vector.shape_cast %22 : vector<2x16x16x128xf32> to vector<512x128xf32>
    %c384 = arith.constant 384 : index
    %c0_44 = arith.constant 0 : index
    %24 = vector.load %arg4[%c384, %c0_44] : memref<1152x128xf32, #tpu.memory_space<vmem>>, vector<128x128xf32>
    %cst_45 = arith.constant dense<0.000000e+00> : vector<512x128xf32>
    %25 = tpu.matmul %23, %24, %cst_45 {dimension_numbers = #tpu.dot_dimension_numbers<[1], [0], [0], [1], [0, 0, 1, 1], [], []>} : vector<512x128xf32>, vector<128x128xf32>, vector<512x128xf32> -> vector<512x128xf32>
    %26 = arith.addf %21, %25 : vector<512x128xf32>
    %c0_46 = arith.constant 0 : index
    %c1_47 = arith.constant 1 : index
    %c1_48 = arith.constant 1 : index
    %c0_49 = arith.constant 0 : index
    %27 = vector.load %arg7[%c0_46, %c1_47, %c1_48, %c0_49] : memref<2x18x18x128xf32, #tpu.memory_space<vmem>>, vector<2x16x16x128xf32>
    %28 = vector.shape_cast %27 : vector<2x16x16x128xf32> to vector<512x128xf32>
    %c512 = arith.constant 512 : index
    %c0_50 = arith.constant 0 : index
    %29 = vector.load %arg4[%c512, %c0_50] : memref<1152x128xf32, #tpu.memory_space<vmem>>, vector<128x128xf32>
    %cst_51 = arith.constant dense<0.000000e+00> : vector<512x128xf32>
    %30 = tpu.matmul %28, %29, %cst_51 {dimension_numbers = #tpu.dot_dimension_numbers<[1], [0], [0], [1], [0, 0, 1, 1], [], []>} : vector<512x128xf32>, vector<128x128xf32>, vector<512x128xf32> -> vector<512x128xf32>
    %31 = arith.addf %26, %30 : vector<512x128xf32>
    %c0_52 = arith.constant 0 : index
    %c1_53 = arith.constant 1 : index
    %c2_54 = arith.constant 2 : index
    %c0_55 = arith.constant 0 : index
    %32 = vector.load %arg7[%c0_52, %c1_53, %c2_54, %c0_55] : memref<2x18x18x128xf32, #tpu.memory_space<vmem>>, vector<2x16x16x128xf32>
    %33 = vector.shape_cast %32 : vector<2x16x16x128xf32> to vector<512x128xf32>
    %c640 = arith.constant 640 : index
    %c0_56 = arith.constant 0 : index
    %34 = vector.load %arg4[%c640, %c0_56] : memref<1152x128xf32, #tpu.memory_space<vmem>>, vector<128x128xf32>
    %cst_57 = arith.constant dense<0.000000e+00> : vector<512x128xf32>
    %35 = tpu.matmul %33, %34, %cst_57 {dimension_numbers = #tpu.dot_dimension_numbers<[1], [0], [0], [1], [0, 0, 1, 1], [], []>} : vector<512x128xf32>, vector<128x128xf32>, vector<512x128xf32> -> vector<512x128xf32>
    %36 = arith.addf %31, %35 : vector<512x128xf32>
    %c0_58 = arith.constant 0 : index
    %c2_59 = arith.constant 2 : index
    %c0_60 = arith.constant 0 : index
    %c0_61 = arith.constant 0 : index
    %37 = vector.load %arg7[%c0_58, %c2_59, %c0_60, %c0_61] : memref<2x18x18x128xf32, #tpu.memory_space<vmem>>, vector<2x16x16x128xf32>
    %38 = vector.shape_cast %37 : vector<2x16x16x128xf32> to vector<512x128xf32>
    %c768 = arith.constant 768 : index
    %c0_62 = arith.constant 0 : index
    %39 = vector.load %arg4[%c768, %c0_62] : memref<1152x128xf32, #tpu.memory_space<vmem>>, vector<128x128xf32>
    %cst_63 = arith.constant dense<0.000000e+00> : vector<512x128xf32>
    %40 = tpu.matmul %38, %39, %cst_63 {dimension_numbers = #tpu.dot_dimension_numbers<[1], [0], [0], [1], [0, 0, 1, 1], [], []>} : vector<512x128xf32>, vector<128x128xf32>, vector<512x128xf32> -> vector<512x128xf32>
    %41 = arith.addf %36, %40 : vector<512x128xf32>
    %c0_64 = arith.constant 0 : index
    %c2_65 = arith.constant 2 : index
    %c1_66 = arith.constant 1 : index
    %c0_67 = arith.constant 0 : index
    %42 = vector.load %arg7[%c0_64, %c2_65, %c1_66, %c0_67] : memref<2x18x18x128xf32, #tpu.memory_space<vmem>>, vector<2x16x16x128xf32>
    %43 = vector.shape_cast %42 : vector<2x16x16x128xf32> to vector<512x128xf32>
    %c896 = arith.constant 896 : index
    %c0_68 = arith.constant 0 : index
    %44 = vector.load %arg4[%c896, %c0_68] : memref<1152x128xf32, #tpu.memory_space<vmem>>, vector<128x128xf32>
    %cst_69 = arith.constant dense<0.000000e+00> : vector<512x128xf32>
    %45 = tpu.matmul %43, %44, %cst_69 {dimension_numbers = #tpu.dot_dimension_numbers<[1], [0], [0], [1], [0, 0, 1, 1], [], []>} : vector<512x128xf32>, vector<128x128xf32>, vector<512x128xf32> -> vector<512x128xf32>
    %46 = arith.addf %41, %45 : vector<512x128xf32>
    %c0_70 = arith.constant 0 : index
    %c2_71 = arith.constant 2 : index
    %c2_72 = arith.constant 2 : index
    %c0_73 = arith.constant 0 : index
    %47 = vector.load %arg7[%c0_70, %c2_71, %c2_72, %c0_73] : memref<2x18x18x128xf32, #tpu.memory_space<vmem>>, vector<2x16x16x128xf32>
    %48 = vector.shape_cast %47 : vector<2x16x16x128xf32> to vector<512x128xf32>
    %c1024 = arith.constant 1024 : index
    %c0_74 = arith.constant 0 : index
    %49 = vector.load %arg4[%c1024, %c0_74] : memref<1152x128xf32, #tpu.memory_space<vmem>>, vector<128x128xf32>
    %cst_75 = arith.constant dense<0.000000e+00> : vector<512x128xf32>
    %50 = tpu.matmul %48, %49, %cst_75 {dimension_numbers = #tpu.dot_dimension_numbers<[1], [0], [0], [1], [0, 0, 1, 1], [], []>} : vector<512x128xf32>, vector<128x128xf32>, vector<512x128xf32> -> vector<512x128xf32>
    %51 = arith.addf %46, %50 : vector<512x128xf32>
    %52 = vector.shape_cast %51 : vector<512x128xf32> to vector<2x16x16x128xf32>
    %c0_76 = arith.constant 0 : index
    %c0_77 = arith.constant 0 : index
    %c0_78 = arith.constant 0 : index
    %c0_79 = arith.constant 0 : index
    %53 = vector.load %arg5[%c0_76, %c0_77, %c0_78, %c0_79] : memref<2x16x16x128xf32, #tpu.memory_space<vmem>>, vector<2x16x16x128xf32>
    tpu.vector_store %arg5[%c0_76, %c0_77, %c0_78, %c0_79], %52 {strides = array<i32>} : memref<2x16x16x128xf32, #tpu.memory_space<vmem>>, vector<2x16x16x128xf32>,
    %cst_80 = arith.constant dense<0.000000e+00> : vector<128xf32>
    %54 = vector.multi_reduction <add>, %51, %cst_80 [0] : vector<512x128xf32> to vector<128xf32>
    %55 = vector.shape_cast %54 : vector<128xf32> to vector<1x128xf32>
    %56 = arith.mulf %51, %51 : vector<512x128xf32>
    %cst_81 = arith.constant dense<0.000000e+00> : vector<128xf32>
    %57 = vector.multi_reduction <add>, %56, %cst_81 [0] : vector<512x128xf32> to vector<128xf32>
    %58 = vector.shape_cast %57 : vector<128xf32> to vector<1x128xf32>
    %59 = tpu.concatenate %55, %58 in 0 : vector<1x128xf32>, vector<1x128xf32> -> vector<2x128xf32>
    %c0_82 = arith.constant 0 : index
    %c0_83 = arith.constant 0 : index
    %c0_84 = arith.constant 0 : index
    %60 = vector.load %arg6[%c0_82, %c0_83, %c0_84] : memref<1x2x128xf32, #tpu.memory_space<vmem>>, vector<1x2x128xf32>
    %61 = vector.shape_cast %60 : vector<1x2x128xf32> to vector<2x128xf32>
    %62 = vector.shape_cast %59 : vector<2x128xf32> to vector<1x2x128xf32>
    tpu.vector_store %arg6[%c0_82, %c0_83, %c0_84], %62 {strides = array<i32>} : memref<1x2x128xf32, #tpu.memory_space<vmem>>, vector<1x2x128xf32>,
    return
  }
  func.func @transform_0(%arg0: i32) -> (i32, i32) {
    %c0_i32 = arith.constant 0 : i32
    %c0_i32_0 = arith.constant 0 : i32
    %c0_i32_1 = arith.constant 0 : i32
    return %c0_i32, %c0_i32_0 : i32, i32
  }
  func.func @transform_1(%arg0: i32) -> (i32, i32) {
    %c0_i32 = arith.constant 0 : i32
    %c0_i32_0 = arith.constant 0 : i32
    %c0_i32_1 = arith.constant 0 : i32
    return %c0_i32, %c0_i32_0 : i32, i32
  }
  func.func @transform_2(%arg0: i32) -> (i32, i32, i32, i32) {
    %c0_i32 = arith.constant 0 : i32
    %c0_i32_0 = arith.constant 0 : i32
    %c0_i32_1 = arith.constant 0 : i32
    %c0_i32_2 = arith.constant 0 : i32
    return %arg0, %c0_i32, %c0_i32_0, %c0_i32_1 : i32, i32, i32, i32
  }
  func.func @transform_3(%arg0: i32) -> (i32, i32) {
    %c0_i32 = arith.constant 0 : i32
    %c0_i32_0 = arith.constant 0 : i32
    %c0_i32_1 = arith.constant 0 : i32
    return %c0_i32, %c0_i32_0 : i32, i32
  }
  func.func @transform_4(%arg0: i32) -> (i32, i32, i32, i32) {
    %c0_i32 = arith.constant 0 : i32
    %c0_i32_0 = arith.constant 0 : i32
    %c0_i32_1 = arith.constant 0 : i32
    %c0_i32_2 = arith.constant 0 : i32
    return %arg0, %c0_i32, %c0_i32_0, %c0_i32_1 : i32, i32, i32, i32
  }
  func.func @transform_5(%arg0: i32) -> (i32, i32, i32) {
    %c0_i32 = arith.constant 0 : i32
    %c0_i32_0 = arith.constant 0 : i32
    %c0_i32_1 = arith.constant 0 : i32
    return %arg0, %c0_i32, %c0_i32_0 : i32, i32, i32
  }
}

</mosaic_0001>

<llo_original>
// kernel: residual_block.5
$region0: #{residual_block.5}
  #allocation0 [shape = 'u32[]', space=smem, size = 0x4, offset = 0x4, fixed_abs, tag = 'smem constant byte address 0x4 - core index']
  #allocation1 [shape = 'u32[144,128]{1,0:T(1,128)}', space=vmem, size = 0x12000, scoped, tag = 'internal scratch']
  %s0 = inlined_call_operand.vmem [shape: f32[1,128], index: 0, kind: input, shape index: {}]
  %s1 = inlined_call_operand.vmem [shape: f32[1,128], index: 1, kind: input, shape index: {}]
  %s2 = inlined_call_operand.vmem [shape: f32[2,16,16,128], index: 2, kind: input, shape index: {}]
  %s3 = inlined_call_operand.vmem [shape: f32[2,16,16,128], index: 3, kind: input, shape index: {}]
  %s4 = inlined_call_operand.vmem [shape: f32[2,16,16,128], index: 4, kind: output, shape index: {}]
  %s5 = sld [smem:[#allocation0]]
  $region26: #{residual_block.5} parent=0
    _
  %s7 = ssub.s32 1, %s5
  %s8 = scalar_select 0, %s7, %s5
  // Predicated region
  $region2: #{residual_block.5} parent=0 // pred_check
    _
  $region3: #{residual_block.5} parent=0 // pred_check_branch
    %10 = sbr.rel (0) target = $region5
  $region4: #{residual_block.5} parent=0 // pred_region
    _
  $region5: #{residual_block.5} parent=0 // pred_fallthru
    _
  // Predicated region
  $region6: #{residual_block.5} parent=0 // pred_check
    _
  $region7: #{residual_block.5} parent=0 // pred_check_branch
    %12 = sbr.rel (0) target = $region9
  $region8: #{residual_block.5} parent=0 // pred_region
    _
  $region9: #{residual_block.5} parent=0 // pred_fallthru
    _
  // Predicated region
  $region10: #{residual_block.5} parent=0 // pred_check
    _
  $region11: #{residual_block.5} parent=0 // pred_check_branch
    %14 = sbr.rel (0) target = $region13
  $region12: #{residual_block.5} parent=0 // pred_region
    _
  $region13: #{residual_block.5} parent=0 // pred_fallthru
    _
  // Predicated region
  $region14: #{residual_block.5} parent=0 // pred_check
    _
  $region15: #{residual_block.5} parent=0 // pred_check_branch
    %16 = sbr.rel (0) target = $region17
  $region16: #{residual_block.5} parent=0 // pred_region
    _
  $region17: #{residual_block.5} parent=0 // pred_fallthru
    _
  %v17 = vld [vmem:[%s2] sm:$0xff]
  %v18 = vld [vmem:[%s2 + $0x8] sm:$0xff]
  %v19 = vld [vmem:[%s2 + $0x10] sm:$0xff]
  %v20 = vld [vmem:[%s2 + $0x18] sm:$0xff]
  %v21 = vld [vmem:[%s2 + $0x20] sm:$0xff]
  %v22 = vld [vmem:[%s2 + $0x28] sm:$0xff]
  %v23 = vld [vmem:[%s2 + $0x30] sm:$0xff]
  %v24 = vld [vmem:[%s2 + $0x38] sm:$0xff]
  %v25 = vld [vmem:[%s2 + $0x40] sm:$0xff]
  %v26 = vld [vmem:[%s2 + $0x48] sm:$0xff]
  %v27 = vld [vmem:[%s2 + $0x50] sm:$0xff]
  %v28 = vld [vmem:[%s2 + $0x58] sm:$0xff]
  %v29 = vld [vmem:[%s2 + $0x60] sm:$0xff]
  %v30 = vld [vmem:[%s2 + $0x68] sm:$0xff]
  %v31 = vld [vmem:[%s2 + $0x70] sm:$0xff]
  %v32 = vld [vmem:[%s2 + $0x78] sm:$0xff]
  %v33 = vld [vmem:[%s2 + $0x80] sm:$0xff]
  %v34 = vld [vmem:[%s2 + $0x88] sm:$0xff]
  %v35 = vld [vmem:[%s2 + $0x90] sm:$0xff]
  %v36 = vld [vmem:[%s2 + $0x98] sm:$0xff]
  %v37 = vld [vmem:[%s2 + $0xa0] sm:$0xff]
  %v38 = vld [vmem:[%s2 + $0xa8] sm:$0xff]
  %v39 = vld [vmem:[%s2 + $0xb0] sm:$0xff]
  %v40 = vld [vmem:[%s2 + $0xb8] sm:$0xff]
  %v41 = vld [vmem:[%s2 + $0xc0] sm:$0xff]
  %v42 = vld [vmem:[%s2 + $0xc8] sm:$0xff]
  %v43 = vld [vmem:[%s2 + $0xd0] sm:$0xff]
  %v44 = vld [vmem:[%s2 + $0xd8] sm:$0xff]
  %v45 = vld [vmem:[%s2 + $0xe0] sm:$0xff]
  %v46 = vld [vmem:[%s2 + $0xe8] sm:$0xff]
  %v47 = vld [vmem:[%s2 + $0xf0] sm:$0xff]
  %v48 = vld [vmem:[%s2 + $0xf8] sm:$0xff]
  %v49 = vld [vmem:[%s2 + $0x100] sm:$0xff]
  %v50 = vld [vmem:[%s2 + $0x108] sm:$0xff]
  %v51 = vld [vmem:[%s2 + $0x110] sm:$0xff]
  %v52 = vld [vmem:[%s2 + $0x118] sm:$0xff]
  %v53 = vld [vmem:[%s2 + $0x120] sm:$0xff]
  %v54 = vld [vmem:[%s2 + $0x128] sm:$0xff]
  %v55 = vld [vmem:[%s2 + $0x130] sm:$0xff]
  %v56 = vld [vmem:[%s2 + $0x138] sm:$0xff]
  %v57 = vld [vmem:[%s2 + $0x140] sm:$0xff]
  %v58 = vld [vmem:[%s2 + $0x148] sm:$0xff]
  %v59 = vld [vmem:[%s2 + $0x150] sm:$0xff]
  %v60 = vld [vmem:[%s2 + $0x158] sm:$0xff]
  %v61 = vld [vmem:[%s2 + $0x160] sm:$0xff]
  %v62 = vld [vmem:[%s2 + $0x168] sm:$0xff]
  %v63 = vld [vmem:[%s2 + $0x170] sm:$0xff]
  %v64 = vld [vmem:[%s2 + $0x178] sm:$0xff]
  %v65 = vld [vmem:[%s2 + $0x180] sm:$0xff]
  %v66 = vld [vmem:[%s2 + $0x188] sm:$0xff]
  %v67 = vld [vmem:[%s2 + $0x190] sm:$0xff]
  %v68 = vld [vmem:[%s2 + $0x198] sm:$0xff]
  %v69 = vld [vmem:[%s2 + $0x1a0] sm:$0xff]
  %v70 = vld [vmem:[%s2 + $0x1a8] sm:$0xff]
  %v71 = vld [vmem:[%s2 + $0x1b0] sm:$0xff]
  %v72 = vld [vmem:[%s2 + $0x1b8] sm:$0xff]
  %v73 = vld [vmem:[%s2 + $0x1c0] sm:$0xff]
  %v74 = vld [vmem:[%s2 + $0x1c8] sm:$0xff]
  %v75 = vld [vmem:[%s2 + $0x1d0] sm:$0xff]
  %v76 = vld [vmem:[%s2 + $0x1d8] sm:$0xff]
  %v77 = vld [vmem:[%s2 + $0x1e0] sm:$0xff]
  %v78 = vld [vmem:[%s2 + $0x1e8] sm:$0xff]
  %v79 = vld [vmem:[%s2 + $0x1f0] sm:$0xff]
  %v80 = vld [vmem:[%s2 + $0x1f8] sm:$0xff]
  %v81 = vld [vmem:[%s0] sm:$0x1]
  %v83 = vlaneseq
  %v84 = vshrl.u32 %v83, 7
  %v85 = vsub.s32 0, %v84
  %v86 = vrot.slane %v81, %v85
  %v88 = vmul.f32 %v17, %v86
  %v89 = vmul.f32 %v18, %v86
  %v90 = vmul.f32 %v19, %v86
  %v91 = vmul.f32 %v20, %v86
  %v92 = vmul.f32 %v21, %v86
  %v93 = vmul.f32 %v22, %v86
  %v94 = vmul.f32 %v23, %v86
  %v95 = vmul.f32 %v24, %v86
  %v96 = vmul.f32 %v25, %v86
  %v97 = vmul.f32 %v26, %v86
  %v98 = vmul.f32 %v27, %v86
  %v99 = vmul.f32 %v28, %v86
  %v100 = vmul.f32 %v29, %v86
  %v101 = vmul.f32 %v30, %v86
  %v102 = vmul.f32 %v31, %v86
  %v103 = vmul.f32 %v32, %v86
  %v104 = vmul.f32 %v33, %v86
  %v105 = vmul.f32 %v34, %v86
  %v106 = vmul.f32 %v35, %v86
  %v107 = vmul.f32 %v36, %v86
  %v108 = vmul.f32 %v37, %v86
  %v109 = vmul.f32 %v38, %v86
  %v110 = vmul.f32 %v39, %v86
  %v111 = vmul.f32 %v40, %v86
  %v112 = vmul.f32 %v41, %v86
  %v113 = vmul.f32 %v42, %v86
  %v114 = vmul.f32 %v43, %v86
  %v115 = vmul.f32 %v44, %v86
  %v116 = vmul.f32 %v45, %v86
  %v117 = vmul.f32 %v46, %v86
  %v118 = vmul.f32 %v47, %v86
  %v119 = vmul.f32 %v48, %v86
  %v120 = vmul.f32 %v49, %v86
  %v121 = vmul.f32 %v50, %v86
  %v122 = vmul.f32 %v51, %v86
  %v123 = vmul.f32 %v52, %v86
  %v124 = vmul.f32 %v53, %v86
  %v125 = vmul.f32 %v54, %v86
  %v126 = vmul.f32 %v55, %v86
  %v127 = vmul.f32 %v56, %v86
  %v128 = vmul.f32 %v57, %v86
  %v129 = vmul.f32 %v58, %v86
  %v130 = vmul.f32 %v59, %v86
  %v131 = vmul.f32 %v60, %v86
  %v132 = vmul.f32 %v61, %v86
  %v133 = vmul.f32 %v62, %v86
  %v134 = vmul.f32 %v63, %v86
  %v135 = vmul.f32 %v64, %v86
  %v136 = vmul.f32 %v65, %v86
  %v137 = vmul.f32 %v66, %v86
  %v138 = vmul.f32 %v67, %v86
  %v139 = vmul.f32 %v68, %v86
  %v140 = vmul.f32 %v69, %v86
  %v141 = vmul.f32 %v70, %v86
  %v142 = vmul.f32 %v71, %v86
  %v143 = vmul.f32 %v72, %v86
  %v144 = vmul.f32 %v73, %v86
  %v145 = vmul.f32 %v74, %v86
  %v146 = vmul.f32 %v75, %v86
  %v147 = vmul.f32 %v76, %v86
  %v148 = vmul.f32 %v77, %v86
  %v149 = vmul.f32 %v78, %v86
  %v150 = vmul.f32 %v79, %v86
  %v151 = vmul.f32 %v80, %v86
  %v152 = vld [vmem:[%s1] sm:$0x1]
  %v154 = vlaneseq
  %v155 = vshrl.u32 %v154, 7
  %v156 = vsub.s32 0, %v155
  %v157 = vrot.slane %v152, %v156
  %v159 = vadd.f32 %v88, %v157
  %v160 = vadd.f32 %v89, %v157
  %v161 = vadd.f32 %v90, %v157
  %v162 = vadd.f32 %v91, %v157
  %v163 = vadd.f32 %v92, %v157
  %v164 = vadd.f32 %v93, %v157
  %v165 = vadd.f32 %v94, %v157
  %v166 = vadd.f32 %v95, %v157
  %v167 = vadd.f32 %v96, %v157
  %v168 = vadd.f32 %v97, %v157
  %v169 = vadd.f32 %v98, %v157
  %v170 = vadd.f32 %v99, %v157
  %v171 = vadd.f32 %v100, %v157
  %v172 = vadd.f32 %v101, %v157
  %v173 = vadd.f32 %v102, %v157
  %v174 = vadd.f32 %v103, %v157
  %v175 = vadd.f32 %v104, %v157
  %v176 = vadd.f32 %v105, %v157
  %v177 = vadd.f32 %v106, %v157
  %v178 = vadd.f32 %v107, %v157
  %v179 = vadd.f32 %v108, %v157
  %v180 = vadd.f32 %v109, %v157
  %v181 = vadd.f32 %v110, %v157
  %v182 = vadd.f32 %v111, %v157
  %v183 = vadd.f32 %v112, %v157
  %v184 = vadd.f32 %v113, %v157
  %v185 = vadd.f32 %v114, %v157
  %v186 = vadd.f32 %v115, %v157
  %v187 = vadd.f32 %v116, %v157
  %v188 = vadd.f32 %v117, %v157
  %v189 = vadd.f32 %v118, %v157
  %v190 = vadd.f32 %v119, %v157
  %v191 = vadd.f32 %v120, %v157
  %v192 = vadd.f32 %v121, %v157
  %v193 = vadd.f32 %v122, %v157
  %v194 = vadd.f32 %v123, %v157
  %v195 = vadd.f32 %v124, %v157
  %v196 = vadd.f32 %v125, %v157
  %v197 = vadd.f32 %v126, %v157
  %v198 = vadd.f32 %v127, %v157
  %v199 = vadd.f32 %v128, %v157
  %v200 = vadd.f32 %v129, %v157
  %v201 = vadd.f32 %v130, %v157
  %v202 = vadd.f32 %v131, %v157
  %v203 = vadd.f32 %v132, %v157
  %v204 = vadd.f32 %v133, %v157
  %v205 = vadd.f32 %v134, %v157
  %v206 = vadd.f32 %v135, %v157
  %v207 = vadd.f32 %v136, %v157
  %v208 = vadd.f32 %v137, %v157
  %v209 = vadd.f32 %v138, %v157
  %v210 = vadd.f32 %v139, %v157
  %v211 = vadd.f32 %v140, %v157
  %v212 = vadd.f32 %v141, %v157
  %v213 = vadd.f32 %v142, %v157
  %v214 = vadd.f32 %v143, %v157
  %v215 = vadd.f32 %v144, %v157
  %v216 = vadd.f32 %v145, %v157
  %v217 = vadd.f32 %v146, %v157
  %v218 = vadd.f32 %v147, %v157
  %v219 = vadd.f32 %v148, %v157
  %v220 = vadd.f32 %v149, %v157
  %v221 = vadd.f32 %v150, %v157
  %v222 = vadd.f32 %v151, %v157
  %v223 = vld [vmem:[%s3] sm:$0xff]
  %v224 = vld [vmem:[%s3 + $0x8] sm:$0xff]
  %v225 = vld [vmem:[%s3 + $0x10] sm:$0xff]
  %v226 = vld [vmem:[%s3 + $0x18] sm:$0xff]
  %v227 = vld [vmem:[%s3 + $0x20] sm:$0xff]
  %v228 = vld [vmem:[%s3 + $0x28] sm:$0xff]
  %v229 = vld [vmem:[%s3 + $0x30] sm:$0xff]
  %v230 = vld [vmem:[%s3 + $0x38] sm:$0xff]
  %v231 = vld [vmem:[%s3 + $0x40] sm:$0xff]
  %v232 = vld [vmem:[%s3 + $0x48] sm:$0xff]
  %v233 = vld [vmem:[%s3 + $0x50] sm:$0xff]
  %v234 = vld [vmem:[%s3 + $0x58] sm:$0xff]
  %v235 = vld [vmem:[%s3 + $0x60] sm:$0xff]
  %v236 = vld [vmem:[%s3 + $0x68] sm:$0xff]
  %v237 = vld [vmem:[%s3 + $0x70] sm:$0xff]
  %v238 = vld [vmem:[%s3 + $0x78] sm:$0xff]
  %v239 = vld [vmem:[%s3 + $0x80] sm:$0xff]
  %v240 = vld [vmem:[%s3 + $0x88] sm:$0xff]
  %v241 = vld [vmem:[%s3 + $0x90] sm:$0xff]
  %v242 = vld [vmem:[%s3 + $0x98] sm:$0xff]
  %v243 = vld [vmem:[%s3 + $0xa0] sm:$0xff]
  %v244 = vld [vmem:[%s3 + $0xa8] sm:$0xff]
  %v245 = vld [vmem:[%s3 + $0xb0] sm:$0xff]
  %v246 = vld [vmem:[%s3 + $0xb8] sm:$0xff]
  %v247 = vld [vmem:[%s3 + $0xc0] sm:$0xff]
  %v248 = vld [vmem:[%s3 + $0xc8] sm:$0xff]
  %v249 = vld [vmem:[%s3 + $0xd0] sm:$0xff]
  %v250 = vld [vmem:[%s3 + $0xd8] sm:$0xff]
  %v251 = vld [vmem:[%s3 + $0xe0] sm:$0xff]
  %v252 = vld [vmem:[%s3 + $0xe8] sm:$0xff]
  %v253 = vld [vmem:[%s3 + $0xf0] sm:$0xff]
  %v254 = vld [vmem:[%s3 + $0xf8] sm:$0xff]
  %v255 = vld [vmem:[%s3 + $0x100] sm:$0xff]
  %v256 = vld [vmem:[%s3 + $0x108] sm:$0xff]
  %v257 = vld [vmem:[%s3 + $0x110] sm:$0xff]
  %v258 = vld [vmem:[%s3 + $0x118] sm:$0xff]
  %v259 = vld [vmem:[%s3 + $0x120] sm:$0xff]
  %v260 = vld [vmem:[%s3 + $0x128] sm:$0xff]
  %v261 = vld [vmem:[%s3 + $0x130] sm:$0xff]
  %v262 = vld [vmem:[%s3 + $0x138] sm:$0xff]
  %v263 = vld [vmem:[%s3 + $0x140] sm:$0xff]
  %v264 = vld [vmem:[%s3 + $0x148] sm:$0xff]
  %v265 = vld [vmem:[%s3 + $0x150] sm:$0xff]
  %v266 = vld [vmem:[%s3 + $0x158] sm:$0xff]
  %v267 = vld [vmem:[%s3 + $0x160] sm:$0xff]
  %v268 = vld [vmem:[%s3 + $0x168] sm:$0xff]
  %v269 = vld [vmem:[%s3 + $0x170] sm:$0xff]
  %v270 = vld [vmem:[%s3 + $0x178] sm:$0xff]
  %v271 = vld [vmem:[%s3 + $0x180] sm:$0xff]
  %v272 = vld [vmem:[%s3 + $0x188] sm:$0xff]
  %v273 = vld [vmem:[%s3 + $0x190] sm:$0xff]
  %v274 = vld [vmem:[%s3 + $0x198] sm:$0xff]
  %v275 = vld [vmem:[%s3 + $0x1a0] sm:$0xff]
  %v276 = vld [vmem:[%s3 + $0x1a8] sm:$0xff]
  %v277 = vld [vmem:[%s3 + $0x1b0] sm:$0xff]
  %v278 = vld [vmem:[%s3 + $0x1b8] sm:$0xff]
  %v279 = vld [vmem:[%s3 + $0x1c0] sm:$0xff]
  %v280 = vld [vmem:[%s3 + $0x1c8] sm:$0xff]
  %v281 = vld [vmem:[%s3 + $0x1d0] sm:$0xff]
  %v282 = vld [vmem:[%s3 + $0x1d8] sm:$0xff]
  %v283 = vld [vmem:[%s3 + $0x1e0] sm:$0xff]
  %v284 = vld [vmem:[%s3 + $0x1e8] sm:$0xff]
  %v285 = vld [vmem:[%s3 + $0x1f0] sm:$0xff]
  %v286 = vld [vmem:[%s3 + $0x1f8] sm:$0xff]
  %v287 = vadd.f32 %v159, %v223
  %v288 = vadd.f32 %v160, %v224
  %v289 = vadd.f32 %v161, %v225
  %v290 = vadd.f32 %v162, %v226
  %v291 = vadd.f32 %v163, %v227
  %v292 = vadd.f32 %v164, %v228
  %v293 = vadd.f32 %v165, %v229
  %v294 = vadd.f32 %v166, %v230
  %v295 = vadd.f32 %v167, %v231
  %v296 = vadd.f32 %v168, %v232
  %v297 = vadd.f32 %v169, %v233
  %v298 = vadd.f32 %v170, %v234
  %v299 = vadd.f32 %v171, %v235
  %v300 = vadd.f32 %v172, %v236
  %v301 = vadd.f32 %v173, %v237
  %v302 = vadd.f32 %v174, %v238
  %v303 = vadd.f32 %v175, %v239
  %v304 = vadd.f32 %v176, %v240
  %v305 = vadd.f32 %v177, %v241
  %v306 = vadd.f32 %v178, %v242
  %v307 = vadd.f32 %v179, %v243
  %v308 = vadd.f32 %v180, %v244
  %v309 = vadd.f32 %v181, %v245
  %v310 = vadd.f32 %v182, %v246
  %v311 = vadd.f32 %v183, %v247
  %v312 = vadd.f32 %v184, %v248
  %v313 = vadd.f32 %v185, %v249
  %v314 = vadd.f32 %v186, %v250
  %v315 = vadd.f32 %v187, %v251
  %v316 = vadd.f32 %v188, %v252
  %v317 = vadd.f32 %v189, %v253
  %v318 = vadd.f32 %v190, %v254
  %v319 = vadd.f32 %v191, %v255
  %v320 = vadd.f32 %v192, %v256
  %v321 = vadd.f32 %v193, %v257
  %v322 = vadd.f32 %v194, %v258
  %v323 = vadd.f32 %v195, %v259
  %v324 = vadd.f32 %v196, %v260
  %v325 = vadd.f32 %v197, %v261
  %v326 = vadd.f32 %v198, %v262
  %v327 = vadd.f32 %v199, %v263
  %v328 = vadd.f32 %v200, %v264
  %v329 = vadd.f32 %v201, %v265
  %v330 = vadd.f32 %v202, %v266
  %v331 = vadd.f32 %v203, %v267
  %v332 = vadd.f32 %v204, %v268
  %v333 = vadd.f32 %v205, %v269
  %v334 = vadd.f32 %v206, %v270
  %v335 = vadd.f32 %v207, %v271
  %v336 = vadd.f32 %v208, %v272
  %v337 = vadd.f32 %v209, %v273
  %v338 = vadd.f32 %v210, %v274
  %v339 = vadd.f32 %v211, %v275
  %v340 = vadd.f32 %v212, %v276
  %v341 = vadd.f32 %v213, %v277
  %v342 = vadd.f32 %v214, %v278
  %v343 = vadd.f32 %v215, %v279
  %v344 = vadd.f32 %v216, %v280
  %v345 = vadd.f32 %v217, %v281
  %v346 = vadd.f32 %v218, %v282
  %v347 = vadd.f32 %v219, %v283
  %v348 = vadd.f32 %v220, %v284
  %v349 = vadd.f32 %v221, %v285
  %v350 = vadd.f32 %v222, %v286
  %v351 = vmax.f32 %v287, 0.0
  %v352 = vmax.f32 %v288, 0.0
  %v353 = vmax.f32 %v289, 0.0
  %v354 = vmax.f32 %v290, 0.0
  %v355 = vmax.f32 %v291, 0.0
  %v356 = vmax.f32 %v292, 0.0
  %v357 = vmax.f32 %v293, 0.0
  %v358 = vmax.f32 %v294, 0.0
  %v359 = vmax.f32 %v295, 0.0
  %v360 = vmax.f32 %v296, 0.0
  %v361 = vmax.f32 %v297, 0.0
  %v362 = vmax.f32 %v298, 0.0
  %v363 = vmax.f32 %v299, 0.0
  %v364 = vmax.f32 %v300, 0.0
  %v365 = vmax.f32 %v301, 0.0
  %v366 = vmax.f32 %v302, 0.0
  %v367 = vmax.f32 %v303, 0.0
  %v368 = vmax.f32 %v304, 0.0
  %v369 = vmax.f32 %v305, 0.0
  %v370 = vmax.f32 %v306, 0.0
  %v371 = vmax.f32 %v307, 0.0
  %v372 = vmax.f32 %v308, 0.0
  %v373 = vmax.f32 %v309, 0.0
  %v374 = vmax.f32 %v310, 0.0
  %v375 = vmax.f32 %v311, 0.0
  %v376 = vmax.f32 %v312, 0.0
  %v377 = vmax.f32 %v313, 0.0
  %v378 = vmax.f32 %v314, 0.0
  %v379 = vmax.f32 %v315, 0.0
  %v380 = vmax.f32 %v316, 0.0
  %v381 = vmax.f32 %v317, 0.0
  %v382 = vmax.f32 %v318, 0.0
  %v383 = vmax.f32 %v319, 0.0
  %v384 = vmax.f32 %v320, 0.0
  %v385 = vmax.f32 %v321, 0.0
  %v386 = vmax.f32 %v322, 0.0
  %v387 = vmax.f32 %v323, 0.0
  %v388 = vmax.f32 %v324, 0.0
  %v389 = vmax.f32 %v325, 0.0
  %v390 = vmax.f32 %v326, 0.0
  %v391 = vmax.f32 %v327, 0.0
  %v392 = vmax.f32 %v328, 0.0
  %v393 = vmax.f32 %v329, 0.0
  %v394 = vmax.f32 %v330, 0.0
  %v395 = vmax.f32 %v331, 0.0
  %v396 = vmax.f32 %v332, 0.0
  %v397 = vmax.f32 %v333, 0.0
  %v398 = vmax.f32 %v334, 0.0
  %v399 = vmax.f32 %v335, 0.0
  %v400 = vmax.f32 %v336, 0.0
  %v401 = vmax.f32 %v337, 0.0
  %v402 = vmax.f32 %v338, 0.0
  %v403 = vmax.f32 %v339, 0.0
  %v404 = vmax.f32 %v340, 0.0
  %v405 = vmax.f32 %v341, 0.0
  %v406 = vmax.f32 %v342, 0.0
  %v407 = vmax.f32 %v343, 0.0
  %v408 = vmax.f32 %v344, 0.0
  %v409 = vmax.f32 %v345, 0.0
  %v410 = vmax.f32 %v346, 0.0
  %v411 = vmax.f32 %v347, 0.0
  %v412 = vmax.f32 %v348, 0.0
  %v413 = vmax.f32 %v349, 0.0
  %v414 = vmax.f32 %v350, 0.0
  %415 = vst [vmem:[%s4] sm:$0xff] %v351
  %416 = vst [vmem:[%s4 + $0x8] sm:$0xff] %v352
  %417 = vst [vmem:[%s4 + $0x10] sm:$0xff] %v353
  %418 = vst [vmem:[%s4 + $0x18] sm:$0xff] %v354
  %419 = vst [vmem:[%s4 + $0x20] sm:$0xff] %v355
  %420 = vst [vmem:[%s4 + $0x28] sm:$0xff] %v356
  %421 = vst [vmem:[%s4 + $0x30] sm:$0xff] %v357
  %422 = vst [vmem:[%s4 + $0x38] sm:$0xff] %v358
  %423 = vst [vmem:[%s4 + $0x40] sm:$0xff] %v359
  %424 = vst [vmem:[%s4 + $0x48] sm:$0xff] %v360
  %425 = vst [vmem:[%s4 + $0x50] sm:$0xff] %v361
  %426 = vst [vmem:[%s4 + $0x58] sm:$0xff] %v362
  %427 = vst [vmem:[%s4 + $0x60] sm:$0xff] %v363
  %428 = vst [vmem:[%s4 + $0x68] sm:$0xff] %v364
  %429 = vst [vmem:[%s4 + $0x70] sm:$0xff] %v365
  %430 = vst [vmem:[%s4 + $0x78] sm:$0xff] %v366
  %431 = vst [vmem:[%s4 + $0x80] sm:$0xff] %v367
  %432 = vst [vmem:[%s4 + $0x88] sm:$0xff] %v368
  %433 = vst [vmem:[%s4 + $0x90] sm:$0xff] %v369
  %434 = vst [vmem:[%s4 + $0x98] sm:$0xff] %v370
  %435 = vst [vmem:[%s4 + $0xa0] sm:$0xff] %v371
  %436 = vst [vmem:[%s4 + $0xa8] sm:$0xff] %v372
  %437 = vst [vmem:[%s4 + $0xb0] sm:$0xff] %v373
  %438 = vst [vmem:[%s4 + $0xb8] sm:$0xff] %v374
  %439 = vst [vmem:[%s4 + $0xc0] sm:$0xff] %v375
  %440 = vst [vmem:[%s4 + $0xc8] sm:$0xff] %v376
  %441 = vst [vmem:[%s4 + $0xd0] sm:$0xff] %v377
  %442 = vst [vmem:[%s4 + $0xd8] sm:$0xff] %v378
  %443 = vst [vmem:[%s4 + $0xe0] sm:$0xff] %v379
  %444 = vst [vmem:[%s4 + $0xe8] sm:$0xff] %v380
  %445 = vst [vmem:[%s4 + $0xf0] sm:$0xff] %v381
  %446 = vst [vmem:[%s4 + $0xf8] sm:$0xff] %v382
  %447 = vst [vmem:[%s4 + $0x100] sm:$0xff] %v383
  %448 = vst [vmem:[%s4 + $0x108] sm:$0xff] %v384
  %449 = vst [vmem:[%s4 + $0x110] sm:$0xff] %v385
  %450 = vst [vmem:[%s4 + $0x118] sm:$0xff] %v386
  %451 = vst [vmem:[%s4 + $0x120] sm:$0xff] %v387
  %452 = vst [vmem:[%s4 + $0x128] sm:$0xff] %v388
  %453 = vst [vmem:[%s4 + $0x130] sm:$0xff] %v389
  %454 = vst [vmem:[%s4 + $0x138] sm:$0xff] %v390
  %455 = vst [vmem:[%s4 + $0x140] sm:$0xff] %v391
  %456 = vst [vmem:[%s4 + $0x148] sm:$0xff] %v392
  %457 = vst [vmem:[%s4 + $0x150] sm:$0xff] %v393
  %458 = vst [vmem:[%s4 + $0x158] sm:$0xff] %v394
  %459 = vst [vmem:[%s4 + $0x160] sm:$0xff] %v395
  %460 = vst [vmem:[%s4 + $0x168] sm:$0xff] %v396
  %461 = vst [vmem:[%s4 + $0x170] sm:$0xff] %v397
  %462 = vst [vmem:[%s4 + $0x178] sm:$0xff] %v398
  %463 = vst [vmem:[%s4 + $0x180] sm:$0xff] %v399
  %464 = vst [vmem:[%s4 + $0x188] sm:$0xff] %v400
  %465 = vst [vmem:[%s4 + $0x190] sm:$0xff] %v401
  %466 = vst [vmem:[%s4 + $0x198] sm:$0xff] %v402
  %467 = vst [vmem:[%s4 + $0x1a0] sm:$0xff] %v403
  %468 = vst [vmem:[%s4 + $0x1a8] sm:$0xff] %v404
  %469 = vst [vmem:[%s4 + $0x1b0] sm:$0xff] %v405
  %470 = vst [vmem:[%s4 + $0x1b8] sm:$0xff] %v406
  %471 = vst [vmem:[%s4 + $0x1c0] sm:$0xff] %v407
  %472 = vst [vmem:[%s4 + $0x1c8] sm:$0xff] %v408
  %473 = vst [vmem:[%s4 + $0x1d0] sm:$0xff] %v409
  %474 = vst [vmem:[%s4 + $0x1d8] sm:$0xff] %v410
  %475 = vst [vmem:[%s4 + $0x1e0] sm:$0xff] %v411
  %476 = vst [vmem:[%s4 + $0x1e8] sm:$0xff] %v412
  %477 = vst [vmem:[%s4 + $0x1f0] sm:$0xff] %v413
  %478 = vst [vmem:[%s4 + $0x1f8] sm:$0xff] %v414
  // Predicated region
  $region18: #{residual_block.5} parent=0 // pred_check
    _
  $region19: #{residual_block.5} parent=0 // pred_check_branch
    %480 = sbr.rel (0) target = $region21
  $region20: #{residual_block.5} parent=0 // pred_region
    _
  $region21: #{residual_block.5} parent=0 // pred_fallthru
    _
  // Predicated region
  $region22: #{residual_block.5} parent=0 // pred_check
    _
  $region23: #{residual_block.5} parent=0 // pred_check_branch
    %482 = sbr.rel (0) target = $region25
  $region24: #{residual_block.5} parent=0 // pred_region
    _
  $region25: #{residual_block.5} parent=0 // pred_fallthru
    _

// kernel: residual_block.3
$region0: #{residual_block.3}
  #allocation0 [shape = 'u32[]', space=smem, size = 0x4, offset = 0x4, fixed_abs, tag = 'smem constant byte address 0x4 - core index']
  #allocation1 [shape = 'u32[144,128]{1,0:T(1,128)}', space=vmem, size = 0x12000, scoped, tag = 'internal scratch']
  #allocation2 [shape = 'f32[2,18,18,128]{3,2,1,0:T(8,128)}', space=vmem, size = 0x6c000, scoped, tag = 'scratch operand']
  %s0 = inlined_call_operand.vmem [shape: f32[1,128], index: 0, kind: input, shape index: {}]
  %s1 = inlined_call_operand.vmem [shape: f32[1,128], index: 1, kind: input, shape index: {}]
  %s2 = inlined_call_operand.vmem [shape: f32[2,16,16,128], index: 2, kind: input, shape index: {}]
  %s3 = inlined_call_operand.vmem [shape: f32[1152,128], index: 3, kind: input, shape index: {}]
  %s4 = inlined_call_operand.vmem [shape: f32[2,16,16,128], index: 4, kind: output, shape index: {0}]
  %s5 = inlined_call_operand.vmem [shape: f32[1,2,128], index: 5, kind: output, shape index: {1}]
  %6 = xla_tuple %s4, %s5
  %s7 = sld [smem:[#allocation0]]
  $region34: #{residual_block.3} parent=0
    _
  %s9 = ssub.s32 1, %s7
  %s10 = scalar_select 0, %s9, %s7
  // Predicated region
  $region2: #{residual_block.3} parent=0 // pred_check
    _
  $region3: #{residual_block.3} parent=0 // pred_check_branch
    %12 = sbr.rel (0) target = $region5
  $region4: #{residual_block.3} parent=0 // pred_region
    _
  $region5: #{residual_block.3} parent=0 // pred_fallthru
    _
  // Predicated region
  $region6: #{residual_block.3} parent=0 // pred_check
    _
  $region7: #{residual_block.3} parent=0 // pred_check_branch
    %14 = sbr.rel (0) target = $region9
  $region8: #{residual_block.3} parent=0 // pred_region
    _
  $region9: #{residual_block.3} parent=0 // pred_fallthru
    _
  // Predicated region
  $region10: #{residual_block.3} parent=0 // pred_check
    _
  $region11: #{residual_block.3} parent=0 // pred_check_branch
    %16 = sbr.rel (0) target = $region13
  $region12: #{residual_block.3} parent=0 // pred_region
    _
  $region13: #{residual_block.3} parent=0 // pred_fallthru
    _
  // Predicated region
  $region14: #{residual_block.3} parent=0 // pred_check
    _
  $region15: #{residual_block.3} parent=0 // pred_check_branch
    %18 = sbr.rel (0) target = $region17
  $region16: #{residual_block.3} parent=0 // pred_region
    _
  $region17: #{residual_block.3} parent=0 // pred_fallthru
    _
  %v19 = vld [vmem:[%s2] sm:$0xff]
  %v20 = vld [vmem:[%s2 + $0x8] sm:$0xff]
  %v21 = vld [vmem:[%s2 + $0x10] sm:$0xff]
  %v22 = vld [vmem:[%s2 + $0x18] sm:$0xff]
  %v23 = vld [vmem:[%s2 + $0x20] sm:$0xff]
  %v24 = vld [vmem:[%s2 + $0x28] sm:$0xff]
  %v25 = vld [vmem:[%s2 + $0x30] sm:$0xff]
  %v26 = vld [vmem:[%s2 + $0x38] sm:$0xff]
  %v27 = vld [vmem:[%s2 + $0x40] sm:$0xff]
  %v28 = vld [vmem:[%s2 + $0x48] sm:$0xff]
  %v29 = vld [vmem:[%s2 + $0x50] sm:$0xff]
  %v30 = vld [vmem:[%s2 + $0x58] sm:$0xff]
  %v31 = vld [vmem:[%s2 + $0x60] sm:$0xff]
  %v32 = vld [vmem:[%s2 + $0x68] sm:$0xff]
  %v33 = vld [vmem:[%s2 + $0x70] sm:$0xff]
  %v34 = vld [vmem:[%s2 + $0x78] sm:$0xff]
  %v35 = vld [vmem:[%s2 + $0x80] sm:$0xff]
  %v36 = vld [vmem:[%s2 + $0x88] sm:$0xff]
  %v37 = vld [vmem:[%s2 + $0x90] sm:$0xff]
  %v38 = vld [vmem:[%s2 + $0x98] sm:$0xff]
  %v39 = vld [vmem:[%s2 + $0xa0] sm:$0xff]
  %v40 = vld [vmem:[%s2 + $0xa8] sm:$0xff]
  %v41 = vld [vmem:[%s2 + $0xb0] sm:$0xff]
  %v42 = vld [vmem:[%s2 + $0xb8] sm:$0xff]
  %v43 = vld [vmem:[%s2 + $0xc0] sm:$0xff]
  %v44 = vld [vmem:[%s2 + $0xc8] sm:$0xff]
  %v45 = vld [vmem:[%s2 + $0xd0] sm:$0xff]
  %v46 = vld [vmem:[%s2 + $0xd8] sm:$0xff]
  %v47 = vld [vmem:[%s2 + $0xe0] sm:$0xff]
  %v48 = vld [vmem:[%s2 + $0xe8] sm:$0xff]
  %v49 = vld [vmem:[%s2 + $0xf0] sm:$0xff]
  %v50 = vld [vmem:[%s2 + $0xf8] sm:$0xff]
  %v51 = vld [vmem:[%s2 + $0x100] sm:$0xff]
  %v52 = vld [vmem:[%s2 + $0x108] sm:$0xff]
  %v53 = vld [vmem:[%s2 + $0x110] sm:$0xff]
  %v54 = vld [vmem:[%s2 + $0x118] sm:$0xff]
  %v55 = vld [vmem:[%s2 + $0x120] sm:$0xff]
  %v56 = vld [vmem:[%s2 + $0x128] sm:$0xff]
  %v57 = vld [vmem:[%s2 + $0x130] sm:$0xff]
  %v58 = vld [vmem:[%s2 + $0x138] sm:$0xff]
  %v59 = vld [vmem:[%s2 + $0x140] sm:$0xff]
  %v60 = vld [vmem:[%s2 + $0x148] sm:$0xff]
  %v61 = vld [vmem:[%s2 + $0x150] sm:$0xff]
  %v62 = vld [vmem:[%s2 + $0x158] sm:$0xff]
  %v63 = vld [vmem:[%s2 + $0x160] sm:$0xff]
  %v64 = vld [vmem:[%s2 + $0x168] sm:$0xff]
  %v65 = vld [vmem:[%s2 + $0x170] sm:$0xff]
  %v66 = vld [vmem:[%s2 + $0x178] sm:$0xff]
  %v67 = vld [vmem:[%s2 + $0x180] sm:$0xff]
  %v68 = vld [vmem:[%s2 + $0x188] sm:$0xff]
  %v69 = vld [vmem:[%s2 + $0x190] sm:$0xff]
  %v70 = vld [vmem:[%s2 + $0x198] sm:$0xff]
  %v71 = vld [vmem:[%s2 + $0x1a0] sm:$0xff]
  %v72 = vld [vmem:[%s2 + $0x1a8] sm:$0xff]
  %v73 = vld [vmem:[%s2 + $0x1b0] sm:$0xff]
  %v74 = vld [vmem:[%s2 + $0x1b8] sm:$0xff]
  %v75 = vld [vmem:[%s2 + $0x1c0] sm:$0xff]
  %v76 = vld [vmem:[%s2 + $0x1c8] sm:$0xff]
  %v77 = vld [vmem:[%s2 + $0x1d0] sm:$0xff]
  %v78 = vld [vmem:[%s2 + $0x1d8] sm:$0xff]
  %v79 = vld [vmem:[%s2 + $0x1e0] sm:$0xff]
  %v80 = vld [vmem:[%s2 + $0x1e8] sm:$0xff]
  %v81 = vld [vmem:[%s2 + $0x1f0] sm:$0xff]
  %v82 = vld [vmem:[%s2 + $0x1f8] sm:$0xff]
  %s83 = scalar_lea.vmem [#allocation2], 24
  %84 = vst [vmem:[%s83 + $0x1] sm:$0xff] %v19
  %85 = vst [vmem:[%s83 + $0x9] sm:$0xff] %v20
  %86 = vst [vmem:[%s83 + $0x19] sm:$0xff] %v21
  %87 = vst [vmem:[%s83 + $0x21] sm:$0xff] %v22
  %88 = vst [vmem:[%s83 + $0x31] sm:$0xff] %v23
  %89 = vst [vmem:[%s83 + $0x39] sm:$0xff] %v24
  %90 = vst [vmem:[%s83 + $0x49] sm:$0xff] %v25
  %91 = vst [vmem:[%s83 + $0x51] sm:$0xff] %v26
  %92 = vst [vmem:[%s83 + $0x61] sm:$0xff] %v27
  %93 = vst [vmem:[%s83 + $0x69] sm:$0xff] %v28
  %94 = vst [vmem:[%s83 + $0x79] sm:$0xff] %v29
  %95 = vst [vmem:[%s83 + $0x81] sm:$0xff] %v30
  %96 = vst [vmem:[%s83 + $0x91] sm:$0xff] %v31
  %97 = vst [vmem:[%s83 + $0x99] sm:$0xff] %v32
  %98 = vst [vmem:[%s83 + $0xa9] sm:$0xff] %v33
  %99 = vst [vmem:[%s83 + $0xb1] sm:$0xff] %v34
  %100 = vst [vmem:[%s83 + $0xc1] sm:$0xff] %v35
  %101 = vst [vmem:[%s83 + $0xc9] sm:$0xff] %v36
  %102 = vst [vmem:[%s83 + $0xd9] sm:$0xff] %v37
  %103 = vst [vmem:[%s83 + $0xe1] sm:$0xff] %v38
  %104 = vst [vmem:[%s83 + $0xf1] sm:$0xff] %v39
  %105 = vst [vmem:[%s83 + $0xf9] sm:$0xff] %v40
  %106 = vst [vmem:[%s83 + $0x109] sm:$0xff] %v41
  %107 = vst [vmem:[%s83 + $0x111] sm:$0xff] %v42
  %108 = vst [vmem:[%s83 + $0x121] sm:$0xff] %v43
  %109 = vst [vmem:[%s83 + $0x129] sm:$0xff] %v44
  %110 = vst [vmem:[%s83 + $0x139] sm:$0xff] %v45
  %111 = vst [vmem:[%s83 + $0x141] sm:$0xff] %v46
  %112 = vst [vmem:[%s83 + $0x151] sm:$0xff] %v47
  %113 = vst [vmem:[%s83 + $0x159] sm:$0xff] %v48
  %114 = vst [vmem:[%s83 + $0x169] sm:$0xff] %v49
  %115 = vst [vmem:[%s83 + $0x171] sm:$0xff] %v50
  %116 = vst [vmem:[%s83 + $0x1b1] sm:$0xff] %v51
  %117 = vst [vmem:[%s83 + $0x1b9] sm:$0xff] %v52
  %118 = vst [vmem:[%s83 + $0x1c9] sm:$0xff] %v53
  %119 = vst [vmem:[%s83 + $0x1d1] sm:$0xff] %v54
  %120 = vst [vmem:[%s83 + $0x1e1] sm:$0xff] %v55
  %121 = vst [vmem:[%s83 + $0x1e9] sm:$0xff] %v56
  %122 = vst [vmem:[%s83 + $0x1f9] sm:$0xff] %v57
  %123 = vst [vmem:[%s83 + $0x201] sm:$0xff] %v58
  %124 = vst [vmem:[%s83 + $0x211] sm:$0xff] %v59
  %125 = vst [vmem:[%s83 + $0x219] sm:$0xff] %v60
  %126 = vst [vmem:[%s83 + $0x229] sm:$0xff] %v61
  %127 = vst [vmem:[%s83 + $0x231] sm:$0xff] %v62
  %128 = vst [vmem:[%s83 + $0x241] sm:$0xff] %v63
  %129 = vst [vmem:[%s83 + $0x249] sm:$0xff] %v64
  %130 = vst [vmem:[%s83 + $0x259] sm:$0xff] %v65
  %131 = vst [vmem:[%s83 + $0x261] sm:$0xff] %v66
  %132 = vst [vmem:[%s83 + $0x271] sm:$0xff] %v67
  %133 = vst [vmem:[%s83 + $0x279] sm:$0xff] %v68
  %134 = vst [vmem:[%s83 + $0x289] sm:$0xff] %v69
  %135 = vst [vmem:[%s83 + $0x291] sm:$0xff] %v70
  %136 = vst [vmem:[%s83 + $0x2a1] sm:$0xff] %v71
  %137 = vst [vmem:[%s83 + $0x2a9] sm:$0xff] %v72
  %138 = vst [vmem:[%s83 + $0x2b9] sm:$0xff] %v73
  %139 = vst [vmem:[%s83 + $0x2c1] sm:$0xff] %v74
  %140 = vst [vmem:[%s83 + $0x2d1] sm:$0xff] %v75
  %141 = vst [vmem:[%s83 + $0x2d9] sm:$0xff] %v76
  %142 = vst [vmem:[%s83 + $0x2e9] sm:$0xff] %v77
  %143 = vst [vmem:[%s83 + $0x2f1] sm:$0xff] %v78
  %144 = vst [vmem:[%s83 + $0x301] sm:$0xff] %v79
  %145 = vst [vmem:[%s83 + $0x309] sm:$0xff] %v80
  %146 = vst [vmem:[%s83 + $0x319] sm:$0xff] %v81
  %147 = vst [vmem:[%s83 + $0x321] sm:$0xff] %v82
  %148 = vst [vmem:[#allocation2] sm:$0xff] 0.0
  %149 = vst [vmem:[#allocation2 + $0x8] sm:$0xff] 0.0
  %150 = vst [vmem:[#allocation2 + $0x10] sm:$0x3] 0.0
  %151 = vst [vmem:[#allocation2 + $0x1b0] sm:$0xff] 0.0
  %152 = vst [vmem:[#allocation2 + $0x1b8] sm:$0xff] 0.0
  %153 = vst [vmem:[#allocation2 + $0x1c0] sm:$0x3] 0.0
  %s154 = scalar_lea.vmem [#allocation2], 408
  %155 = vst [vmem:[%s154] sm:$0xff] 0.0
  %156 = vst [vmem:[%s154 + $0x8] sm:$0xff] 0.0
  %157 = vst [vmem:[%s154 + $0x10] sm:$0x3] 0.0
  %158 = vst [vmem:[%s154 + $0x1b0] sm:$0xff] 0.0
  %159 = vst [vmem:[%s154 + $0x1b8] sm:$0xff] 0.0
  %160 = vst [vmem:[%s154 + $0x1c0] sm:$0x3] 0.0
  %161 = vst [vmem:[%s83] sm:$0x1] 0.0
  %162 = vst [vmem:[%s83 + $0x18] sm:$0x1] 0.0
  %163 = vst [vmem:[%s83 + $0x30] sm:$0x1] 0.0
  %164 = vst [vmem:[%s83 + $0x48] sm:$0x1] 0.0
  %165 = vst [vmem:[%s83 + $0x60] sm:$0x1] 0.0
  %166 = vst [vmem:[%s83 + $0x78] sm:$0x1] 0.0
  %167 = vst [vmem:[%s83 + $0x90] sm:$0x1] 0.0
  %168 = vst [vmem:[%s83 + $0xa8] sm:$0x1] 0.0
  %169 = vst [vmem:[%s83 + $0xc0] sm:$0x1] 0.0
  %170 = vst [vmem:[%s83 + $0xd8] sm:$0x1] 0.0
  %171 = vst [vmem:[%s83 + $0xf0] sm:$0x1] 0.0
  %172 = vst [vmem:[%s83 + $0x108] sm:$0x1] 0.0
  %173 = vst [vmem:[%s83 + $0x120] sm:$0x1] 0.0
  %174 = vst [vmem:[%s83 + $0x138] sm:$0x1] 0.0
  %175 = vst [vmem:[%s83 + $0x150] sm:$0x1] 0.0
  %176 = vst [vmem:[%s83 + $0x168] sm:$0x1] 0.0
  %177 = vst [vmem:[%s83 + $0x1b0] sm:$0x1] 0.0
  %178 = vst [vmem:[%s83 + $0x1c8] sm:$0x1] 0.0
  %179 = vst [vmem:[%s83 + $0x1e0] sm:$0x1] 0.0
  %180 = vst [vmem:[%s83 + $0x1f8] sm:$0x1] 0.0
  %181 = vst [vmem:[%s83 + $0x210] sm:$0x1] 0.0
  %182 = vst [vmem:[%s83 + $0x228] sm:$0x1] 0.0
  %183 = vst [vmem:[%s83 + $0x240] sm:$0x1] 0.0
  %184 = vst [vmem:[%s83 + $0x258] sm:$0x1] 0.0
  %185 = vst [vmem:[%s83 + $0x270] sm:$0x1] 0.0
  %186 = vst [vmem:[%s83 + $0x288] sm:$0x1] 0.0
  %187 = vst [vmem:[%s83 + $0x2a0] sm:$0x1] 0.0
  %188 = vst [vmem:[%s83 + $0x2b8] sm:$0x1] 0.0
  %189 = vst [vmem:[%s83 + $0x2d0] sm:$0x1] 0.0
  %190 = vst [vmem:[%s83 + $0x2e8] sm:$0x1] 0.0
  %191 = vst [vmem:[%s83 + $0x300] sm:$0x1] 0.0
  %192 = vst [vmem:[%s83 + $0x318] sm:$0x1] 0.0
  %193 = vst [vmem:[%s83 + $0x11] sm:$0x1] 0.0
  %194 = vst [vmem:[%s83 + $0x29] sm:$0x1] 0.0
  %195 = vst [vmem:[%s83 + $0x41] sm:$0x1] 0.0
  %196 = vst [vmem:[%s83 + $0x59] sm:$0x1] 0.0
  %197 = vst [vmem:[%s83 + $0x71] sm:$0x1] 0.0
  %198 = vst [vmem:[%s83 + $0x89] sm:$0x1] 0.0
  %199 = vst [vmem:[%s83 + $0xa1] sm:$0x1] 0.0
  %200 = vst [vmem:[%s83 + $0xb9] sm:$0x1] 0.0
  %201 = vst [vmem:[%s83 + $0xd1] sm:$0x1] 0.0
  %202 = vst [vmem:[%s83 + $0xe9] sm:$0x1] 0.0
  %203 = vst [vmem:[%s83 + $0x101] sm:$0x1] 0.0
  %204 = vst [vmem:[%s83 + $0x119] sm:$0x1] 0.0
  %205 = vst [vmem:[%s83 + $0x131] sm:$0x1] 0.0
  %206 = vst [vmem:[%s83 + $0x149] sm:$0x1] 0.0
  %207 = vst [vmem:[%s83 + $0x161] sm:$0x1] 0.0
  %208 = vst [vmem:[%s83 + $0x179] sm:$0x1] 0.0
  %209 = vst [vmem:[%s83 + $0x1c1] sm:$0x1] 0.0
  %210 = vst [vmem:[%s83 + $0x1d9] sm:$0x1] 0.0
  %211 = vst [vmem:[%s83 + $0x1f1] sm:$0x1] 0.0
  %212 = vst [vmem:[%s83 + $0x209] sm:$0x1] 0.0
  %213 = vst [vmem:[%s83 + $0x221] sm:$0x1] 0.0
  %214 = vst [vmem:[%s83 + $0x239] sm:$0x1] 0.0
  %215 = vst [vmem:[%s83 + $0x251] sm:$0x1] 0.0
  %216 = vst [vmem:[%s83 + $0x269] sm:$0x1] 0.0
  %217 = vst [vmem:[%s83 + $0x281] sm:$0x1] 0.0
  %218 = vst [vmem:[%s83 + $0x299] sm:$0x1] 0.0
  %219 = vst [vmem:[%s83 + $0x2b1] sm:$0x1] 0.0
  %220 = vst [vmem:[%s83 + $0x2c9] sm:$0x1] 0.0
  %221 = vst [vmem:[%s83 + $0x2e1] sm:$0x1] 0.0
  %222 = vst [vmem:[%s83 + $0x2f9] sm:$0x1] 0.0
  %223 = vst [vmem:[%s83 + $0x311] sm:$0x1] 0.0
  %224 = vst [vmem:[%s83 + $0x329] sm:$0x1] 0.0
  %v225 = vld [vmem:[#allocation2] sm:$0xff]
  %v226 = vld [vmem:[#allocation2 + $0x8] sm:$0xff]
  %v227 = vld [vmem:[#allocation2 + $0x18] sm:$0xff]
  %v228 = vld [vmem:[#allocation2 + $0x20] sm:$0xff]
  %v229 = vld [vmem:[#allocation2 + $0x30] sm:$0xff]
  %v230 = vld [vmem:[#allocation2 + $0x38] sm:$0xff]
  %v231 = vld [vmem:[#allocation2 + $0x48] sm:$0xff]
  %v232 = vld [vmem:[#allocation2 + $0x50] sm:$0xff]
  %v233 = vld [vmem:[#allocation2 + $0x60] sm:$0xff]
  %v234 = vld [vmem:[#allocation2 + $0x68] sm:$0xff]
  %v235 = vld [vmem:[#allocation2 + $0x78] sm:$0xff]
  %v236 = vld [vmem:[#allocation2 + $0x80] sm:$0xff]
  %v237 = vld [vmem:[#allocation2 + $0x90] sm:$0xff]
  %v238 = vld [vmem:[#allocation2 + $0x98] sm:$0xff]
  %v239 = vld [vmem:[#allocation2 + $0xa8] sm:$0xff]
  %v240 = vld [vmem:[#allocation2 + $0xb0] sm:$0xff]
  %v241 = vld [vmem:[#allocation2 + $0xc0] sm:$0xff]
  %v242 = vld [vmem:[#allocation2 + $0xc8] sm:$0xff]
  %v243 = vld [vmem:[#allocation2 + $0xd8] sm:$0xff]
  %v244 = vld [vmem:[#allocation2 + $0xe0] sm:$0xff]
  %v245 = vld [vmem:[#allocation2 + $0xf0] sm:$0xff]
  %v246 = vld [vmem:[#allocation2 + $0xf8] sm:$0xff]
  %v247 = vld [vmem:[#allocation2 + $0x108] sm:$0xff]
  %v248 = vld [vmem:[#allocation2 + $0x110] sm:$0xff]
  %v249 = vld [vmem:[#allocation2 + $0x120] sm:$0xff]
  %v250 = vld [vmem:[#allocation2 + $0x128] sm:$0xff]
  %v251 = vld [vmem:[#allocation2 + $0x138] sm:$0xff]
  %v252 = vld [vmem:[#allocation2 + $0x140] sm:$0xff]
  %v253 = vld [vmem:[#allocation2 + $0x150] sm:$0xff]
  %v254 = vld [vmem:[#allocation2 + $0x158] sm:$0xff]
  %v255 = vld [vmem:[#allocation2 + $0x168] sm:$0xff]
  %v256 = vld [vmem:[#allocation2 + $0x170] sm:$0xff]
  %v257 = vld [vmem:[#allocation2 + $0x1b0] sm:$0xff]
  %v258 = vld [vmem:[#allocation2 + $0x1b8] sm:$0xff]
  %v259 = vld [vmem:[#allocation2 + $0x1c8] sm:$0xff]
  %v260 = vld [vmem:[#allocation2 + $0x1d0] sm:$0xff]
  %v261 = vld [vmem:[#allocation2 + $0x1e0] sm:$0xff]
  %v262 = vld [vmem:[#allocation2 + $0x1e8] sm:$0xff]
  %v263 = vld [vmem:[#allocation2 + $0x1f8] sm:$0xff]
  %v264 = vld [vmem:[#allocation2 + $0x200] sm:$0xff]
  %v265 = vld [vmem:[#allocation2 + $0x210] sm:$0xff]
  %v266 = vld [vmem:[#allocation2 + $0x218] sm:$0xff]
  %v267 = vld [vmem:[#allocation2 + $0x228] sm:$0xff]
  %v268 = vld [vmem:[#allocation2 + $0x230] sm:$0xff]
  %v269 = vld [vmem:[#allocation2 + $0x240] sm:$0xff]
  %v270 = vld [vmem:[#allocation2 + $0x248] sm:$0xff]
  %v271 = vld [vmem:[#allocation2 + $0x258] sm:$0xff]
  %v272 = vld [vmem:[#allocation2 + $0x260] sm:$0xff]
  %v273 = vld [vmem:[#allocation2 + $0x270] sm:$0xff]
  %v274 = vld [vmem:[#allocation2 + $0x278] sm:$0xff]
  %v275 = vld [vmem:[#allocation2 + $0x288] sm:$0xff]
  %v276 = vld [vmem:[#allocation2 + $0x290] sm:$0xff]
  %v277 = vld [vmem:[#allocation2 + $0x2a0] sm:$0xff]
  %v278 = vld [vmem:[#allocation2 + $0x2a8] sm:$0xff]
  %v279 = vld [vmem:[#allocation2 + $0x2b8] sm:$0xff]
  %v280 = vld [vmem:[#allocation2 + $0x2c0] sm:$0xff]
  %v281 = vld [vmem:[#allocation2 + $0x2d0] sm:$0xff]
  %v282 = vld [vmem:[#allocation2 + $0x2d8] sm:$0xff]
  %v283 = vld [vmem:[#allocation2 + $0x2e8] sm:$0xff]
  %v284 = vld [vmem:[#allocation2 + $0x2f0] sm:$0xff]
  %v285 = vld [vmem:[#allocation2 + $0x300] sm:$0xff]
  %v286 = vld [vmem:[#allocation2 + $0x308] sm:$0xff]
  %v287 = vld [vmem:[#allocation2 + $0x318] sm:$0xff]
  %v288 = vld [vmem:[#allocation2 + $0x320] sm:$0xff]
  %v289 = vld [vmem:[%s3] sm:$0xff]
  %v290 = vld [vmem:[%s3 + $0x8] sm:$0xff]
  %v291 = vld [vmem:[%s3 + $0x10] sm:$0xff]
  %v292 = vld [vmem:[%s3 + $0x18] sm:$0xff]
  %v293 = vld [vmem:[%s3 + $0x20] sm:$0xff]
  %v294 = vld [vmem:[%s3 + $0x28] sm:$0xff]
  %v295 = vld [vmem:[%s3 + $0x30] sm:$0xff]
  %v296 = vld [vmem:[%s3 + $0x38] sm:$0xff]
  %v297 = vld [vmem:[%s3 + $0x40] sm:$0xff]
  %v298 = vld [vmem:[%s3 + $0x48] sm:$0xff]
  %v299 = vld [vmem:[%s3 + $0x50] sm:$0xff]
  %v300 = vld [vmem:[%s3 + $0x58] sm:$0xff]
  %v301 = vld [vmem:[%s3 + $0x60] sm:$0xff]
  %v302 = vld [vmem:[%s3 + $0x68] sm:$0xff]
  %v303 = vld [vmem:[%s3 + $0x70] sm:$0xff]
  %v304 = vld [vmem:[%s3 + $0x78] sm:$0xff]
  %v305 = vld [vmem:[#allocation2 + $0x1] sm:$0xff]
  %v306 = vld [vmem:[#allocation2 + $0x9] sm:$0xff]
  %v307 = vld [vmem:[#allocation2 + $0x19] sm:$0xff]
  %v308 = vld [vmem:[#allocation2 + $0x21] sm:$0xff]
  %v309 = vld [vmem:[#allocation2 + $0x31] sm:$0xff]
  %v310 = vld [vmem:[#allocation2 + $0x39] sm:$0xff]
  %v311 = vld [vmem:[#allocation2 + $0x49] sm:$0xff]
  %v312 = vld [vmem:[#allocation2 + $0x51] sm:$0xff]
  %v313 = vld [vmem:[#allocation2 + $0x61] sm:$0xff]
  %v314 = vld [vmem:[#allocation2 + $0x69] sm:$0xff]
  %v315 = vld [vmem:[#allocation2 + $0x79] sm:$0xff]
  %v316 = vld [vmem:[#allocation2 + $0x81] sm:$0xff]
  %v317 = vld [vmem:[#allocation2 + $0x91] sm:$0xff]
  %v318 = vld [vmem:[#allocation2 + $0x99] sm:$0xff]
  %v319 = vld [vmem:[#allocation2 + $0xa9] sm:$0xff]
  %v320 = vld [vmem:[#allocation2 + $0xb1] sm:$0xff]
  %v321 = vld [vmem:[#allocation2 + $0xc1] sm:$0xff]
  %v322 = vld [vmem:[#allocation2 + $0xc9] sm:$0xff]
  %v323 = vld [vmem:[#allocation2 + $0xd9] sm:$0xff]
  %v324 = vld [vmem:[#allocation2 + $0xe1] sm:$0xff]
  %v325 = vld [vmem:[#allocation2 + $0xf1] sm:$0xff]
  %v326 = vld [vmem:[#allocation2 + $0xf9] sm:$0xff]
  %v327 = vld [vmem:[#allocation2 + $0x109] sm:$0xff]
  %v328 = vld [vmem:[#allocation2 + $0x111] sm:$0xff]
  %v329 = vld [vmem:[#allocation2 + $0x121] sm:$0xff]
  %v330 = vld [vmem:[#allocation2 + $0x129] sm:$0xff]
  %v331 = vld [vmem:[#allocation2 + $0x139] sm:$0xff]
  %v332 = vld [vmem:[#allocation2 + $0x141] sm:$0xff]
  %v333 = vld [vmem:[#allocation2 + $0x151] sm:$0xff]
  %v334 = vld [vmem:[#allocation2 + $0x159] sm:$0xff]
  %v335 = vld [vmem:[#allocation2 + $0x169] sm:$0xff]
  %v336 = vld [vmem:[#allocation2 + $0x171] sm:$0xff]
  %v337 = vld [vmem:[#allocation2 + $0x1b1] sm:$0xff]
  %v338 = vld [vmem:[#allocation2 + $0x1b9] sm:$0xff]
  %v339 = vld [vmem:[#allocation2 + $0x1c9] sm:$0xff]
  %v340 = vld [vmem:[#allocation2 + $0x1d1] sm:$0xff]
  %v341 = vld [vmem:[#allocation2 + $0x1e1] sm:$0xff]
  %v342 = vld [vmem:[#allocation2 + $0x1e9] sm:$0xff]
  %v343 = vld [vmem:[#allocation2 + $0x1f9] sm:$0xff]
  %v344 = vld [vmem:[#allocation2 + $0x201] sm:$0xff]
  %v345 = vld [vmem:[#allocation2 + $0x211] sm:$0xff]
  %v346 = vld [vmem:[#allocation2 + $0x219] sm:$0xff]
  %v347 = vld [vmem:[#allocation2 + $0x229] sm:$0xff]
  %v348 = vld [vmem:[#allocation2 + $0x231] sm:$0xff]
  %v349 = vld [vmem:[#allocation2 + $0x241] sm:$0xff]
  %v350 = vld [vmem:[#allocation2 + $0x249] sm:$0xff]
  %v351 = vld [vmem:[#allocation2 + $0x259] sm:$0xff]
  %v352 = vld [vmem:[#allocation2 + $0x261] sm:$0xff]
  %v353 = vld [vmem:[#allocation2 + $0x271] sm:$0xff]
  %v354 = vld [vmem:[#allocation2 + $0x279] sm:$0xff]
  %v355 = vld [vmem:[#allocation2 + $0x289] sm:$0xff]
  %v356 = vld [vmem:[#allocation2 + $0x291] sm:$0xff]
  %v357 = vld [vmem:[#allocation2 + $0x2a1] sm:$0xff]
  %v358 = vld [vmem:[#allocation2 + $0x2a9] sm:$0xff]
  %v359 = vld [vmem:[#allocation2 + $0x2b9] sm:$0xff]
  %v360 = vld [vmem:[#allocation2 + $0x2c1] sm:$0xff]
  %v361 = vld [vmem:[#allocation2 + $0x2d1] sm:$0xff]
  %v362 = vld [vmem:[#allocation2 + $0x2d9] sm:$0xff]
  %v363 = vld [vmem:[#allocation2 + $0x2e9] sm:$0xff]
  %v364 = vld [vmem:[#allocation2 + $0x2f1] sm:$0xff]
  %v365 = vld [vmem:[#allocation2 + $0x301] sm:$0xff]
  %v366 = vld [vmem:[#allocation2 + $0x309] sm:$0xff]
  %v367 = vld [vmem:[#allocation2 + $0x319] sm:$0xff]
  %v368 = vld [vmem:[#allocation2 + $0x321] sm:$0xff]
  %v369 = vld [vmem:[%s3 + $0x80] sm:$0xff]
  %v370 = vld [vmem:[%s3 + $0x88] sm:$0xff]
  %v371 = vld [vmem:[%s3 + $0x90] sm:$0xff]
  %v372 = vld [vmem:[%s3 + $0x98] sm:$0xff]
  %v373 = vld [vmem:[%s3 + $0xa0] sm:$0xff]
  %v374 = vld [vmem:[%s3 + $0xa8] sm:$0xff]
  %v375 = vld [vmem:[%s3 + $0xb0] sm:$0xff]
  %v376 = vld [vmem:[%s3 + $0xb8] sm:$0xff]
  %v377 = vld [vmem:[%s3 + $0xc0] sm:$0xff]
  %v378 = vld [vmem:[%s3 + $0xc8] sm:$0xff]
  %v379 = vld [vmem:[%s3 + $0xd0] sm:$0xff]
  %v380 = vld [vmem:[%s3 + $0xd8] sm:$0xff]
  %v381 = vld [vmem:[%s3 + $0xe0] sm:$0xff]
  %v382 = vld [vmem:[%s3 + $0xe8] sm:$0xff]
  %v383 = vld [vmem:[%s3 + $0xf0] sm:$0xff]
  %v384 = vld [vmem:[%s3 + $0xf8] sm:$0xff]
  %385 = vmatprep.subr.mxu0 0.0
  %386 = vmatpush1.msra.mxu0 %v384
  %387 = vmatprep.subr.mxu0 0.0
  %388 = vmatpush1.msra.mxu0 %v383
  %389 = vmatprep.subr.mxu0 0.0
  %390 = vmatpush1.msra.mxu0 %v382
  %391 = vmatprep.subr.mxu0 0.0
  %392 = vmatpush1.msra.mxu0 %v381
  %393 = vmatprep.subr.mxu0 0.0
  %394 = vmatpush1.msra.mxu0 %v380
  %395 = vmatprep.subr.mxu0 0.0
  %396 = vmatpush1.msra.mxu0 %v379
  %397 = vmatprep.subr.mxu0 0.0
  %398 = vmatpush1.msra.mxu0 %v378
  %399 = vmatprep.subr.mxu0 0.0
  %400 = vmatpush1.msra.mxu0 %v377
  %401 = vmatprep.subr.mxu0 0.0
  %402 = vmatpush1.msra.mxu0 %v376
  %403 = vmatprep.subr.mxu0 0.0
  %404 = vmatpush1.msra.mxu0 %v375
  %405 = vmatprep.subr.mxu0 0.0
  %406 = vmatpush1.msra.mxu0 %v374
  %407 = vmatprep.subr.mxu0 0.0
  %408 = vmatpush1.msra.mxu0 %v373
  %409 = vmatprep.subr.mxu0 0.0
  %410 = vmatpush1.msra.mxu0 %v372
  %411 = vmatprep.subr.mxu0 0.0
  %412 = vmatpush1.msra.mxu0 %v371
  %413 = vmatprep.subr.mxu0 0.0
  %414 = vmatpush1.msra.mxu0 %v370
  %415 = vmatprep.subr.mxu0 0.0
  %416 = vmatpush1.msra.mxu0 %v369
  %417 = vmatprep.subr.mxu0 0.0
  %418 = vmatpush2.msra.mxu0 0.0
  %419 = vmatprep.subr.mxu0 0.0
  %420 = vmatpush2.msra.mxu0 0.0
  %421 = vmatprep.subr.mxu0 0.0
  %422 = vmatpush2.msra.mxu0 0.0
  %423 = vmatprep.subr.mxu0 0.0
  %424 = vmatpush2.msra.mxu0 0.0
  %425 = vmatprep.subr.mxu0 0.0
  %426 = vmatpush2.msra.mxu0 0.0
  %427 = vmatprep.subr.mxu0 0.0
  %428 = vmatpush2.msra.mxu0 0.0
  %429 = vmatprep.subr.mxu0 0.0
  %430 = vmatpush2.msra.mxu0 0.0
  %431 = vmatprep.subr.mxu0 0.0
  %432 = vmatpush2.msra.mxu0 0.0
  %433 = vmatprep.subr.mxu0 0.0
  %434 = vmatpush2.msra.mxu0 0.0
  %435 = vmatprep.subr.mxu0 0.0
  %436 = vmatpush2.msra.mxu0 0.0
  %437 = vmatprep.subr.mxu0 0.0
  %438 = vmatpush2.msra.mxu0 0.0
  %439 = vmatprep.subr.mxu0 0.0
  %440 = vmatpush2.msra.mxu0 0.0
  %441 = vmatprep.subr.mxu0 0.0
  %442 = vmatpush2.msra.mxu0 0.0
  %443 = vmatprep.subr.mxu0 0.0
  %444 = vmatpush2.msra.mxu0 0.0
  %445 = vmatprep.subr.mxu0 0.0
  %446 = vmatpush2.msra.mxu0 0.0
  %447 = vmatprep.subr.mxu0 0.0
  %448 = vmatpush2.msra.mxu0 0.0
  %449 = vmatprep.mubr.f32.mxu0 0.0
  %450 = vmatmul.mubr.f32.gmra.mxu0 %v305
  %v451 = vpop.f32.mrf.mxu0
  %v452 = vadd.f32 0.0, %v451
  %v453 = vpop.f32.mrf.mxu0
  %454 = vmatprep.mubr.f32.mxu0 0.0
  %455 = vmatmul.mubr.f32.gmra.mxu0 %v306
  %v456 = vpop.f32.mrf.mxu0
  %v457 = vadd.f32 0.0, %v456
  %v458 = vpop.f32.mrf.mxu0
  %459 = vmatprep.mubr.f32.mxu0 0.0
  %460 = vmatmul.mubr.f32.gmra.mxu0 %v307
  %v461 = vpop.f32.mrf.mxu0
  %v462 = vadd.f32 0.0, %v461
  %v463 = vpop.f32.mrf.mxu0
  %464 = vmatprep.mubr.f32.mxu0 0.0
  %465 = vmatmul.mubr.f32.gmra.mxu0 %v308
  %v466 = vpop.f32.mrf.mxu0
  %v467 = vadd.f32 0.0, %v466
  %v468 = vpop.f32.mrf.mxu0
  %469 = vmatprep.mubr.f32.mxu0 0.0
  %470 = vmatmul.mubr.f32.gmra.mxu0 %v309
  %v471 = vpop.f32.mrf.mxu0
  %v472 = vadd.f32 0.0, %v471
  %v473 = vpop.f32.mrf.mxu0
  %474 = vmatprep.mubr.f32.mxu0 0.0
  %475 = vmatmul.mubr.f32.gmra.mxu0 %v310
  %v476 = vpop.f32.mrf.mxu0
  %v477 = vadd.f32 0.0, %v476
  %v478 = vpop.f32.mrf.mxu0
  %479 = vmatprep.mubr.f32.mxu0 0.0
  %480 = vmatmul.mubr.f32.gmra.mxu0 %v311
  %v481 = vpop.f32.mrf.mxu0
  %v482 = vadd.f32 0.0, %v481
  %v483 = vpop.f32.mrf.mxu0
  %484 = vmatprep.mubr.f32.mxu0 0.0
  %485 = vmatmul.mubr.f32.gmra.mxu0 %v312
  %v486 = vpop.f32.mrf.mxu0
  %v487 = vadd.f32 0.0, %v486
  %v488 = vpop.f32.mrf.mxu0
  %489 = vmatprep.mubr.f32.mxu0 0.0
  %490 = vmatmul.mubr.f32.gmra.mxu0 %v313
  %v491 = vpop.f32.mrf.mxu0
  %v492 = vadd.f32 0.0, %v491
  %v493 = vpop.f32.mrf.mxu0
  %494 = vmatprep.mubr.f32.mxu0 0.0
  %495 = vmatmul.mubr.f32.gmra.mxu0 %v314
  %v496 = vpop.f32.mrf.mxu0
  %v497 = vadd.f32 0.0, %v496
  %v498 = vpop.f32.mrf.mxu0
  %499 = vmatprep.mubr.f32.mxu0 0.0
  %500 = vmatmul.mubr.f32.gmra.mxu0 %v315
  %v501 = vpop.f32.mrf.mxu0
  %v502 = vadd.f32 0.0, %v501
  %v503 = vpop.f32.mrf.mxu0
  %504 = vmatprep.mubr.f32.mxu0 0.0
  %505 = vmatmul.mubr.f32.gmra.mxu0 %v316
  %v506 = vpop.f32.mrf.mxu0
  %v507 = vadd.f32 0.0, %v506
  %v508 = vpop.f32.mrf.mxu0
  %509 = vmatprep.mubr.f32.mxu0 0.0
  %510 = vmatmul.mubr.f32.gmra.mxu0 %v317
  %v511 = vpop.f32.mrf.mxu0
  %v512 = vadd.f32 0.0, %v511
  %v513 = vpop.f32.mrf.mxu0
  %514 = vmatprep.mubr.f32.mxu0 0.0
  %515 = vmatmul.mubr.f32.gmra.mxu0 %v318
  %v516 = vpop.f32.mrf.mxu0
  %v517 = vadd.f32 0.0, %v516
  %v518 = vpop.f32.mrf.mxu0
  %519 = vmatprep.mubr.f32.mxu0 0.0
  %520 = vmatmul.mubr.f32.gmra.mxu0 %v319
  %v521 = vpop.f32.mrf.mxu0
  %v522 = vadd.f32 0.0, %v521
  %v523 = vpop.f32.mrf.mxu0
  %524 = vmatprep.mubr.f32.mxu0 0.0
  %525 = vmatmul.mubr.f32.gmra.mxu0 %v320
  %v526 = vpop.f32.mrf.mxu0
  %v527 = vadd.f32 0.0, %v526
  %v528 = vpop.f32.mrf.mxu0
  %529 = vmatprep.mubr.f32.mxu0 0.0
  %530 = vmatmul.mubr.f32.gmra.mxu0 %v321
  %v531 = vpop.f32.mrf.mxu0
  %v532 = vadd.f32 0.0, %v531
  %v533 = vpop.f32.mrf.mxu0
  %534 = vmatprep.mubr.f32.mxu0 0.0
  %535 = vmatmul.mubr.f32.gmra.mxu0 %v322
  %v536 = vpop.f32.mrf.mxu0
  %v537 = vadd.f32 0.0, %v536
  %v538 = vpop.f32.mrf.mxu0
  %539 = vmatprep.mubr.f32.mxu0 0.0
  %540 = vmatmul.mubr.f32.gmra.mxu0 %v323
  %v541 = vpop.f32.mrf.mxu0
  %v542 = vadd.f32 0.0, %v541
  %v543 = vpop.f32.mrf.mxu0
  %544 = vmatprep.mubr.f32.mxu0 0.0
  %545 = vmatmul.mubr.f32.gmra.mxu0 %v324
  %v546 = vpop.f32.mrf.mxu0
  %v547 = vadd.f32 0.0, %v546
  %v548 = vpop.f32.mrf.mxu0
  %549 = vmatprep.mubr.f32.mxu0 0.0
  %550 = vmatmul.mubr.f32.gmra.mxu0 %v325
  %v551 = vpop.f32.mrf.mxu0
  %v552 = vadd.f32 0.0, %v551
  %v553 = vpop.f32.mrf.mxu0
  %554 = vmatprep.mubr.f32.mxu0 0.0
  %555 = vmatmul.mubr.f32.gmra.mxu0 %v326
  %v556 = vpop.f32.mrf.mxu0
  %v557 = vadd.f32 0.0, %v556
  %v558 = vpop.f32.mrf.mxu0
  %559 = vmatprep.mubr.f32.mxu0 0.0
  %560 = vmatmul.mubr.f32.gmra.mxu0 %v327
  %v561 = vpop.f32.mrf.mxu0
  %v562 = vadd.f32 0.0, %v561
  %v563 = vpop.f32.mrf.mxu0
  %564 = vmatprep.mubr.f32.mxu0 0.0
  %565 = vmatmul.mubr.f32.gmra.mxu0 %v328
  %v566 = vpop.f32.mrf.mxu0
  %v567 = vadd.f32 0.0, %v566
  %v568 = vpop.f32.mrf.mxu0
  %569 = vmatprep.mubr.f32.mxu0 0.0
  %570 = vmatmul.mubr.f32.gmra.mxu0 %v329
  %v571 = vpop.f32.mrf.mxu0
  %v572 = vadd.f32 0.0, %v571
  %v573 = vpop.f32.mrf.mxu0
  %574 = vmatprep.mubr.f32.mxu0 0.0
  %575 = vmatmul.mubr.f32.gmra.mxu0 %v330
  %v576 = vpop.f32.mrf.mxu0
  %v577 = vadd.f32 0.0, %v576
  %v578 = vpop.f32.mrf.mxu0
  %579 = vmatprep.mubr.f32.mxu0 0.0
  %580 = vmatmul.mubr.f32.gmra.mxu0 %v331
  %v581 = vpop.f32.mrf.mxu0
  %v582 = vadd.f32 0.0, %v581
  %v583 = vpop.f32.mrf.mxu0
  %584 = vmatprep.mubr.f32.mxu0 0.0
  %585 = vmatmul.mubr.f32.gmra.mxu0 %v332
  %v586 = vpop.f32.mrf.mxu0
  %v587 = vadd.f32 0.0, %v586
  %v588 = vpop.f32.mrf.mxu0
  %589 = vmatprep.mubr.f32.mxu0 0.0
  %590 = vmatmul.mubr.f32.gmra.mxu0 %v333
  %v591 = vpop.f32.mrf.mxu0
  %v592 = vadd.f32 0.0, %v591
  %v593 = vpop.f32.mrf.mxu0
  %594 = vmatprep.mubr.f32.mxu0 0.0
  %595 = vmatmul.mubr.f32.gmra.mxu0 %v334
  %v596 = vpop.f32.mrf.mxu0
  %v597 = vadd.f32 0.0, %v596
  %v598 = vpop.f32.mrf.mxu0
  %599 = vmatprep.mubr.f32.mxu0 0.0
  %600 = vmatmul.mubr.f32.gmra.mxu0 %v335
  %v601 = vpop.f32.mrf.mxu0
  %v602 = vadd.f32 0.0, %v601
  %v603 = vpop.f32.mrf.mxu0
  %604 = vmatprep.mubr.f32.mxu0 0.0
  %605 = vmatmul.mubr.f32.gmra.mxu0 %v336
  %v606 = vpop.f32.mrf.mxu0
  %v607 = vadd.f32 0.0, %v606
  %v608 = vpop.f32.mrf.mxu0
  %609 = vmatprep.mubr.f32.mxu0 0.0
  %610 = vmatmul.mubr.f32.gmra.mxu0 %v337
  %v611 = vpop.f32.mrf.mxu0
  %v612 = vadd.f32 0.0, %v611
  %v613 = vpop.f32.mrf.mxu0
  %614 = vmatprep.mubr.f32.mxu0 0.0
  %615 = vmatmul.mubr.f32.gmra.mxu0 %v338
  %v616 = vpop.f32.mrf.mxu0
  %v617 = vadd.f32 0.0, %v616
  %v618 = vpop.f32.mrf.mxu0
  %619 = vmatprep.mubr.f32.mxu0 0.0
  %620 = vmatmul.mubr.f32.gmra.mxu0 %v339
  %v621 = vpop.f32.mrf.mxu0
  %v622 = vadd.f32 0.0, %v621
  %v623 = vpop.f32.mrf.mxu0
  %624 = vmatprep.mubr.f32.mxu0 0.0
  %625 = vmatmul.mubr.f32.gmra.mxu0 %v340
  %v626 = vpop.f32.mrf.mxu0
  %v627 = vadd.f32 0.0, %v626
  %v628 = vpop.f32.mrf.mxu0
  %629 = vmatprep.mubr.f32.mxu0 0.0
  %630 = vmatmul.mubr.f32.gmra.mxu0 %v341
  %v631 = vpop.f32.mrf.mxu0
  %v632 = vadd.f32 0.0, %v631
  %v633 = vpop.f32.mrf.mxu0
  %634 = vmatprep.mubr.f32.mxu0 0.0
  %635 = vmatmul.mubr.f32.gmra.mxu0 %v342
  %v636 = vpop.f32.mrf.mxu0
  %v637 = vadd.f32 0.0, %v636
  %v638 = vpop.f32.mrf.mxu0
  %639 = vmatprep.mubr.f32.mxu0 0.0
  %640 = vmatmul.mubr.f32.gmra.mxu0 %v343
  %v641 = vpop.f32.mrf.mxu0
  %v642 = vadd.f32 0.0, %v641
  %v643 = vpop.f32.mrf.mxu0
  %644 = vmatprep.mubr.f32.mxu0 0.0
  %645 = vmatmul.mubr.f32.gmra.mxu0 %v344
  %v646 = vpop.f32.mrf.mxu0
  %v647 = vadd.f32 0.0, %v646
  %v648 = vpop.f32.mrf.mxu0
  %649 = vmatprep.mubr.f32.mxu0 0.0
  %650 = vmatmul.mubr.f32.gmra.mxu0 %v345
  %v651 = vpop.f32.mrf.mxu0
  %v652 = vadd.f32 0.0, %v651
  %v653 = vpop.f32.mrf.mxu0
  %654 = vmatprep.mubr.f32.mxu0 0.0
  %655 = vmatmul.mubr.f32.gmra.mxu0 %v346
  %v656 = vpop.f32.mrf.mxu0
  %v657 = vadd.f32 0.0, %v656
  %v658 = vpop.f32.mrf.mxu0
  %659 = vmatprep.mubr.f32.mxu0 0.0
  %660 = vmatmul.mubr.f32.gmra.mxu0 %v347
  %v661 = vpop.f32.mrf.mxu0
  %v662 = vadd.f32 0.0, %v661
  %v663 = vpop.f32.mrf.mxu0
  %664 = vmatprep.mubr.f32.mxu0 0.0
  %665 = vmatmul.mubr.f32.gmra.mxu0 %v348
  %v666 = vpop.f32.mrf.mxu0
  %v667 = vadd.f32 0.0, %v666
  %v668 = vpop.f32.mrf.mxu0
  %669 = vmatprep.mubr.f32.mxu0 0.0
  %670 = vmatmul.mubr.f32.gmra.mxu0 %v349
  %v671 = vpop.f32.mrf.mxu0
  %v672 = vadd.f32 0.0, %v671
  %v673 = vpop.f32.mrf.mxu0
  %674 = vmatprep.mubr.f32.mxu0 0.0
  %675 = vmatmul.mubr.f32.gmra.mxu0 %v350
  %v676 = vpop.f32.mrf.mxu0
  %v677 = vadd.f32 0.0, %v676
  %v678 = vpop.f32.mrf.mxu0
  %679 = vmatprep.mubr.f32.mxu0 0.0
  %680 = vmatmul.mubr.f32.gmra.mxu0 %v351
  %v681 = vpop.f32.mrf.mxu0
  %v682 = vadd.f32 0.0, %v681
  %v683 = vpop.f32.mrf.mxu0
  %684 = vmatprep.mubr.f32.mxu0 0.0
  %685 = vmatmul.mubr.f32.gmra.mxu0 %v352
  %v686 = vpop.f32.mrf.mxu0
  %v687 = vadd.f32 0.0, %v686
  %v688 = vpop.f32.mrf.mxu0
  %689 = vmatprep.mubr.f32.mxu0 0.0
  %690 = vmatmul.mubr.f32.gmra.mxu0 %v353
  %v691 = vpop.f32.mrf.mxu0
  %v692 = vadd.f32 0.0, %v691
  %v693 = vpop.f32.mrf.mxu0
  %694 = vmatprep.mubr.f32.mxu0 0.0
  %695 = vmatmul.mubr.f32.gmra.mxu0 %v354
  %v696 = vpop.f32.mrf.mxu0
  %v697 = vadd.f32 0.0, %v696
  %v698 = vpop.f32.mrf.mxu0
  %699 = vmatprep.mubr.f32.mxu0 0.0
  %700 = vmatmul.mubr.f32.gmra.mxu0 %v355
  %v701 = vpop.f32.mrf.mxu0
  %v702 = vadd.f32 0.0, %v701
  %v703 = vpop.f32.mrf.mxu0
  %704 = vmatprep.mubr.f32.mxu0 0.0
  %705 = vmatmul.mubr.f32.gmra.mxu0 %v356
  %v706 = vpop.f32.mrf.mxu0
  %v707 = vadd.f32 0.0, %v706
  %v708 = vpop.f32.mrf.mxu0
  %709 = vmatprep.mubr.f32.mxu0 0.0
  %710 = vmatmul.mubr.f32.gmra.mxu0 %v357
  %v711 = vpop.f32.mrf.mxu0
  %v712 = vadd.f32 0.0, %v711
  %v713 = vpop.f32.mrf.mxu0
  %714 = vmatprep.mubr.f32.mxu0 0.0
  %715 = vmatmul.mubr.f32.gmra.mxu0 %v358
  %v716 = vpop.f32.mrf.mxu0
  %v717 = vadd.f32 0.0, %v716
  %v718 = vpop.f32.mrf.mxu0
  %719 = vmatprep.mubr.f32.mxu0 0.0
  %720 = vmatmul.mubr.f32.gmra.mxu0 %v359
  %v721 = vpop.f32.mrf.mxu0
  %v722 = vadd.f32 0.0, %v721
  %v723 = vpop.f32.mrf.mxu0
  %724 = vmatprep.mubr.f32.mxu0 0.0
  %725 = vmatmul.mubr.f32.gmra.mxu0 %v360
  %v726 = vpop.f32.mrf.mxu0
  %v727 = vadd.f32 0.0, %v726
  %v728 = vpop.f32.mrf.mxu0
  %729 = vmatprep.mubr.f32.mxu0 0.0
  %730 = vmatmul.mubr.f32.gmra.mxu0 %v361
  %v731 = vpop.f32.mrf.mxu0
  %v732 = vadd.f32 0.0, %v731
  %v733 = vpop.f32.mrf.mxu0
  %734 = vmatprep.mubr.f32.mxu0 0.0
  %735 = vmatmul.mubr.f32.gmra.mxu0 %v362
  %v736 = vpop.f32.mrf.mxu0
  %v737 = vadd.f32 0.0, %v736
  %v738 = vpop.f32.mrf.mxu0
  %739 = vmatprep.mubr.f32.mxu0 0.0
  %740 = vmatmul.mubr.f32.gmra.mxu0 %v363
  %v741 = vpop.f32.mrf.mxu0
  %v742 = vadd.f32 0.0, %v741
  %v743 = vpop.f32.mrf.mxu0
  %744 = vmatprep.mubr.f32.mxu0 0.0
  %745 = vmatmul.mubr.f32.gmra.mxu0 %v364
  %v746 = vpop.f32.mrf.mxu0
  %v747 = vadd.f32 0.0, %v746
  %v748 = vpop.f32.mrf.mxu0
  %749 = vmatprep.mubr.f32.mxu0 0.0
  %750 = vmatmul.mubr.f32.gmra.mxu0 %v365
  %v751 = vpop.f32.mrf.mxu0
  %v752 = vadd.f32 0.0, %v751
  %v753 = vpop.f32.mrf.mxu0
  %754 = vmatprep.mubr.f32.mxu0 0.0
  %755 = vmatmul.mubr.f32.gmra.mxu0 %v366
  %v756 = vpop.f32.mrf.mxu0
  %v757 = vadd.f32 0.0, %v756
  %v758 = vpop.f32.mrf.mxu0
  %759 = vmatprep.mubr.f32.mxu0 0.0
  %760 = vmatmul.mubr.f32.gmra.mxu0 %v367
  %v761 = vpop.f32.mrf.mxu0
  %v762 = vadd.f32 0.0, %v761
  %v763 = vpop.f32.mrf.mxu0
  %764 = vmatprep.mubr.f32.mxu0 0.0
  %765 = vmatmul.mubr.f32.gmra.mxu0 %v368
  %v766 = vpop.f32.mrf.mxu0
  %v767 = vadd.f32 0.0, %v766
  %v768 = vpop.f32.mrf.mxu0
  %769 = vdwg.mxu0
  %770 = vmatprep.subr.mxu0 0.0
  %771 = vmatpush1.msra.mxu0 %v304
  %772 = vmatprep.subr.mxu0 0.0
  %773 = vmatpush1.msra.mxu0 %v303
  %774 = vmatprep.subr.mxu0 0.0
  %775 = vmatpush1.msra.mxu0 %v302
  %776 = vmatprep.subr.mxu0 0.0
  %777 = vmatpush1.msra.mxu0 %v301
  %778 = vmatprep.subr.mxu0 0.0
  %779 = vmatpush1.msra.mxu0 %v300
  %780 = vmatprep.subr.mxu0 0.0
  %781 = vmatpush1.msra.mxu0 %v299
  %782 = vmatprep.subr.mxu0 0.0
  %783 = vmatpush1.msra.mxu0 %v298
  %784 = vmatprep.subr.mxu0 0.0
  %785 = vmatpush1.msra.mxu0 %v297
  %786 = vmatprep.subr.mxu0 0.0
  %787 = vmatpush1.msra.mxu0 %v296
  %788 = vmatprep.subr.mxu0 0.0
  %789 = vmatpush1.msra.mxu0 %v295
  %790 = vmatprep.subr.mxu0 0.0
  %791 = vmatpush1.msra.mxu0 %v294
  %792 = vmatprep.subr.mxu0 0.0
  %793 = vmatpush1.msra.mxu0 %v293
  %794 = vmatprep.subr.mxu0 0.0
  %795 = vmatpush1.msra.mxu0 %v292
  %796 = vmatprep.subr.mxu0 0.0
  %797 = vmatpush1.msra.mxu0 %v291
  %798 = vmatprep.subr.mxu0 0.0
  %799 = vmatpush1.msra.mxu0 %v290
  %800 = vmatprep.subr.mxu0 0.0
  %801 = vmatpush1.msra.mxu0 %v289
  %802 = vmatprep.subr.mxu0 0.0
  %803 = vmatpush2.msra.mxu0 0.0
  %804 = vmatprep.subr.mxu0 0.0
  %805 = vmatpush2.msra.mxu0 0.0
  %806 = vmatprep.subr.mxu0 0.0
  %807 = vmatpush2.msra.mxu0 0.0
  %808 = vmatprep.subr.mxu0 0.0
  %809 = vmatpush2.msra.mxu0 0.0
  %810 = vmatprep.subr.mxu0 0.0
  %811 = vmatpush2.msra.mxu0 0.0
  %812 = vmatprep.subr.mxu0 0.0
  %813 = vmatpush2.msra.mxu0 0.0
  %814 = vmatprep.subr.mxu0 0.0
  %815 = vmatpush2.msra.mxu0 0.0
  %816 = vmatprep.subr.mxu0 0.0
  %817 = vmatpush2.msra.mxu0 0.0
  %818 = vmatprep.subr.mxu0 0.0
  %819 = vmatpush2.msra.mxu0 0.0
  %820 = vmatprep.subr.mxu0 0.0
  %821 = vmatpush2.msra.mxu0 0.0
  %822 = vmatprep.subr.mxu0 0.0
  %823 = vmatpush2.msra.mxu0 0.0
  %824 = vmatprep.subr.mxu0 0.0
  %825 = vmatpush2.msra.mxu0 0.0
  %826 = vmatprep.subr.mxu0 0.0
  %827 = vmatpush2.msra.mxu0 0.0
  %828 = vmatprep.subr.mxu0 0.0
  %829 = vmatpush2.msra.mxu0 0.0
  %830 = vmatprep.subr.mxu0 0.0
  %831 = vmatpush2.msra.mxu0 0.0
  %832 = vmatprep.subr.mxu0 0.0
  %833 = vmatpush2.msra.mxu0 0.0
  %834 = vmatprep.mubr.f32.mxu0 0.0
  %835 = vmatmul.mubr.f32.gmra.mxu0 %v225
  %v836 = vpop.f32.mrf.mxu0
  %v837 = vadd.f32 %v452, %v836
  %v838 = vpop.f32.mrf.mxu0
  %839 = vmatprep.mubr.f32.mxu0 0.0
  %840 = vmatmul.mubr.f32.gmra.mxu0 %v226
  %v841 = vpop.f32.mrf.mxu0
  %v842 = vadd.f32 %v457, %v841
  %v843 = vpop.f32.mrf.mxu0
  %844 = vmatprep.mubr.f32.mxu0 0.0
  %845 = vmatmul.mubr.f32.gmra.mxu0 %v227
  %v846 = vpop.f32.mrf.mxu0
  %v847 = vadd.f32 %v462, %v846
  %v848 = vpop.f32.mrf.mxu0
  %849 = vmatprep.mubr.f32.mxu0 0.0
  %850 = vmatmul.mubr.f32.gmra.mxu0 %v228
  %v851 = vpop.f32.mrf.mxu0
  %v852 = vadd.f32 %v467, %v851
  %v853 = vpop.f32.mrf.mxu0
  %854 = vmatprep.mubr.f32.mxu0 0.0
  %855 = vmatmul.mubr.f32.gmra.mxu0 %v229
  %v856 = vpop.f32.mrf.mxu0
  %v857 = vadd.f32 %v472, %v856
  %v858 = vpop.f32.mrf.mxu0
  %859 = vmatprep.mubr.f32.mxu0 0.0
  %860 = vmatmul.mubr.f32.gmra.mxu0 %v230
  %v861 = vpop.f32.mrf.mxu0
  %v862 = vadd.f32 %v477, %v861
  %v863 = vpop.f32.mrf.mxu0
  %864 = vmatprep.mubr.f32.mxu0 0.0
  %865 = vmatmul.mubr.f32.gmra.mxu0 %v231
  %v866 = vpop.f32.mrf.mxu0
  %v867 = vadd.f32 %v482, %v866
  %v868 = vpop.f32.mrf.mxu0
  %869 = vmatprep.mubr.f32.mxu0 0.0
  %870 = vmatmul.mubr.f32.gmra.mxu0 %v232
  %v871 = vpop.f32.mrf.mxu0
  %v872 = vadd.f32 %v487, %v871
  %v873 = vpop.f32.mrf.mxu0
  %874 = vmatprep.mubr.f32.mxu0 0.0
  %875 = vmatmul.mubr.f32.gmra.mxu0 %v233
  %v876 = vpop.f32.mrf.mxu0
  %v877 = vadd.f32 %v492, %v876
  %v878 = vpop.f32.mrf.mxu0
  %879 = vmatprep.mubr.f32.mxu0 0.0
  %880 = vmatmul.mubr.f32.gmra.mxu0 %v234
  %v881 = vpop.f32.mrf.mxu0
  %v882 = vadd.f32 %v497, %v881
  %v883 = vpop.f32.mrf.mxu0
  %884 = vmatprep.mubr.f32.mxu0 0.0
  %885 = vmatmul.mubr.f32.gmra.mxu0 %v235
  %v886 = vpop.f32.mrf.mxu0
  %v887 = vadd.f32 %v502, %v886
  %v888 = vpop.f32.mrf.mxu0
  %889 = vmatprep.mubr.f32.mxu0 0.0
  %890 = vmatmul.mubr.f32.gmra.mxu0 %v236
  %v891 = vpop.f32.mrf.mxu0
  %v892 = vadd.f32 %v507, %v891
  %v893 = vpop.f32.mrf.mxu0
  %894 = vmatprep.mubr.f32.mxu0 0.0
  %895 = vmatmul.mubr.f32.gmra.mxu0 %v237
  %v896 = vpop.f32.mrf.mxu0
  %v897 = vadd.f32 %v512, %v896
  %v898 = vpop.f32.mrf.mxu0
  %899 = vmatprep.mubr.f32.mxu0 0.0
  %900 = vmatmul.mubr.f32.gmra.mxu0 %v238
  %v901 = vpop.f32.mrf.mxu0
  %v902 = vadd.f32 %v517, %v901
  %v903 = vpop.f32.mrf.mxu0
  %904 = vmatprep.mubr.f32.mxu0 0.0
  %905 = vmatmul.mubr.f32.gmra.mxu0 %v239
  %v906 = vpop.f32.mrf.mxu0
  %v907 = vadd.f32 %v522, %v906
  %v908 = vpop.f32.mrf.mxu0
  %909 = vmatprep.mubr.f32.mxu0 0.0
  %910 = vmatmul.mubr.f32.gmra.mxu0 %v240
  %v911 = vpop.f32.mrf.mxu0
  %v912 = vadd.f32 %v527, %v911
  %v913 = vpop.f32.mrf.mxu0
  %914 = vmatprep.mubr.f32.mxu0 0.0
  %915 = vmatmul.mubr.f32.gmra.mxu0 %v241
  %v916 = vpop.f32.mrf.mxu0
  %v917 = vadd.f32 %v532, %v916
  %v918 = vpop.f32.mrf.mxu0
  %919 = vmatprep.mubr.f32.mxu0 0.0
  %920 = vmatmul.mubr.f32.gmra.mxu0 %v242
  %v921 = vpop.f32.mrf.mxu0
  %v922 = vadd.f32 %v537, %v921
  %v923 = vpop.f32.mrf.mxu0
  %924 = vmatprep.mubr.f32.mxu0 0.0
  %925 = vmatmul.mubr.f32.gmra.mxu0 %v243
  %v926 = vpop.f32.mrf.mxu0
  %v927 = vadd.f32 %v542, %v926
  %v928 = vpop.f32.mrf.mxu0
  %929 = vmatprep.mubr.f32.mxu0 0.0
  %930 = vmatmul.mubr.f32.gmra.mxu0 %v244
  %v931 = vpop.f32.mrf.mxu0
  %v932 = vadd.f32 %v547, %v931
  %v933 = vpop.f32.mrf.mxu0
  %934 = vmatprep.mubr.f32.mxu0 0.0
  %935 = vmatmul.mubr.f32.gmra.mxu0 %v245
  %v936 = vpop.f32.mrf.mxu0
  %v937 = vadd.f32 %v552, %v936
  %v938 = vpop.f32.mrf.mxu0
  %939 = vmatprep.mubr.f32.mxu0 0.0
  %940 = vmatmul.mubr.f32.gmra.mxu0 %v246
  %v941 = vpop.f32.mrf.mxu0
  %v942 = vadd.f32 %v557, %v941
  %v943 = vpop.f32.mrf.mxu0
  %944 = vmatprep.mubr.f32.mxu0 0.0
  %945 = vmatmul.mubr.f32.gmra.mxu0 %v247
  %v946 = vpop.f32.mrf.mxu0
  %v947 = vadd.f32 %v562, %v946
  %v948 = vpop.f32.mrf.mxu0
  %949 = vmatprep.mubr.f32.mxu0 0.0
  %950 = vmatmul.mubr.f32.gmra.mxu0 %v248
  %v951 = vpop.f32.mrf.mxu0
  %v952 = vadd.f32 %v567, %v951
  %v953 = vpop.f32.mrf.mxu0
  %954 = vmatprep.mubr.f32.mxu0 0.0
  %955 = vmatmul.mubr.f32.gmra.mxu0 %v249
  %v956 = vpop.f32.mrf.mxu0
  %v957 = vadd.f32 %v572, %v956
  %v958 = vpop.f32.mrf.mxu0
  %959 = vmatprep.mubr.f32.mxu0 0.0
  %960 = vmatmul.mubr.f32.gmra.mxu0 %v250
  %v961 = vpop.f32.mrf.mxu0
  %v962 = vadd.f32 %v577, %v961
  %v963 = vpop.f32.mrf.mxu0
  %964 = vmatprep.mubr.f32.mxu0 0.0
  %965 = vmatmul.mubr.f32.gmra.mxu0 %v251
  %v966 = vpop.f32.mrf.mxu0
  %v967 = vadd.f32 %v582, %v966
  %v968 = vpop.f32.mrf.mxu0
  %969 = vmatprep.mubr.f32.mxu0 0.0
  %970 = vmatmul.mubr.f32.gmra.mxu0 %v252
  %v971 = vpop.f32.mrf.mxu0
  %v972 = vadd.f32 %v587, %v971
  %v973 = vpop.f32.mrf.mxu0
  %974 = vmatprep.mubr.f32.mxu0 0.0
  %975 = vmatmul.mubr.f32.gmra.mxu0 %v253
  %v976 = vpop.f32.mrf.mxu0
  %v977 = vadd.f32 %v592, %v976
  %v978 = vpop.f32.mrf.mxu0
  %979 = vmatprep.mubr.f32.mxu0 0.0
  %980 = vmatmul.mubr.f32.gmra.mxu0 %v254
  %v981 = vpop.f32.mrf.mxu0
  %v982 = vadd.f32 %v597, %v981
  %v983 = vpop.f32.mrf.mxu0
  %984 = vmatprep.mubr.f32.mxu0 0.0
  %985 = vmatmul.mubr.f32.gmra.mxu0 %v255
  %v986 = vpop.f32.mrf.mxu0
  %v987 = vadd.f32 %v602, %v986
  %v988 = vpop.f32.mrf.mxu0
  %989 = vmatprep.mubr.f32.mxu0 0.0
  %990 = vmatmul.mubr.f32.gmra.mxu0 %v256
  %v991 = vpop.f32.mrf.mxu0
  %v992 = vadd.f32 %v607, %v991
  %v993 = vpop.f32.mrf.mxu0
  %994 = vmatprep.mubr.f32.mxu0 0.0
  %995 = vmatmul.mubr.f32.gmra.mxu0 %v257
  %v996 = vpop.f32.mrf.mxu0
  %v997 = vadd.f32 %v612, %v996
  %v998 = vpop.f32.mrf.mxu0
  %999 = vmatprep.mubr.f32.mxu0 0.0
  %1000 = vmatmul.mubr.f32.gmra.mxu0 %v258
  %v1001 = vpop.f32.mrf.mxu0
  %v1002 = vadd.f32 %v617, %v1001
  %v1003 = vpop.f32.mrf.mxu0
  %1004 = vmatprep.mubr.f32.mxu0 0.0
  %1005 = vmatmul.mubr.f32.gmra.mxu0 %v259
  %v1006 = vpop.f32.mrf.mxu0
  %v1007 = vadd.f32 %v622, %v1006
  %v1008 = vpop.f32.mrf.mxu0
  %1009 = vmatprep.mubr.f32.mxu0 0.0
  %1010 = vmatmul.mubr.f32.gmra.mxu0 %v260
  %v1011 = vpop.f32.mrf.mxu0
  %v1012 = vadd.f32 %v627, %v1011
  %v1013 = vpop.f32.mrf.mxu0
  %1014 = vmatprep.mubr.f32.mxu0 0.0
  %1015 = vmatmul.mubr.f32.gmra.mxu0 %v261
  %v1016 = vpop.f32.mrf.mxu0
  %v1017 = vadd.f32 %v632, %v1016
  %v1018 = vpop.f32.mrf.mxu0
  %1019 = vmatprep.mubr.f32.mxu0 0.0
  %1020 = vmatmul.mubr.f32.gmra.mxu0 %v262
  %v1021 = vpop.f32.mrf.mxu0
  %v1022 = vadd.f32 %v637, %v1021
  %v1023 = vpop.f32.mrf.mxu0
  %1024 = vmatprep.mubr.f32.mxu0 0.0
  %1025 = vmatmul.mubr.f32.gmra.mxu0 %v263
  %v1026 = vpop.f32.mrf.mxu0
  %v1027 = vadd.f32 %v642, %v1026
  %v1028 = vpop.f32.mrf.mxu0
  %1029 = vmatprep.mubr.f32.mxu0 0.0
  %1030 = vmatmul.mubr.f32.gmra.mxu0 %v264
  %v1031 = vpop.f32.mrf.mxu0
  %v1032 = vadd.f32 %v647, %v1031
  %v1033 = vpop.f32.mrf.mxu0
  %1034 = vmatprep.mubr.f32.mxu0 0.0
  %1035 = vmatmul.mubr.f32.gmra.mxu0 %v265
  %v1036 = vpop.f32.mrf.mxu0
  %v1037 = vadd.f32 %v652, %v1036
  %v1038 = vpop.f32.mrf.mxu0
  %1039 = vmatprep.mubr.f32.mxu0 0.0
  %1040 = vmatmul.mubr.f32.gmra.mxu0 %v266
  %v1041 = vpop.f32.mrf.mxu0
  %v1042 = vadd.f32 %v657, %v1041
  %v1043 = vpop.f32.mrf.mxu0
  %1044 = vmatprep.mubr.f32.mxu0 0.0
  %1045 = vmatmul.mubr.f32.gmra.mxu0 %v267
  %v1046 = vpop.f32.mrf.mxu0
  %v1047 = vadd.f32 %v662, %v1046
  %v1048 = vpop.f32.mrf.mxu0
  %1049 = vmatprep.mubr.f32.mxu0 0.0
  %1050 = vmatmul.mubr.f32.gmra.mxu0 %v268
  %v1051 = vpop.f32.mrf.mxu0
  %v1052 = vadd.f32 %v667, %v1051
  %v1053 = vpop.f32.mrf.mxu0
  %1054 = vmatprep.mubr.f32.mxu0 0.0
  %1055 = vmatmul.mubr.f32.gmra.mxu0 %v269
  %v1056 = vpop.f32.mrf.mxu0
  %v1057 = vadd.f32 %v672, %v1056
  %v1058 = vpop.f32.mrf.mxu0
  %1059 = vmatprep.mubr.f32.mxu0 0.0
  %1060 = vmatmul.mubr.f32.gmra.mxu0 %v270
  %v1061 = vpop.f32.mrf.mxu0
  %v1062 = vadd.f32 %v677, %v1061
  %v1063 = vpop.f32.mrf.mxu0
  %1064 = vmatprep.mubr.f32.mxu0 0.0
  %1065 = vmatmul.mubr.f32.gmra.mxu0 %v271
  %v1066 = vpop.f32.mrf.mxu0
  %v1067 = vadd.f32 %v682, %v1066
  %v1068 = vpop.f32.mrf.mxu0
  %1069 = vmatprep.mubr.f32.mxu0 0.0
  %1070 = vmatmul.mubr.f32.gmra.mxu0 %v272
  %v1071 = vpop.f32.mrf.mxu0
  %v1072 = vadd.f32 %v687, %v1071
  %v1073 = vpop.f32.mrf.mxu0
  %1074 = vmatprep.mubr.f32.mxu0 0.0
  %1075 = vmatmul.mubr.f32.gmra.mxu0 %v273
  %v1076 = vpop.f32.mrf.mxu0
  %v1077 = vadd.f32 %v692, %v1076
  %v1078 = vpop.f32.mrf.mxu0
  %1079 = vmatprep.mubr.f32.mxu0 0.0
  %1080 = vmatmul.mubr.f32.gmra.mxu0 %v274
  %v1081 = vpop.f32.mrf.mxu0
  %v1082 = vadd.f32 %v697, %v1081
  %v1083 = vpop.f32.mrf.mxu0
  %1084 = vmatprep.mubr.f32.mxu0 0.0
  %1085 = vmatmul.mubr.f32.gmra.mxu0 %v275
  %v1086 = vpop.f32.mrf.mxu0
  %v1087 = vadd.f32 %v702, %v1086
  %v1088 = vpop.f32.mrf.mxu0
  %1089 = vmatprep.mubr.f32.mxu0 0.0
  %1090 = vmatmul.mubr.f32.gmra.mxu0 %v276
  %v1091 = vpop.f32.mrf.mxu0
  %v1092 = vadd.f32 %v707, %v1091
  %v1093 = vpop.f32.mrf.mxu0
  %1094 = vmatprep.mubr.f32.mxu0 0.0
  %1095 = vmatmul.mubr.f32.gmra.mxu0 %v277
  %v1096 = vpop.f32.mrf.mxu0
  %v1097 = vadd.f32 %v712, %v1096
  %v1098 = vpop.f32.mrf.mxu0
  %1099 = vmatprep.mubr.f32.mxu0 0.0
  %1100 = vmatmul.mubr.f32.gmra.mxu0 %v278
  %v1101 = vpop.f32.mrf.mxu0
  %v1102 = vadd.f32 %v717, %v1101
  %v1103 = vpop.f32.mrf.mxu0
  %1104 = vmatprep.mubr.f32.mxu0 0.0
  %1105 = vmatmul.mubr.f32.gmra.mxu0 %v279
  %v1106 = vpop.f32.mrf.mxu0
  %v1107 = vadd.f32 %v722, %v1106
  %v1108 = vpop.f32.mrf.mxu0
  %1109 = vmatprep.mubr.f32.mxu0 0.0
  %1110 = vmatmul.mubr.f32.gmra.mxu0 %v280
  %v1111 = vpop.f32.mrf.mxu0
  %v1112 = vadd.f32 %v727, %v1111
  %v1113 = vpop.f32.mrf.mxu0
  %1114 = vmatprep.mubr.f32.mxu0 0.0
  %1115 = vmatmul.mubr.f32.gmra.mxu0 %v281
  %v1116 = vpop.f32.mrf.mxu0
  %v1117 = vadd.f32 %v732, %v1116
  %v1118 = vpop.f32.mrf.mxu0
  %1119 = vmatprep.mubr.f32.mxu0 0.0
  %1120 = vmatmul.mubr.f32.gmra.mxu0 %v282
  %v1121 = vpop.f32.mrf.mxu0
  %v1122 = vadd.f32 %v737, %v1121
  %v1123 = vpop.f32.mrf.mxu0
  %1124 = vmatprep.mubr.f32.mxu0 0.0
  %1125 = vmatmul.mubr.f32.gmra.mxu0 %v283
  %v1126 = vpop.f32.mrf.mxu0
  %v1127 = vadd.f32 %v742, %v1126
  %v1128 = vpop.f32.mrf.mxu0
  %1129 = vmatprep.mubr.f32.mxu0 0.0
  %1130 = vmatmul.mubr.f32.gmra.mxu0 %v284
  %v1131 = vpop.f32.mrf.mxu0
  %v1132 = vadd.f32 %v747, %v1131
  %v1133 = vpop.f32.mrf.mxu0
  %1134 = vmatprep.mubr.f32.mxu0 0.0
  %1135 = vmatmul.mubr.f32.gmra.mxu0 %v285
  %v1136 = vpop.f32.mrf.mxu0
  %v1137 = vadd.f32 %v752, %v1136
  %v1138 = vpop.f32.mrf.mxu0
  %1139 = vmatprep.mubr.f32.mxu0 0.0
  %1140 = vmatmul.mubr.f32.gmra.mxu0 %v286
  %v1141 = vpop.f32.mrf.mxu0
  %v1142 = vadd.f32 %v757, %v1141
  %v1143 = vpop.f32.mrf.mxu0
  %1144 = vmatprep.mubr.f32.mxu0 0.0
  %1145 = vmatmul.mubr.f32.gmra.mxu0 %v287
  %v1146 = vpop.f32.mrf.mxu0
  %v1147 = vadd.f32 %v762, %v1146
  %v1148 = vpop.f32.mrf.mxu0
  %1149 = vmatprep.mubr.f32.mxu0 0.0
  %1150 = vmatmul.mubr.f32.gmra.mxu0 %v288
  %v1151 = vpop.f32.mrf.mxu0
  %v1152 = vadd.f32 %v767, %v1151
  %v1153 = vpop.f32.mrf.mxu0
  %1154 = vdwg.mxu0
  %v1155 = vld [vmem:[#allocation2 + $0x2] sm:$0xff]
  %v1156 = vld [vmem:[#allocation2 + $0xa] sm:$0xff]
  %v1157 = vld [vmem:[#allocation2 + $0x1a] sm:$0xff]
  %v1158 = vld [vmem:[#allocation2 + $0x22] sm:$0xff]
  %v1159 = vld [vmem:[#allocation2 + $0x32] sm:$0xff]
  %v1160 = vld [vmem:[#allocation2 + $0x3a] sm:$0xff]
  %v1161 = vld [vmem:[#allocation2 + $0x4a] sm:$0xff]
  %v1162 = vld [vmem:[#allocation2 + $0x52] sm:$0xff]
  %v1163 = vld [vmem:[#allocation2 + $0x62] sm:$0xff]
  %v1164 = vld [vmem:[#allocation2 + $0x6a] sm:$0xff]
  %v1165 = vld [vmem:[#allocation2 + $0x7a] sm:$0xff]
  %v1166 = vld [vmem:[#allocation2 + $0x82] sm:$0xff]
  %v1167 = vld [vmem:[#allocation2 + $0x92] sm:$0xff]
  %v1168 = vld [vmem:[#allocation2 + $0x9a] sm:$0xff]
  %v1169 = vld [vmem:[#allocation2 + $0xaa] sm:$0xff]
  %v1170 = vld [vmem:[#allocation2 + $0xb2] sm:$0xff]
  %v1171 = vld [vmem:[#allocation2 + $0xc2] sm:$0xff]
  %v1172 = vld [vmem:[#allocation2 + $0xca] sm:$0xff]
  %v1173 = vld [vmem:[#allocation2 + $0xda] sm:$0xff]
  %v1174 = vld [vmem:[#allocation2 + $0xe2] sm:$0xff]
  %v1175 = vld [vmem:[#allocation2 + $0xf2] sm:$0xff]
  %v1176 = vld [vmem:[#allocation2 + $0xfa] sm:$0xff]
  %v1177 = vld [vmem:[#allocation2 + $0x10a] sm:$0xff]
  %v1178 = vld [vmem:[#allocation2 + $0x112] sm:$0xff]
  %v1179 = vld [vmem:[#allocation2 + $0x122] sm:$0xff]
  %v1180 = vld [vmem:[#allocation2 + $0x12a] sm:$0xff]
  %v1181 = vld [vmem:[#allocation2 + $0x13a] sm:$0xff]
  %v1182 = vld [vmem:[#allocation2 + $0x142] sm:$0xff]
  %v1183 = vld [vmem:[#allocation2 + $0x152] sm:$0xff]
  %v1184 = vld [vmem:[#allocation2 + $0x15a] sm:$0xff]
  %v1185 = vld [vmem:[#allocation2 + $0x16a] sm:$0xff]
  %v1186 = vld [vmem:[#allocation2 + $0x172] sm:$0xff]
  %v1187 = vld [vmem:[#allocation2 + $0x1b2] sm:$0xff]
  %v1188 = vld [vmem:[#allocation2 + $0x1ba] sm:$0xff]
  %v1189 = vld [vmem:[#allocation2 + $0x1ca] sm:$0xff]
  %v1190 = vld [vmem:[#allocation2 + $0x1d2] sm:$0xff]
  %v1191 = vld [vmem:[#allocation2 + $0x1e2] sm:$0xff]
  %v1192 = vld [vmem:[#allocation2 + $0x1ea] sm:$0xff]
  %v1193 = vld [vmem:[#allocation2 + $0x1fa] sm:$0xff]
  %v1194 = vld [vmem:[#allocation2 + $0x202] sm:$0xff]
  %v1195 = vld [vmem:[#allocation2 + $0x212] sm:$0xff]
  %v1196 = vld [vmem:[#allocation2 + $0x21a] sm:$0xff]
  %v1197 = vld [vmem:[#allocation2 + $0x22a] sm:$0xff]
  %v1198 = vld [vmem:[#allocation2 + $0x232] sm:$0xff]
  %v1199 = vld [vmem:[#allocation2 + $0x242] sm:$0xff]
  %v1200 = vld [vmem:[#allocation2 + $0x24a] sm:$0xff]
  %v1201 = vld [vmem:[#allocation2 + $0x25a] sm:$0xff]
  %v1202 = vld [vmem:[#allocation2 + $0x262] sm:$0xff]
  %v1203 = vld [vmem:[#allocation2 + $0x272] sm:$0xff]
  %v1204 = vld [vmem:[#allocation2 + $0x27a] sm:$0xff]
  %v1205 = vld [vmem:[#allocation2 + $0x28a] sm:$0xff]
  %v1206 = vld [vmem:[#allocation2 + $0x292] sm:$0xff]
  %v1207 = vld [vmem:[#allocation2 + $0x2a2] sm:$0xff]
  %v1208 = vld [vmem:[#allocation2 + $0x2aa] sm:$0xff]
  %v1209 = vld [vmem:[#allocation2 + $0x2ba] sm:$0xff]
  %v1210 = vld [vmem:[#allocation2 + $0x2c2] sm:$0xff]
  %v1211 = vld [vmem:[#allocation2 + $0x2d2] sm:$0xff]
  %v1212 = vld [vmem:[#allocation2 + $0x2da] sm:$0xff]
  %v1213 = vld [vmem:[#allocation2 + $0x2ea] sm:$0xff]
  %v1214 = vld [vmem:[#allocation2 + $0x2f2] sm:$0xff]
  %v1215 = vld [vmem:[#allocation2 + $0x302] sm:$0xff]
  %v1216 = vld [vmem:[#allocation2 + $0x30a] sm:$0xff]
  %v1217 = vld [vmem:[#allocation2 + $0x31a] sm:$0xff]
  %v1218 = vld [vmem:[#allocation2 + $0x322] sm:$0xff]
  %v1219 = vld [vmem:[%s3 + $0x100] sm:$0xff]
  %v1220 = vld [vmem:[%s3 + $0x108] sm:$0xff]
  %v1221 = vld [vmem:[%s3 + $0x110] sm:$0xff]
  %v1222 = vld [vmem:[%s3 + $0x118] sm:$0xff]
  %v1223 = vld [vmem:[%s3 + $0x120] sm:$0xff]
  %v1224 = vld [vmem:[%s3 + $0x128] sm:$0xff]
  %v1225 = vld [vmem:[%s3 + $0x130] sm:$0xff]
  %v1226 = vld [vmem:[%s3 + $0x138] sm:$0xff]
  %v1227 = vld [vmem:[%s3 + $0x140] sm:$0xff]
  %v1228 = vld [vmem:[%s3 + $0x148] sm:$0xff]
  %v1229 = vld [vmem:[%s3 + $0x150] sm:$0xff]
  %v1230 = vld [vmem:[%s3 + $0x158] sm:$0xff]
  %v1231 = vld [vmem:[%s3 + $0x160] sm:$0xff]
  %v1232 = vld [vmem:[%s3 + $0x168] sm:$0xff]
  %v1233 = vld [vmem:[%s3 + $0x170] sm:$0xff]
  %v1234 = vld [vmem:[%s3 + $0x178] sm:$0xff]
  %1235 = vmatprep.subr.mxu0 0.0
  %1236 = vmatpush1.msra.mxu0 %v1234
  %1237 = vmatprep.subr.mxu0 0.0
  %1238 = vmatpush1.msra.mxu0 %v1233
  %1239 = vmatprep.subr.mxu0 0.0
  %1240 = vmatpush1.msra.mxu0 %v1232
  %1241 = vmatprep.subr.mxu0 0.0
  %1242 = vmatpush1.msra.mxu0 %v1231
  %1243 = vmatprep.subr.mxu0 0.0
  %1244 = vmatpush1.msra.mxu0 %v1230
  %1245 = vmatprep.subr.mxu0 0.0
  %1246 = vmatpush1.msra.mxu0 %v1229
  %1247 = vmatprep.subr.mxu0 0.0
  %1248 = vmatpush1.msra.mxu0 %v1228
  %1249 = vmatprep.subr.mxu0 0.0
  %1250 = vmatpush1.msra.mxu0 %v1227
  %1251 = vmatprep.subr.mxu0 0.0
  %1252 = vmatpush1.msra.mxu0 %v1226
  %1253 = vmatprep.subr.mxu0 0.0
  %1254 = vmatpush1.msra.mxu0 %v1225
  %1255 = vmatprep.subr.mxu0 0.0
  %1256 = vmatpush1.msra.mxu0 %v1224
  %1257 = vmatprep.subr.mxu0 0.0
  %1258 = vmatpush1.msra.mxu0 %v1223
  %1259 = vmatprep.subr.mxu0 0.0
  %1260 = vmatpush1.msra.mxu0 %v1222
  %1261 = vmatprep.subr.mxu0 0.0
  %1262 = vmatpush1.msra.mxu0 %v1221
  %1263 = vmatprep.subr.mxu0 0.0
  %1264 = vmatpush1.msra.mxu0 %v1220
  %1265 = vmatprep.subr.mxu0 0.0
  %1266 = vmatpush1.msra.mxu0 %v1219
  %1267 = vmatprep.subr.mxu0 0.0
  %1268 = vmatpush2.msra.mxu0 0.0
  %1269 = vmatprep.subr.mxu0 0.0
  %1270 = vmatpush2.msra.mxu0 0.0
  %1271 = vmatprep.subr.mxu0 0.0
  %1272 = vmatpush2.msra.mxu0 0.0
  %1273 = vmatprep.subr.mxu0 0.0
  %1274 = vmatpush2.msra.mxu0 0.0
  %1275 = vmatprep.subr.mxu0 0.0
  %1276 = vmatpush2.msra.mxu0 0.0
  %1277 = vmatprep.subr.mxu0 0.0
  %1278 = vmatpush2.msra.mxu0 0.0
  %1279 = vmatprep.subr.mxu0 0.0
  %1280 = vmatpush2.msra.mxu0 0.0
  %1281 = vmatprep.subr.mxu0 0.0
  %1282 = vmatpush2.msra.mxu0 0.0
  %1283 = vmatprep.subr.mxu0 0.0
  %1284 = vmatpush2.msra.mxu0 0.0
  %1285 = vmatprep.subr.mxu0 0.0
  %1286 = vmatpush2.msra.mxu0 0.0
  %1287 = vmatprep.subr.mxu0 0.0
  %1288 = vmatpush2.msra.mxu0 0.0
  %1289 = vmatprep.subr.mxu0 0.0
  %1290 = vmatpush2.msra.mxu0 0.0
  %1291 = vmatprep.subr.mxu0 0.0
  %1292 = vmatpush2.msra.mxu0 0.0
  %1293 = vmatprep.subr.mxu0 0.0
  %1294 = vmatpush2.msra.mxu0 0.0
  %1295 = vmatprep.subr.mxu0 0.0
  %1296 = vmatpush2.msra.mxu0 0.0
  %1297 = vmatprep.subr.mxu0 0.0
  %1298 = vmatpush2.msra.mxu0 0.0
  %1299 = vmatprep.mubr.f32.mxu0 0.0
  %1300 = vmatmul.mubr.f32.gmra.mxu0 %v1155
  %v1301 = vpop.f32.mrf.mxu0
  %v1302 = vadd.f32 0.0, %v1301
  %v1303 = vpop.f32.mrf.mxu0
  %1304 = vmatprep.mubr.f32.mxu0 0.0
  %1305 = vmatmul.mubr.f32.gmra.mxu0 %v1156
  %v1306 = vpop.f32.mrf.mxu0
  %v1307 = vadd.f32 0.0, %v1306
  %v1308 = vpop.f32.mrf.mxu0
  %1309 = vmatprep.mubr.f32.mxu0 0.0
  %1310 = vmatmul.mubr.f32.gmra.mxu0 %v1157
  %v1311 = vpop.f32.mrf.mxu0
  %v1312 = vadd.f32 0.0, %v1311
  %v1313 = vpop.f32.mrf.mxu0
  %1314 = vmatprep.mubr.f32.mxu0 0.0
  %1315 = vmatmul.mubr.f32.gmra.mxu0 %v1158
  %v1316 = vpop.f32.mrf.mxu0
  %v1317 = vadd.f32 0.0, %v1316
  %v1318 = vpop.f32.mrf.mxu0
  %1319 = vmatprep.mubr.f32.mxu0 0.0
  %1320 = vmatmul.mubr.f32.gmra.mxu0 %v1159
  %v1321 = vpop.f32.mrf.mxu0
  %v1322 = vadd.f32 0.0, %v1321
  %v1323 = vpop.f32.mrf.mxu0
  %1324 = vmatprep.mubr.f32.mxu0 0.0
  %1325 = vmatmul.mubr.f32.gmra.mxu0 %v1160
  %v1326 = vpop.f32.mrf.mxu0
  %v1327 = vadd.f32 0.0, %v1326
  %v1328 = vpop.f32.mrf.mxu0
  %1329 = vmatprep.mubr.f32.mxu0 0.0
  %1330 = vmatmul.mubr.f32.gmra.mxu0 %v1161
  %v1331 = vpop.f32.mrf.mxu0
  %v1332 = vadd.f32 0.0, %v1331
  %v1333 = vpop.f32.mrf.mxu0
  %1334 = vmatprep.mubr.f32.mxu0 0.0
  %1335 = vmatmul.mubr.f32.gmra.mxu0 %v1162
  %v1336 = vpop.f32.mrf.mxu0
  %v1337 = vadd.f32 0.0, %v1336
  %v1338 = vpop.f32.mrf.mxu0
  %1339 = vmatprep.mubr.f32.mxu0 0.0
  %1340 = vmatmul.mubr.f32.gmra.mxu0 %v1163
  %v1341 = vpop.f32.mrf.mxu0
  %v1342 = vadd.f32 0.0, %v1341
  %v1343 = vpop.f32.mrf.mxu0
  %1344 = vmatprep.mubr.f32.mxu0 0.0
  %1345 = vmatmul.mubr.f32.gmra.mxu0 %v1164
  %v1346 = vpop.f32.mrf.mxu0
  %v1347 = vadd.f32 0.0, %v1346
  %v1348 = vpop.f32.mrf.mxu0
  %1349 = vmatprep.mubr.f32.mxu0 0.0
  %1350 = vmatmul.mubr.f32.gmra.mxu0 %v1165
  %v1351 = vpop.f32.mrf.mxu0
  %v1352 = vadd.f32 0.0, %v1351
  %v1353 = vpop.f32.mrf.mxu0
  %1354 = vmatprep.mubr.f32.mxu0 0.0
  %1355 = vmatmul.mubr.f32.gmra.mxu0 %v1166
  %v1356 = vpop.f32.mrf.mxu0
  %v1357 = vadd.f32 0.0, %v1356
  %v1358 = vpop.f32.mrf.mxu0
  %1359 = vmatprep.mubr.f32.mxu0 0.0
  %1360 = vmatmul.mubr.f32.gmra.mxu0 %v1167
  %v1361 = vpop.f32.mrf.mxu0
  %v1362 = vadd.f32 0.0, %v1361
  %v1363 = vpop.f32.mrf.mxu0
  %1364 = vmatprep.mubr.f32.mxu0 0.0
  %1365 = vmatmul.mubr.f32.gmra.mxu0 %v1168
  %v1366 = vpop.f32.mrf.mxu0
  %v1367 = vadd.f32 0.0, %v1366
  %v1368 = vpop.f32.mrf.mxu0
  %1369 = vmatprep.mubr.f32.mxu0 0.0
  %1370 = vmatmul.mubr.f32.gmra.mxu0 %v1169
  %v1371 = vpop.f32.mrf.mxu0
  %v1372 = vadd.f32 0.0, %v1371
  %v1373 = vpop.f32.mrf.mxu0
  %1374 = vmatprep.mubr.f32.mxu0 0.0
  %1375 = vmatmul.mubr.f32.gmra.mxu0 %v1170
  %v1376 = vpop.f32.mrf.mxu0
  %v1377 = vadd.f32 0.0, %v1376
  %v1378 = vpop.f32.mrf.mxu0
  %1379 = vmatprep.mubr.f32.mxu0 0.0
  %1380 = vmatmul.mubr.f32.gmra.mxu0 %v1171
  %v1381 = vpop.f32.mrf.mxu0
  %v1382 = vadd.f32 0.0, %v1381
  %v1383 = vpop.f32.mrf.mxu0
  %1384 = vmatprep.mubr.f32.mxu0 0.0
  %1385 = vmatmul.mubr.f32.gmra.mxu0 %v1172
  %v1386 = vpop.f32.mrf.mxu0
  %v1387 = vadd.f32 0.0, %v1386
  %v1388 = vpop.f32.mrf.mxu0
  %1389 = vmatprep.mubr.f32.mxu0 0.0
  %1390 = vmatmul.mubr.f32.gmra.mxu0 %v1173
  %v1391 = vpop.f32.mrf.mxu0
  %v1392 = vadd.f32 0.0, %v1391
  %v1393 = vpop.f32.mrf.mxu0
  %1394 = vmatprep.mubr.f32.mxu0 0.0
  %1395 = vmatmul.mubr.f32.gmra.mxu0 %v1174
  %v1396 = vpop.f32.mrf.mxu0
  %v1397 = vadd.f32 0.0, %v1396
  %v1398 = vpop.f32.mrf.mxu0
  %1399 = vmatprep.mubr.f32.mxu0 0.0
  %1400 = vmatmul.mubr.f32.gmra.mxu0 %v1175
  %v1401 = vpop.f32.mrf.mxu0
  %v1402 = vadd.f32 0.0, %v1401
  %v1403 = vpop.f32.mrf.mxu0
  %1404 = vmatprep.mubr.f32.mxu0 0.0
  %1405 = vmatmul.mubr.f32.gmra.mxu0 %v1176
  %v1406 = vpop.f32.mrf.mxu0
  %v1407 = vadd.f32 0.0, %v1406
  %v1408 = vpop.f32.mrf.mxu0
  %1409 = vmatprep.mubr.f32.mxu0 0.0
  %1410 = vmatmul.mubr.f32.gmra.mxu0 %v1177
  %v1411 = vpop.f32.mrf.mxu0
  %v1412 = vadd.f32 0.0, %v1411
  %v1413 = vpop.f32.mrf.mxu0
  %1414 = vmatprep.mubr.f32.mxu0 0.0
  %1415 = vmatmul.mubr.f32.gmra.mxu0 %v1178
  %v1416 = vpop.f32.mrf.mxu0
  %v1417 = vadd.f32 0.0, %v1416
  %v1418 = vpop.f32.mrf.mxu0
  %1419 = vmatprep.mubr.f32.mxu0 0.0
  %1420 = vmatmul.mubr.f32.gmra.mxu0 %v1179
  %v1421 = vpop.f32.mrf.mxu0
  %v1422 = vadd.f32 0.0, %v1421
  %v1423 = vpop.f32.mrf.mxu0
  %1424 = vmatprep.mubr.f32.mxu0 0.0
  %1425 = vmatmul.mubr.f32.gmra.mxu0 %v1180
  %v1426 = vpop.f32.mrf.mxu0
  %v1427 = vadd.f32 0.0, %v1426
  %v1428 = vpop.f32.mrf.mxu0
  %1429 = vmatprep.mubr.f32.mxu0 0.0
  %1430 = vmatmul.mubr.f32.gmra.mxu0 %v1181
  %v1431 = vpop.f32.mrf.mxu0
  %v1432 = vadd.f32 0.0, %v1431
  %v1433 = vpop.f32.mrf.mxu0
  %1434 = vmatprep.mubr.f32.mxu0 0.0
  %1435 = vmatmul.mubr.f32.gmra.mxu0 %v1182
  %v1436 = vpop.f32.mrf.mxu0
  %v1437 = vadd.f32 0.0, %v1436
  %v1438 = vpop.f32.mrf.mxu0
  %1439 = vmatprep.mubr.f32.mxu0 0.0
  %1440 = vmatmul.mubr.f32.gmra.mxu0 %v1183
  %v1441 = vpop.f32.mrf.mxu0
  %v1442 = vadd.f32 0.0, %v1441
  %v1443 = vpop.f32.mrf.mxu0
  %1444 = vmatprep.mubr.f32.mxu0 0.0
  %1445 = vmatmul.mubr.f32.gmra.mxu0 %v1184
  %v1446 = vpop.f32.mrf.mxu0
  %v1447 = vadd.f32 0.0, %v1446
  %v1448 = vpop.f32.mrf.mxu0
  %1449 = vmatprep.mubr.f32.mxu0 0.0
  %1450 = vmatmul.mubr.f32.gmra.mxu0 %v1185
  %v1451 = vpop.f32.mrf.mxu0
  %v1452 = vadd.f32 0.0, %v1451
  %v1453 = vpop.f32.mrf.mxu0
  %1454 = vmatprep.mubr.f32.mxu0 0.0
  %1455 = vmatmul.mubr.f32.gmra.mxu0 %v1186
  %v1456 = vpop.f32.mrf.mxu0
  %v1457 = vadd.f32 0.0, %v1456
  %v1458 = vpop.f32.mrf.mxu0
  %1459 = vmatprep.mubr.f32.mxu0 0.0
  %1460 = vmatmul.mubr.f32.gmra.mxu0 %v1187
  %v1461 = vpop.f32.mrf.mxu0
  %v1462 = vadd.f32 0.0, %v1461
  %v1463 = vpop.f32.mrf.mxu0
  %1464 = vmatprep.mubr.f32.mxu0 0.0
  %1465 = vmatmul.mubr.f32.gmra.mxu0 %v1188
  %v1466 = vpop.f32.mrf.mxu0
  %v1467 = vadd.f32 0.0, %v1466
  %v1468 = vpop.f32.mrf.mxu0
  %1469 = vmatprep.mubr.f32.mxu0 0.0
  %1470 = vmatmul.mubr.f32.gmra.mxu0 %v1189
  %v1471 = vpop.f32.mrf.mxu0
  %v1472 = vadd.f32 0.0, %v1471
  %v1473 = vpop.f32.mrf.mxu0
  %1474 = vmatprep.mubr.f32.mxu0 0.0
  %1475 = vmatmul.mubr.f32.gmra.mxu0 %v1190
  %v1476 = vpop.f32.mrf.mxu0
  %v1477 = vadd.f32 0.0, %v1476
  %v1478 = vpop.f32.mrf.mxu0
  %1479 = vmatprep.mubr.f32.mxu0 0.0
  %1480 = vmatmul.mubr.f32.gmra.mxu0 %v1191
  %v1481 = vpop.f32.mrf.mxu0
  %v1482 = vadd.f32 0.0, %v1481
  %v1483 = vpop.f32.mrf.mxu0
  %1484 = vmatprep.mubr.f32.mxu0 0.0
  %1485 = vmatmul.mubr.f32.gmra.mxu0 %v1192
  %v1486 = vpop.f32.mrf.mxu0
  %v1487 = vadd.f32 0.0, %v1486
  %v1488 = vpop.f32.mrf.mxu0
  %1489 = vmatprep.mubr.f32.mxu0 0.0
  %1490 = vmatmul.mubr.f32.gmra.mxu0 %v1193
  %v1491 = vpop.f32.mrf.mxu0
  %v1492 = vadd.f32 0.0, %v1491
  %v1493 = vpop.f32.mrf.mxu0
  %1494 = vmatprep.mubr.f32.mxu0 0.0
  %1495 = vmatmul.mubr.f32.gmra.mxu0 %v1194
  %v1496 = vpop.f32.mrf.mxu0
  %v1497 = vadd.f32 0.0, %v1496
  %v1498 = vpop.f32.mrf.mxu0
  %1499 = vmatprep.mubr.f32.mxu0 0.0
  %1500 = vmatmul.mubr.f32.gmra.mxu0 %v1195
  %v1501 = vpop.f32.mrf.mxu0
  %v1502 = vadd.f32 0.0, %v1501
  %v1503 = vpop.f32.mrf.mxu0
  %1504 = vmatprep.mubr.f32.mxu0 0.0
  %1505 = vmatmul.mubr.f32.gmra.mxu0 %v1196
  %v1506 = vpop.f32.mrf.mxu0
  %v1507 = vadd.f32 0.0, %v1506
  %v1508 = vpop.f32.mrf.mxu0
  %1509 = vmatprep.mubr.f32.mxu0 0.0
  %1510 = vmatmul.mubr.f32.gmra.mxu0 %v1197
  %v1511 = vpop.f32.mrf.mxu0
  %v1512 = vadd.f32 0.0, %v1511
  %v1513 = vpop.f32.mrf.mxu0
  %1514 = vmatprep.mubr.f32.mxu0 0.0
  %1515 = vmatmul.mubr.f32.gmra.mxu0 %v1198
  %v1516 = vpop.f32.mrf.mxu0
  %v1517 = vadd.f32 0.0, %v1516
  %v1518 = vpop.f32.mrf.mxu0
  %1519 = vmatprep.mubr.f32.mxu0 0.0
  %1520 = vmatmul.mubr.f32.gmra.mxu0 %v1199
  %v1521 = vpop.f32.mrf.mxu0
  %v1522 = vadd.f32 0.0, %v1521
  %v1523 = vpop.f32.mrf.mxu0
  %1524 = vmatprep.mubr.f32.mxu0 0.0
  %1525 = vmatmul.mubr.f32.gmra.mxu0 %v1200
  %v1526 = vpop.f32.mrf.mxu0
  %v1527 = vadd.f32 0.0, %v1526
  %v1528 = vpop.f32.mrf.mxu0
  %1529 = vmatprep.mubr.f32.mxu0 0.0
  %1530 = vmatmul.mubr.f32.gmra.mxu0 %v1201
  %v1531 = vpop.f32.mrf.mxu0
  %v1532 = vadd.f32 0.0, %v1531
  %v1533 = vpop.f32.mrf.mxu0
  %1534 = vmatprep.mubr.f32.mxu0 0.0
  %1535 = vmatmul.mubr.f32.gmra.mxu0 %v1202
  %v1536 = vpop.f32.mrf.mxu0
  %v1537 = vadd.f32 0.0, %v1536
  %v1538 = vpop.f32.mrf.mxu0
  %1539 = vmatprep.mubr.f32.mxu0 0.0
  %1540 = vmatmul.mubr.f32.gmra.mxu0 %v1203
  %v1541 = vpop.f32.mrf.mxu0
  %v1542 = vadd.f32 0.0, %v1541
  %v1543 = vpop.f32.mrf.mxu0
  %1544 = vmatprep.mubr.f32.mxu0 0.0
  %1545 = vmatmul.mubr.f32.gmra.mxu0 %v1204
  %v1546 = vpop.f32.mrf.mxu0
  %v1547 = vadd.f32 0.0, %v1546
  %v1548 = vpop.f32.mrf.mxu0
  %1549 = vmatprep.mubr.f32.mxu0 0.0
  %1550 = vmatmul.mubr.f32.gmra.mxu0 %v1205
  %v1551 = vpop.f32.mrf.mxu0
  %v1552 = vadd.f32 0.0, %v1551
  %v1553 = vpop.f32.mrf.mxu0
  %1554 = vmatprep.mubr.f32.mxu0 0.0
  %1555 = vmatmul.mubr.f32.gmra.mxu0 %v1206
  %v1556 = vpop.f32.mrf.mxu0
  %v1557 = vadd.f32 0.0, %v1556
  %v1558 = vpop.f32.mrf.mxu0
  %1559 = vmatprep.mubr.f32.mxu0 0.0
  %1560 = vmatmul.mubr.f32.gmra.mxu0 %v1207
  %v1561 = vpop.f32.mrf.mxu0
  %v1562 = vadd.f32 0.0, %v1561
  %v1563 = vpop.f32.mrf.mxu0
  %1564 = vmatprep.mubr.f32.mxu0 0.0
  %1565 = vmatmul.mubr.f32.gmra.mxu0 %v1208
  %v1566 = vpop.f32.mrf.mxu0
  %v1567 = vadd.f32 0.0, %v1566
  %v1568 = vpop.f32.mrf.mxu0
  %1569 = vmatprep.mubr.f32.mxu0 0.0
  %1570 = vmatmul.mubr.f32.gmra.mxu0 %v1209
  %v1571 = vpop.f32.mrf.mxu0
  %v1572 = vadd.f32 0.0, %v1571
  %v1573 = vpop.f32.mrf.mxu0
  %1574 = vmatprep.mubr.f32.mxu0 0.0
  %1575 = vmatmul.mubr.f32.gmra.mxu0 %v1210
  %v1576 = vpop.f32.mrf.mxu0
  %v1577 = vadd.f32 0.0, %v1576
  %v1578 = vpop.f32.mrf.mxu0
  %1579 = vmatprep.mubr.f32.mxu0 0.0
  %1580 = vmatmul.mubr.f32.gmra.mxu0 %v1211
  %v1581 = vpop.f32.mrf.mxu0
  %v1582 = vadd.f32 0.0, %v1581
  %v1583 = vpop.f32.mrf.mxu0
  %1584 = vmatprep.mubr.f32.mxu0 0.0
  %1585 = vmatmul.mubr.f32.gmra.mxu0 %v1212
  %v1586 = vpop.f32.mrf.mxu0
  %v1587 = vadd.f32 0.0, %v1586
  %v1588 = vpop.f32.mrf.mxu0
  %1589 = vmatprep.mubr.f32.mxu0 0.0
  %1590 = vmatmul.mubr.f32.gmra.mxu0 %v1213
  %v1591 = vpop.f32.mrf.mxu0
  %v1592 = vadd.f32 0.0, %v1591
  %v1593 = vpop.f32.mrf.mxu0
  %1594 = vmatprep.mubr.f32.mxu0 0.0
  %1595 = vmatmul.mubr.f32.gmra.mxu0 %v1214
  %v1596 = vpop.f32.mrf.mxu0
  %v1597 = vadd.f32 0.0, %v1596
  %v1598 = vpop.f32.mrf.mxu0
  %1599 = vmatprep.mubr.f32.mxu0 0.0
  %1600 = vmatmul.mubr.f32.gmra.mxu0 %v1215
  %v1601 = vpop.f32.mrf.mxu0
  %v1602 = vadd.f32 0.0, %v1601
  %v1603 = vpop.f32.mrf.mxu0
  %1604 = vmatprep.mubr.f32.mxu0 0.0
  %1605 = vmatmul.mubr.f32.gmra.mxu0 %v1216
  %v1606 = vpop.f32.mrf.mxu0
  %v1607 = vadd.f32 0.0, %v1606
  %v1608 = vpop.f32.mrf.mxu0
  %1609 = vmatprep.mubr.f32.mxu0 0.0
  %1610 = vmatmul.mubr.f32.gmra.mxu0 %v1217
  %v1611 = vpop.f32.mrf.mxu0
  %v1612 = vadd.f32 0.0, %v1611
  %v1613 = vpop.f32.mrf.mxu0
  %1614 = vmatprep.mubr.f32.mxu0 0.0
  %1615 = vmatmul.mubr.f32.gmra.mxu0 %v1218
  %v1616 = vpop.f32.mrf.mxu0
  %v1617 = vadd.f32 0.0, %v1616
  %v1618 = vpop.f32.mrf.mxu0
  %1619 = vdwg.mxu0
  %v1620 = vadd.f32 %v837, %v1302
  %v1621 = vadd.f32 %v842, %v1307
  %v1622 = vadd.f32 %v847, %v1312
  %v1623 = vadd.f32 %v852, %v1317
  %v1624 = vadd.f32 %v857, %v1322
  %v1625 = vadd.f32 %v862, %v1327
  %v1626 = vadd.f32 %v867, %v1332
  %v1627 = vadd.f32 %v872, %v1337
  %v1628 = vadd.f32 %v877, %v1342
  %v1629 = vadd.f32 %v882, %v1347
  %v1630 = vadd.f32 %v887, %v1352
  %v1631 = vadd.f32 %v892, %v1357
  %v1632 = vadd.f32 %v897, %v1362
  %v1633 = vadd.f32 %v902, %v1367
  %v1634 = vadd.f32 %v907, %v1372
  %v1635 = vadd.f32 %v912, %v1377
  %v1636 = vadd.f32 %v917, %v1382
  %v1637 = vadd.f32 %v922, %v1387
  %v1638 = vadd.f32 %v927, %v1392
  %v1639 = vadd.f32 %v932, %v1397
  %v1640 = vadd.f32 %v937, %v1402
  %v1641 = vadd.f32 %v942, %v1407
  %v1642 = vadd.f32 %v947, %v1412
  %v1643 = vadd.f32 %v952, %v1417
  %v1644 = vadd.f32 %v957, %v1422
  %v1645 = vadd.f32 %v962, %v1427
  %v1646 = vadd.f32 %v967, %v1432
  %v1647 = vadd.f32 %v972, %v1437
  %v1648 = vadd.f32 %v977, %v1442
  %v1649 = vadd.f32 %v982, %v1447
  %v1650 = vadd.f32 %v987, %v1452
  %v1651 = vadd.f32 %v992, %v1457
  %v1652 = vadd.f32 %v997, %v1462
  %v1653 = vadd.f32 %v1002, %v1467
  %v1654 = vadd.f32 %v1007, %v1472
  %v1655 = vadd.f32 %v1012, %v1477
  %v1656 = vadd.f32 %v1017, %v1482
  %v1657 = vadd.f32 %v1022, %v1487
  %v1658 = vadd.f32 %v1027, %v1492
  %v1659 = vadd.f32 %v1032, %v1497
  %v1660 = vadd.f32 %v1037, %v1502
  %v1661 = vadd.f32 %v1042, %v1507
  %v1662 = vadd.f32 %v1047, %v1512
  %v1663 = vadd.f32 %v1052, %v1517
  %v1664 = vadd.f32 %v1057, %v1522
  %v1665 = vadd.f32 %v1062, %v1527
  %v1666 = vadd.f32 %v1067, %v1532
  %v1667 = vadd.f32 %v1072, %v1537
  %v1668 = vadd.f32 %v1077, %v1542
  %v1669 = vadd.f32 %v1082, %v1547
  %v1670 = vadd.f32 %v1087, %v1552
  %v1671 = vadd.f32 %v1092, %v1557
  %v1672 = vadd.f32 %v1097, %v1562
  %v1673 = vadd.f32 %v1102, %v1567
  %v1674 = vadd.f32 %v1107, %v1572
  %v1675 = vadd.f32 %v1112, %v1577
  %v1676 = vadd.f32 %v1117, %v1582
  %v1677 = vadd.f32 %v1122, %v1587
  %v1678 = vadd.f32 %v1127, %v1592
  %v1679 = vadd.f32 %v1132, %v1597
  %v1680 = vadd.f32 %v1137, %v1602
  %v1681 = vadd.f32 %v1142, %v1607
  %v1682 = vadd.f32 %v1147, %v1612
  %v1683 = vadd.f32 %v1152, %v1617
  %v1684 = vld [vmem:[%s83] sm:$0xff]
  %v1685 = vld [vmem:[%s83 + $0x8] sm:$0xff]
  %v1686 = vld [vmem:[%s83 + $0x18] sm:$0xff]
  %v1687 = vld [vmem:[%s83 + $0x20] sm:$0xff]
  %v1688 = vld [vmem:[%s83 + $0x30] sm:$0xff]
  %v1689 = vld [vmem:[%s83 + $0x38] sm:$0xff]
  %v1690 = vld [vmem:[%s83 + $0x48] sm:$0xff]
  %v1691 = vld [vmem:[%s83 + $0x50] sm:$0xff]
  %v1692 = vld [vmem:[%s83 + $0x60] sm:$0xff]
  %v1693 = vld [vmem:[%s83 + $0x68] sm:$0xff]
  %v1694 = vld [vmem:[%s83 + $0x78] sm:$0xff]
  %v1695 = vld [vmem:[%s83 + $0x80] sm:$0xff]
  %v1696 = vld [vmem:[%s83 + $0x90] sm:$0xff]
  %v1697 = vld [vmem:[%s83 + $0x98] sm:$0xff]
  %v1698 = vld [vmem:[%s83 + $0xa8] sm:$0xff]
  %v1699 = vld [vmem:[%s83 + $0xb0] sm:$0xff]
  %v1700 = vld [vmem:[%s83 + $0xc0] sm:$0xff]
  %v1701 = vld [vmem:[%s83 + $0xc8] sm:$0xff]
  %v1702 = vld [vmem:[%s83 + $0xd8] sm:$0xff]
  %v1703 = vld [vmem:[%s83 + $0xe0] sm:$0xff]
  %v1704 = vld [vmem:[%s83 + $0xf0] sm:$0xff]
  %v1705 = vld [vmem:[%s83 + $0xf8] sm:$0xff]
  %v1706 = vld [vmem:[%s83 + $0x108] sm:$0xff]
  %v1707 = vld [vmem:[%s83 + $0x110] sm:$0xff]
  %v1708 = vld [vmem:[%s83 + $0x120] sm:$0xff]
  %v1709 = vld [vmem:[%s83 + $0x128] sm:$0xff]
  %v1710 = vld [vmem:[%s83 + $0x138] sm:$0xff]
  %v1711 = vld [vmem:[%s83 + $0x140] sm:$0xff]
  %v1712 = vld [vmem:[%s83 + $0x150] sm:$0xff]
  %v1713 = vld [vmem:[%s83 + $0x158] sm:$0xff]
  %v1714 = vld [vmem:[%s83 + $0x168] sm:$0xff]
  %v1715 = vld [vmem:[%s83 + $0x170] sm:$0xff]
  %v1716 = vld [vmem:[%s83 + $0x1b0] sm:$0xff]
  %v1717 = vld [vmem:[%s83 + $0x1b8] sm:$0xff]
  %v1718 = vld [vmem:[%s83 + $0x1c8] sm:$0xff]
  %v1719 = vld [vmem:[%s83 + $0x1d0] sm:$0xff]
  %v1720 = vld [vmem:[%s83 + $0x1e0] sm:$0xff]
  %v1721 = vld [vmem:[%s83 + $0x1e8] sm:$0xff]
  %v1722 = vld [vmem:[%s83 + $0x1f8] sm:$0xff]
  %v1723 = vld [vmem:[%s83 + $0x200] sm:$0xff]
  %v1724 = vld [vmem:[%s83 + $0x210] sm:$0xff]
  %v1725 = vld [vmem:[%s83 + $0x218] sm:$0xff]
  %v1726 = vld [vmem:[%s83 + $0x228] sm:$0xff]
  %v1727 = vld [vmem:[%s83 + $0x230] sm:$0xff]
  %v1728 = vld [vmem:[%s83 + $0x240] sm:$0xff]
  %v1729 = vld [vmem:[%s83 + $0x248] sm:$0xff]
  %v1730 = vld [vmem:[%s83 + $0x258] sm:$0xff]
  %v1731 = vld [vmem:[%s83 + $0x260] sm:$0xff]
  %v1732 = vld [vmem:[%s83 + $0x270] sm:$0xff]
  %v1733 = vld [vmem:[%s83 + $0x278] sm:$0xff]
  %v1734 = vld [vmem:[%s83 + $0x288] sm:$0xff]
  %v1735 = vld [vmem:[%s83 + $0x290] sm:$0xff]
  %v1736 = vld [vmem:[%s83 + $0x2a0] sm:$0xff]
  %v1737 = vld [vmem:[%s83 + $0x2a8] sm:$0xff]
  %v1738 = vld [vmem:[%s83 + $0x2b8] sm:$0xff]
  %v1739 = vld [vmem:[%s83 + $0x2c0] sm:$0xff]
  %v1740 = vld [vmem:[%s83 + $0x2d0] sm:$0xff]
  %v1741 = vld [vmem:[%s83 + $0x2d8] sm:$0xff]
  %v1742 = vld [vmem:[%s83 + $0x2e8] sm:$0xff]
  %v1743 = vld [vmem:[%s83 + $0x2f0] sm:$0xff]
  %v1744 = vld [vmem:[%s83 + $0x300] sm:$0xff]
  %v1745 = vld [vmem:[%s83 + $0x308] sm:$0xff]
  %v1746 = vld [vmem:[%s83 + $0x318] sm:$0xff]
  %v1747 = vld [vmem:[%s83 + $0x320] sm:$0xff]
  %v1748 = vld [vmem:[%s3 + $0x180] sm:$0xff]
  %v1749 = vld [vmem:[%s3 + $0x188] sm:$0xff]
  %v1750 = vld [vmem:[%s3 + $0x190] sm:$0xff]
  %v1751 = vld [vmem:[%s3 + $0x198] sm:$0xff]
  %v1752 = vld [vmem:[%s3 + $0x1a0] sm:$0xff]
  %v1753 = vld [vmem:[%s3 + $0x1a8] sm:$0xff]
  %v1754 = vld [vmem:[%s3 + $0x1b0] sm:$0xff]
  %v1755 = vld [vmem:[%s3 + $0x1b8] sm:$0xff]
  %v1756 = vld [vmem:[%s3 + $0x1c0] sm:$0xff]
  %v1757 = vld [vmem:[%s3 + $0x1c8] sm:$0xff]
  %v1758 = vld [vmem:[%s3 + $0x1d0] sm:$0xff]
  %v1759 = vld [vmem:[%s3 + $0x1d8] sm:$0xff]
  %v1760 = vld [vmem:[%s3 + $0x1e0] sm:$0xff]
  %v1761 = vld [vmem:[%s3 + $0x1e8] sm:$0xff]
  %v1762 = vld [vmem:[%s3 + $0x1f0] sm:$0xff]
  %v1763 = vld [vmem:[%s3 + $0x1f8] sm:$0xff]
  %1764 = vmatprep.subr.mxu0 0.0
  %1765 = vmatpush1.msra.mxu0 %v1763
  %1766 = vmatprep.subr.mxu0 0.0
  %1767 = vmatpush1.msra.mxu0 %v1762
  %1768 = vmatprep.subr.mxu0 0.0
  %1769 = vmatpush1.msra.mxu0 %v1761
  %1770 = vmatprep.subr.mxu0 0.0
  %1771 = vmatpush1.msra.mxu0 %v1760
  %1772 = vmatprep.subr.mxu0 0.0
  %1773 = vmatpush1.msra.mxu0 %v1759
  %1774 = vmatprep.subr.mxu0 0.0
  %1775 = vmatpush1.msra.mxu0 %v1758
  %1776 = vmatprep.subr.mxu0 0.0
  %1777 = vmatpush1.msra.mxu0 %v1757
  %1778 = vmatprep.subr.mxu0 0.0
  %1779 = vmatpush1.msra.mxu0 %v1756
  %1780 = vmatprep.subr.mxu0 0.0
  %1781 = vmatpush1.msra.mxu0 %v1755
  %1782 = vmatprep.subr.mxu0 0.0
  %1783 = vmatpush1.msra.mxu0 %v1754
  %1784 = vmatprep.subr.mxu0 0.0
  %1785 = vmatpush1.msra.mxu0 %v1753
  %1786 = vmatprep.subr.mxu0 0.0
  %1787 = vmatpush1.msra.mxu0 %v1752
  %1788 = vmatprep.subr.mxu0 0.0
  %1789 = vmatpush1.msra.mxu0 %v1751
  %1790 = vmatprep.subr.mxu0 0.0
  %1791 = vmatpush1.msra.mxu0 %v1750
  %1792 = vmatprep.subr.mxu0 0.0
  %1793 = vmatpush1.msra.mxu0 %v1749
  %1794 = vmatprep.subr.mxu0 0.0
  %1795 = vmatpush1.msra.mxu0 %v1748
  %1796 = vmatprep.subr.mxu0 0.0
  %1797 = vmatpush2.msra.mxu0 0.0
  %1798 = vmatprep.subr.mxu0 0.0
  %1799 = vmatpush2.msra.mxu0 0.0
  %1800 = vmatprep.subr.mxu0 0.0
  %1801 = vmatpush2.msra.mxu0 0.0
  %1802 = vmatprep.subr.mxu0 0.0
  %1803 = vmatpush2.msra.mxu0 0.0
  %1804 = vmatprep.subr.mxu0 0.0
  %1805 = vmatpush2.msra.mxu0 0.0
  %1806 = vmatprep.subr.mxu0 0.0
  %1807 = vmatpush2.msra.mxu0 0.0
  %1808 = vmatprep.subr.mxu0 0.0
  %1809 = vmatpush2.msra.mxu0 0.0
  %1810 = vmatprep.subr.mxu0 0.0
  %1811 = vmatpush2.msra.mxu0 0.0
  %1812 = vmatprep.subr.mxu0 0.0
  %1813 = vmatpush2.msra.mxu0 0.0
  %1814 = vmatprep.subr.mxu0 0.0
  %1815 = vmatpush2.msra.mxu0 0.0
  %1816 = vmatprep.subr.mxu0 0.0
  %1817 = vmatpush2.msra.mxu0 0.0
  %1818 = vmatprep.subr.mxu0 0.0
  %1819 = vmatpush2.msra.mxu0 0.0
  %1820 = vmatprep.subr.mxu0 0.0
  %1821 = vmatpush2.msra.mxu0 0.0
  %1822 = vmatprep.subr.mxu0 0.0
  %1823 = vmatpush2.msra.mxu0 0.0
  %1824 = vmatprep.subr.mxu0 0.0
  %1825 = vmatpush2.msra.mxu0 0.0
  %1826 = vmatprep.subr.mxu0 0.0
  %1827 = vmatpush2.msra.mxu0 0.0
  %1828 = vmatprep.mubr.f32.mxu0 0.0
  %1829 = vmatmul.mubr.f32.gmra.mxu0 %v1684
  %v1830 = vpop.f32.mrf.mxu0
  %v1831 = vadd.f32 0.0, %v1830
  %v1832 = vpop.f32.mrf.mxu0
  %1833 = vmatprep.mubr.f32.mxu0 0.0
  %1834 = vmatmul.mubr.f32.gmra.mxu0 %v1685
  %v1835 = vpop.f32.mrf.mxu0
  %v1836 = vadd.f32 0.0, %v1835
  %v1837 = vpop.f32.mrf.mxu0
  %1838 = vmatprep.mubr.f32.mxu0 0.0
  %1839 = vmatmul.mubr.f32.gmra.mxu0 %v1686
  %v1840 = vpop.f32.mrf.mxu0
  %v1841 = vadd.f32 0.0, %v1840
  %v1842 = vpop.f32.mrf.mxu0
  %1843 = vmatprep.mubr.f32.mxu0 0.0
  %1844 = vmatmul.mubr.f32.gmra.mxu0 %v1687
  %v1845 = vpop.f32.mrf.mxu0
  %v1846 = vadd.f32 0.0, %v1845
  %v1847 = vpop.f32.mrf.mxu0
  %1848 = vmatprep.mubr.f32.mxu0 0.0
  %1849 = vmatmul.mubr.f32.gmra.mxu0 %v1688
  %v1850 = vpop.f32.mrf.mxu0
  %v1851 = vadd.f32 0.0, %v1850
  %v1852 = vpop.f32.mrf.mxu0
  %1853 = vmatprep.mubr.f32.mxu0 0.0
  %1854 = vmatmul.mubr.f32.gmra.mxu0 %v1689
  %v1855 = vpop.f32.mrf.mxu0
  %v1856 = vadd.f32 0.0, %v1855
  %v1857 = vpop.f32.mrf.mxu0
  %1858 = vmatprep.mubr.f32.mxu0 0.0
  %1859 = vmatmul.mubr.f32.gmra.mxu0 %v1690
  %v1860 = vpop.f32.mrf.mxu0
  %v1861 = vadd.f32 0.0, %v1860
  %v1862 = vpop.f32.mrf.mxu0
  %1863 = vmatprep.mubr.f32.mxu0 0.0
  %1864 = vmatmul.mubr.f32.gmra.mxu0 %v1691
  %v1865 = vpop.f32.mrf.mxu0
  %v1866 = vadd.f32 0.0, %v1865
  %v1867 = vpop.f32.mrf.mxu0
  %1868 = vmatprep.mubr.f32.mxu0 0.0
  %1869 = vmatmul.mubr.f32.gmra.mxu0 %v1692
  %v1870 = vpop.f32.mrf.mxu0
  %v1871 = vadd.f32 0.0, %v1870
  %v1872 = vpop.f32.mrf.mxu0
  %1873 = vmatprep.mubr.f32.mxu0 0.0
  %1874 = vmatmul.mubr.f32.gmra.mxu0 %v1693
  %v1875 = vpop.f32.mrf.mxu0
  %v1876 = vadd.f32 0.0, %v1875
  %v1877 = vpop.f32.mrf.mxu0
  %1878 = vmatprep.mubr.f32.mxu0 0.0
  %1879 = vmatmul.mubr.f32.gmra.mxu0 %v1694
  %v1880 = vpop.f32.mrf.mxu0
  %v1881 = vadd.f32 0.0, %v1880
  %v1882 = vpop.f32.mrf.mxu0
  %1883 = vmatprep.mubr.f32.mxu0 0.0
  %1884 = vmatmul.mubr.f32.gmra.mxu0 %v1695
  %v1885 = vpop.f32.mrf.mxu0
  %v1886 = vadd.f32 0.0, %v1885
  %v1887 = vpop.f32.mrf.mxu0
  %1888 = vmatprep.mubr.f32.mxu0 0.0
  %1889 = vmatmul.mubr.f32.gmra.mxu0 %v1696
  %v1890 = vpop.f32.mrf.mxu0
  %v1891 = vadd.f32 0.0, %v1890
  %v1892 = vpop.f32.mrf.mxu0
  %1893 = vmatprep.mubr.f32.mxu0 0.0
  %1894 = vmatmul.mubr.f32.gmra.mxu0 %v1697
  %v1895 = vpop.f32.mrf.mxu0
  %v1896 = vadd.f32 0.0, %v1895
  %v1897 = vpop.f32.mrf.mxu0
  %1898 = vmatprep.mubr.f32.mxu0 0.0
  %1899 = vmatmul.mubr.f32.gmra.mxu0 %v1698
  %v1900 = vpop.f32.mrf.mxu0
  %v1901 = vadd.f32 0.0, %v1900
  %v1902 = vpop.f32.mrf.mxu0
  %1903 = vmatprep.mubr.f32.mxu0 0.0
  %1904 = vmatmul.mubr.f32.gmra.mxu0 %v1699
  %v1905 = vpop.f32.mrf.mxu0
  %v1906 = vadd.f32 0.0, %v1905
  %v1907 = vpop.f32.mrf.mxu0
  %1908 = vmatprep.mubr.f32.mxu0 0.0
  %1909 = vmatmul.mubr.f32.gmra.mxu0 %v1700
  %v1910 = vpop.f32.mrf.mxu0
  %v1911 = vadd.f32 0.0, %v1910
  %v1912 = vpop.f32.mrf.mxu0
  %1913 = vmatprep.mubr.f32.mxu0 0.0
  %1914 = vmatmul.mubr.f32.gmra.mxu0 %v1701
  %v1915 = vpop.f32.mrf.mxu0
  %v1916 = vadd.f32 0.0, %v1915
  %v1917 = vpop.f32.mrf.mxu0
  %1918 = vmatprep.mubr.f32.mxu0 0.0
  %1919 = vmatmul.mubr.f32.gmra.mxu0 %v1702
  %v1920 = vpop.f32.mrf.mxu0
  %v1921 = vadd.f32 0.0, %v1920
  %v1922 = vpop.f32.mrf.mxu0
  %1923 = vmatprep.mubr.f32.mxu0 0.0
  %1924 = vmatmul.mubr.f32.gmra.mxu0 %v1703
  %v1925 = vpop.f32.mrf.mxu0
  %v1926 = vadd.f32 0.0, %v1925
  %v1927 = vpop.f32.mrf.mxu0
  %1928 = vmatprep.mubr.f32.mxu0 0.0
  %1929 = vmatmul.mubr.f32.gmra.mxu0 %v1704
  %v1930 = vpop.f32.mrf.mxu0
  %v1931 = vadd.f32 0.0, %v1930
  %v1932 = vpop.f32.mrf.mxu0
  %1933 = vmatprep.mubr.f32.mxu0 0.0
  %1934 = vmatmul.mubr.f32.gmra.mxu0 %v1705
  %v1935 = vpop.f32.mrf.mxu0
  %v1936 = vadd.f32 0.0, %v1935
  %v1937 = vpop.f32.mrf.mxu0
  %1938 = vmatprep.mubr.f32.mxu0 0.0
  %1939 = vmatmul.mubr.f32.gmra.mxu0 %v1706
  %v1940 = vpop.f32.mrf.mxu0
  %v1941 = vadd.f32 0.0, %v1940
  %v1942 = vpop.f32.mrf.mxu0
  %1943 = vmatprep.mubr.f32.mxu0 0.0
  %1944 = vmatmul.mubr.f32.gmra.mxu0 %v1707
  %v1945 = vpop.f32.mrf.mxu0
  %v1946 = vadd.f32 0.0, %v1945
  %v1947 = vpop.f32.mrf.mxu0
  %1948 = vmatprep.mubr.f32.mxu0 0.0
  %1949 = vmatmul.mubr.f32.gmra.mxu0 %v1708
  %v1950 = vpop.f32.mrf.mxu0
  %v1951 = vadd.f32 0.0, %v1950
  %v1952 = vpop.f32.mrf.mxu0
  %1953 = vmatprep.mubr.f32.mxu0 0.0
  %1954 = vmatmul.mubr.f32.gmra.mxu0 %v1709
  %v1955 = vpop.f32.mrf.mxu0
  %v1956 = vadd.f32 0.0, %v1955
  %v1957 = vpop.f32.mrf.mxu0
  %1958 = vmatprep.mubr.f32.mxu0 0.0
  %1959 = vmatmul.mubr.f32.gmra.mxu0 %v1710
  %v1960 = vpop.f32.mrf.mxu0
  %v1961 = vadd.f32 0.0, %v1960
  %v1962 = vpop.f32.mrf.mxu0
  %1963 = vmatprep.mubr.f32.mxu0 0.0
  %1964 = vmatmul.mubr.f32.gmra.mxu0 %v1711
  %v1965 = vpop.f32.mrf.mxu0
  %v1966 = vadd.f32 0.0, %v1965
  %v1967 = vpop.f32.mrf.mxu0
  %1968 = vmatprep.mubr.f32.mxu0 0.0
  %1969 = vmatmul.mubr.f32.gmra.mxu0 %v1712
  %v1970 = vpop.f32.mrf.mxu0
  %v1971 = vadd.f32 0.0, %v1970
  %v1972 = vpop.f32.mrf.mxu0
  %1973 = vmatprep.mubr.f32.mxu0 0.0
  %1974 = vmatmul.mubr.f32.gmra.mxu0 %v1713
  %v1975 = vpop.f32.mrf.mxu0
  %v1976 = vadd.f32 0.0, %v1975
  %v1977 = vpop.f32.mrf.mxu0
  %1978 = vmatprep.mubr.f32.mxu0 0.0
  %1979 = vmatmul.mubr.f32.gmra.mxu0 %v1714
  %v1980 = vpop.f32.mrf.mxu0
  %v1981 = vadd.f32 0.0, %v1980
  %v1982 = vpop.f32.mrf.mxu0
  %1983 = vmatprep.mubr.f32.mxu0 0.0
  %1984 = vmatmul.mubr.f32.gmra.mxu0 %v1715
  %v1985 = vpop.f32.mrf.mxu0
  %v1986 = vadd.f32 0.0, %v1985
  %v1987 = vpop.f32.mrf.mxu0
  %1988 = vmatprep.mubr.f32.mxu0 0.0
  %1989 = vmatmul.mubr.f32.gmra.mxu0 %v1716
  %v1990 = vpop.f32.mrf.mxu0
  %v1991 = vadd.f32 0.0, %v1990
  %v1992 = vpop.f32.mrf.mxu0
  %1993 = vmatprep.mubr.f32.mxu0 0.0
  %1994 = vmatmul.mubr.f32.gmra.mxu0 %v1717
  %v1995 = vpop.f32.mrf.mxu0
  %v1996 = vadd.f32 0.0, %v1995
  %v1997 = vpop.f32.mrf.mxu0
  %1998 = vmatprep.mubr.f32.mxu0 0.0
  %1999 = vmatmul.mubr.f32.gmra.mxu0 %v1718
  %v2000 = vpop.f32.mrf.mxu0
  %v2001 = vadd.f32 0.0, %v2000
  %v2002 = vpop.f32.mrf.mxu0
  %2003 = vmatprep.mubr.f32.mxu0 0.0
  %2004 = vmatmul.mubr.f32.gmra.mxu0 %v1719
  %v2005 = vpop.f32.mrf.mxu0
  %v2006 = vadd.f32 0.0, %v2005
  %v2007 = vpop.f32.mrf.mxu0
  %2008 = vmatprep.mubr.f32.mxu0 0.0
  %2009 = vmatmul.mubr.f32.gmra.mxu0 %v1720
  %v2010 = vpop.f32.mrf.mxu0
  %v2011 = vadd.f32 0.0, %v2010
  %v2012 = vpop.f32.mrf.mxu0
  %2013 = vmatprep.mubr.f32.mxu0 0.0
  %2014 = vmatmul.mubr.f32.gmra.mxu0 %v1721
  %v2015 = vpop.f32.mrf.mxu0
  %v2016 = vadd.f32 0.0, %v2015
  %v2017 = vpop.f32.mrf.mxu0
  %2018 = vmatprep.mubr.f32.mxu0 0.0
  %2019 = vmatmul.mubr.f32.gmra.mxu0 %v1722
  %v2020 = vpop.f32.mrf.mxu0
  %v2021 = vadd.f32 0.0, %v2020
  %v2022 = vpop.f32.mrf.mxu0
  %2023 = vmatprep.mubr.f32.mxu0 0.0
  %2024 = vmatmul.mubr.f32.gmra.mxu0 %v1723
  %v2025 = vpop.f32.mrf.mxu0
  %v2026 = vadd.f32 0.0, %v2025
  %v2027 = vpop.f32.mrf.mxu0
  %2028 = vmatprep.mubr.f32.mxu0 0.0
  %2029 = vmatmul.mubr.f32.gmra.mxu0 %v1724
  %v2030 = vpop.f32.mrf.mxu0
  %v2031 = vadd.f32 0.0, %v2030
  %v2032 = vpop.f32.mrf.mxu0
  %2033 = vmatprep.mubr.f32.mxu0 0.0
  %2034 = vmatmul.mubr.f32.gmra.mxu0 %v1725
  %v2035 = vpop.f32.mrf.mxu0
  %v2036 = vadd.f32 0.0, %v2035
  %v2037 = vpop.f32.mrf.mxu0
  %2038 = vmatprep.mubr.f32.mxu0 0.0
  %2039 = vmatmul.mubr.f32.gmra.mxu0 %v1726
  %v2040 = vpop.f32.mrf.mxu0
  %v2041 = vadd.f32 0.0, %v2040
  %v2042 = vpop.f32.mrf.mxu0
  %2043 = vmatprep.mubr.f32.mxu0 0.0
  %2044 = vmatmul.mubr.f32.gmra.mxu0 %v1727
  %v2045 = vpop.f32.mrf.mxu0
  %v2046 = vadd.f32 0.0, %v2045
  %v2047 = vpop.f32.mrf.mxu0
  %2048 = vmatprep.mubr.f32.mxu0 0.0
  %2049 = vmatmul.mubr.f32.gmra.mxu0 %v1728
  %v2050 = vpop.f32.mrf.mxu0
  %v2051 = vadd.f32 0.0, %v2050
  %v2052 = vpop.f32.mrf.mxu0
  %2053 = vmatprep.mubr.f32.mxu0 0.0
  %2054 = vmatmul.mubr.f32.gmra.mxu0 %v1729
  %v2055 = vpop.f32.mrf.mxu0
  %v2056 = vadd.f32 0.0, %v2055
  %v2057 = vpop.f32.mrf.mxu0
  %2058 = vmatprep.mubr.f32.mxu0 0.0
  %2059 = vmatmul.mubr.f32.gmra.mxu0 %v1730
  %v2060 = vpop.f32.mrf.mxu0
  %v2061 = vadd.f32 0.0, %v2060
  %v2062 = vpop.f32.mrf.mxu0
  %2063 = vmatprep.mubr.f32.mxu0 0.0
  %2064 = vmatmul.mubr.f32.gmra.mxu0 %v1731
  %v2065 = vpop.f32.mrf.mxu0
  %v2066 = vadd.f32 0.0, %v2065
  %v2067 = vpop.f32.mrf.mxu0
  %2068 = vmatprep.mubr.f32.mxu0 0.0
  %2069 = vmatmul.mubr.f32.gmra.mxu0 %v1732
  %v2070 = vpop.f32.mrf.mxu0
  %v2071 = vadd.f32 0.0, %v2070
  %v2072 = vpop.f32.mrf.mxu0
  %2073 = vmatprep.mubr.f32.mxu0 0.0
  %2074 = vmatmul.mubr.f32.gmra.mxu0 %v1733
  %v2075 = vpop.f32.mrf.mxu0
  %v2076 = vadd.f32 0.0, %v2075
  %v2077 = vpop.f32.mrf.mxu0
  %2078 = vmatprep.mubr.f32.mxu0 0.0
  %2079 = vmatmul.mubr.f32.gmra.mxu0 %v1734
  %v2080 = vpop.f32.mrf.mxu0
  %v2081 = vadd.f32 0.0, %v2080
  %v2082 = vpop.f32.mrf.mxu0
  %2083 = vmatprep.mubr.f32.mxu0 0.0
  %2084 = vmatmul.mubr.f32.gmra.mxu0 %v1735
  %v2085 = vpop.f32.mrf.mxu0
  %v2086 = vadd.f32 0.0, %v2085
  %v2087 = vpop.f32.mrf.mxu0
  %2088 = vmatprep.mubr.f32.mxu0 0.0
  %2089 = vmatmul.mubr.f32.gmra.mxu0 %v1736
  %v2090 = vpop.f32.mrf.mxu0
  %v2091 = vadd.f32 0.0, %v2090
  %v2092 = vpop.f32.mrf.mxu0
  %2093 = vmatprep.mubr.f32.mxu0 0.0
  %2094 = vmatmul.mubr.f32.gmra.mxu0 %v1737
  %v2095 = vpop.f32.mrf.mxu0
  %v2096 = vadd.f32 0.0, %v2095
  %v2097 = vpop.f32.mrf.mxu0
  %2098 = vmatprep.mubr.f32.mxu0 0.0
  %2099 = vmatmul.mubr.f32.gmra.mxu0 %v1738
  %v2100 = vpop.f32.mrf.mxu0
  %v2101 = vadd.f32 0.0, %v2100
  %v2102 = vpop.f32.mrf.mxu0
  %2103 = vmatprep.mubr.f32.mxu0 0.0
  %2104 = vmatmul.mubr.f32.gmra.mxu0 %v1739
  %v2105 = vpop.f32.mrf.mxu0
  %v2106 = vadd.f32 0.0, %v2105
  %v2107 = vpop.f32.mrf.mxu0
  %2108 = vmatprep.mubr.f32.mxu0 0.0
  %2109 = vmatmul.mubr.f32.gmra.mxu0 %v1740
  %v2110 = vpop.f32.mrf.mxu0
  %v2111 = vadd.f32 0.0, %v2110
  %v2112 = vpop.f32.mrf.mxu0
  %2113 = vmatprep.mubr.f32.mxu0 0.0
  %2114 = vmatmul.mubr.f32.gmra.mxu0 %v1741
  %v2115 = vpop.f32.mrf.mxu0
  %v2116 = vadd.f32 0.0, %v2115
  %v2117 = vpop.f32.mrf.mxu0
  %2118 = vmatprep.mubr.f32.mxu0 0.0
  %2119 = vmatmul.mubr.f32.gmra.mxu0 %v1742
  %v2120 = vpop.f32.mrf.mxu0
  %v2121 = vadd.f32 0.0, %v2120
  %v2122 = vpop.f32.mrf.mxu0
  %2123 = vmatprep.mubr.f32.mxu0 0.0
  %2124 = vmatmul.mubr.f32.gmra.mxu0 %v1743
  %v2125 = vpop.f32.mrf.mxu0
  %v2126 = vadd.f32 0.0, %v2125
  %v2127 = vpop.f32.mrf.mxu0
  %2128 = vmatprep.mubr.f32.mxu0 0.0
  %2129 = vmatmul.mubr.f32.gmra.mxu0 %v1744
  %v2130 = vpop.f32.mrf.mxu0
  %v2131 = vadd.f32 0.0, %v2130
  %v2132 = vpop.f32.mrf.mxu0
  %2133 = vmatprep.mubr.f32.mxu0 0.0
  %2134 = vmatmul.mubr.f32.gmra.mxu0 %v1745
  %v2135 = vpop.f32.mrf.mxu0
  %v2136 = vadd.f32 0.0, %v2135
  %v2137 = vpop.f32.mrf.mxu0
  %2138 = vmatprep.mubr.f32.mxu0 0.0
  %2139 = vmatmul.mubr.f32.gmra.mxu0 %v1746
  %v2140 = vpop.f32.mrf.mxu0
  %v2141 = vadd.f32 0.0, %v2140
  %v2142 = vpop.f32.mrf.mxu0
  %2143 = vmatprep.mubr.f32.mxu0 0.0
  %2144 = vmatmul.mubr.f32.gmra.mxu0 %v1747
  %v2145 = vpop.f32.mrf.mxu0
  %v2146 = vadd.f32 0.0, %v2145
  %v2147 = vpop.f32.mrf.mxu0
  %2148 = vdwg.mxu0
  %v2149 = vadd.f32 %v1620, %v1831
  %v2150 = vadd.f32 %v1621, %v1836
  %v2151 = vadd.f32 %v1622, %v1841
  %v2152 = vadd.f32 %v1623, %v1846
  %v2153 = vadd.f32 %v1624, %v1851
  %v2154 = vadd.f32 %v1625, %v1856
  %v2155 = vadd.f32 %v1626, %v1861
  %v2156 = vadd.f32 %v1627, %v1866
  %v2157 = vadd.f32 %v1628, %v1871
  %v2158 = vadd.f32 %v1629, %v1876
  %v2159 = vadd.f32 %v1630, %v1881
  %v2160 = vadd.f32 %v1631, %v1886
  %v2161 = vadd.f32 %v1632, %v1891
  %v2162 = vadd.f32 %v1633, %v1896
  %v2163 = vadd.f32 %v1634, %v1901
  %v2164 = vadd.f32 %v1635, %v1906
  %v2165 = vadd.f32 %v1636, %v1911
  %v2166 = vadd.f32 %v1637, %v1916
  %v2167 = vadd.f32 %v1638, %v1921
  %v2168 = vadd.f32 %v1639, %v1926
  %v2169 = vadd.f32 %v1640, %v1931
  %v2170 = vadd.f32 %v1641, %v1936
  %v2171 = vadd.f32 %v1642, %v1941
  %v2172 = vadd.f32 %v1643, %v1946
  %v2173 = vadd.f32 %v1644, %v1951
  %v2174 = vadd.f32 %v1645, %v1956
  %v2175 = vadd.f32 %v1646, %v1961
  %v2176 = vadd.f32 %v1647, %v1966
  %v2177 = vadd.f32 %v1648, %v1971
  %v2178 = vadd.f32 %v1649, %v1976
  %v2179 = vadd.f32 %v1650, %v1981
  %v2180 = vadd.f32 %v1651, %v1986
  %v2181 = vadd.f32 %v1652, %v1991
  %v2182 = vadd.f32 %v1653, %v1996
  %v2183 = vadd.f32 %v1654, %v2001
  %v2184 = vadd.f32 %v1655, %v2006
  %v2185 = vadd.f32 %v1656, %v2011
  %v2186 = vadd.f32 %v1657, %v2016
  %v2187 = vadd.f32 %v1658, %v2021
  %v2188 = vadd.f32 %v1659, %v2026
  %v2189 = vadd.f32 %v1660, %v2031
  %v2190 = vadd.f32 %v1661, %v2036
  %v2191 = vadd.f32 %v1662, %v2041
  %v2192 = vadd.f32 %v1663, %v2046
  %v2193 = vadd.f32 %v1664, %v2051
  %v2194 = vadd.f32 %v1665, %v2056
  %v2195 = vadd.f32 %v1666, %v2061
  %v2196 = vadd.f32 %v1667, %v2066
  %v2197 = vadd.f32 %v1668, %v2071
  %v2198 = vadd.f32 %v1669, %v2076
  %v2199 = vadd.f32 %v1670, %v2081
  %v2200 = vadd.f32 %v1671, %v2086
  %v2201 = vadd.f32 %v1672, %v2091
  %v2202 = vadd.f32 %v1673, %v2096
  %v2203 = vadd.f32 %v1674, %v2101
  %v2204 = vadd.f32 %v1675, %v2106
  %v2205 = vadd.f32 %v1676, %v2111
  %v2206 = vadd.f32 %v1677, %v2116
  %v2207 = vadd.f32 %v1678, %v2121
  %v2208 = vadd.f32 %v1679, %v2126
  %v2209 = vadd.f32 %v1680, %v2131
  %v2210 = vadd.f32 %v1681, %v2136
  %v2211 = vadd.f32 %v1682, %v2141
  %v2212 = vadd.f32 %v1683, %v2146
  %v2213 = vld [vmem:[%s83 + $0x1] sm:$0xff]
  %v2214 = vld [vmem:[%s83 + $0x9] sm:$0xff]
  %v2215 = vld [vmem:[%s83 + $0x19] sm:$0xff]
  %v2216 = vld [vmem:[%s83 + $0x21] sm:$0xff]
  %v2217 = vld [vmem:[%s83 + $0x31] sm:$0xff]
  %v2218 = vld [vmem:[%s83 + $0x39] sm:$0xff]
  %v2219 = vld [vmem:[%s83 + $0x49] sm:$0xff]
  %v2220 = vld [vmem:[%s83 + $0x51] sm:$0xff]
  %v2221 = vld [vmem:[%s83 + $0x61] sm:$0xff]
  %v2222 = vld [vmem:[%s83 + $0x69] sm:$0xff]
  %v2223 = vld [vmem:[%s83 + $0x79] sm:$0xff]
  %v2224 = vld [vmem:[%s83 + $0x81] sm:$0xff]
  %v2225 = vld [vmem:[%s83 + $0x91] sm:$0xff]
  %v2226 = vld [vmem:[%s83 + $0x99] sm:$0xff]
  %v2227 = vld [vmem:[%s83 + $0xa9] sm:$0xff]
  %v2228 = vld [vmem:[%s83 + $0xb1] sm:$0xff]
  %v2229 = vld [vmem:[%s83 + $0xc1] sm:$0xff]
  %v2230 = vld [vmem:[%s83 + $0xc9] sm:$0xff]
  %v2231 = vld [vmem:[%s83 + $0xd9] sm:$0xff]
  %v2232 = vld [vmem:[%s83 + $0xe1] sm:$0xff]
  %v2233 = vld [vmem:[%s83 + $0xf1] sm:$0xff]
  %v2234 = vld [vmem:[%s83 + $0xf9] sm:$0xff]
  %v2235 = vld [vmem:[%s83 + $0x109] sm:$0xff]
  %v2236 = vld [vmem:[%s83 + $0x111] sm:$0xff]
  %v2237 = vld [vmem:[%s83 + $0x121] sm:$0xff]
  %v2238 = vld [vmem:[%s83 + $0x129] sm:$0xff]
  %v2239 = vld [vmem:[%s83 + $0x139] sm:$0xff]
  %v2240 = vld [vmem:[%s83 + $0x141] sm:$0xff]
  %v2241 = vld [vmem:[%s83 + $0x151] sm:$0xff]
  %v2242 = vld [vmem:[%s83 + $0x159] sm:$0xff]
  %v2243 = vld [vmem:[%s83 + $0x169] sm:$0xff]
  %v2244 = vld [vmem:[%s83 + $0x171] sm:$0xff]
  %v2245 = vld [vmem:[%s83 + $0x1b1] sm:$0xff]
  %v2246 = vld [vmem:[%s83 + $0x1b9] sm:$0xff]
  %v2247 = vld [vmem:[%s83 + $0x1c9] sm:$0xff]
  %v2248 = vld [vmem:[%s83 + $0x1d1] sm:$0xff]
  %v2249 = vld [vmem:[%s83 + $0x1e1] sm:$0xff]
  %v2250 = vld [vmem:[%s83 + $0x1e9] sm:$0xff]
  %v2251 = vld [vmem:[%s83 + $0x1f9] sm:$0xff]
  %v2252 = vld [vmem:[%s83 + $0x201] sm:$0xff]
  %v2253 = vld [vmem:[%s83 + $0x211] sm:$0xff]
  %v2254 = vld [vmem:[%s83 + $0x219] sm:$0xff]
  %v2255 = vld [vmem:[%s83 + $0x229] sm:$0xff]
  %v2256 = vld [vmem:[%s83 + $0x231] sm:$0xff]
  %v2257 = vld [vmem:[%s83 + $0x241] sm:$0xff]
  %v2258 = vld [vmem:[%s83 + $0x249] sm:$0xff]
  %v2259 = vld [vmem:[%s83 + $0x259] sm:$0xff]
  %v2260 = vld [vmem:[%s83 + $0x261] sm:$0xff]
  %v2261 = vld [vmem:[%s83 + $0x271] sm:$0xff]
  %v2262 = vld [vmem:[%s83 + $0x279] sm:$0xff]
  %v2263 = vld [vmem:[%s83 + $0x289] sm:$0xff]
  %v2264 = vld [vmem:[%s83 + $0x291] sm:$0xff]
  %v2265 = vld [vmem:[%s83 + $0x2a1] sm:$0xff]
  %v2266 = vld [vmem:[%s83 + $0x2a9] sm:$0xff]
  %v2267 = vld [vmem:[%s83 + $0x2b9] sm:$0xff]
  %v2268 = vld [vmem:[%s83 + $0x2c1] sm:$0xff]
  %v2269 = vld [vmem:[%s83 + $0x2d1] sm:$0xff]
  %v2270 = vld [vmem:[%s83 + $0x2d9] sm:$0xff]
  %v2271 = vld [vmem:[%s83 + $0x2e9] sm:$0xff]
  %v2272 = vld [vmem:[%s83 + $0x2f1] sm:$0xff]
  %v2273 = vld [vmem:[%s83 + $0x301] sm:$0xff]
  %v2274 = vld [vmem:[%s83 + $0x309] sm:$0xff]
  %v2275 = vld [vmem:[%s83 + $0x319] sm:$0xff]
  %v2276 = vld [vmem:[%s83 + $0x321] sm:$0xff]
  %v2277 = vld [vmem:[%s3 + $0x200] sm:$0xff]
  %v2278 = vld [vmem:[%s3 + $0x208] sm:$0xff]
  %v2279 = vld [vmem:[%s3 + $0x210] sm:$0xff]
  %v2280 = vld [vmem:[%s3 + $0x218] sm:$0xff]
  %v2281 = vld [vmem:[%s3 + $0x220] sm:$0xff]
  %v2282 = vld [vmem:[%s3 + $0x228] sm:$0xff]
  %v2283 = vld [vmem:[%s3 + $0x230] sm:$0xff]
  %v2284 = vld [vmem:[%s3 + $0x238] sm:$0xff]
  %v2285 = vld [vmem:[%s3 + $0x240] sm:$0xff]
  %v2286 = vld [vmem:[%s3 + $0x248] sm:$0xff]
  %v2287 = vld [vmem:[%s3 + $0x250] sm:$0xff]
  %v2288 = vld [vmem:[%s3 + $0x258] sm:$0xff]
  %v2289 = vld [vmem:[%s3 + $0x260] sm:$0xff]
  %v2290 = vld [vmem:[%s3 + $0x268] sm:$0xff]
  %v2291 = vld [vmem:[%s3 + $0x270] sm:$0xff]
  %v2292 = vld [vmem:[%s3 + $0x278] sm:$0xff]
  %2293 = vmatprep.subr.mxu0 0.0
  %2294 = vmatpush1.msra.mxu0 %v2292
  %2295 = vmatprep.subr.mxu0 0.0
  %2296 = vmatpush1.msra.mxu0 %v2291
  %2297 = vmatprep.subr.mxu0 0.0
  %2298 = vmatpush1.msra.mxu0 %v2290
  %2299 = vmatprep.subr.mxu0 0.0
  %2300 = vmatpush1.msra.mxu0 %v2289
  %2301 = vmatprep.subr.mxu0 0.0
  %2302 = vmatpush1.msra.mxu0 %v2288
  %2303 = vmatprep.subr.mxu0 0.0
  %2304 = vmatpush1.msra.mxu0 %v2287
  %2305 = vmatprep.subr.mxu0 0.0
  %2306 = vmatpush1.msra.mxu0 %v2286
  %2307 = vmatprep.subr.mxu0 0.0
  %2308 = vmatpush1.msra.mxu0 %v2285
  %2309 = vmatprep.subr.mxu0 0.0
  %2310 = vmatpush1.msra.mxu0 %v2284
  %2311 = vmatprep.subr.mxu0 0.0
  %2312 = vmatpush1.msra.mxu0 %v2283
  %2313 = vmatprep.subr.mxu0 0.0
  %2314 = vmatpush1.msra.mxu0 %v2282
  %2315 = vmatprep.subr.mxu0 0.0
  %2316 = vmatpush1.msra.mxu0 %v2281
  %2317 = vmatprep.subr.mxu0 0.0
  %2318 = vmatpush1.msra.mxu0 %v2280
  %2319 = vmatprep.subr.mxu0 0.0
  %2320 = vmatpush1.msra.mxu0 %v2279
  %2321 = vmatprep.subr.mxu0 0.0
  %2322 = vmatpush1.msra.mxu0 %v2278
  %2323 = vmatprep.subr.mxu0 0.0
  %2324 = vmatpush1.msra.mxu0 %v2277
  %2325 = vmatprep.subr.mxu0 0.0
  %2326 = vmatpush2.msra.mxu0 0.0
  %2327 = vmatprep.subr.mxu0 0.0
  %2328 = vmatpush2.msra.mxu0 0.0
  %2329 = vmatprep.subr.mxu0 0.0
  %2330 = vmatpush2.msra.mxu0 0.0
  %2331 = vmatprep.subr.mxu0 0.0
  %2332 = vmatpush2.msra.mxu0 0.0
  %2333 = vmatprep.subr.mxu0 0.0
  %2334 = vmatpush2.msra.mxu0 0.0
  %2335 = vmatprep.subr.mxu0 0.0
  %2336 = vmatpush2.msra.mxu0 0.0
  %2337 = vmatprep.subr.mxu0 0.0
  %2338 = vmatpush2.msra.mxu0 0.0
  %2339 = vmatprep.subr.mxu0 0.0
  %2340 = vmatpush2.msra.mxu0 0.0
  %2341 = vmatprep.subr.mxu0 0.0
  %2342 = vmatpush2.msra.mxu0 0.0
  %2343 = vmatprep.subr.mxu0 0.0
  %2344 = vmatpush2.msra.mxu0 0.0
  %2345 = vmatprep.subr.mxu0 0.0
  %2346 = vmatpush2.msra.mxu0 0.0
  %2347 = vmatprep.subr.mxu0 0.0
  %2348 = vmatpush2.msra.mxu0 0.0
  %2349 = vmatprep.subr.mxu0 0.0
  %2350 = vmatpush2.msra.mxu0 0.0
  %2351 = vmatprep.subr.mxu0 0.0
  %2352 = vmatpush2.msra.mxu0 0.0
  %2353 = vmatprep.subr.mxu0 0.0
  %2354 = vmatpush2.msra.mxu0 0.0
  %2355 = vmatprep.subr.mxu0 0.0
  %2356 = vmatpush2.msra.mxu0 0.0
  %2357 = vmatprep.mubr.f32.mxu0 0.0
  %2358 = vmatmul.mubr.f32.gmra.mxu0 %v2213
  %v2359 = vpop.f32.mrf.mxu0
  %v2360 = vadd.f32 0.0, %v2359
  %v2361 = vpop.f32.mrf.mxu0
  %2362 = vmatprep.mubr.f32.mxu0 0.0
  %2363 = vmatmul.mubr.f32.gmra.mxu0 %v2214
  %v2364 = vpop.f32.mrf.mxu0
  %v2365 = vadd.f32 0.0, %v2364
  %v2366 = vpop.f32.mrf.mxu0
  %2367 = vmatprep.mubr.f32.mxu0 0.0
  %2368 = vmatmul.mubr.f32.gmra.mxu0 %v2215
  %v2369 = vpop.f32.mrf.mxu0
  %v2370 = vadd.f32 0.0, %v2369
  %v2371 = vpop.f32.mrf.mxu0
  %2372 = vmatprep.mubr.f32.mxu0 0.0
  %2373 = vmatmul.mubr.f32.gmra.mxu0 %v2216
  %v2374 = vpop.f32.mrf.mxu0
  %v2375 = vadd.f32 0.0, %v2374
  %v2376 = vpop.f32.mrf.mxu0
  %2377 = vmatprep.mubr.f32.mxu0 0.0
  %2378 = vmatmul.mubr.f32.gmra.mxu0 %v2217
  %v2379 = vpop.f32.mrf.mxu0
  %v2380 = vadd.f32 0.0, %v2379
  %v2381 = vpop.f32.mrf.mxu0
  %2382 = vmatprep.mubr.f32.mxu0 0.0
  %2383 = vmatmul.mubr.f32.gmra.mxu0 %v2218
  %v2384 = vpop.f32.mrf.mxu0
  %v2385 = vadd.f32 0.0, %v2384
  %v2386 = vpop.f32.mrf.mxu0
  %2387 = vmatprep.mubr.f32.mxu0 0.0
  %2388 = vmatmul.mubr.f32.gmra.mxu0 %v2219
  %v2389 = vpop.f32.mrf.mxu0
  %v2390 = vadd.f32 0.0, %v2389
  %v2391 = vpop.f32.mrf.mxu0
  %2392 = vmatprep.mubr.f32.mxu0 0.0
  %2393 = vmatmul.mubr.f32.gmra.mxu0 %v2220
  %v2394 = vpop.f32.mrf.mxu0
  %v2395 = vadd.f32 0.0, %v2394
  %v2396 = vpop.f32.mrf.mxu0
  %2397 = vmatprep.mubr.f32.mxu0 0.0
  %2398 = vmatmul.mubr.f32.gmra.mxu0 %v2221
  %v2399 = vpop.f32.mrf.mxu0
  %v2400 = vadd.f32 0.0, %v2399
  %v2401 = vpop.f32.mrf.mxu0
  %2402 = vmatprep.mubr.f32.mxu0 0.0
  %2403 = vmatmul.mubr.f32.gmra.mxu0 %v2222
  %v2404 = vpop.f32.mrf.mxu0
  %v2405 = vadd.f32 0.0, %v2404
  %v2406 = vpop.f32.mrf.mxu0
  %2407 = vmatprep.mubr.f32.mxu0 0.0
  %2408 = vmatmul.mubr.f32.gmra.mxu0 %v2223
  %v2409 = vpop.f32.mrf.mxu0
  %v2410 = vadd.f32 0.0, %v2409
  %v2411 = vpop.f32.mrf.mxu0
  %2412 = vmatprep.mubr.f32.mxu0 0.0
  %2413 = vmatmul.mubr.f32.gmra.mxu0 %v2224
  %v2414 = vpop.f32.mrf.mxu0
  %v2415 = vadd.f32 0.0, %v2414
  %v2416 = vpop.f32.mrf.mxu0
  %2417 = vmatprep.mubr.f32.mxu0 0.0
  %2418 = vmatmul.mubr.f32.gmra.mxu0 %v2225
  %v2419 = vpop.f32.mrf.mxu0
  %v2420 = vadd.f32 0.0, %v2419
  %v2421 = vpop.f32.mrf.mxu0
  %2422 = vmatprep.mubr.f32.mxu0 0.0
  %2423 = vmatmul.mubr.f32.gmra.mxu0 %v2226
  %v2424 = vpop.f32.mrf.mxu0
  %v2425 = vadd.f32 0.0, %v2424
  %v2426 = vpop.f32.mrf.mxu0
  %2427 = vmatprep.mubr.f32.mxu0 0.0
  %2428 = vmatmul.mubr.f32.gmra.mxu0 %v2227
  %v2429 = vpop.f32.mrf.mxu0
  %v2430 = vadd.f32 0.0, %v2429
  %v2431 = vpop.f32.mrf.mxu0
  %2432 = vmatprep.mubr.f32.mxu0 0.0
  %2433 = vmatmul.mubr.f32.gmra.mxu0 %v2228
  %v2434 = vpop.f32.mrf.mxu0
  %v2435 = vadd.f32 0.0, %v2434
  %v2436 = vpop.f32.mrf.mxu0
  %2437 = vmatprep.mubr.f32.mxu0 0.0
  %2438 = vmatmul.mubr.f32.gmra.mxu0 %v2229
  %v2439 = vpop.f32.mrf.mxu0
  %v2440 = vadd.f32 0.0, %v2439
  %v2441 = vpop.f32.mrf.mxu0
  %2442 = vmatprep.mubr.f32.mxu0 0.0
  %2443 = vmatmul.mubr.f32.gmra.mxu0 %v2230
  %v2444 = vpop.f32.mrf.mxu0
  %v2445 = vadd.f32 0.0, %v2444
  %v2446 = vpop.f32.mrf.mxu0
  %2447 = vmatprep.mubr.f32.mxu0 0.0
  %2448 = vmatmul.mubr.f32.gmra.mxu0 %v2231
  %v2449 = vpop.f32.mrf.mxu0
  %v2450 = vadd.f32 0.0, %v2449
  %v2451 = vpop.f32.mrf.mxu0
  %2452 = vmatprep.mubr.f32.mxu0 0.0
  %2453 = vmatmul.mubr.f32.gmra.mxu0 %v2232
  %v2454 = vpop.f32.mrf.mxu0
  %v2455 = vadd.f32 0.0, %v2454
  %v2456 = vpop.f32.mrf.mxu0
  %2457 = vmatprep.mubr.f32.mxu0 0.0
  %2458 = vmatmul.mubr.f32.gmra.mxu0 %v2233
  %v2459 = vpop.f32.mrf.mxu0
  %v2460 = vadd.f32 0.0, %v2459
  %v2461 = vpop.f32.mrf.mxu0
  %2462 = vmatprep.mubr.f32.mxu0 0.0
  %2463 = vmatmul.mubr.f32.gmra.mxu0 %v2234
  %v2464 = vpop.f32.mrf.mxu0
  %v2465 = vadd.f32 0.0, %v2464
  %v2466 = vpop.f32.mrf.mxu0
  %2467 = vmatprep.mubr.f32.mxu0 0.0
  %2468 = vmatmul.mubr.f32.gmra.mxu0 %v2235
  %v2469 = vpop.f32.mrf.mxu0
  %v2470 = vadd.f32 0.0, %v2469
  %v2471 = vpop.f32.mrf.mxu0
  %2472 = vmatprep.mubr.f32.mxu0 0.0
  %2473 = vmatmul.mubr.f32.gmra.mxu0 %v2236
  %v2474 = vpop.f32.mrf.mxu0
  %v2475 = vadd.f32 0.0, %v2474
  %v2476 = vpop.f32.mrf.mxu0
  %2477 = vmatprep.mubr.f32.mxu0 0.0
  %2478 = vmatmul.mubr.f32.gmra.mxu0 %v2237
  %v2479 = vpop.f32.mrf.mxu0
  %v2480 = vadd.f32 0.0, %v2479
  %v2481 = vpop.f32.mrf.mxu0
  %2482 = vmatprep.mubr.f32.mxu0 0.0
  %2483 = vmatmul.mubr.f32.gmra.mxu0 %v2238
  %v2484 = vpop.f32.mrf.mxu0
  %v2485 = vadd.f32 0.0, %v2484
  %v2486 = vpop.f32.mrf.mxu0
  %2487 = vmatprep.mubr.f32.mxu0 0.0
  %2488 = vmatmul.mubr.f32.gmra.mxu0 %v2239
  %v2489 = vpop.f32.mrf.mxu0
  %v2490 = vadd.f32 0.0, %v2489
  %v2491 = vpop.f32.mrf.mxu0
  %2492 = vmatprep.mubr.f32.mxu0 0.0
  %2493 = vmatmul.mubr.f32.gmra.mxu0 %v2240
  %v2494 = vpop.f32.mrf.mxu0
  %v2495 = vadd.f32 0.0, %v2494
  %v2496 = vpop.f32.mrf.mxu0
  %2497 = vmatprep.mubr.f32.mxu0 0.0
  %2498 = vmatmul.mubr.f32.gmra.mxu0 %v2241
  %v2499 = vpop.f32.mrf.mxu0
  %v2500 = vadd.f32 0.0, %v2499
  %v2501 = vpop.f32.mrf.mxu0
  %2502 = vmatprep.mubr.f32.mxu0 0.0
  %2503 = vmatmul.mubr.f32.gmra.mxu0 %v2242
  %v2504 = vpop.f32.mrf.mxu0
  %v2505 = vadd.f32 0.0, %v2504
  %v2506 = vpop.f32.mrf.mxu0
  %2507 = vmatprep.mubr.f32.mxu0 0.0
  %2508 = vmatmul.mubr.f32.gmra.mxu0 %v2243
  %v2509 = vpop.f32.mrf.mxu0
  %v2510 = vadd.f32 0.0, %v2509
  %v2511 = vpop.f32.mrf.mxu0
  %2512 = vmatprep.mubr.f32.mxu0 0.0
  %2513 = vmatmul.mubr.f32.gmra.mxu0 %v2244
  %v2514 = vpop.f32.mrf.mxu0
  %v2515 = vadd.f32 0.0, %v2514
  %v2516 = vpop.f32.mrf.mxu0
  %2517 = vmatprep.mubr.f32.mxu0 0.0
  %2518 = vmatmul.mubr.f32.gmra.mxu0 %v2245
  %v2519 = vpop.f32.mrf.mxu0
  %v2520 = vadd.f32 0.0, %v2519
  %v2521 = vpop.f32.mrf.mxu0
  %2522 = vmatprep.mubr.f32.mxu0 0.0
  %2523 = vmatmul.mubr.f32.gmra.mxu0 %v2246
  %v2524 = vpop.f32.mrf.mxu0
  %v2525 = vadd.f32 0.0, %v2524
  %v2526 = vpop.f32.mrf.mxu0
  %2527 = vmatprep.mubr.f32.mxu0 0.0
  %2528 = vmatmul.mubr.f32.gmra.mxu0 %v2247
  %v2529 = vpop.f32.mrf.mxu0
  %v2530 = vadd.f32 0.0, %v2529
  %v2531 = vpop.f32.mrf.mxu0
  %2532 = vmatprep.mubr.f32.mxu0 0.0
  %2533 = vmatmul.mubr.f32.gmra.mxu0 %v2248
  %v2534 = vpop.f32.mrf.mxu0
  %v2535 = vadd.f32 0.0, %v2534
  %v2536 = vpop.f32.mrf.mxu0
  %2537 = vmatprep.mubr.f32.mxu0 0.0
  %2538 = vmatmul.mubr.f32.gmra.mxu0 %v2249
  %v2539 = vpop.f32.mrf.mxu0
  %v2540 = vadd.f32 0.0, %v2539
  %v2541 = vpop.f32.mrf.mxu0
  %2542 = vmatprep.mubr.f32.mxu0 0.0
  %2543 = vmatmul.mubr.f32.gmra.mxu0 %v2250
  %v2544 = vpop.f32.mrf.mxu0
  %v2545 = vadd.f32 0.0, %v2544
  %v2546 = vpop.f32.mrf.mxu0
  %2547 = vmatprep.mubr.f32.mxu0 0.0
  %2548 = vmatmul.mubr.f32.gmra.mxu0 %v2251
  %v2549 = vpop.f32.mrf.mxu0
  %v2550 = vadd.f32 0.0, %v2549
  %v2551 = vpop.f32.mrf.mxu0
  %2552 = vmatprep.mubr.f32.mxu0 0.0
  %2553 = vmatmul.mubr.f32.gmra.mxu0 %v2252
  %v2554 = vpop.f32.mrf.mxu0
  %v2555 = vadd.f32 0.0, %v2554
  %v2556 = vpop.f32.mrf.mxu0
  %2557 = vmatprep.mubr.f32.mxu0 0.0
  %2558 = vmatmul.mubr.f32.gmra.mxu0 %v2253
  %v2559 = vpop.f32.mrf.mxu0
  %v2560 = vadd.f32 0.0, %v2559
  %v2561 = vpop.f32.mrf.mxu0
  %2562 = vmatprep.mubr.f32.mxu0 0.0
  %2563 = vmatmul.mubr.f32.gmra.mxu0 %v2254
  %v2564 = vpop.f32.mrf.mxu0
  %v2565 = vadd.f32 0.0, %v2564
  %v2566 = vpop.f32.mrf.mxu0
  %2567 = vmatprep.mubr.f32.mxu0 0.0
  %2568 = vmatmul.mubr.f32.gmra.mxu0 %v2255
  %v2569 = vpop.f32.mrf.mxu0
  %v2570 = vadd.f32 0.0, %v2569
  %v2571 = vpop.f32.mrf.mxu0
  %2572 = vmatprep.mubr.f32.mxu0 0.0
  %2573 = vmatmul.mubr.f32.gmra.mxu0 %v2256
  %v2574 = vpop.f32.mrf.mxu0
  %v2575 = vadd.f32 0.0, %v2574
  %v2576 = vpop.f32.mrf.mxu0
  %2577 = vmatprep.mubr.f32.mxu0 0.0
  %2578 = vmatmul.mubr.f32.gmra.mxu0 %v2257
  %v2579 = vpop.f32.mrf.mxu0
  %v2580 = vadd.f32 0.0, %v2579
  %v2581 = vpop.f32.mrf.mxu0
  %2582 = vmatprep.mubr.f32.mxu0 0.0
  %2583 = vmatmul.mubr.f32.gmra.mxu0 %v2258
  %v2584 = vpop.f32.mrf.mxu0
  %v2585 = vadd.f32 0.0, %v2584
  %v2586 = vpop.f32.mrf.mxu0
  %2587 = vmatprep.mubr.f32.mxu0 0.0
  %2588 = vmatmul.mubr.f32.gmra.mxu0 %v2259
  %v2589 = vpop.f32.mrf.mxu0
  %v2590 = vadd.f32 0.0, %v2589
  %v2591 = vpop.f32.mrf.mxu0
  %2592 = vmatprep.mubr.f32.mxu0 0.0
  %2593 = vmatmul.mubr.f32.gmra.mxu0 %v2260
  %v2594 = vpop.f32.mrf.mxu0
  %v2595 = vadd.f32 0.0, %v2594
  %v2596 = vpop.f32.mrf.mxu0
  %2597 = vmatprep.mubr.f32.mxu0 0.0
  %2598 = vmatmul.mubr.f32.gmra.mxu0 %v2261
  %v2599 = vpop.f32.mrf.mxu0
  %v2600 = vadd.f32 0.0, %v2599
  %v2601 = vpop.f32.mrf.mxu0
  %2602 = vmatprep.mubr.f32.mxu0 0.0
  %2603 = vmatmul.mubr.f32.gmra.mxu0 %v2262
  %v2604 = vpop.f32.mrf.mxu0
  %v2605 = vadd.f32 0.0, %v2604
  %v2606 = vpop.f32.mrf.mxu0
  %2607 = vmatprep.mubr.f32.mxu0 0.0
  %2608 = vmatmul.mubr.f32.gmra.mxu0 %v2263
  %v2609 = vpop.f32.mrf.mxu0
  %v2610 = vadd.f32 0.0, %v2609
  %v2611 = vpop.f32.mrf.mxu0
  %2612 = vmatprep.mubr.f32.mxu0 0.0
  %2613 = vmatmul.mubr.f32.gmra.mxu0 %v2264
  %v2614 = vpop.f32.mrf.mxu0
  %v2615 = vadd.f32 0.0, %v2614
  %v2616 = vpop.f32.mrf.mxu0
  %2617 = vmatprep.mubr.f32.mxu0 0.0
  %2618 = vmatmul.mubr.f32.gmra.mxu0 %v2265
  %v2619 = vpop.f32.mrf.mxu0
  %v2620 = vadd.f32 0.0, %v2619
  %v2621 = vpop.f32.mrf.mxu0
  %2622 = vmatprep.mubr.f32.mxu0 0.0
  %2623 = vmatmul.mubr.f32.gmra.mxu0 %v2266
  %v2624 = vpop.f32.mrf.mxu0
  %v2625 = vadd.f32 0.0, %v2624
  %v2626 = vpop.f32.mrf.mxu0
  %2627 = vmatprep.mubr.f32.mxu0 0.0
  %2628 = vmatmul.mubr.f32.gmra.mxu0 %v2267
  %v2629 = vpop.f32.mrf.mxu0
  %v2630 = vadd.f32 0.0, %v2629
  %v2631 = vpop.f32.mrf.mxu0
  %2632 = vmatprep.mubr.f32.mxu0 0.0
  %2633 = vmatmul.mubr.f32.gmra.mxu0 %v2268
  %v2634 = vpop.f32.mrf.mxu0
  %v2635 = vadd.f32 0.0, %v2634
  %v2636 = vpop.f32.mrf.mxu0
  %2637 = vmatprep.mubr.f32.mxu0 0.0
  %2638 = vmatmul.mubr.f32.gmra.mxu0 %v2269
  %v2639 = vpop.f32.mrf.mxu0
  %v2640 = vadd.f32 0.0, %v2639
  %v2641 = vpop.f32.mrf.mxu0
  %2642 = vmatprep.mubr.f32.mxu0 0.0
  %2643 = vmatmul.mubr.f32.gmra.mxu0 %v2270
  %v2644 = vpop.f32.mrf.mxu0
  %v2645 = vadd.f32 0.0, %v2644
  %v2646 = vpop.f32.mrf.mxu0
  %2647 = vmatprep.mubr.f32.mxu0 0.0
  %2648 = vmatmul.mubr.f32.gmra.mxu0 %v2271
  %v2649 = vpop.f32.mrf.mxu0
  %v2650 = vadd.f32 0.0, %v2649
  %v2651 = vpop.f32.mrf.mxu0
  %2652 = vmatprep.mubr.f32.mxu0 0.0
  %2653 = vmatmul.mubr.f32.gmra.mxu0 %v2272
  %v2654 = vpop.f32.mrf.mxu0
  %v2655 = vadd.f32 0.0, %v2654
  %v2656 = vpop.f32.mrf.mxu0
  %2657 = vmatprep.mubr.f32.mxu0 0.0
  %2658 = vmatmul.mubr.f32.gmra.mxu0 %v2273
  %v2659 = vpop.f32.mrf.mxu0
  %v2660 = vadd.f32 0.0, %v2659
  %v2661 = vpop.f32.mrf.mxu0
  %2662 = vmatprep.mubr.f32.mxu0 0.0
  %2663 = vmatmul.mubr.f32.gmra.mxu0 %v2274
  %v2664 = vpop.f32.mrf.mxu0
  %v2665 = vadd.f32 0.0, %v2664
  %v2666 = vpop.f32.mrf.mxu0
  %2667 = vmatprep.mubr.f32.mxu0 0.0
  %2668 = vmatmul.mubr.f32.gmra.mxu0 %v2275
  %v2669 = vpop.f32.mrf.mxu0
  %v2670 = vadd.f32 0.0, %v2669
  %v2671 = vpop.f32.mrf.mxu0
  %2672 = vmatprep.mubr.f32.mxu0 0.0
  %2673 = vmatmul.mubr.f32.gmra.mxu0 %v2276
  %v2674 = vpop.f32.mrf.mxu0
  %v2675 = vadd.f32 0.0, %v2674
  %v2676 = vpop.f32.mrf.mxu0
  %2677 = vdwg.mxu0
  %v2678 = vadd.f32 %v2149, %v2360
  %v2679 = vadd.f32 %v2150, %v2365
  %v2680 = vadd.f32 %v2151, %v2370
  %v2681 = vadd.f32 %v2152, %v2375
  %v2682 = vadd.f32 %v2153, %v2380
  %v2683 = vadd.f32 %v2154, %v2385
  %v2684 = vadd.f32 %v2155, %v2390
  %v2685 = vadd.f32 %v2156, %v2395
  %v2686 = vadd.f32 %v2157, %v2400
  %v2687 = vadd.f32 %v2158, %v2405
  %v2688 = vadd.f32 %v2159, %v2410
  %v2689 = vadd.f32 %v2160, %v2415
  %v2690 = vadd.f32 %v2161, %v2420
  %v2691 = vadd.f32 %v2162, %v2425
  %v2692 = vadd.f32 %v2163, %v2430
  %v2693 = vadd.f32 %v2164, %v2435
  %v2694 = vadd.f32 %v2165, %v2440
  %v2695 = vadd.f32 %v2166, %v2445
  %v2696 = vadd.f32 %v2167, %v2450
  %v2697 = vadd.f32 %v2168, %v2455
  %v2698 = vadd.f32 %v2169, %v2460
  %v2699 = vadd.f32 %v2170, %v2465
  %v2700 = vadd.f32 %v2171, %v2470
  %v2701 = vadd.f32 %v2172, %v2475
  %v2702 = vadd.f32 %v2173, %v2480
  %v2703 = vadd.f32 %v2174, %v2485
  %v2704 = vadd.f32 %v2175, %v2490
  %v2705 = vadd.f32 %v2176, %v2495
  %v2706 = vadd.f32 %v2177, %v2500
  %v2707 = vadd.f32 %v2178, %v2505
  %v2708 = vadd.f32 %v2179, %v2510
  %v2709 = vadd.f32 %v2180, %v2515
  %v2710 = vadd.f32 %v2181, %v2520
  %v2711 = vadd.f32 %v2182, %v2525
  %v2712 = vadd.f32 %v2183, %v2530
  %v2713 = vadd.f32 %v2184, %v2535
  %v2714 = vadd.f32 %v2185, %v2540
  %v2715 = vadd.f32 %v2186, %v2545
  %v2716 = vadd.f32 %v2187, %v2550
  %v2717 = vadd.f32 %v2188, %v2555
  %v2718 = vadd.f32 %v2189, %v2560
  %v2719 = vadd.f32 %v2190, %v2565
  %v2720 = vadd.f32 %v2191, %v2570
  %v2721 = vadd.f32 %v2192, %v2575
  %v2722 = vadd.f32 %v2193, %v2580
  %v2723 = vadd.f32 %v2194, %v2585
  %v2724 = vadd.f32 %v2195, %v2590
  %v2725 = vadd.f32 %v2196, %v2595
  %v2726 = vadd.f32 %v2197, %v2600
  %v2727 = vadd.f32 %v2198, %v2605
  %v2728 = vadd.f32 %v2199, %v2610
  %v2729 = vadd.f32 %v2200, %v2615
  %v2730 = vadd.f32 %v2201, %v2620
  %v2731 = vadd.f32 %v2202, %v2625
  %v2732 = vadd.f32 %v2203, %v2630
  %v2733 = vadd.f32 %v2204, %v2635
  %v2734 = vadd.f32 %v2205, %v2640
  %v2735 = vadd.f32 %v2206, %v2645
  %v2736 = vadd.f32 %v2207, %v2650
  %v2737 = vadd.f32 %v2208, %v2655
  %v2738 = vadd.f32 %v2209, %v2660
  %v2739 = vadd.f32 %v2210, %v2665
  %v2740 = vadd.f32 %v2211, %v2670
  %v2741 = vadd.f32 %v2212, %v2675
  %v2742 = vld [vmem:[%s83 + $0x2] sm:$0xff]
  %v2743 = vld [vmem:[%s83 + $0xa] sm:$0xff]
  %v2744 = vld [vmem:[%s83 + $0x1a] sm:$0xff]
  %v2745 = vld [vmem:[%s83 + $0x22] sm:$0xff]
  %v2746 = vld [vmem:[%s83 + $0x32] sm:$0xff]
  %v2747 = vld [vmem:[%s83 + $0x3a] sm:$0xff]
  %v2748 = vld [vmem:[%s83 + $0x4a] sm:$0xff]
  %v2749 = vld [vmem:[%s83 + $0x52] sm:$0xff]
  %v2750 = vld [vmem:[%s83 + $0x62] sm:$0xff]
  %v2751 = vld [vmem:[%s83 + $0x6a] sm:$0xff]
  %v2752 = vld [vmem:[%s83 + $0x7a] sm:$0xff]
  %v2753 = vld [vmem:[%s83 + $0x82] sm:$0xff]
  %v2754 = vld [vmem:[%s83 + $0x92] sm:$0xff]
  %v2755 = vld [vmem:[%s83 + $0x9a] sm:$0xff]
  %v2756 = vld [vmem:[%s83 + $0xaa] sm:$0xff]
  %v2757 = vld [vmem:[%s83 + $0xb2] sm:$0xff]
  %v2758 = vld [vmem:[%s83 + $0xc2] sm:$0xff]
  %v2759 = vld [vmem:[%s83 + $0xca] sm:$0xff]
  %v2760 = vld [vmem:[%s83 + $0xda] sm:$0xff]
  %v2761 = vld [vmem:[%s83 + $0xe2] sm:$0xff]
  %v2762 = vld [vmem:[%s83 + $0xf2] sm:$0xff]
  %v2763 = vld [vmem:[%s83 + $0xfa] sm:$0xff]
  %v2764 = vld [vmem:[%s83 + $0x10a] sm:$0xff]
  %v2765 = vld [vmem:[%s83 + $0x112] sm:$0xff]
  %v2766 = vld [vmem:[%s83 + $0x122] sm:$0xff]
  %v2767 = vld [vmem:[%s83 + $0x12a] sm:$0xff]
  %v2768 = vld [vmem:[%s83 + $0x13a] sm:$0xff]
  %v2769 = vld [vmem:[%s83 + $0x142] sm:$0xff]
  %v2770 = vld [vmem:[%s83 + $0x152] sm:$0xff]
  %v2771 = vld [vmem:[%s83 + $0x15a] sm:$0xff]
  %v2772 = vld [vmem:[%s83 + $0x16a] sm:$0xff]
  %v2773 = vld [vmem:[%s83 + $0x172] sm:$0xff]
  %v2774 = vld [vmem:[%s83 + $0x1b2] sm:$0xff]
  %v2775 = vld [vmem:[%s83 + $0x1ba] sm:$0xff]
  %v2776 = vld [vmem:[%s83 + $0x1ca] sm:$0xff]
  %v2777 = vld [vmem:[%s83 + $0x1d2] sm:$0xff]
  %v2778 = vld [vmem:[%s83 + $0x1e2] sm:$0xff]
  %v2779 = vld [vmem:[%s83 + $0x1ea] sm:$0xff]
  %v2780 = vld [vmem:[%s83 + $0x1fa] sm:$0xff]
  %v2781 = vld [vmem:[%s83 + $0x202] sm:$0xff]
  %v2782 = vld [vmem:[%s83 + $0x212] sm:$0xff]
  %v2783 = vld [vmem:[%s83 + $0x21a] sm:$0xff]
  %v2784 = vld [vmem:[%s83 + $0x22a] sm:$0xff]
  %v2785 = vld [vmem:[%s83 + $0x232] sm:$0xff]
  %v2786 = vld [vmem:[%s83 + $0x242] sm:$0xff]
  %v2787 = vld [vmem:[%s83 + $0x24a] sm:$0xff]
  %v2788 = vld [vmem:[%s83 + $0x25a] sm:$0xff]
  %v2789 = vld [vmem:[%s83 + $0x262] sm:$0xff]
  %v2790 = vld [vmem:[%s83 + $0x272] sm:$0xff]
  %v2791 = vld [vmem:[%s83 + $0x27a] sm:$0xff]
  %v2792 = vld [vmem:[%s83 + $0x28a] sm:$0xff]
  %v2793 = vld [vmem:[%s83 + $0x292] sm:$0xff]
  %v2794 = vld [vmem:[%s83 + $0x2a2] sm:$0xff]
  %v2795 = vld [vmem:[%s83 + $0x2aa] sm:$0xff]
  %v2796 = vld [vmem:[%s83 + $0x2ba] sm:$0xff]
  %v2797 = vld [vmem:[%s83 + $0x2c2] sm:$0xff]
  %v2798 = vld [vmem:[%s83 + $0x2d2] sm:$0xff]
  %v2799 = vld [vmem:[%s83 + $0x2da] sm:$0xff]
  %v2800 = vld [vmem:[%s83 + $0x2ea] sm:$0xff]
  %v2801 = vld [vmem:[%s83 + $0x2f2] sm:$0xff]
  %v2802 = vld [vmem:[%s83 + $0x302] sm:$0xff]
  %v2803 = vld [vmem:[%s83 + $0x30a] sm:$0xff]
  %v2804 = vld [vmem:[%s83 + $0x31a] sm:$0xff]
  %v2805 = vld [vmem:[%s83 + $0x322] sm:$0xff]
  %v2806 = vld [vmem:[%s3 + $0x280] sm:$0xff]
  %v2807 = vld [vmem:[%s3 + $0x288] sm:$0xff]
  %v2808 = vld [vmem:[%s3 + $0x290] sm:$0xff]
  %v2809 = vld [vmem:[%s3 + $0x298] sm:$0xff]
  %v2810 = vld [vmem:[%s3 + $0x2a0] sm:$0xff]
  %v2811 = vld [vmem:[%s3 + $0x2a8] sm:$0xff]
  %v2812 = vld [vmem:[%s3 + $0x2b0] sm:$0xff]
  %v2813 = vld [vmem:[%s3 + $0x2b8] sm:$0xff]
  %v2814 = vld [vmem:[%s3 + $0x2c0] sm:$0xff]
  %v2815 = vld [vmem:[%s3 + $0x2c8] sm:$0xff]
  %v2816 = vld [vmem:[%s3 + $0x2d0] sm:$0xff]
  %v2817 = vld [vmem:[%s3 + $0x2d8] sm:$0xff]
  %v2818 = vld [vmem:[%s3 + $0x2e0] sm:$0xff]
  %v2819 = vld [vmem:[%s3 + $0x2e8] sm:$0xff]
  %v2820 = vld [vmem:[%s3 + $0x2f0] sm:$0xff]
  %v2821 = vld [vmem:[%s3 + $0x2f8] sm:$0xff]
  %2822 = vmatprep.subr.mxu0 0.0
  %2823 = vmatpush1.msra.mxu0 %v2821
  %2824 = vmatprep.subr.mxu0 0.0
  %2825 = vmatpush1.msra.mxu0 %v2820
  %2826 = vmatprep.subr.mxu0 0.0
  %2827 = vmatpush1.msra.mxu0 %v2819
  %2828 = vmatprep.subr.mxu0 0.0
  %2829 = vmatpush1.msra.mxu0 %v2818
  %2830 = vmatprep.subr.mxu0 0.0
  %2831 = vmatpush1.msra.mxu0 %v2817
  %2832 = vmatprep.subr.mxu0 0.0
  %2833 = vmatpush1.msra.mxu0 %v2816
  %2834 = vmatprep.subr.mxu0 0.0
  %2835 = vmatpush1.msra.mxu0 %v2815
  %2836 = vmatprep.subr.mxu0 0.0
  %2837 = vmatpush1.msra.mxu0 %v2814
  %2838 = vmatprep.subr.mxu0 0.0
  %2839 = vmatpush1.msra.mxu0 %v2813
  %2840 = vmatprep.subr.mxu0 0.0
  %2841 = vmatpush1.msra.mxu0 %v2812
  %2842 = vmatprep.subr.mxu0 0.0
  %2843 = vmatpush1.msra.mxu0 %v2811
  %2844 = vmatprep.subr.mxu0 0.0
  %2845 = vmatpush1.msra.mxu0 %v2810
  %2846 = vmatprep.subr.mxu0 0.0
  %2847 = vmatpush1.msra.mxu0 %v2809
  %2848 = vmatprep.subr.mxu0 0.0
  %2849 = vmatpush1.msra.mxu0 %v2808
  %2850 = vmatprep.subr.mxu0 0.0
  %2851 = vmatpush1.msra.mxu0 %v2807
  %2852 = vmatprep.subr.mxu0 0.0
  %2853 = vmatpush1.msra.mxu0 %v2806
  %2854 = vmatprep.subr.mxu0 0.0
  %2855 = vmatpush2.msra.mxu0 0.0
  %2856 = vmatprep.subr.mxu0 0.0
  %2857 = vmatpush2.msra.mxu0 0.0
  %2858 = vmatprep.subr.mxu0 0.0
  %2859 = vmatpush2.msra.mxu0 0.0
  %2860 = vmatprep.subr.mxu0 0.0
  %2861 = vmatpush2.msra.mxu0 0.0
  %2862 = vmatprep.subr.mxu0 0.0
  %2863 = vmatpush2.msra.mxu0 0.0
  %2864 = vmatprep.subr.mxu0 0.0
  %2865 = vmatpush2.msra.mxu0 0.0
  %2866 = vmatprep.subr.mxu0 0.0
  %2867 = vmatpush2.msra.mxu0 0.0
  %2868 = vmatprep.subr.mxu0 0.0
  %2869 = vmatpush2.msra.mxu0 0.0
  %2870 = vmatprep.subr.mxu0 0.0
  %2871 = vmatpush2.msra.mxu0 0.0
  %2872 = vmatprep.subr.mxu0 0.0
  %2873 = vmatpush2.msra.mxu0 0.0
  %2874 = vmatprep.subr.mxu0 0.0
  %2875 = vmatpush2.msra.mxu0 0.0
  %2876 = vmatprep.subr.mxu0 0.0
  %2877 = vmatpush2.msra.mxu0 0.0
  %2878 = vmatprep.subr.mxu0 0.0
  %2879 = vmatpush2.msra.mxu0 0.0
  %2880 = vmatprep.subr.mxu0 0.0
  %2881 = vmatpush2.msra.mxu0 0.0
  %2882 = vmatprep.subr.mxu0 0.0
  %2883 = vmatpush2.msra.mxu0 0.0
  %2884 = vmatprep.subr.mxu0 0.0
  %2885 = vmatpush2.msra.mxu0 0.0
  %2886 = vmatprep.mubr.f32.mxu0 0.0
  %2887 = vmatmul.mubr.f32.gmra.mxu0 %v2742
  %v2888 = vpop.f32.mrf.mxu0
  %v2889 = vadd.f32 0.0, %v2888
  %v2890 = vpop.f32.mrf.mxu0
  %2891 = vmatprep.mubr.f32.mxu0 0.0
  %2892 = vmatmul.mubr.f32.gmra.mxu0 %v2743
  %v2893 = vpop.f32.mrf.mxu0
  %v2894 = vadd.f32 0.0, %v2893
  %v2895 = vpop.f32.mrf.mxu0
  %2896 = vmatprep.mubr.f32.mxu0 0.0
  %2897 = vmatmul.mubr.f32.gmra.mxu0 %v2744
  %v2898 = vpop.f32.mrf.mxu0
  %v2899 = vadd.f32 0.0, %v2898
  %v2900 = vpop.f32.mrf.mxu0
  %2901 = vmatprep.mubr.f32.mxu0 0.0
  %2902 = vmatmul.mubr.f32.gmra.mxu0 %v2745
  %v2903 = vpop.f32.mrf.mxu0
  %v2904 = vadd.f32 0.0, %v2903
  %v2905 = vpop.f32.mrf.mxu0
  %2906 = vmatprep.mubr.f32.mxu0 0.0
  %2907 = vmatmul.mubr.f32.gmra.mxu0 %v2746
  %v2908 = vpop.f32.mrf.mxu0
  %v2909 = vadd.f32 0.0, %v2908
  %v2910 = vpop.f32.mrf.mxu0
  %2911 = vmatprep.mubr.f32.mxu0 0.0
  %2912 = vmatmul.mubr.f32.gmra.mxu0 %v2747
  %v2913 = vpop.f32.mrf.mxu0
  %v2914 = vadd.f32 0.0, %v2913
  %v2915 = vpop.f32.mrf.mxu0
  %2916 = vmatprep.mubr.f32.mxu0 0.0
  %2917 = vmatmul.mubr.f32.gmra.mxu0 %v2748
  %v2918 = vpop.f32.mrf.mxu0
  %v2919 = vadd.f32 0.0, %v2918
  %v2920 = vpop.f32.mrf.mxu0
  %2921 = vmatprep.mubr.f32.mxu0 0.0
  %2922 = vmatmul.mubr.f32.gmra.mxu0 %v2749
  %v2923 = vpop.f32.mrf.mxu0
  %v2924 = vadd.f32 0.0, %v2923
  %v2925 = vpop.f32.mrf.mxu0
  %2926 = vmatprep.mubr.f32.mxu0 0.0
  %2927 = vmatmul.mubr.f32.gmra.mxu0 %v2750
  %v2928 = vpop.f32.mrf.mxu0
  %v2929 = vadd.f32 0.0, %v2928
  %v2930 = vpop.f32.mrf.mxu0
  %2931 = vmatprep.mubr.f32.mxu0 0.0
  %2932 = vmatmul.mubr.f32.gmra.mxu0 %v2751
  %v2933 = vpop.f32.mrf.mxu0
  %v2934 = vadd.f32 0.0, %v2933
  %v2935 = vpop.f32.mrf.mxu0
  %2936 = vmatprep.mubr.f32.mxu0 0.0
  %2937 = vmatmul.mubr.f32.gmra.mxu0 %v2752
  %v2938 = vpop.f32.mrf.mxu0
  %v2939 = vadd.f32 0.0, %v2938
  %v2940 = vpop.f32.mrf.mxu0
  %2941 = vmatprep.mubr.f32.mxu0 0.0
  %2942 = vmatmul.mubr.f32.gmra.mxu0 %v2753
  %v2943 = vpop.f32.mrf.mxu0
  %v2944 = vadd.f32 0.0, %v2943
  %v2945 = vpop.f32.mrf.mxu0
  %2946 = vmatprep.mubr.f32.mxu0 0.0
  %2947 = vmatmul.mubr.f32.gmra.mxu0 %v2754
  %v2948 = vpop.f32.mrf.mxu0
  %v2949 = vadd.f32 0.0, %v2948
  %v2950 = vpop.f32.mrf.mxu0
  %2951 = vmatprep.mubr.f32.mxu0 0.0
  %2952 = vmatmul.mubr.f32.gmra.mxu0 %v2755
  %v2953 = vpop.f32.mrf.mxu0
  %v2954 = vadd.f32 0.0, %v2953
  %v2955 = vpop.f32.mrf.mxu0
  %2956 = vmatprep.mubr.f32.mxu0 0.0
  %2957 = vmatmul.mubr.f32.gmra.mxu0 %v2756
  %v2958 = vpop.f32.mrf.mxu0
  %v2959 = vadd.f32 0.0, %v2958
  %v2960 = vpop.f32.mrf.mxu0
  %2961 = vmatprep.mubr.f32.mxu0 0.0
  %2962 = vmatmul.mubr.f32.gmra.mxu0 %v2757
  %v2963 = vpop.f32.mrf.mxu0
  %v2964 = vadd.f32 0.0, %v2963
  %v2965 = vpop.f32.mrf.mxu0
  %2966 = vmatprep.mubr.f32.mxu0 0.0
  %2967 = vmatmul.mubr.f32.gmra.mxu0 %v2758
  %v2968 = vpop.f32.mrf.mxu0
  %v2969 = vadd.f32 0.0, %v2968
  %v2970 = vpop.f32.mrf.mxu0
  %2971 = vmatprep.mubr.f32.mxu0 0.0
  %2972 = vmatmul.mubr.f32.gmra.mxu0 %v2759
  %v2973 = vpop.f32.mrf.mxu0
  %v2974 = vadd.f32 0.0, %v2973
  %v2975 = vpop.f32.mrf.mxu0
  %2976 = vmatprep.mubr.f32.mxu0 0.0
  %2977 = vmatmul.mubr.f32.gmra.mxu0 %v2760
  %v2978 = vpop.f32.mrf.mxu0
  %v2979 = vadd.f32 0.0, %v2978
  %v2980 = vpop.f32.mrf.mxu0
  %2981 = vmatprep.mubr.f32.mxu0 0.0
  %2982 = vmatmul.mubr.f32.gmra.mxu0 %v2761
  %v2983 = vpop.f32.mrf.mxu0
  %v2984 = vadd.f32 0.0, %v2983
  %v2985 = vpop.f32.mrf.mxu0
  %2986 = vmatprep.mubr.f32.mxu0 0.0
  %2987 = vmatmul.mubr.f32.gmra.mxu0 %v2762
  %v2988 = vpop.f32.mrf.mxu0
  %v2989 = vadd.f32 0.0, %v2988
  %v2990 = vpop.f32.mrf.mxu0
  %2991 = vmatprep.mubr.f32.mxu0 0.0
  %2992 = vmatmul.mubr.f32.gmra.mxu0 %v2763
  %v2993 = vpop.f32.mrf.mxu0
  %v2994 = vadd.f32 0.0, %v2993
  %v2995 = vpop.f32.mrf.mxu0
  %2996 = vmatprep.mubr.f32.mxu0 0.0
  %2997 = vmatmul.mubr.f32.gmra.mxu0 %v2764
  %v2998 = vpop.f32.mrf.mxu0
  %v2999 = vadd.f32 0.0, %v2998
  %v3000 = vpop.f32.mrf.mxu0
  %3001 = vmatprep.mubr.f32.mxu0 0.0
  %3002 = vmatmul.mubr.f32.gmra.mxu0 %v2765
  %v3003 = vpop.f32.mrf.mxu0
  %v3004 = vadd.f32 0.0, %v3003
  %v3005 = vpop.f32.mrf.mxu0
  %3006 = vmatprep.mubr.f32.mxu0 0.0
  %3007 = vmatmul.mubr.f32.gmra.mxu0 %v2766
  %v3008 = vpop.f32.mrf.mxu0
  %v3009 = vadd.f32 0.0, %v3008
  %v3010 = vpop.f32.mrf.mxu0
  %3011 = vmatprep.mubr.f32.mxu0 0.0
  %3012 = vmatmul.mubr.f32.gmra.mxu0 %v2767
  %v3013 = vpop.f32.mrf.mxu0
  %v3014 = vadd.f32 0.0, %v3013
  %v3015 = vpop.f32.mrf.mxu0
  %3016 = vmatprep.mubr.f32.mxu0 0.0
  %3017 = vmatmul.mubr.f32.gmra.mxu0 %v2768
  %v3018 = vpop.f32.mrf.mxu0
  %v3019 = vadd.f32 0.0, %v3018
  %v3020 = vpop.f32.mrf.mxu0
  %3021 = vmatprep.mubr.f32.mxu0 0.0
  %3022 = vmatmul.mubr.f32.gmra.mxu0 %v2769
  %v3023 = vpop.f32.mrf.mxu0
  %v3024 = vadd.f32 0.0, %v3023
  %v3025 = vpop.f32.mrf.mxu0
  %3026 = vmatprep.mubr.f32.mxu0 0.0
  %3027 = vmatmul.mubr.f32.gmra.mxu0 %v2770
  %v3028 = vpop.f32.mrf.mxu0
  %v3029 = vadd.f32 0.0, %v3028
  %v3030 = vpop.f32.mrf.mxu0
  %3031 = vmatprep.mubr.f32.mxu0 0.0
  %3032 = vmatmul.mubr.f32.gmra.mxu0 %v2771
  %v3033 = vpop.f32.mrf.mxu0
  %v3034 = vadd.f32 0.0, %v3033
  %v3035 = vpop.f32.mrf.mxu0
  %3036 = vmatprep.mubr.f32.mxu0 0.0
  %3037 = vmatmul.mubr.f32.gmra.mxu0 %v2772
  %v3038 = vpop.f32.mrf.mxu0
  %v3039 = vadd.f32 0.0, %v3038
  %v3040 = vpop.f32.mrf.mxu0
  %3041 = vmatprep.mubr.f32.mxu0 0.0
  %3042 = vmatmul.mubr.f32.gmra.mxu0 %v2773
  %v3043 = vpop.f32.mrf.mxu0
  %v3044 = vadd.f32 0.0, %v3043
  %v3045 = vpop.f32.mrf.mxu0
  %3046 = vmatprep.mubr.f32.mxu0 0.0
  %3047 = vmatmul.mubr.f32.gmra.mxu0 %v2774
  %v3048 = vpop.f32.mrf.mxu0
  %v3049 = vadd.f32 0.0, %v3048
  %v3050 = vpop.f32.mrf.mxu0
  %3051 = vmatprep.mubr.f32.mxu0 0.0
  %3052 = vmatmul.mubr.f32.gmra.mxu0 %v2775
  %v3053 = vpop.f32.mrf.mxu0
  %v3054 = vadd.f32 0.0, %v3053
  %v3055 = vpop.f32.mrf.mxu0
  %3056 = vmatprep.mubr.f32.mxu0 0.0
  %3057 = vmatmul.mubr.f32.gmra.mxu0 %v2776
  %v3058 = vpop.f32.mrf.mxu0
  %v3059 = vadd.f32 0.0, %v3058
  %v3060 = vpop.f32.mrf.mxu0
  %3061 = vmatprep.mubr.f32.mxu0 0.0
  %3062 = vmatmul.mubr.f32.gmra.mxu0 %v2777
  %v3063 = vpop.f32.mrf.mxu0
  %v3064 = vadd.f32 0.0, %v3063
  %v3065 = vpop.f32.mrf.mxu0
  %3066 = vmatprep.mubr.f32.mxu0 0.0
  %3067 = vmatmul.mubr.f32.gmra.mxu0 %v2778
  %v3068 = vpop.f32.mrf.mxu0
  %v3069 = vadd.f32 0.0, %v3068
  %v3070 = vpop.f32.mrf.mxu0
  %3071 = vmatprep.mubr.f32.mxu0 0.0
  %3072 = vmatmul.mubr.f32.gmra.mxu0 %v2779
  %v3073 = vpop.f32.mrf.mxu0
  %v3074 = vadd.f32 0.0, %v3073
  %v3075 = vpop.f32.mrf.mxu0
  %3076 = vmatprep.mubr.f32.mxu0 0.0
  %3077 = vmatmul.mubr.f32.gmra.mxu0 %v2780
  %v3078 = vpop.f32.mrf.mxu0
  %v3079 = vadd.f32 0.0, %v3078
  %v3080 = vpop.f32.mrf.mxu0
  %3081 = vmatprep.mubr.f32.mxu0 0.0
  %3082 = vmatmul.mubr.f32.gmra.mxu0 %v2781
  %v3083 = vpop.f32.mrf.mxu0
  %v3084 = vadd.f32 0.0, %v3083
  %v3085 = vpop.f32.mrf.mxu0
  %3086 = vmatprep.mubr.f32.mxu0 0.0
  %3087 = vmatmul.mubr.f32.gmra.mxu0 %v2782
  %v3088 = vpop.f32.mrf.mxu0
  %v3089 = vadd.f32 0.0, %v3088
  %v3090 = vpop.f32.mrf.mxu0
  %3091 = vmatprep.mubr.f32.mxu0 0.0
  %3092 = vmatmul.mubr.f32.gmra.mxu0 %v2783
  %v3093 = vpop.f32.mrf.mxu0
  %v3094 = vadd.f32 0.0, %v3093
  %v3095 = vpop.f32.mrf.mxu0
  %3096 = vmatprep.mubr.f32.mxu0 0.0
  %3097 = vmatmul.mubr.f32.gmra.mxu0 %v2784
  %v3098 = vpop.f32.mrf.mxu0
  %v3099 = vadd.f32 0.0, %v3098
  %v3100 = vpop.f32.mrf.mxu0
  %3101 = vmatprep.mubr.f32.mxu0 0.0
  %3102 = vmatmul.mubr.f32.gmra.mxu0 %v2785
  %v3103 = vpop.f32.mrf.mxu0
  %v3104 = vadd.f32 0.0, %v3103
  %v3105 = vpop.f32.mrf.mxu0
  %3106 = vmatprep.mubr.f32.mxu0 0.0
  %3107 = vmatmul.mubr.f32.gmra.mxu0 %v2786
  %v3108 = vpop.f32.mrf.mxu0
  %v3109 = vadd.f32 0.0, %v3108
  %v3110 = vpop.f32.mrf.mxu0
  %3111 = vmatprep.mubr.f32.mxu0 0.0
  %3112 = vmatmul.mubr.f32.gmra.mxu0 %v2787
  %v3113 = vpop.f32.mrf.mxu0
  %v3114 = vadd.f32 0.0, %v3113
  %v3115 = vpop.f32.mrf.mxu0
  %3116 = vmatprep.mubr.f32.mxu0 0.0
  %3117 = vmatmul.mubr.f32.gmra.mxu0 %v2788
  %v3118 = vpop.f32.mrf.mxu0
  %v3119 = vadd.f32 0.0, %v3118
  %v3120 = vpop.f32.mrf.mxu0
  %3121 = vmatprep.mubr.f32.mxu0 0.0
  %3122 = vmatmul.mubr.f32.gmra.mxu0 %v2789
  %v3123 = vpop.f32.mrf.mxu0
  %v3124 = vadd.f32 0.0, %v3123
  %v3125 = vpop.f32.mrf.mxu0
  %3126 = vmatprep.mubr.f32.mxu0 0.0
  %3127 = vmatmul.mubr.f32.gmra.mxu0 %v2790
  %v3128 = vpop.f32.mrf.mxu0
  %v3129 = vadd.f32 0.0, %v3128
  %v3130 = vpop.f32.mrf.mxu0
  %3131 = vmatprep.mubr.f32.mxu0 0.0
  %3132 = vmatmul.mubr.f32.gmra.mxu0 %v2791
  %v3133 = vpop.f32.mrf.mxu0
  %v3134 = vadd.f32 0.0, %v3133
  %v3135 = vpop.f32.mrf.mxu0
  %3136 = vmatprep.mubr.f32.mxu0 0.0
  %3137 = vmatmul.mubr.f32.gmra.mxu0 %v2792
  %v3138 = vpop.f32.mrf.mxu0
  %v3139 = vadd.f32 0.0, %v3138
  %v3140 = vpop.f32.mrf.mxu0
  %3141 = vmatprep.mubr.f32.mxu0 0.0
  %3142 = vmatmul.mubr.f32.gmra.mxu0 %v2793
  %v3143 = vpop.f32.mrf.mxu0
  %v3144 = vadd.f32 0.0, %v3143
  %v3145 = vpop.f32.mrf.mxu0
  %3146 = vmatprep.mubr.f32.mxu0 0.0
  %3147 = vmatmul.mubr.f32.gmra.mxu0 %v2794
  %v3148 = vpop.f32.mrf.mxu0
  %v3149 = vadd.f32 0.0, %v3148
  %v3150 = vpop.f32.mrf.mxu0
  %3151 = vmatprep.mubr.f32.mxu0 0.0
  %3152 = vmatmul.mubr.f32.gmra.mxu0 %v2795
  %v3153 = vpop.f32.mrf.mxu0
  %v3154 = vadd.f32 0.0, %v3153
  %v3155 = vpop.f32.mrf.mxu0
  %3156 = vmatprep.mubr.f32.mxu0 0.0
  %3157 = vmatmul.mubr.f32.gmra.mxu0 %v2796
  %v3158 = vpop.f32.mrf.mxu0
  %v3159 = vadd.f32 0.0, %v3158
  %v3160 = vpop.f32.mrf.mxu0
  %3161 = vmatprep.mubr.f32.mxu0 0.0
  %3162 = vmatmul.mubr.f32.gmra.mxu0 %v2797
  %v3163 = vpop.f32.mrf.mxu0
  %v3164 = vadd.f32 0.0, %v3163
  %v3165 = vpop.f32.mrf.mxu0
  %3166 = vmatprep.mubr.f32.mxu0 0.0
  %3167 = vmatmul.mubr.f32.gmra.mxu0 %v2798
  %v3168 = vpop.f32.mrf.mxu0
  %v3169 = vadd.f32 0.0, %v3168
  %v3170 = vpop.f32.mrf.mxu0
  %3171 = vmatprep.mubr.f32.mxu0 0.0
  %3172 = vmatmul.mubr.f32.gmra.mxu0 %v2799
  %v3173 = vpop.f32.mrf.mxu0
  %v3174 = vadd.f32 0.0, %v3173
  %v3175 = vpop.f32.mrf.mxu0
  %3176 = vmatprep.mubr.f32.mxu0 0.0
  %3177 = vmatmul.mubr.f32.gmra.mxu0 %v2800
  %v3178 = vpop.f32.mrf.mxu0
  %v3179 = vadd.f32 0.0, %v3178
  %v3180 = vpop.f32.mrf.mxu0
  %3181 = vmatprep.mubr.f32.mxu0 0.0
  %3182 = vmatmul.mubr.f32.gmra.mxu0 %v2801
  %v3183 = vpop.f32.mrf.mxu0
  %v3184 = vadd.f32 0.0, %v3183
  %v3185 = vpop.f32.mrf.mxu0
  %3186 = vmatprep.mubr.f32.mxu0 0.0
  %3187 = vmatmul.mubr.f32.gmra.mxu0 %v2802
  %v3188 = vpop.f32.mrf.mxu0
  %v3189 = vadd.f32 0.0, %v3188
  %v3190 = vpop.f32.mrf.mxu0
  %3191 = vmatprep.mubr.f32.mxu0 0.0
  %3192 = vmatmul.mubr.f32.gmra.mxu0 %v2803
  %v3193 = vpop.f32.mrf.mxu0
  %v3194 = vadd.f32 0.0, %v3193
  %v3195 = vpop.f32.mrf.mxu0
  %3196 = vmatprep.mubr.f32.mxu0 0.0
  %3197 = vmatmul.mubr.f32.gmra.mxu0 %v2804
  %v3198 = vpop.f32.mrf.mxu0
  %v3199 = vadd.f32 0.0, %v3198
  %v3200 = vpop.f32.mrf.mxu0
  %3201 = vmatprep.mubr.f32.mxu0 0.0
  %3202 = vmatmul.mubr.f32.gmra.mxu0 %v2805
  %v3203 = vpop.f32.mrf.mxu0
  %v3204 = vadd.f32 0.0, %v3203
  %v3205 = vpop.f32.mrf.mxu0
  %3206 = vdwg.mxu0
  %v3207 = vadd.f32 %v2678, %v2889
  %v3208 = vadd.f32 %v2679, %v2894
  %v3209 = vadd.f32 %v2680, %v2899
  %v3210 = vadd.f32 %v2681, %v2904
  %v3211 = vadd.f32 %v2682, %v2909
  %v3212 = vadd.f32 %v2683, %v2914
  %v3213 = vadd.f32 %v2684, %v2919
  %v3214 = vadd.f32 %v2685, %v2924
  %v3215 = vadd.f32 %v2686, %v2929
  %v3216 = vadd.f32 %v2687, %v2934
  %v3217 = vadd.f32 %v2688, %v2939
  %v3218 = vadd.f32 %v2689, %v2944
  %v3219 = vadd.f32 %v2690, %v2949
  %v3220 = vadd.f32 %v2691, %v2954
  %v3221 = vadd.f32 %v2692, %v2959
  %v3222 = vadd.f32 %v2693, %v2964
  %v3223 = vadd.f32 %v2694, %v2969
  %v3224 = vadd.f32 %v2695, %v2974
  %v3225 = vadd.f32 %v2696, %v2979
  %v3226 = vadd.f32 %v2697, %v2984
  %v3227 = vadd.f32 %v2698, %v2989
  %v3228 = vadd.f32 %v2699, %v2994
  %v3229 = vadd.f32 %v2700, %v2999
  %v3230 = vadd.f32 %v2701, %v3004
  %v3231 = vadd.f32 %v2702, %v3009
  %v3232 = vadd.f32 %v2703, %v3014
  %v3233 = vadd.f32 %v2704, %v3019
  %v3234 = vadd.f32 %v2705, %v3024
  %v3235 = vadd.f32 %v2706, %v3029
  %v3236 = vadd.f32 %v2707, %v3034
  %v3237 = vadd.f32 %v2708, %v3039
  %v3238 = vadd.f32 %v2709, %v3044
  %v3239 = vadd.f32 %v2710, %v3049
  %v3240 = vadd.f32 %v2711, %v3054
  %v3241 = vadd.f32 %v2712, %v3059
  %v3242 = vadd.f32 %v2713, %v3064
  %v3243 = vadd.f32 %v2714, %v3069
  %v3244 = vadd.f32 %v2715, %v3074
  %v3245 = vadd.f32 %v2716, %v3079
  %v3246 = vadd.f32 %v2717, %v3084
  %v3247 = vadd.f32 %v2718, %v3089
  %v3248 = vadd.f32 %v2719, %v3094
  %v3249 = vadd.f32 %v2720, %v3099
  %v3250 = vadd.f32 %v2721, %v3104
  %v3251 = vadd.f32 %v2722, %v3109
  %v3252 = vadd.f32 %v2723, %v3114
  %v3253 = vadd.f32 %v2724, %v3119
  %v3254 = vadd.f32 %v2725, %v3124
  %v3255 = vadd.f32 %v2726, %v3129
  %v3256 = vadd.f32 %v2727, %v3134
  %v3257 = vadd.f32 %v2728, %v3139
  %v3258 = vadd.f32 %v2729, %v3144
  %v3259 = vadd.f32 %v2730, %v3149
  %v3260 = vadd.f32 %v2731, %v3154
  %v3261 = vadd.f32 %v2732, %v3159
  %v3262 = vadd.f32 %v2733, %v3164
  %v3263 = vadd.f32 %v2734, %v3169
  %v3264 = vadd.f32 %v2735, %v3174
  %v3265 = vadd.f32 %v2736, %v3179
  %v3266 = vadd.f32 %v2737, %v3184
  %v3267 = vadd.f32 %v2738, %v3189
  %v3268 = vadd.f32 %v2739, %v3194
  %v3269 = vadd.f32 %v2740, %v3199
  %v3270 = vadd.f32 %v2741, %v3204
  %s3271 = scalar_lea.vmem [#allocation2], 48
  %v3272 = vld [vmem:[%s3271] sm:$0xff]
  %v3273 = vld [vmem:[%s3271 + $0x8] sm:$0xff]
  %v3274 = vld [vmem:[%s3271 + $0x18] sm:$0xff]
  %v3275 = vld [vmem:[%s3271 + $0x20] sm:$0xff]
  %v3276 = vld [vmem:[%s3271 + $0x30] sm:$0xff]
  %v3277 = vld [vmem:[%s3271 + $0x38] sm:$0xff]
  %v3278 = vld [vmem:[%s3271 + $0x48] sm:$0xff]
  %v3279 = vld [vmem:[%s3271 + $0x50] sm:$0xff]
  %v3280 = vld [vmem:[%s3271 + $0x60] sm:$0xff]
  %v3281 = vld [vmem:[%s3271 + $0x68] sm:$0xff]
  %v3282 = vld [vmem:[%s3271 + $0x78] sm:$0xff]
  %v3283 = vld [vmem:[%s3271 + $0x80] sm:$0xff]
  %v3284 = vld [vmem:[%s3271 + $0x90] sm:$0xff]
  %v3285 = vld [vmem:[%s3271 + $0x98] sm:$0xff]
  %v3286 = vld [vmem:[%s3271 + $0xa8] sm:$0xff]
  %v3287 = vld [vmem:[%s3271 + $0xb0] sm:$0xff]
  %v3288 = vld [vmem:[%s3271 + $0xc0] sm:$0xff]
  %v3289 = vld [vmem:[%s3271 + $0xc8] sm:$0xff]
  %v3290 = vld [vmem:[%s3271 + $0xd8] sm:$0xff]
  %v3291 = vld [vmem:[%s3271 + $0xe0] sm:$0xff]
  %v3292 = vld [vmem:[%s3271 + $0xf0] sm:$0xff]
  %v3293 = vld [vmem:[%s3271 + $0xf8] sm:$0xff]
  %v3294 = vld [vmem:[%s3271 + $0x108] sm:$0xff]
  %v3295 = vld [vmem:[%s3271 + $0x110] sm:$0xff]
  %v3296 = vld [vmem:[%s3271 + $0x120] sm:$0xff]
  %v3297 = vld [vmem:[%s3271 + $0x128] sm:$0xff]
  %v3298 = vld [vmem:[%s3271 + $0x138] sm:$0xff]
  %v3299 = vld [vmem:[%s3271 + $0x140] sm:$0xff]
  %v3300 = vld [vmem:[%s3271 + $0x150] sm:$0xff]
  %v3301 = vld [vmem:[%s3271 + $0x158] sm:$0xff]
  %v3302 = vld [vmem:[%s3271 + $0x168] sm:$0xff]
  %v3303 = vld [vmem:[%s3271 + $0x170] sm:$0xff]
  %v3304 = vld [vmem:[%s3271 + $0x1b0] sm:$0xff]
  %v3305 = vld [vmem:[%s3271 + $0x1b8] sm:$0xff]
  %v3306 = vld [vmem:[%s3271 + $0x1c8] sm:$0xff]
  %v3307 = vld [vmem:[%s3271 + $0x1d0] sm:$0xff]
  %v3308 = vld [vmem:[%s3271 + $0x1e0] sm:$0xff]
  %v3309 = vld [vmem:[%s3271 + $0x1e8] sm:$0xff]
  %v3310 = vld [vmem:[%s3271 + $0x1f8] sm:$0xff]
  %v3311 = vld [vmem:[%s3271 + $0x200] sm:$0xff]
  %v3312 = vld [vmem:[%s3271 + $0x210] sm:$0xff]
  %v3313 = vld [vmem:[%s3271 + $0x218] sm:$0xff]
  %v3314 = vld [vmem:[%s3271 + $0x228] sm:$0xff]
  %v3315 = vld [vmem:[%s3271 + $0x230] sm:$0xff]
  %v3316 = vld [vmem:[%s3271 + $0x240] sm:$0xff]
  %v3317 = vld [vmem:[%s3271 + $0x248] sm:$0xff]
  %v3318 = vld [vmem:[%s3271 + $0x258] sm:$0xff]
  %v3319 = vld [vmem:[%s3271 + $0x260] sm:$0xff]
  %v3320 = vld [vmem:[%s3271 + $0x270] sm:$0xff]
  %v3321 = vld [vmem:[%s3271 + $0x278] sm:$0xff]
  %v3322 = vld [vmem:[%s3271 + $0x288] sm:$0xff]
  %v3323 = vld [vmem:[%s3271 + $0x290] sm:$0xff]
  %v3324 = vld [vmem:[%s3271 + $0x2a0] sm:$0xff]
  %v3325 = vld [vmem:[%s3271 + $0x2a8] sm:$0xff]
  %v3326 = vld [vmem:[%s3271 + $0x2b8] sm:$0xff]
  %v3327 = vld [vmem:[%s3271 + $0x2c0] sm:$0xff]
  %v3328 = vld [vmem:[%s3271 + $0x2d0] sm:$0xff]
  %v3329 = vld [vmem:[%s3271 + $0x2d8] sm:$0xff]
  %v3330 = vld [vmem:[%s3271 + $0x2e8] sm:$0xff]
  %v3331 = vld [vmem:[%s3271 + $0x2f0] sm:$0xff]
  %v3332 = vld [vmem:[%s3271 + $0x300] sm:$0xff]
  %v3333 = vld [vmem:[%s3271 + $0x308] sm:$0xff]
  %v3334 = vld [vmem:[%s3271 + $0x318] sm:$0xff]
  %v3335 = vld [vmem:[%s3271 + $0x320] sm:$0xff]
  %v3336 = vld [vmem:[%s3 + $0x300] sm:$0xff]
  %v3337 = vld [vmem:[%s3 + $0x308] sm:$0xff]
  %v3338 = vld [vmem:[%s3 + $0x310] sm:$0xff]
  %v3339 = vld [vmem:[%s3 + $0x318] sm:$0xff]
  %v3340 = vld [vmem:[%s3 + $0x320] sm:$0xff]
  %v3341 = vld [vmem:[%s3 + $0x328] sm:$0xff]
  %v3342 = vld [vmem:[%s3 + $0x330] sm:$0xff]
  %v3343 = vld [vmem:[%s3 + $0x338] sm:$0xff]
  %v3344 = vld [vmem:[%s3 + $0x340] sm:$0xff]
  %v3345 = vld [vmem:[%s3 + $0x348] sm:$0xff]
  %v3346 = vld [vmem:[%s3 + $0x350] sm:$0xff]
  %v3347 = vld [vmem:[%s3 + $0x358] sm:$0xff]
  %v3348 = vld [vmem:[%s3 + $0x360] sm:$0xff]
  %v3349 = vld [vmem:[%s3 + $0x368] sm:$0xff]
  %v3350 = vld [vmem:[%s3 + $0x370] sm:$0xff]
  %v3351 = vld [vmem:[%s3 + $0x378] sm:$0xff]
  %3352 = vmatprep.subr.mxu0 0.0
  %3353 = vmatpush1.msra.mxu0 %v3351
  %3354 = vmatprep.subr.mxu0 0.0
  %3355 = vmatpush1.msra.mxu0 %v3350
  %3356 = vmatprep.subr.mxu0 0.0
  %3357 = vmatpush1.msra.mxu0 %v3349
  %3358 = vmatprep.subr.mxu0 0.0
  %3359 = vmatpush1.msra.mxu0 %v3348
  %3360 = vmatprep.subr.mxu0 0.0
  %3361 = vmatpush1.msra.mxu0 %v3347
  %3362 = vmatprep.subr.mxu0 0.0
  %3363 = vmatpush1.msra.mxu0 %v3346
  %3364 = vmatprep.subr.mxu0 0.0
  %3365 = vmatpush1.msra.mxu0 %v3345
  %3366 = vmatprep.subr.mxu0 0.0
  %3367 = vmatpush1.msra.mxu0 %v3344
  %3368 = vmatprep.subr.mxu0 0.0
  %3369 = vmatpush1.msra.mxu0 %v3343
  %3370 = vmatprep.subr.mxu0 0.0
  %3371 = vmatpush1.msra.mxu0 %v3342
  %3372 = vmatprep.subr.mxu0 0.0
  %3373 = vmatpush1.msra.mxu0 %v3341
  %3374 = vmatprep.subr.mxu0 0.0
  %3375 = vmatpush1.msra.mxu0 %v3340
  %3376 = vmatprep.subr.mxu0 0.0
  %3377 = vmatpush1.msra.mxu0 %v3339
  %3378 = vmatprep.subr.mxu0 0.0
  %3379 = vmatpush1.msra.mxu0 %v3338
  %3380 = vmatprep.subr.mxu0 0.0
  %3381 = vmatpush1.msra.mxu0 %v3337
  %3382 = vmatprep.subr.mxu0 0.0
  %3383 = vmatpush1.msra.mxu0 %v3336
  %3384 = vmatprep.subr.mxu0 0.0
  %3385 = vmatpush2.msra.mxu0 0.0
  %3386 = vmatprep.subr.mxu0 0.0
  %3387 = vmatpush2.msra.mxu0 0.0
  %3388 = vmatprep.subr.mxu0 0.0
  %3389 = vmatpush2.msra.mxu0 0.0
  %3390 = vmatprep.subr.mxu0 0.0
  %3391 = vmatpush2.msra.mxu0 0.0
  %3392 = vmatprep.subr.mxu0 0.0
  %3393 = vmatpush2.msra.mxu0 0.0
  %3394 = vmatprep.subr.mxu0 0.0
  %3395 = vmatpush2.msra.mxu0 0.0
  %3396 = vmatprep.subr.mxu0 0.0
  %3397 = vmatpush2.msra.mxu0 0.0
  %3398 = vmatprep.subr.mxu0 0.0
  %3399 = vmatpush2.msra.mxu0 0.0
  %3400 = vmatprep.subr.mxu0 0.0
  %3401 = vmatpush2.msra.mxu0 0.0
  %3402 = vmatprep.subr.mxu0 0.0
  %3403 = vmatpush2.msra.mxu0 0.0
  %3404 = vmatprep.subr.mxu0 0.0
  %3405 = vmatpush2.msra.mxu0 0.0
  %3406 = vmatprep.subr.mxu0 0.0
  %3407 = vmatpush2.msra.mxu0 0.0
  %3408 = vmatprep.subr.mxu0 0.0
  %3409 = vmatpush2.msra.mxu0 0.0
  %3410 = vmatprep.subr.mxu0 0.0
  %3411 = vmatpush2.msra.mxu0 0.0
  %3412 = vmatprep.subr.mxu0 0.0
  %3413 = vmatpush2.msra.mxu0 0.0
  %3414 = vmatprep.subr.mxu0 0.0
  %3415 = vmatpush2.msra.mxu0 0.0
  %3416 = vmatprep.mubr.f32.mxu0 0.0
  %3417 = vmatmul.mubr.f32.gmra.mxu0 %v3272
  %v3418 = vpop.f32.mrf.mxu0
  %v3419 = vadd.f32 0.0, %v3418
  %v3420 = vpop.f32.mrf.mxu0
  %3421 = vmatprep.mubr.f32.mxu0 0.0
  %3422 = vmatmul.mubr.f32.gmra.mxu0 %v3273
  %v3423 = vpop.f32.mrf.mxu0
  %v3424 = vadd.f32 0.0, %v3423
  %v3425 = vpop.f32.mrf.mxu0
  %3426 = vmatprep.mubr.f32.mxu0 0.0
  %3427 = vmatmul.mubr.f32.gmra.mxu0 %v3274
  %v3428 = vpop.f32.mrf.mxu0
  %v3429 = vadd.f32 0.0, %v3428
  %v3430 = vpop.f32.mrf.mxu0
  %3431 = vmatprep.mubr.f32.mxu0 0.0
  %3432 = vmatmul.mubr.f32.gmra.mxu0 %v3275
  %v3433 = vpop.f32.mrf.mxu0
  %v3434 = vadd.f32 0.0, %v3433
  %v3435 = vpop.f32.mrf.mxu0
  %3436 = vmatprep.mubr.f32.mxu0 0.0
  %3437 = vmatmul.mubr.f32.gmra.mxu0 %v3276
  %v3438 = vpop.f32.mrf.mxu0
  %v3439 = vadd.f32 0.0, %v3438
  %v3440 = vpop.f32.mrf.mxu0
  %3441 = vmatprep.mubr.f32.mxu0 0.0
  %3442 = vmatmul.mubr.f32.gmra.mxu0 %v3277
  %v3443 = vpop.f32.mrf.mxu0
  %v3444 = vadd.f32 0.0, %v3443
  %v3445 = vpop.f32.mrf.mxu0
  %3446 = vmatprep.mubr.f32.mxu0 0.0
  %3447 = vmatmul.mubr.f32.gmra.mxu0 %v3278
  %v3448 = vpop.f32.mrf.mxu0
  %v3449 = vadd.f32 0.0, %v3448
  %v3450 = vpop.f32.mrf.mxu0
  %3451 = vmatprep.mubr.f32.mxu0 0.0
  %3452 = vmatmul.mubr.f32.gmra.mxu0 %v3279
  %v3453 = vpop.f32.mrf.mxu0
  %v3454 = vadd.f32 0.0, %v3453
  %v3455 = vpop.f32.mrf.mxu0
  %3456 = vmatprep.mubr.f32.mxu0 0.0
  %3457 = vmatmul.mubr.f32.gmra.mxu0 %v3280
  %v3458 = vpop.f32.mrf.mxu0
  %v3459 = vadd.f32 0.0, %v3458
  %v3460 = vpop.f32.mrf.mxu0
  %3461 = vmatprep.mubr.f32.mxu0 0.0
  %3462 = vmatmul.mubr.f32.gmra.mxu0 %v3281
  %v3463 = vpop.f32.mrf.mxu0
  %v3464 = vadd.f32 0.0, %v3463
  %v3465 = vpop.f32.mrf.mxu0
  %3466 = vmatprep.mubr.f32.mxu0 0.0
  %3467 = vmatmul.mubr.f32.gmra.mxu0 %v3282
  %v3468 = vpop.f32.mrf.mxu0
  %v3469 = vadd.f32 0.0, %v3468
  %v3470 = vpop.f32.mrf.mxu0
  %3471 = vmatprep.mubr.f32.mxu0 0.0
  %3472 = vmatmul.mubr.f32.gmra.mxu0 %v3283
  %v3473 = vpop.f32.mrf.mxu0
  %v3474 = vadd.f32 0.0, %v3473
  %v3475 = vpop.f32.mrf.mxu0
  %3476 = vmatprep.mubr.f32.mxu0 0.0
  %3477 = vmatmul.mubr.f32.gmra.mxu0 %v3284
  %v3478 = vpop.f32.mrf.mxu0
  %v3479 = vadd.f32 0.0, %v3478
  %v3480 = vpop.f32.mrf.mxu0
  %3481 = vmatprep.mubr.f32.mxu0 0.0
  %3482 = vmatmul.mubr.f32.gmra.mxu0 %v3285
  %v3483 = vpop.f32.mrf.mxu0
  %v3484 = vadd.f32 0.0, %v3483
  %v3485 = vpop.f32.mrf.mxu0
  %3486 = vmatprep.mubr.f32.mxu0 0.0
  %3487 = vmatmul.mubr.f32.gmra.mxu0 %v3286
  %v3488 = vpop.f32.mrf.mxu0
  %v3489 = vadd.f32 0.0, %v3488
  %v3490 = vpop.f32.mrf.mxu0
  %3491 = vmatprep.mubr.f32.mxu0 0.0
  %3492 = vmatmul.mubr.f32.gmra.mxu0 %v3287
  %v3493 = vpop.f32.mrf.mxu0
  %v3494 = vadd.f32 0.0, %v3493
  %v3495 = vpop.f32.mrf.mxu0
  %3496 = vmatprep.mubr.f32.mxu0 0.0
  %3497 = vmatmul.mubr.f32.gmra.mxu0 %v3288
  %v3498 = vpop.f32.mrf.mxu0
  %v3499 = vadd.f32 0.0, %v3498
  %v3500 = vpop.f32.mrf.mxu0
  %3501 = vmatprep.mubr.f32.mxu0 0.0
  %3502 = vmatmul.mubr.f32.gmra.mxu0 %v3289
  %v3503 = vpop.f32.mrf.mxu0
  %v3504 = vadd.f32 0.0, %v3503
  %v3505 = vpop.f32.mrf.mxu0
  %3506 = vmatprep.mubr.f32.mxu0 0.0
  %3507 = vmatmul.mubr.f32.gmra.mxu0 %v3290
  %v3508 = vpop.f32.mrf.mxu0
  %v3509 = vadd.f32 0.0, %v3508
  %v3510 = vpop.f32.mrf.mxu0
  %3511 = vmatprep.mubr.f32.mxu0 0.0
  %3512 = vmatmul.mubr.f32.gmra.mxu0 %v3291
  %v3513 = vpop.f32.mrf.mxu0
  %v3514 = vadd.f32 0.0, %v3513
  %v3515 = vpop.f32.mrf.mxu0
  %3516 = vmatprep.mubr.f32.mxu0 0.0
  %3517 = vmatmul.mubr.f32.gmra.mxu0 %v3292
  %v3518 = vpop.f32.mrf.mxu0
  %v3519 = vadd.f32 0.0, %v3518
  %v3520 = vpop.f32.mrf.mxu0
  %3521 = vmatprep.mubr.f32.mxu0 0.0
  %3522 = vmatmul.mubr.f32.gmra.mxu0 %v3293
  %v3523 = vpop.f32.mrf.mxu0
  %v3524 = vadd.f32 0.0, %v3523
  %v3525 = vpop.f32.mrf.mxu0
  %3526 = vmatprep.mubr.f32.mxu0 0.0
  %3527 = vmatmul.mubr.f32.gmra.mxu0 %v3294
  %v3528 = vpop.f32.mrf.mxu0
  %v3529 = vadd.f32 0.0, %v3528
  %v3530 = vpop.f32.mrf.mxu0
  %3531 = vmatprep.mubr.f32.mxu0 0.0
  %3532 = vmatmul.mubr.f32.gmra.mxu0 %v3295
  %v3533 = vpop.f32.mrf.mxu0
  %v3534 = vadd.f32 0.0, %v3533
  %v3535 = vpop.f32.mrf.mxu0
  %3536 = vmatprep.mubr.f32.mxu0 0.0
  %3537 = vmatmul.mubr.f32.gmra.mxu0 %v3296
  %v3538 = vpop.f32.mrf.mxu0
  %v3539 = vadd.f32 0.0, %v3538
  %v3540 = vpop.f32.mrf.mxu0
  %3541 = vmatprep.mubr.f32.mxu0 0.0
  %3542 = vmatmul.mubr.f32.gmra.mxu0 %v3297
  %v3543 = vpop.f32.mrf.mxu0
  %v3544 = vadd.f32 0.0, %v3543
  %v3545 = vpop.f32.mrf.mxu0
  %3546 = vmatprep.mubr.f32.mxu0 0.0
  %3547 = vmatmul.mubr.f32.gmra.mxu0 %v3298
  %v3548 = vpop.f32.mrf.mxu0
  %v3549 = vadd.f32 0.0, %v3548
  %v3550 = vpop.f32.mrf.mxu0
  %3551 = vmatprep.mubr.f32.mxu0 0.0
  %3552 = vmatmul.mubr.f32.gmra.mxu0 %v3299
  %v3553 = vpop.f32.mrf.mxu0
  %v3554 = vadd.f32 0.0, %v3553
  %v3555 = vpop.f32.mrf.mxu0
  %3556 = vmatprep.mubr.f32.mxu0 0.0
  %3557 = vmatmul.mubr.f32.gmra.mxu0 %v3300
  %v3558 = vpop.f32.mrf.mxu0
  %v3559 = vadd.f32 0.0, %v3558
  %v3560 = vpop.f32.mrf.mxu0
  %3561 = vmatprep.mubr.f32.mxu0 0.0
  %3562 = vmatmul.mubr.f32.gmra.mxu0 %v3301
  %v3563 = vpop.f32.mrf.mxu0
  %v3564 = vadd.f32 0.0, %v3563
  %v3565 = vpop.f32.mrf.mxu0
  %3566 = vmatprep.mubr.f32.mxu0 0.0
  %3567 = vmatmul.mubr.f32.gmra.mxu0 %v3302
  %v3568 = vpop.f32.mrf.mxu0
  %v3569 = vadd.f32 0.0, %v3568
  %v3570 = vpop.f32.mrf.mxu0
  %3571 = vmatprep.mubr.f32.mxu0 0.0
  %3572 = vmatmul.mubr.f32.gmra.mxu0 %v3303
  %v3573 = vpop.f32.mrf.mxu0
  %v3574 = vadd.f32 0.0, %v3573
  %v3575 = vpop.f32.mrf.mxu0
  %3576 = vmatprep.mubr.f32.mxu0 0.0
  %3577 = vmatmul.mubr.f32.gmra.mxu0 %v3304
  %v3578 = vpop.f32.mrf.mxu0
  %v3579 = vadd.f32 0.0, %v3578
  %v3580 = vpop.f32.mrf.mxu0
  %3581 = vmatprep.mubr.f32.mxu0 0.0
  %3582 = vmatmul.mubr.f32.gmra.mxu0 %v3305
  %v3583 = vpop.f32.mrf.mxu0
  %v3584 = vadd.f32 0.0, %v3583
  %v3585 = vpop.f32.mrf.mxu0
  %3586 = vmatprep.mubr.f32.mxu0 0.0
  %3587 = vmatmul.mubr.f32.gmra.mxu0 %v3306
  %v3588 = vpop.f32.mrf.mxu0
  %v3589 = vadd.f32 0.0, %v3588
  %v3590 = vpop.f32.mrf.mxu0
  %3591 = vmatprep.mubr.f32.mxu0 0.0
  %3592 = vmatmul.mubr.f32.gmra.mxu0 %v3307
  %v3593 = vpop.f32.mrf.mxu0
  %v3594 = vadd.f32 0.0, %v3593
  %v3595 = vpop.f32.mrf.mxu0
  %3596 = vmatprep.mubr.f32.mxu0 0.0
  %3597 = vmatmul.mubr.f32.gmra.mxu0 %v3308
  %v3598 = vpop.f32.mrf.mxu0
  %v3599 = vadd.f32 0.0, %v3598
  %v3600 = vpop.f32.mrf.mxu0
  %3601 = vmatprep.mubr.f32.mxu0 0.0
  %3602 = vmatmul.mubr.f32.gmra.mxu0 %v3309
  %v3603 = vpop.f32.mrf.mxu0
  %v3604 = vadd.f32 0.0, %v3603
  %v3605 = vpop.f32.mrf.mxu0
  %3606 = vmatprep.mubr.f32.mxu0 0.0
  %3607 = vmatmul.mubr.f32.gmra.mxu0 %v3310
  %v3608 = vpop.f32.mrf.mxu0
  %v3609 = vadd.f32 0.0, %v3608
  %v3610 = vpop.f32.mrf.mxu0
  %3611 = vmatprep.mubr.f32.mxu0 0.0
  %3612 = vmatmul.mubr.f32.gmra.mxu0 %v3311
  %v3613 = vpop.f32.mrf.mxu0
  %v3614 = vadd.f32 0.0, %v3613
  %v3615 = vpop.f32.mrf.mxu0
  %3616 = vmatprep.mubr.f32.mxu0 0.0
  %3617 = vmatmul.mubr.f32.gmra.mxu0 %v3312
  %v3618 = vpop.f32.mrf.mxu0
  %v3619 = vadd.f32 0.0, %v3618
  %v3620 = vpop.f32.mrf.mxu0
  %3621 = vmatprep.mubr.f32.mxu0 0.0
  %3622 = vmatmul.mubr.f32.gmra.mxu0 %v3313
  %v3623 = vpop.f32.mrf.mxu0
  %v3624 = vadd.f32 0.0, %v3623
  %v3625 = vpop.f32.mrf.mxu0
  %3626 = vmatprep.mubr.f32.mxu0 0.0
  %3627 = vmatmul.mubr.f32.gmra.mxu0 %v3314
  %v3628 = vpop.f32.mrf.mxu0
  %v3629 = vadd.f32 0.0, %v3628
  %v3630 = vpop.f32.mrf.mxu0
  %3631 = vmatprep.mubr.f32.mxu0 0.0
  %3632 = vmatmul.mubr.f32.gmra.mxu0 %v3315
  %v3633 = vpop.f32.mrf.mxu0
  %v3634 = vadd.f32 0.0, %v3633
  %v3635 = vpop.f32.mrf.mxu0
  %3636 = vmatprep.mubr.f32.mxu0 0.0
  %3637 = vmatmul.mubr.f32.gmra.mxu0 %v3316
  %v3638 = vpop.f32.mrf.mxu0
  %v3639 = vadd.f32 0.0, %v3638
  %v3640 = vpop.f32.mrf.mxu0
  %3641 = vmatprep.mubr.f32.mxu0 0.0
  %3642 = vmatmul.mubr.f32.gmra.mxu0 %v3317
  %v3643 = vpop.f32.mrf.mxu0
  %v3644 = vadd.f32 0.0, %v3643
  %v3645 = vpop.f32.mrf.mxu0
  %3646 = vmatprep.mubr.f32.mxu0 0.0
  %3647 = vmatmul.mubr.f32.gmra.mxu0 %v3318
  %v3648 = vpop.f32.mrf.mxu0
  %v3649 = vadd.f32 0.0, %v3648
  %v3650 = vpop.f32.mrf.mxu0
  %3651 = vmatprep.mubr.f32.mxu0 0.0
  %3652 = vmatmul.mubr.f32.gmra.mxu0 %v3319
  %v3653 = vpop.f32.mrf.mxu0
  %v3654 = vadd.f32 0.0, %v3653
  %v3655 = vpop.f32.mrf.mxu0
  %3656 = vmatprep.mubr.f32.mxu0 0.0
  %3657 = vmatmul.mubr.f32.gmra.mxu0 %v3320
  %v3658 = vpop.f32.mrf.mxu0
  %v3659 = vadd.f32 0.0, %v3658
  %v3660 = vpop.f32.mrf.mxu0
  %3661 = vmatprep.mubr.f32.mxu0 0.0
  %3662 = vmatmul.mubr.f32.gmra.mxu0 %v3321
  %v3663 = vpop.f32.mrf.mxu0
  %v3664 = vadd.f32 0.0, %v3663
  %v3665 = vpop.f32.mrf.mxu0
  %3666 = vmatprep.mubr.f32.mxu0 0.0
  %3667 = vmatmul.mubr.f32.gmra.mxu0 %v3322
  %v3668 = vpop.f32.mrf.mxu0
  %v3669 = vadd.f32 0.0, %v3668
  %v3670 = vpop.f32.mrf.mxu0
  %3671 = vmatprep.mubr.f32.mxu0 0.0
  %3672 = vmatmul.mubr.f32.gmra.mxu0 %v3323
  %v3673 = vpop.f32.mrf.mxu0
  %v3674 = vadd.f32 0.0, %v3673
  %v3675 = vpop.f32.mrf.mxu0
  %3676 = vmatprep.mubr.f32.mxu0 0.0
  %3677 = vmatmul.mubr.f32.gmra.mxu0 %v3324
  %v3678 = vpop.f32.mrf.mxu0
  %v3679 = vadd.f32 0.0, %v3678
  %v3680 = vpop.f32.mrf.mxu0
  %3681 = vmatprep.mubr.f32.mxu0 0.0
  %3682 = vmatmul.mubr.f32.gmra.mxu0 %v3325
  %v3683 = vpop.f32.mrf.mxu0
  %v3684 = vadd.f32 0.0, %v3683
  %v3685 = vpop.f32.mrf.mxu0
  %3686 = vmatprep.mubr.f32.mxu0 0.0
  %3687 = vmatmul.mubr.f32.gmra.mxu0 %v3326
  %v3688 = vpop.f32.mrf.mxu0
  %v3689 = vadd.f32 0.0, %v3688
  %v3690 = vpop.f32.mrf.mxu0
  %3691 = vmatprep.mubr.f32.mxu0 0.0
  %3692 = vmatmul.mubr.f32.gmra.mxu0 %v3327
  %v3693 = vpop.f32.mrf.mxu0
  %v3694 = vadd.f32 0.0, %v3693
  %v3695 = vpop.f32.mrf.mxu0
  %3696 = vmatprep.mubr.f32.mxu0 0.0
  %3697 = vmatmul.mubr.f32.gmra.mxu0 %v3328
  %v3698 = vpop.f32.mrf.mxu0
  %v3699 = vadd.f32 0.0, %v3698
  %v3700 = vpop.f32.mrf.mxu0
  %3701 = vmatprep.mubr.f32.mxu0 0.0
  %3702 = vmatmul.mubr.f32.gmra.mxu0 %v3329
  %v3703 = vpop.f32.mrf.mxu0
  %v3704 = vadd.f32 0.0, %v3703
  %v3705 = vpop.f32.mrf.mxu0
  %3706 = vmatprep.mubr.f32.mxu0 0.0
  %3707 = vmatmul.mubr.f32.gmra.mxu0 %v3330
  %v3708 = vpop.f32.mrf.mxu0
  %v3709 = vadd.f32 0.0, %v3708
  %v3710 = vpop.f32.mrf.mxu0
  %3711 = vmatprep.mubr.f32.mxu0 0.0
  %3712 = vmatmul.mubr.f32.gmra.mxu0 %v3331
  %v3713 = vpop.f32.mrf.mxu0
  %v3714 = vadd.f32 0.0, %v3713
  %v3715 = vpop.f32.mrf.mxu0
  %3716 = vmatprep.mubr.f32.mxu0 0.0
  %3717 = vmatmul.mubr.f32.gmra.mxu0 %v3332
  %v3718 = vpop.f32.mrf.mxu0
  %v3719 = vadd.f32 0.0, %v3718
  %v3720 = vpop.f32.mrf.mxu0
  %3721 = vmatprep.mubr.f32.mxu0 0.0
  %3722 = vmatmul.mubr.f32.gmra.mxu0 %v3333
  %v3723 = vpop.f32.mrf.mxu0
  %v3724 = vadd.f32 0.0, %v3723
  %v3725 = vpop.f32.mrf.mxu0
  %3726 = vmatprep.mubr.f32.mxu0 0.0
  %3727 = vmatmul.mubr.f32.gmra.mxu0 %v3334
  %v3728 = vpop.f32.mrf.mxu0
  %v3729 = vadd.f32 0.0, %v3728
  %v3730 = vpop.f32.mrf.mxu0
  %3731 = vmatprep.mubr.f32.mxu0 0.0
  %3732 = vmatmul.mubr.f32.gmra.mxu0 %v3335
  %v3733 = vpop.f32.mrf.mxu0
  %v3734 = vadd.f32 0.0, %v3733
  %v3735 = vpop.f32.mrf.mxu0
  %3736 = vdwg.mxu0
  %v3737 = vadd.f32 %v3207, %v3419
  %v3738 = vadd.f32 %v3208, %v3424
  %v3739 = vadd.f32 %v3209, %v3429
  %v3740 = vadd.f32 %v3210, %v3434
  %v3741 = vadd.f32 %v3211, %v3439
  %v3742 = vadd.f32 %v3212, %v3444
  %v3743 = vadd.f32 %v3213, %v3449
  %v3744 = vadd.f32 %v3214, %v3454
  %v3745 = vadd.f32 %v3215, %v3459
  %v3746 = vadd.f32 %v3216, %v3464
  %v3747 = vadd.f32 %v3217, %v3469
  %v3748 = vadd.f32 %v3218, %v3474
  %v3749 = vadd.f32 %v3219, %v3479
  %v3750 = vadd.f32 %v3220, %v3484
  %v3751 = vadd.f32 %v3221, %v3489
  %v3752 = vadd.f32 %v3222, %v3494
  %v3753 = vadd.f32 %v3223, %v3499
  %v3754 = vadd.f32 %v3224, %v3504
  %v3755 = vadd.f32 %v3225, %v3509
  %v3756 = vadd.f32 %v3226, %v3514
  %v3757 = vadd.f32 %v3227, %v3519
  %v3758 = vadd.f32 %v3228, %v3524
  %v3759 = vadd.f32 %v3229, %v3529
  %v3760 = vadd.f32 %v3230, %v3534
  %v3761 = vadd.f32 %v3231, %v3539
  %v3762 = vadd.f32 %v3232, %v3544
  %v3763 = vadd.f32 %v3233, %v3549
  %v3764 = vadd.f32 %v3234, %v3554
  %v3765 = vadd.f32 %v3235, %v3559
  %v3766 = vadd.f32 %v3236, %v3564
  %v3767 = vadd.f32 %v3237, %v3569
  %v3768 = vadd.f32 %v3238, %v3574
  %v3769 = vadd.f32 %v3239, %v3579
  %v3770 = vadd.f32 %v3240, %v3584
  %v3771 = vadd.f32 %v3241, %v3589
  %v3772 = vadd.f32 %v3242, %v3594
  %v3773 = vadd.f32 %v3243, %v3599
  %v3774 = vadd.f32 %v3244, %v3604
  %v3775 = vadd.f32 %v3245, %v3609
  %v3776 = vadd.f32 %v3246, %v3614
  %v3777 = vadd.f32 %v3247, %v3619
  %v3778 = vadd.f32 %v3248, %v3624
  %v3779 = vadd.f32 %v3249, %v3629
  %v3780 = vadd.f32 %v3250, %v3634
  %v3781 = vadd.f32 %v3251, %v3639
  %v3782 = vadd.f32 %v3252, %v3644
  %v3783 = vadd.f32 %v3253, %v3649
  %v3784 = vadd.f32 %v3254, %v3654
  %v3785 = vadd.f32 %v3255, %v3659
  %v3786 = vadd.f32 %v3256, %v3664
  %v3787 = vadd.f32 %v3257, %v3669
  %v3788 = vadd.f32 %v3258, %v3674
  %v3789 = vadd.f32 %v3259, %v3679
  %v3790 = vadd.f32 %v3260, %v3684
  %v3791 = vadd.f32 %v3261, %v3689
  %v3792 = vadd.f32 %v3262, %v3694
  %v3793 = vadd.f32 %v3263, %v3699
  %v3794 = vadd.f32 %v3264, %v3704
  %v3795 = vadd.f32 %v3265, %v3709
  %v3796 = vadd.f32 %v3266, %v3714
  %v3797 = vadd.f32 %v3267, %v3719
  %v3798 = vadd.f32 %v3268, %v3724
  %v3799 = vadd.f32 %v3269, %v3729
  %v3800 = vadd.f32 %v3270, %v3734
  %v3801 = vld [vmem:[%s3271 + $0x1] sm:$0xff]
  %v3802 = vld [vmem:[%s3271 + $0x9] sm:$0xff]
  %v3803 = vld [vmem:[%s3271 + $0x19] sm:$0xff]
  %v3804 = vld [vmem:[%s3271 + $0x21] sm:$0xff]
  %v3805 = vld [vmem:[%s3271 + $0x31] sm:$0xff]
  %v3806 = vld [vmem:[%s3271 + $0x39] sm:$0xff]
  %v3807 = vld [vmem:[%s3271 + $0x49] sm:$0xff]
  %v3808 = vld [vmem:[%s3271 + $0x51] sm:$0xff]
  %v3809 = vld [vmem:[%s3271 + $0x61] sm:$0xff]
  %v3810 = vld [vmem:[%s3271 + $0x69] sm:$0xff]
  %v3811 = vld [vmem:[%s3271 + $0x79] sm:$0xff]
  %v3812 = vld [vmem:[%s3271 + $0x81] sm:$0xff]
  %v3813 = vld [vmem:[%s3271 + $0x91] sm:$0xff]
  %v3814 = vld [vmem:[%s3271 + $0x99] sm:$0xff]
  %v3815 = vld [vmem:[%s3271 + $0xa9] sm:$0xff]
  %v3816 = vld [vmem:[%s3271 + $0xb1] sm:$0xff]
  %v3817 = vld [vmem:[%s3271 + $0xc1] sm:$0xff]
  %v3818 = vld [vmem:[%s3271 + $0xc9] sm:$0xff]
  %v3819 = vld [vmem:[%s3271 + $0xd9] sm:$0xff]
  %v3820 = vld [vmem:[%s3271 + $0xe1] sm:$0xff]
  %v3821 = vld [vmem:[%s3271 + $0xf1] sm:$0xff]
  %v3822 = vld [vmem:[%s3271 + $0xf9] sm:$0xff]
  %v3823 = vld [vmem:[%s3271 + $0x109] sm:$0xff]
  %v3824 = vld [vmem:[%s3271 + $0x111] sm:$0xff]
  %v3825 = vld [vmem:[%s3271 + $0x121] sm:$0xff]
  %v3826 = vld [vmem:[%s3271 + $0x129] sm:$0xff]
  %v3827 = vld [vmem:[%s3271 + $0x139] sm:$0xff]
  %v3828 = vld [vmem:[%s3271 + $0x141] sm:$0xff]
  %v3829 = vld [vmem:[%s3271 + $0x151] sm:$0xff]
  %v3830 = vld [vmem:[%s3271 + $0x159] sm:$0xff]
  %v3831 = vld [vmem:[%s3271 + $0x169] sm:$0xff]
  %v3832 = vld [vmem:[%s3271 + $0x171] sm:$0xff]
  %v3833 = vld [vmem:[%s3271 + $0x1b1] sm:$0xff]
  %v3834 = vld [vmem:[%s3271 + $0x1b9] sm:$0xff]
  %v3835 = vld [vmem:[%s3271 + $0x1c9] sm:$0xff]
  %v3836 = vld [vmem:[%s3271 + $0x1d1] sm:$0xff]
  %v3837 = vld [vmem:[%s3271 + $0x1e1] sm:$0xff]
  %v3838 = vld [vmem:[%s3271 + $0x1e9] sm:$0xff]
  %v3839 = vld [vmem:[%s3271 + $0x1f9] sm:$0xff]
  %v3840 = vld [vmem:[%s3271 + $0x201] sm:$0xff]
  %v3841 = vld [vmem:[%s3271 + $0x211] sm:$0xff]
  %v3842 = vld [vmem:[%s3271 + $0x219] sm:$0xff]
  %v3843 = vld [vmem:[%s3271 + $0x229] sm:$0xff]
  %v3844 = vld [vmem:[%s3271 + $0x231] sm:$0xff]
  %v3845 = vld [vmem:[%s3271 + $0x241] sm:$0xff]
  %v3846 = vld [vmem:[%s3271 + $0x249] sm:$0xff]
  %v3847 = vld [vmem:[%s3271 + $0x259] sm:$0xff]
  %v3848 = vld [vmem:[%s3271 + $0x261] sm:$0xff]
  %v3849 = vld [vmem:[%s3271 + $0x271] sm:$0xff]
  %v3850 = vld [vmem:[%s3271 + $0x279] sm:$0xff]
  %v3851 = vld [vmem:[%s3271 + $0x289] sm:$0xff]
  %v3852 = vld [vmem:[%s3271 + $0x291] sm:$0xff]
  %v3853 = vld [vmem:[%s3271 + $0x2a1] sm:$0xff]
  %v3854 = vld [vmem:[%s3271 + $0x2a9] sm:$0xff]
  %v3855 = vld [vmem:[%s3271 + $0x2b9] sm:$0xff]
  %v3856 = vld [vmem:[%s3271 + $0x2c1] sm:$0xff]
  %v3857 = vld [vmem:[%s3271 + $0x2d1] sm:$0xff]
  %v3858 = vld [vmem:[%s3271 + $0x2d9] sm:$0xff]
  %v3859 = vld [vmem:[%s3271 + $0x2e9] sm:$0xff]
  %v3860 = vld [vmem:[%s3271 + $0x2f1] sm:$0xff]
  %v3861 = vld [vmem:[%s3271 + $0x301] sm:$0xff]
  %v3862 = vld [vmem:[%s3271 + $0x309] sm:$0xff]
  %v3863 = vld [vmem:[%s3271 + $0x319] sm:$0xff]
  %v3864 = vld [vmem:[%s3271 + $0x321] sm:$0xff]
  %v3865 = vld [vmem:[%s3 + $0x380] sm:$0xff]
  %v3866 = vld [vmem:[%s3 + $0x388] sm:$0xff]
  %v3867 = vld [vmem:[%s3 + $0x390] sm:$0xff]
  %v3868 = vld [vmem:[%s3 + $0x398] sm:$0xff]
  %v3869 = vld [vmem:[%s3 + $0x3a0] sm:$0xff]
  %v3870 = vld [vmem:[%s3 + $0x3a8] sm:$0xff]
  %v3871 = vld [vmem:[%s3 + $0x3b0] sm:$0xff]
  %v3872 = vld [vmem:[%s3 + $0x3b8] sm:$0xff]
  %v3873 = vld [vmem:[%s3 + $0x3c0] sm:$0xff]
  %v3874 = vld [vmem:[%s3 + $0x3c8] sm:$0xff]
  %v3875 = vld [vmem:[%s3 + $0x3d0] sm:$0xff]
  %v3876 = vld [vmem:[%s3 + $0x3d8] sm:$0xff]
  %v3877 = vld [vmem:[%s3 + $0x3e0] sm:$0xff]
  %v3878 = vld [vmem:[%s3 + $0x3e8] sm:$0xff]
  %v3879 = vld [vmem:[%s3 + $0x3f0] sm:$0xff]
  %v3880 = vld [vmem:[%s3 + $0x3f8] sm:$0xff]
  %3881 = vmatprep.subr.mxu0 0.0
  %3882 = vmatpush1.msra.mxu0 %v3880
  %3883 = vmatprep.subr.mxu0 0.0
  %3884 = vmatpush1.msra.mxu0 %v3879
  %3885 = vmatprep.subr.mxu0 0.0
  %3886 = vmatpush1.msra.mxu0 %v3878
  %3887 = vmatprep.subr.mxu0 0.0
  %3888 = vmatpush1.msra.mxu0 %v3877
  %3889 = vmatprep.subr.mxu0 0.0
  %3890 = vmatpush1.msra.mxu0 %v3876
  %3891 = vmatprep.subr.mxu0 0.0
  %3892 = vmatpush1.msra.mxu0 %v3875
  %3893 = vmatprep.subr.mxu0 0.0
  %3894 = vmatpush1.msra.mxu0 %v3874
  %3895 = vmatprep.subr.mxu0 0.0
  %3896 = vmatpush1.msra.mxu0 %v3873
  %3897 = vmatprep.subr.mxu0 0.0
  %3898 = vmatpush1.msra.mxu0 %v3872
  %3899 = vmatprep.subr.mxu0 0.0
  %3900 = vmatpush1.msra.mxu0 %v3871
  %3901 = vmatprep.subr.mxu0 0.0
  %3902 = vmatpush1.msra.mxu0 %v3870
  %3903 = vmatprep.subr.mxu0 0.0
  %3904 = vmatpush1.msra.mxu0 %v3869
  %3905 = vmatprep.subr.mxu0 0.0
  %3906 = vmatpush1.msra.mxu0 %v3868
  %3907 = vmatprep.subr.mxu0 0.0
  %3908 = vmatpush1.msra.mxu0 %v3867
  %3909 = vmatprep.subr.mxu0 0.0
  %3910 = vmatpush1.msra.mxu0 %v3866
  %3911 = vmatprep.subr.mxu0 0.0
  %3912 = vmatpush1.msra.mxu0 %v3865
  %3913 = vmatprep.subr.mxu0 0.0
  %3914 = vmatpush2.msra.mxu0 0.0
  %3915 = vmatprep.subr.mxu0 0.0
  %3916 = vmatpush2.msra.mxu0 0.0
  %3917 = vmatprep.subr.mxu0 0.0
  %3918 = vmatpush2.msra.mxu0 0.0
  %3919 = vmatprep.subr.mxu0 0.0
  %3920 = vmatpush2.msra.mxu0 0.0
  %3921 = vmatprep.subr.mxu0 0.0
  %3922 = vmatpush2.msra.mxu0 0.0
  %3923 = vmatprep.subr.mxu0 0.0
  %3924 = vmatpush2.msra.mxu0 0.0
  %3925 = vmatprep.subr.mxu0 0.0
  %3926 = vmatpush2.msra.mxu0 0.0
  %3927 = vmatprep.subr.mxu0 0.0
  %3928 = vmatpush2.msra.mxu0 0.0
  %3929 = vmatprep.subr.mxu0 0.0
  %3930 = vmatpush2.msra.mxu0 0.0
  %3931 = vmatprep.subr.mxu0 0.0
  %3932 = vmatpush2.msra.mxu0 0.0
  %3933 = vmatprep.subr.mxu0 0.0
  %3934 = vmatpush2.msra.mxu0 0.0
  %3935 = vmatprep.subr.mxu0 0.0
  %3936 = vmatpush2.msra.mxu0 0.0
  %3937 = vmatprep.subr.mxu0 0.0
  %3938 = vmatpush2.msra.mxu0 0.0
  %3939 = vmatprep.subr.mxu0 0.0
  %3940 = vmatpush2.msra.mxu0 0.0
  %3941 = vmatprep.subr.mxu0 0.0
  %3942 = vmatpush2.msra.mxu0 0.0
  %3943 = vmatprep.subr.mxu0 0.0
  %3944 = vmatpush2.msra.mxu0 0.0
  %3945 = vmatprep.mubr.f32.mxu0 0.0
  %3946 = vmatmul.mubr.f32.gmra.mxu0 %v3801
  %v3947 = vpop.f32.mrf.mxu0
  %v3948 = vadd.f32 0.0, %v3947
  %v3949 = vpop.f32.mrf.mxu0
  %3950 = vmatprep.mubr.f32.mxu0 0.0
  %3951 = vmatmul.mubr.f32.gmra.mxu0 %v3802
  %v3952 = vpop.f32.mrf.mxu0
  %v3953 = vadd.f32 0.0, %v3952
  %v3954 = vpop.f32.mrf.mxu0
  %3955 = vmatprep.mubr.f32.mxu0 0.0
  %3956 = vmatmul.mubr.f32.gmra.mxu0 %v3803
  %v3957 = vpop.f32.mrf.mxu0
  %v3958 = vadd.f32 0.0, %v3957
  %v3959 = vpop.f32.mrf.mxu0
  %3960 = vmatprep.mubr.f32.mxu0 0.0
  %3961 = vmatmul.mubr.f32.gmra.mxu0 %v3804
  %v3962 = vpop.f32.mrf.mxu0
  %v3963 = vadd.f32 0.0, %v3962
  %v3964 = vpop.f32.mrf.mxu0
  %3965 = vmatprep.mubr.f32.mxu0 0.0
  %3966 = vmatmul.mubr.f32.gmra.mxu0 %v3805
  %v3967 = vpop.f32.mrf.mxu0
  %v3968 = vadd.f32 0.0, %v3967
  %v3969 = vpop.f32.mrf.mxu0
  %3970 = vmatprep.mubr.f32.mxu0 0.0
  %3971 = vmatmul.mubr.f32.gmra.mxu0 %v3806
  %v3972 = vpop.f32.mrf.mxu0
  %v3973 = vadd.f32 0.0, %v3972
  %v3974 = vpop.f32.mrf.mxu0
  %3975 = vmatprep.mubr.f32.mxu0 0.0
  %3976 = vmatmul.mubr.f32.gmra.mxu0 %v3807
  %v3977 = vpop.f32.mrf.mxu0
  %v3978 = vadd.f32 0.0, %v3977
  %v3979 = vpop.f32.mrf.mxu0
  %3980 = vmatprep.mubr.f32.mxu0 0.0
  %3981 = vmatmul.mubr.f32.gmra.mxu0 %v3808
  %v3982 = vpop.f32.mrf.mxu0
  %v3983 = vadd.f32 0.0, %v3982
  %v3984 = vpop.f32.mrf.mxu0
  %3985 = vmatprep.mubr.f32.mxu0 0.0
  %3986 = vmatmul.mubr.f32.gmra.mxu0 %v3809
  %v3987 = vpop.f32.mrf.mxu0
  %v3988 = vadd.f32 0.0, %v3987
  %v3989 = vpop.f32.mrf.mxu0
  %3990 = vmatprep.mubr.f32.mxu0 0.0
  %3991 = vmatmul.mubr.f32.gmra.mxu0 %v3810
  %v3992 = vpop.f32.mrf.mxu0
  %v3993 = vadd.f32 0.0, %v3992
  %v3994 = vpop.f32.mrf.mxu0
  %3995 = vmatprep.mubr.f32.mxu0 0.0
  %3996 = vmatmul.mubr.f32.gmra.mxu0 %v3811
  %v3997 = vpop.f32.mrf.mxu0
  %v3998 = vadd.f32 0.0, %v3997
  %v3999 = vpop.f32.mrf.mxu0
  %4000 = vmatprep.mubr.f32.mxu0 0.0
  %4001 = vmatmul.mubr.f32.gmra.mxu0 %v3812
  %v4002 = vpop.f32.mrf.mxu0
  %v4003 = vadd.f32 0.0, %v4002
  %v4004 = vpop.f32.mrf.mxu0
  %4005 = vmatprep.mubr.f32.mxu0 0.0
  %4006 = vmatmul.mubr.f32.gmra.mxu0 %v3813
  %v4007 = vpop.f32.mrf.mxu0
  %v4008 = vadd.f32 0.0, %v4007
  %v4009 = vpop.f32.mrf.mxu0
  %4010 = vmatprep.mubr.f32.mxu0 0.0
  %4011 = vmatmul.mubr.f32.gmra.mxu0 %v3814
  %v4012 = vpop.f32.mrf.mxu0
  %v4013 = vadd.f32 0.0, %v4012
  %v4014 = vpop.f32.mrf.mxu0
  %4015 = vmatprep.mubr.f32.mxu0 0.0
  %4016 = vmatmul.mubr.f32.gmra.mxu0 %v3815
  %v4017 = vpop.f32.mrf.mxu0
  %v4018 = vadd.f32 0.0, %v4017
  %v4019 = vpop.f32.mrf.mxu0
  %4020 = vmatprep.mubr.f32.mxu0 0.0
  %4021 = vmatmul.mubr.f32.gmra.mxu0 %v3816
  %v4022 = vpop.f32.mrf.mxu0
  %v4023 = vadd.f32 0.0, %v4022
  %v4024 = vpop.f32.mrf.mxu0
  %4025 = vmatprep.mubr.f32.mxu0 0.0
  %4026 = vmatmul.mubr.f32.gmra.mxu0 %v3817
  %v4027 = vpop.f32.mrf.mxu0
  %v4028 = vadd.f32 0.0, %v4027
  %v4029 = vpop.f32.mrf.mxu0
  %4030 = vmatprep.mubr.f32.mxu0 0.0
  %4031 = vmatmul.mubr.f32.gmra.mxu0 %v3818
  %v4032 = vpop.f32.mrf.mxu0
  %v4033 = vadd.f32 0.0, %v4032
  %v4034 = vpop.f32.mrf.mxu0
  %4035 = vmatprep.mubr.f32.mxu0 0.0
  %4036 = vmatmul.mubr.f32.gmra.mxu0 %v3819
  %v4037 = vpop.f32.mrf.mxu0
  %v4038 = vadd.f32 0.0, %v4037
  %v4039 = vpop.f32.mrf.mxu0
  %4040 = vmatprep.mubr.f32.mxu0 0.0
  %4041 = vmatmul.mubr.f32.gmra.mxu0 %v3820
  %v4042 = vpop.f32.mrf.mxu0
  %v4043 = vadd.f32 0.0, %v4042
  %v4044 = vpop.f32.mrf.mxu0
  %4045 = vmatprep.mubr.f32.mxu0 0.0
  %4046 = vmatmul.mubr.f32.gmra.mxu0 %v3821
  %v4047 = vpop.f32.mrf.mxu0
  %v4048 = vadd.f32 0.0, %v4047
  %v4049 = vpop.f32.mrf.mxu0
  %4050 = vmatprep.mubr.f32.mxu0 0.0
  %4051 = vmatmul.mubr.f32.gmra.mxu0 %v3822
  %v4052 = vpop.f32.mrf.mxu0
  %v4053 = vadd.f32 0.0, %v4052
  %v4054 = vpop.f32.mrf.mxu0
  %4055 = vmatprep.mubr.f32.mxu0 0.0
  %4056 = vmatmul.mubr.f32.gmra.mxu0 %v3823
  %v4057 = vpop.f32.mrf.mxu0
  %v4058 = vadd.f32 0.0, %v4057
  %v4059 = vpop.f32.mrf.mxu0
  %4060 = vmatprep.mubr.f32.mxu0 0.0
  %4061 = vmatmul.mubr.f32.gmra.mxu0 %v3824
  %v4062 = vpop.f32.mrf.mxu0
  %v4063 = vadd.f32 0.0, %v4062
  %v4064 = vpop.f32.mrf.mxu0
  %4065 = vmatprep.mubr.f32.mxu0 0.0
  %4066 = vmatmul.mubr.f32.gmra.mxu0 %v3825
  %v4067 = vpop.f32.mrf.mxu0
  %v4068 = vadd.f32 0.0, %v4067
  %v4069 = vpop.f32.mrf.mxu0
  %4070 = vmatprep.mubr.f32.mxu0 0.0
  %4071 = vmatmul.mubr.f32.gmra.mxu0 %v3826
  %v4072 = vpop.f32.mrf.mxu0
  %v4073 = vadd.f32 0.0, %v4072
  %v4074 = vpop.f32.mrf.mxu0
  %4075 = vmatprep.mubr.f32.mxu0 0.0
  %4076 = vmatmul.mubr.f32.gmra.mxu0 %v3827
  %v4077 = vpop.f32.mrf.mxu0
  %v4078 = vadd.f32 0.0, %v4077
  %v4079 = vpop.f32.mrf.mxu0
  %4080 = vmatprep.mubr.f32.mxu0 0.0
  %4081 = vmatmul.mubr.f32.gmra.mxu0 %v3828
  %v4082 = vpop.f32.mrf.mxu0
  %v4083 = vadd.f32 0.0, %v4082
  %v4084 = vpop.f32.mrf.mxu0
  %4085 = vmatprep.mubr.f32.mxu0 0.0
  %4086 = vmatmul.mubr.f32.gmra.mxu0 %v3829
  %v4087 = vpop.f32.mrf.mxu0
  %v4088 = vadd.f32 0.0, %v4087
  %v4089 = vpop.f32.mrf.mxu0
  %4090 = vmatprep.mubr.f32.mxu0 0.0
  %4091 = vmatmul.mubr.f32.gmra.mxu0 %v3830
  %v4092 = vpop.f32.mrf.mxu0
  %v4093 = vadd.f32 0.0, %v4092
  %v4094 = vpop.f32.mrf.mxu0
  %4095 = vmatprep.mubr.f32.mxu0 0.0
  %4096 = vmatmul.mubr.f32.gmra.mxu0 %v3831
  %v4097 = vpop.f32.mrf.mxu0
  %v4098 = vadd.f32 0.0, %v4097
  %v4099 = vpop.f32.mrf.mxu0
  %4100 = vmatprep.mubr.f32.mxu0 0.0
  %4101 = vmatmul.mubr.f32.gmra.mxu0 %v3832
  %v4102 = vpop.f32.mrf.mxu0
  %v4103 = vadd.f32 0.0, %v4102
  %v4104 = vpop.f32.mrf.mxu0
  %4105 = vmatprep.mubr.f32.mxu0 0.0
  %4106 = vmatmul.mubr.f32.gmra.mxu0 %v3833
  %v4107 = vpop.f32.mrf.mxu0
  %v4108 = vadd.f32 0.0, %v4107
  %v4109 = vpop.f32.mrf.mxu0
  %4110 = vmatprep.mubr.f32.mxu0 0.0
  %4111 = vmatmul.mubr.f32.gmra.mxu0 %v3834
  %v4112 = vpop.f32.mrf.mxu0
  %v4113 = vadd.f32 0.0, %v4112
  %v4114 = vpop.f32.mrf.mxu0
  %4115 = vmatprep.mubr.f32.mxu0 0.0
  %4116 = vmatmul.mubr.f32.gmra.mxu0 %v3835
  %v4117 = vpop.f32.mrf.mxu0
  %v4118 = vadd.f32 0.0, %v4117
  %v4119 = vpop.f32.mrf.mxu0
  %4120 = vmatprep.mubr.f32.mxu0 0.0
  %4121 = vmatmul.mubr.f32.gmra.mxu0 %v3836
  %v4122 = vpop.f32.mrf.mxu0
  %v4123 = vadd.f32 0.0, %v4122
  %v4124 = vpop.f32.mrf.mxu0
  %4125 = vmatprep.mubr.f32.mxu0 0.0
  %4126 = vmatmul.mubr.f32.gmra.mxu0 %v3837
  %v4127 = vpop.f32.mrf.mxu0
  %v4128 = vadd.f32 0.0, %v4127
  %v4129 = vpop.f32.mrf.mxu0
  %4130 = vmatprep.mubr.f32.mxu0 0.0
  %4131 = vmatmul.mubr.f32.gmra.mxu0 %v3838
  %v4132 = vpop.f32.mrf.mxu0
  %v4133 = vadd.f32 0.0, %v4132
  %v4134 = vpop.f32.mrf.mxu0
  %4135 = vmatprep.mubr.f32.mxu0 0.0
  %4136 = vmatmul.mubr.f32.gmra.mxu0 %v3839
  %v4137 = vpop.f32.mrf.mxu0
  %v4138 = vadd.f32 0.0, %v4137
  %v4139 = vpop.f32.mrf.mxu0
  %4140 = vmatprep.mubr.f32.mxu0 0.0
  %4141 = vmatmul.mubr.f32.gmra.mxu0 %v3840
  %v4142 = vpop.f32.mrf.mxu0
  %v4143 = vadd.f32 0.0, %v4142
  %v4144 = vpop.f32.mrf.mxu0
  %4145 = vmatprep.mubr.f32.mxu0 0.0
  %4146 = vmatmul.mubr.f32.gmra.mxu0 %v3841
  %v4147 = vpop.f32.mrf.mxu0
  %v4148 = vadd.f32 0.0, %v4147
  %v4149 = vpop.f32.mrf.mxu0
  %4150 = vmatprep.mubr.f32.mxu0 0.0
  %4151 = vmatmul.mubr.f32.gmra.mxu0 %v3842
  %v4152 = vpop.f32.mrf.mxu0
  %v4153 = vadd.f32 0.0, %v4152
  %v4154 = vpop.f32.mrf.mxu0
  %4155 = vmatprep.mubr.f32.mxu0 0.0
  %4156 = vmatmul.mubr.f32.gmra.mxu0 %v3843
  %v4157 = vpop.f32.mrf.mxu0
  %v4158 = vadd.f32 0.0, %v4157
  %v4159 = vpop.f32.mrf.mxu0
  %4160 = vmatprep.mubr.f32.mxu0 0.0
  %4161 = vmatmul.mubr.f32.gmra.mxu0 %v3844
  %v4162 = vpop.f32.mrf.mxu0
  %v4163 = vadd.f32 0.0, %v4162
  %v4164 = vpop.f32.mrf.mxu0
  %4165 = vmatprep.mubr.f32.mxu0 0.0
  %4166 = vmatmul.mubr.f32.gmra.mxu0 %v3845
  %v4167 = vpop.f32.mrf.mxu0
  %v4168 = vadd.f32 0.0, %v4167
  %v4169 = vpop.f32.mrf.mxu0
  %4170 = vmatprep.mubr.f32.mxu0 0.0
  %4171 = vmatmul.mubr.f32.gmra.mxu0 %v3846
  %v4172 = vpop.f32.mrf.mxu0
  %v4173 = vadd.f32 0.0, %v4172
  %v4174 = vpop.f32.mrf.mxu0
  %4175 = vmatprep.mubr.f32.mxu0 0.0
  %4176 = vmatmul.mubr.f32.gmra.mxu0 %v3847
  %v4177 = vpop.f32.mrf.mxu0
  %v4178 = vadd.f32 0.0, %v4177
  %v4179 = vpop.f32.mrf.mxu0
  %4180 = vmatprep.mubr.f32.mxu0 0.0
  %4181 = vmatmul.mubr.f32.gmra.mxu0 %v3848
  %v4182 = vpop.f32.mrf.mxu0
  %v4183 = vadd.f32 0.0, %v4182
  %v4184 = vpop.f32.mrf.mxu0
  %4185 = vmatprep.mubr.f32.mxu0 0.0
  %4186 = vmatmul.mubr.f32.gmra.mxu0 %v3849
  %v4187 = vpop.f32.mrf.mxu0
  %v4188 = vadd.f32 0.0, %v4187
  %v4189 = vpop.f32.mrf.mxu0
  %4190 = vmatprep.mubr.f32.mxu0 0.0
  %4191 = vmatmul.mubr.f32.gmra.mxu0 %v3850
  %v4192 = vpop.f32.mrf.mxu0
  %v4193 = vadd.f32 0.0, %v4192
  %v4194 = vpop.f32.mrf.mxu0
  %4195 = vmatprep.mubr.f32.mxu0 0.0
  %4196 = vmatmul.mubr.f32.gmra.mxu0 %v3851
  %v4197 = vpop.f32.mrf.mxu0
  %v4198 = vadd.f32 0.0, %v4197
  %v4199 = vpop.f32.mrf.mxu0
  %4200 = vmatprep.mubr.f32.mxu0 0.0
  %4201 = vmatmul.mubr.f32.gmra.mxu0 %v3852
  %v4202 = vpop.f32.mrf.mxu0
  %v4203 = vadd.f32 0.0, %v4202
  %v4204 = vpop.f32.mrf.mxu0
  %4205 = vmatprep.mubr.f32.mxu0 0.0
  %4206 = vmatmul.mubr.f32.gmra.mxu0 %v3853
  %v4207 = vpop.f32.mrf.mxu0
  %v4208 = vadd.f32 0.0, %v4207
  %v4209 = vpop.f32.mrf.mxu0
  %4210 = vmatprep.mubr.f32.mxu0 0.0
  %4211 = vmatmul.mubr.f32.gmra.mxu0 %v3854
  %v4212 = vpop.f32.mrf.mxu0
  %v4213 = vadd.f32 0.0, %v4212
  %v4214 = vpop.f32.mrf.mxu0
  %4215 = vmatprep.mubr.f32.mxu0 0.0
  %4216 = vmatmul.mubr.f32.gmra.mxu0 %v3855
  %v4217 = vpop.f32.mrf.mxu0
  %v4218 = vadd.f32 0.0, %v4217
  %v4219 = vpop.f32.mrf.mxu0
  %4220 = vmatprep.mubr.f32.mxu0 0.0
  %4221 = vmatmul.mubr.f32.gmra.mxu0 %v3856
  %v4222 = vpop.f32.mrf.mxu0
  %v4223 = vadd.f32 0.0, %v4222
  %v4224 = vpop.f32.mrf.mxu0
  %4225 = vmatprep.mubr.f32.mxu0 0.0
  %4226 = vmatmul.mubr.f32.gmra.mxu0 %v3857
  %v4227 = vpop.f32.mrf.mxu0
  %v4228 = vadd.f32 0.0, %v4227
  %v4229 = vpop.f32.mrf.mxu0
  %4230 = vmatprep.mubr.f32.mxu0 0.0
  %4231 = vmatmul.mubr.f32.gmra.mxu0 %v3858
  %v4232 = vpop.f32.mrf.mxu0
  %v4233 = vadd.f32 0.0, %v4232
  %v4234 = vpop.f32.mrf.mxu0
  %4235 = vmatprep.mubr.f32.mxu0 0.0
  %4236 = vmatmul.mubr.f32.gmra.mxu0 %v3859
  %v4237 = vpop.f32.mrf.mxu0
  %v4238 = vadd.f32 0.0, %v4237
  %v4239 = vpop.f32.mrf.mxu0
  %4240 = vmatprep.mubr.f32.mxu0 0.0
  %4241 = vmatmul.mubr.f32.gmra.mxu0 %v3860
  %v4242 = vpop.f32.mrf.mxu0
  %v4243 = vadd.f32 0.0, %v4242
  %v4244 = vpop.f32.mrf.mxu0
  %4245 = vmatprep.mubr.f32.mxu0 0.0
  %4246 = vmatmul.mubr.f32.gmra.mxu0 %v3861
  %v4247 = vpop.f32.mrf.mxu0
  %v4248 = vadd.f32 0.0, %v4247
  %v4249 = vpop.f32.mrf.mxu0
  %4250 = vmatprep.mubr.f32.mxu0 0.0
  %4251 = vmatmul.mubr.f32.gmra.mxu0 %v3862
  %v4252 = vpop.f32.mrf.mxu0
  %v4253 = vadd.f32 0.0, %v4252
  %v4254 = vpop.f32.mrf.mxu0
  %4255 = vmatprep.mubr.f32.mxu0 0.0
  %4256 = vmatmul.mubr.f32.gmra.mxu0 %v3863
  %v4257 = vpop.f32.mrf.mxu0
  %v4258 = vadd.f32 0.0, %v4257
  %v4259 = vpop.f32.mrf.mxu0
  %4260 = vmatprep.mubr.f32.mxu0 0.0
  %4261 = vmatmul.mubr.f32.gmra.mxu0 %v3864
  %v4262 = vpop.f32.mrf.mxu0
  %v4263 = vadd.f32 0.0, %v4262
  %v4264 = vpop.f32.mrf.mxu0
  %4265 = vdwg.mxu0
  %v4266 = vadd.f32 %v3737, %v3948
  %v4267 = vadd.f32 %v3738, %v3953
  %v4268 = vadd.f32 %v3739, %v3958
  %v4269 = vadd.f32 %v3740, %v3963
  %v4270 = vadd.f32 %v3741, %v3968
  %v4271 = vadd.f32 %v3742, %v3973
  %v4272 = vadd.f32 %v3743, %v3978
  %v4273 = vadd.f32 %v3744, %v3983
  %v4274 = vadd.f32 %v3745, %v3988
  %v4275 = vadd.f32 %v3746, %v3993
  %v4276 = vadd.f32 %v3747, %v3998
  %v4277 = vadd.f32 %v3748, %v4003
  %v4278 = vadd.f32 %v3749, %v4008
  %v4279 = vadd.f32 %v3750, %v4013
  %v4280 = vadd.f32 %v3751, %v4018
  %v4281 = vadd.f32 %v3752, %v4023
  %v4282 = vadd.f32 %v3753, %v4028
  %v4283 = vadd.f32 %v3754, %v4033
  %v4284 = vadd.f32 %v3755, %v4038
  %v4285 = vadd.f32 %v3756, %v4043
  %v4286 = vadd.f32 %v3757, %v4048
  %v4287 = vadd.f32 %v3758, %v4053
  %v4288 = vadd.f32 %v3759, %v4058
  %v4289 = vadd.f32 %v3760, %v4063
  %v4290 = vadd.f32 %v3761, %v4068
  %v4291 = vadd.f32 %v3762, %v4073
  %v4292 = vadd.f32 %v3763, %v4078
  %v4293 = vadd.f32 %v3764, %v4083
  %v4294 = vadd.f32 %v3765, %v4088
  %v4295 = vadd.f32 %v3766, %v4093
  %v4296 = vadd.f32 %v3767, %v4098
  %v4297 = vadd.f32 %v3768, %v4103
  %v4298 = vadd.f32 %v3769, %v4108
  %v4299 = vadd.f32 %v3770, %v4113
  %v4300 = vadd.f32 %v3771, %v4118
  %v4301 = vadd.f32 %v3772, %v4123
  %v4302 = vadd.f32 %v3773, %v4128
  %v4303 = vadd.f32 %v3774, %v4133
  %v4304 = vadd.f32 %v3775, %v4138
  %v4305 = vadd.f32 %v3776, %v4143
  %v4306 = vadd.f32 %v3777, %v4148
  %v4307 = vadd.f32 %v3778, %v4153
  %v4308 = vadd.f32 %v3779, %v4158
  %v4309 = vadd.f32 %v3780, %v4163
  %v4310 = vadd.f32 %v3781, %v4168
  %v4311 = vadd.f32 %v3782, %v4173
  %v4312 = vadd.f32 %v3783, %v4178
  %v4313 = vadd.f32 %v3784, %v4183
  %v4314 = vadd.f32 %v3785, %v4188
  %v4315 = vadd.f32 %v3786, %v4193
  %v4316 = vadd.f32 %v3787, %v4198
  %v4317 = vadd.f32 %v3788, %v4203
  %v4318 = vadd.f32 %v3789, %v4208
  %v4319 = vadd.f32 %v3790, %v4213
  %v4320 = vadd.f32 %v3791, %v4218
  %v4321 = vadd.f32 %v3792, %v4223
  %v4322 = vadd.f32 %v3793, %v4228
  %v4323 = vadd.f32 %v3794, %v4233
  %v4324 = vadd.f32 %v3795, %v4238
  %v4325 = vadd.f32 %v3796, %v4243
  %v4326 = vadd.f32 %v3797, %v4248
  %v4327 = vadd.f32 %v3798, %v4253
  %v4328 = vadd.f32 %v3799, %v4258
  %v4329 = vadd.f32 %v3800, %v4263
  %v4330 = vld [vmem:[%s3271 + $0x2] sm:$0xff]
  %v4331 = vld [vmem:[%s3271 + $0xa] sm:$0xff]
  %v4332 = vld [vmem:[%s3271 + $0x1a] sm:$0xff]
  %v4333 = vld [vmem:[%s3271 + $0x22] sm:$0xff]
  %v4334 = vld [vmem:[%s3271 + $0x32] sm:$0xff]
  %v4335 = vld [vmem:[%s3271 + $0x3a] sm:$0xff]
  %v4336 = vld [vmem:[%s3271 + $0x4a] sm:$0xff]
  %v4337 = vld [vmem:[%s3271 + $0x52] sm:$0xff]
  %v4338 = vld [vmem:[%s3271 + $0x62] sm:$0xff]
  %v4339 = vld [vmem:[%s3271 + $0x6a] sm:$0xff]
  %v4340 = vld [vmem:[%s3271 + $0x7a] sm:$0xff]
  %v4341 = vld [vmem:[%s3271 + $0x82] sm:$0xff]
  %v4342 = vld [vmem:[%s3271 + $0x92] sm:$0xff]
  %v4343 = vld [vmem:[%s3271 + $0x9a] sm:$0xff]
  %v4344 = vld [vmem:[%s3271 + $0xaa] sm:$0xff]
  %v4345 = vld [vmem:[%s3271 + $0xb2] sm:$0xff]
  %v4346 = vld [vmem:[%s3271 + $0xc2] sm:$0xff]
  %v4347 = vld [vmem:[%s3271 + $0xca] sm:$0xff]
  %v4348 = vld [vmem:[%s3271 + $0xda] sm:$0xff]
  %v4349 = vld [vmem:[%s3271 + $0xe2] sm:$0xff]
  %v4350 = vld [vmem:[%s3271 + $0xf2] sm:$0xff]
  %v4351 = vld [vmem:[%s3271 + $0xfa] sm:$0xff]
  %v4352 = vld [vmem:[%s3271 + $0x10a] sm:$0xff]
  %v4353 = vld [vmem:[%s3271 + $0x112] sm:$0xff]
  %v4354 = vld [vmem:[%s3271 + $0x122] sm:$0xff]
  %v4355 = vld [vmem:[%s3271 + $0x12a] sm:$0xff]
  %v4356 = vld [vmem:[%s3271 + $0x13a] sm:$0xff]
  %v4357 = vld [vmem:[%s3271 + $0x142] sm:$0xff]
  %v4358 = vld [vmem:[%s3271 + $0x152] sm:$0xff]
  %v4359 = vld [vmem:[%s3271 + $0x15a] sm:$0xff]
  %v4360 = vld [vmem:[%s3271 + $0x16a] sm:$0xff]
  %v4361 = vld [vmem:[%s3271 + $0x172] sm:$0xff]
  %v4362 = vld [vmem:[%s3271 + $0x1b2] sm:$0xff]
  %v4363 = vld [vmem:[%s3271 + $0x1ba] sm:$0xff]
  %v4364 = vld [vmem:[%s3271 + $0x1ca] sm:$0xff]
  %v4365 = vld [vmem:[%s3271 + $0x1d2] sm:$0xff]
  %v4366 = vld [vmem:[%s3271 + $0x1e2] sm:$0xff]
  %v4367 = vld [vmem:[%s3271 + $0x1ea] sm:$0xff]
  %v4368 = vld [vmem:[%s3271 + $0x1fa] sm:$0xff]
  %v4369 = vld [vmem:[%s3271 + $0x202] sm:$0xff]
  %v4370 = vld [vmem:[%s3271 + $0x212] sm:$0xff]
  %v4371 = vld [vmem:[%s3271 + $0x21a] sm:$0xff]
  %v4372 = vld [vmem:[%s3271 + $0x22a] sm:$0xff]
  %v4373 = vld [vmem:[%s3271 + $0x232] sm:$0xff]
  %v4374 = vld [vmem:[%s3271 + $0x242] sm:$0xff]
  %v4375 = vld [vmem:[%s3271 + $0x24a] sm:$0xff]
  %v4376 = vld [vmem:[%s3271 + $0x25a] sm:$0xff]
  %v4377 = vld [vmem:[%s3271 + $0x262] sm:$0xff]
  %v4378 = vld [vmem:[%s3271 + $0x272] sm:$0xff]
  %v4379 = vld [vmem:[%s3271 + $0x27a] sm:$0xff]
  %v4380 = vld [vmem:[%s3271 + $0x28a] sm:$0xff]
  %v4381 = vld [vmem:[%s3271 + $0x292] sm:$0xff]
  %v4382 = vld [vmem:[%s3271 + $0x2a2] sm:$0xff]
  %v4383 = vld [vmem:[%s3271 + $0x2aa] sm:$0xff]
  %v4384 = vld [vmem:[%s3271 + $0x2ba] sm:$0xff]
  %v4385 = vld [vmem:[%s3271 + $0x2c2] sm:$0xff]
  %v4386 = vld [vmem:[%s3271 + $0x2d2] sm:$0xff]
  %v4387 = vld [vmem:[%s3271 + $0x2da] sm:$0xff]
  %v4388 = vld [vmem:[%s3271 + $0x2ea] sm:$0xff]
  %v4389 = vld [vmem:[%s3271 + $0x2f2] sm:$0xff]
  %v4390 = vld [vmem:[%s3271 + $0x302] sm:$0xff]
  %v4391 = vld [vmem:[%s3271 + $0x30a] sm:$0xff]
  %v4392 = vld [vmem:[%s3271 + $0x31a] sm:$0xff]
  %v4393 = vld [vmem:[%s3271 + $0x322] sm:$0xff]
  %v4394 = vld [vmem:[%s3 + $0x400] sm:$0xff]
  %v4395 = vld [vmem:[%s3 + $0x408] sm:$0xff]
  %v4396 = vld [vmem:[%s3 + $0x410] sm:$0xff]
  %v4397 = vld [vmem:[%s3 + $0x418] sm:$0xff]
  %v4398 = vld [vmem:[%s3 + $0x420] sm:$0xff]
  %v4399 = vld [vmem:[%s3 + $0x428] sm:$0xff]
  %v4400 = vld [vmem:[%s3 + $0x430] sm:$0xff]
  %v4401 = vld [vmem:[%s3 + $0x438] sm:$0xff]
  %v4402 = vld [vmem:[%s3 + $0x440] sm:$0xff]
  %v4403 = vld [vmem:[%s3 + $0x448] sm:$0xff]
  %v4404 = vld [vmem:[%s3 + $0x450] sm:$0xff]
  %v4405 = vld [vmem:[%s3 + $0x458] sm:$0xff]
  %v4406 = vld [vmem:[%s3 + $0x460] sm:$0xff]
  %v4407 = vld [vmem:[%s3 + $0x468] sm:$0xff]
  %v4408 = vld [vmem:[%s3 + $0x470] sm:$0xff]
  %v4409 = vld [vmem:[%s3 + $0x478] sm:$0xff]
  %4410 = vmatprep.subr.mxu0 0.0
  %4411 = vmatpush1.msra.mxu0 %v4409
  %4412 = vmatprep.subr.mxu0 0.0
  %4413 = vmatpush1.msra.mxu0 %v4408
  %4414 = vmatprep.subr.mxu0 0.0
  %4415 = vmatpush1.msra.mxu0 %v4407
  %4416 = vmatprep.subr.mxu0 0.0
  %4417 = vmatpush1.msra.mxu0 %v4406
  %4418 = vmatprep.subr.mxu0 0.0
  %4419 = vmatpush1.msra.mxu0 %v4405
  %4420 = vmatprep.subr.mxu0 0.0
  %4421 = vmatpush1.msra.mxu0 %v4404
  %4422 = vmatprep.subr.mxu0 0.0
  %4423 = vmatpush1.msra.mxu0 %v4403
  %4424 = vmatprep.subr.mxu0 0.0
  %4425 = vmatpush1.msra.mxu0 %v4402
  %4426 = vmatprep.subr.mxu0 0.0
  %4427 = vmatpush1.msra.mxu0 %v4401
  %4428 = vmatprep.subr.mxu0 0.0
  %4429 = vmatpush1.msra.mxu0 %v4400
  %4430 = vmatprep.subr.mxu0 0.0
  %4431 = vmatpush1.msra.mxu0 %v4399
  %4432 = vmatprep.subr.mxu0 0.0
  %4433 = vmatpush1.msra.mxu0 %v4398
  %4434 = vmatprep.subr.mxu0 0.0
  %4435 = vmatpush1.msra.mxu0 %v4397
  %4436 = vmatprep.subr.mxu0 0.0
  %4437 = vmatpush1.msra.mxu0 %v4396
  %4438 = vmatprep.subr.mxu0 0.0
  %4439 = vmatpush1.msra.mxu0 %v4395
  %4440 = vmatprep.subr.mxu0 0.0
  %4441 = vmatpush1.msra.mxu0 %v4394
  %4442 = vmatprep.subr.mxu0 0.0
  %4443 = vmatpush2.msra.mxu0 0.0
  %4444 = vmatprep.subr.mxu0 0.0
  %4445 = vmatpush2.msra.mxu0 0.0
  %4446 = vmatprep.subr.mxu0 0.0
  %4447 = vmatpush2.msra.mxu0 0.0
  %4448 = vmatprep.subr.mxu0 0.0
  %4449 = vmatpush2.msra.mxu0 0.0
  %4450 = vmatprep.subr.mxu0 0.0
  %4451 = vmatpush2.msra.mxu0 0.0
  %4452 = vmatprep.subr.mxu0 0.0
  %4453 = vmatpush2.msra.mxu0 0.0
  %4454 = vmatprep.subr.mxu0 0.0
  %4455 = vmatpush2.msra.mxu0 0.0
  %4456 = vmatprep.subr.mxu0 0.0
  %4457 = vmatpush2.msra.mxu0 0.0
  %4458 = vmatprep.subr.mxu0 0.0
  %4459 = vmatpush2.msra.mxu0 0.0
  %4460 = vmatprep.subr.mxu0 0.0
  %4461 = vmatpush2.msra.mxu0 0.0
  %4462 = vmatprep.subr.mxu0 0.0
  %4463 = vmatpush2.msra.mxu0 0.0
  %4464 = vmatprep.subr.mxu0 0.0
  %4465 = vmatpush2.msra.mxu0 0.0
  %4466 = vmatprep.subr.mxu0 0.0
  %4467 = vmatpush2.msra.mxu0 0.0
  %4468 = vmatprep.subr.mxu0 0.0
  %4469 = vmatpush2.msra.mxu0 0.0
  %4470 = vmatprep.subr.mxu0 0.0
  %4471 = vmatpush2.msra.mxu0 0.0
  %4472 = vmatprep.subr.mxu0 0.0
  %4473 = vmatpush2.msra.mxu0 0.0
  %4474 = vmatprep.mubr.f32.mxu0 0.0
  %4475 = vmatmul.mubr.f32.gmra.mxu0 %v4330
  %v4476 = vpop.f32.mrf.mxu0
  %v4477 = vadd.f32 0.0, %v4476
  %v4478 = vpop.f32.mrf.mxu0
  %4479 = vmatprep.mubr.f32.mxu0 0.0
  %4480 = vmatmul.mubr.f32.gmra.mxu0 %v4331
  %v4481 = vpop.f32.mrf.mxu0
  %v4482 = vadd.f32 0.0, %v4481
  %v4483 = vpop.f32.mrf.mxu0
  %4484 = vmatprep.mubr.f32.mxu0 0.0
  %4485 = vmatmul.mubr.f32.gmra.mxu0 %v4332
  %v4486 = vpop.f32.mrf.mxu0
  %v4487 = vadd.f32 0.0, %v4486
  %v4488 = vpop.f32.mrf.mxu0
  %4489 = vmatprep.mubr.f32.mxu0 0.0
  %4490 = vmatmul.mubr.f32.gmra.mxu0 %v4333
  %v4491 = vpop.f32.mrf.mxu0
  %v4492 = vadd.f32 0.0, %v4491
  %v4493 = vpop.f32.mrf.mxu0
  %4494 = vmatprep.mubr.f32.mxu0 0.0
  %4495 = vmatmul.mubr.f32.gmra.mxu0 %v4334
  %v4496 = vpop.f32.mrf.mxu0
  %v4497 = vadd.f32 0.0, %v4496
  %v4498 = vpop.f32.mrf.mxu0
  %4499 = vmatprep.mubr.f32.mxu0 0.0
  %4500 = vmatmul.mubr.f32.gmra.mxu0 %v4335
  %v4501 = vpop.f32.mrf.mxu0
  %v4502 = vadd.f32 0.0, %v4501
  %v4503 = vpop.f32.mrf.mxu0
  %4504 = vmatprep.mubr.f32.mxu0 0.0
  %4505 = vmatmul.mubr.f32.gmra.mxu0 %v4336
  %v4506 = vpop.f32.mrf.mxu0
  %v4507 = vadd.f32 0.0, %v4506
  %v4508 = vpop.f32.mrf.mxu0
  %4509 = vmatprep.mubr.f32.mxu0 0.0
  %4510 = vmatmul.mubr.f32.gmra.mxu0 %v4337
  %v4511 = vpop.f32.mrf.mxu0
  %v4512 = vadd.f32 0.0, %v4511
  %v4513 = vpop.f32.mrf.mxu0
  %4514 = vmatprep.mubr.f32.mxu0 0.0
  %4515 = vmatmul.mubr.f32.gmra.mxu0 %v4338
  %v4516 = vpop.f32.mrf.mxu0
  %v4517 = vadd.f32 0.0, %v4516
  %v4518 = vpop.f32.mrf.mxu0
  %4519 = vmatprep.mubr.f32.mxu0 0.0
  %4520 = vmatmul.mubr.f32.gmra.mxu0 %v4339
  %v4521 = vpop.f32.mrf.mxu0
  %v4522 = vadd.f32 0.0, %v4521
  %v4523 = vpop.f32.mrf.mxu0
  %4524 = vmatprep.mubr.f32.mxu0 0.0
  %4525 = vmatmul.mubr.f32.gmra.mxu0 %v4340
  %v4526 = vpop.f32.mrf.mxu0
  %v4527 = vadd.f32 0.0, %v4526
  %v4528 = vpop.f32.mrf.mxu0
  %4529 = vmatprep.mubr.f32.mxu0 0.0
  %4530 = vmatmul.mubr.f32.gmra.mxu0 %v4341
  %v4531 = vpop.f32.mrf.mxu0
  %v4532 = vadd.f32 0.0, %v4531
  %v4533 = vpop.f32.mrf.mxu0
  %4534 = vmatprep.mubr.f32.mxu0 0.0
  %4535 = vmatmul.mubr.f32.gmra.mxu0 %v4342
  %v4536 = vpop.f32.mrf.mxu0
  %v4537 = vadd.f32 0.0, %v4536
  %v4538 = vpop.f32.mrf.mxu0
  %4539 = vmatprep.mubr.f32.mxu0 0.0
  %4540 = vmatmul.mubr.f32.gmra.mxu0 %v4343
  %v4541 = vpop.f32.mrf.mxu0
  %v4542 = vadd.f32 0.0, %v4541
  %v4543 = vpop.f32.mrf.mxu0
  %4544 = vmatprep.mubr.f32.mxu0 0.0
  %4545 = vmatmul.mubr.f32.gmra.mxu0 %v4344
  %v4546 = vpop.f32.mrf.mxu0
  %v4547 = vadd.f32 0.0, %v4546
  %v4548 = vpop.f32.mrf.mxu0
  %4549 = vmatprep.mubr.f32.mxu0 0.0
  %4550 = vmatmul.mubr.f32.gmra.mxu0 %v4345
  %v4551 = vpop.f32.mrf.mxu0
  %v4552 = vadd.f32 0.0, %v4551
  %v4553 = vpop.f32.mrf.mxu0
  %4554 = vmatprep.mubr.f32.mxu0 0.0
  %4555 = vmatmul.mubr.f32.gmra.mxu0 %v4346
  %v4556 = vpop.f32.mrf.mxu0
  %v4557 = vadd.f32 0.0, %v4556
  %v4558 = vpop.f32.mrf.mxu0
  %4559 = vmatprep.mubr.f32.mxu0 0.0
  %4560 = vmatmul.mubr.f32.gmra.mxu0 %v4347
  %v4561 = vpop.f32.mrf.mxu0
  %v4562 = vadd.f32 0.0, %v4561
  %v4563 = vpop.f32.mrf.mxu0
  %4564 = vmatprep.mubr.f32.mxu0 0.0
  %4565 = vmatmul.mubr.f32.gmra.mxu0 %v4348
  %v4566 = vpop.f32.mrf.mxu0
  %v4567 = vadd.f32 0.0, %v4566
  %v4568 = vpop.f32.mrf.mxu0
  %4569 = vmatprep.mubr.f32.mxu0 0.0
  %4570 = vmatmul.mubr.f32.gmra.mxu0 %v4349
  %v4571 = vpop.f32.mrf.mxu0
  %v4572 = vadd.f32 0.0, %v4571
  %v4573 = vpop.f32.mrf.mxu0
  %4574 = vmatprep.mubr.f32.mxu0 0.0
  %4575 = vmatmul.mubr.f32.gmra.mxu0 %v4350
  %v4576 = vpop.f32.mrf.mxu0
  %v4577 = vadd.f32 0.0, %v4576
  %v4578 = vpop.f32.mrf.mxu0
  %4579 = vmatprep.mubr.f32.mxu0 0.0
  %4580 = vmatmul.mubr.f32.gmra.mxu0 %v4351
  %v4581 = vpop.f32.mrf.mxu0
  %v4582 = vadd.f32 0.0, %v4581
  %v4583 = vpop.f32.mrf.mxu0
  %4584 = vmatprep.mubr.f32.mxu0 0.0
  %4585 = vmatmul.mubr.f32.gmra.mxu0 %v4352
  %v4586 = vpop.f32.mrf.mxu0
  %v4587 = vadd.f32 0.0, %v4586
  %v4588 = vpop.f32.mrf.mxu0
  %4589 = vmatprep.mubr.f32.mxu0 0.0
  %4590 = vmatmul.mubr.f32.gmra.mxu0 %v4353
  %v4591 = vpop.f32.mrf.mxu0
  %v4592 = vadd.f32 0.0, %v4591
  %v4593 = vpop.f32.mrf.mxu0
  %4594 = vmatprep.mubr.f32.mxu0 0.0
  %4595 = vmatmul.mubr.f32.gmra.mxu0 %v4354
  %v4596 = vpop.f32.mrf.mxu0
  %v4597 = vadd.f32 0.0, %v4596
  %v4598 = vpop.f32.mrf.mxu0
  %4599 = vmatprep.mubr.f32.mxu0 0.0
  %4600 = vmatmul.mubr.f32.gmra.mxu0 %v4355
  %v4601 = vpop.f32.mrf.mxu0
  %v4602 = vadd.f32 0.0, %v4601
  %v4603 = vpop.f32.mrf.mxu0
  %4604 = vmatprep.mubr.f32.mxu0 0.0
  %4605 = vmatmul.mubr.f32.gmra.mxu0 %v4356
  %v4606 = vpop.f32.mrf.mxu0
  %v4607 = vadd.f32 0.0, %v4606
  %v4608 = vpop.f32.mrf.mxu0
  %4609 = vmatprep.mubr.f32.mxu0 0.0
  %4610 = vmatmul.mubr.f32.gmra.mxu0 %v4357
  %v4611 = vpop.f32.mrf.mxu0
  %v4612 = vadd.f32 0.0, %v4611
  %v4613 = vpop.f32.mrf.mxu0
  %4614 = vmatprep.mubr.f32.mxu0 0.0
  %4615 = vmatmul.mubr.f32.gmra.mxu0 %v4358
  %v4616 = vpop.f32.mrf.mxu0
  %v4617 = vadd.f32 0.0, %v4616
  %v4618 = vpop.f32.mrf.mxu0
  %4619 = vmatprep.mubr.f32.mxu0 0.0
  %4620 = vmatmul.mubr.f32.gmra.mxu0 %v4359
  %v4621 = vpop.f32.mrf.mxu0
  %v4622 = vadd.f32 0.0, %v4621
  %v4623 = vpop.f32.mrf.mxu0
  %4624 = vmatprep.mubr.f32.mxu0 0.0
  %4625 = vmatmul.mubr.f32.gmra.mxu0 %v4360
  %v4626 = vpop.f32.mrf.mxu0
  %v4627 = vadd.f32 0.0, %v4626
  %v4628 = vpop.f32.mrf.mxu0
  %4629 = vmatprep.mubr.f32.mxu0 0.0
  %4630 = vmatmul.mubr.f32.gmra.mxu0 %v4361
  %v4631 = vpop.f32.mrf.mxu0
  %v4632 = vadd.f32 0.0, %v4631
  %v4633 = vpop.f32.mrf.mxu0
  %4634 = vmatprep.mubr.f32.mxu0 0.0
  %4635 = vmatmul.mubr.f32.gmra.mxu0 %v4362
  %v4636 = vpop.f32.mrf.mxu0
  %v4637 = vadd.f32 0.0, %v4636
  %v4638 = vpop.f32.mrf.mxu0
  %4639 = vmatprep.mubr.f32.mxu0 0.0
  %4640 = vmatmul.mubr.f32.gmra.mxu0 %v4363
  %v4641 = vpop.f32.mrf.mxu0
  %v4642 = vadd.f32 0.0, %v4641
  %v4643 = vpop.f32.mrf.mxu0
  %4644 = vmatprep.mubr.f32.mxu0 0.0
  %4645 = vmatmul.mubr.f32.gmra.mxu0 %v4364
  %v4646 = vpop.f32.mrf.mxu0
  %v4647 = vadd.f32 0.0, %v4646
  %v4648 = vpop.f32.mrf.mxu0
  %4649 = vmatprep.mubr.f32.mxu0 0.0
  %4650 = vmatmul.mubr.f32.gmra.mxu0 %v4365
  %v4651 = vpop.f32.mrf.mxu0
  %v4652 = vadd.f32 0.0, %v4651
  %v4653 = vpop.f32.mrf.mxu0
  %4654 = vmatprep.mubr.f32.mxu0 0.0
  %4655 = vmatmul.mubr.f32.gmra.mxu0 %v4366
  %v4656 = vpop.f32.mrf.mxu0
  %v4657 = vadd.f32 0.0, %v4656
  %v4658 = vpop.f32.mrf.mxu0
  %4659 = vmatprep.mubr.f32.mxu0 0.0
  %4660 = vmatmul.mubr.f32.gmra.mxu0 %v4367
  %v4661 = vpop.f32.mrf.mxu0
  %v4662 = vadd.f32 0.0, %v4661
  %v4663 = vpop.f32.mrf.mxu0
  %4664 = vmatprep.mubr.f32.mxu0 0.0
  %4665 = vmatmul.mubr.f32.gmra.mxu0 %v4368
  %v4666 = vpop.f32.mrf.mxu0
  %v4667 = vadd.f32 0.0, %v4666
  %v4668 = vpop.f32.mrf.mxu0
  %4669 = vmatprep.mubr.f32.mxu0 0.0
  %4670 = vmatmul.mubr.f32.gmra.mxu0 %v4369
  %v4671 = vpop.f32.mrf.mxu0
  %v4672 = vadd.f32 0.0, %v4671
  %v4673 = vpop.f32.mrf.mxu0
  %4674 = vmatprep.mubr.f32.mxu0 0.0
  %4675 = vmatmul.mubr.f32.gmra.mxu0 %v4370
  %v4676 = vpop.f32.mrf.mxu0
  %v4677 = vadd.f32 0.0, %v4676
  %v4678 = vpop.f32.mrf.mxu0
  %4679 = vmatprep.mubr.f32.mxu0 0.0
  %4680 = vmatmul.mubr.f32.gmra.mxu0 %v4371
  %v4681 = vpop.f32.mrf.mxu0
  %v4682 = vadd.f32 0.0, %v4681
  %v4683 = vpop.f32.mrf.mxu0
  %4684 = vmatprep.mubr.f32.mxu0 0.0
  %4685 = vmatmul.mubr.f32.gmra.mxu0 %v4372
  %v4686 = vpop.f32.mrf.mxu0
  %v4687 = vadd.f32 0.0, %v4686
  %v4688 = vpop.f32.mrf.mxu0
  %4689 = vmatprep.mubr.f32.mxu0 0.0
  %4690 = vmatmul.mubr.f32.gmra.mxu0 %v4373
  %v4691 = vpop.f32.mrf.mxu0
  %v4692 = vadd.f32 0.0, %v4691
  %v4693 = vpop.f32.mrf.mxu0
  %4694 = vmatprep.mubr.f32.mxu0 0.0
  %4695 = vmatmul.mubr.f32.gmra.mxu0 %v4374
  %v4696 = vpop.f32.mrf.mxu0
  %v4697 = vadd.f32 0.0, %v4696
  %v4698 = vpop.f32.mrf.mxu0
  %4699 = vmatprep.mubr.f32.mxu0 0.0
  %4700 = vmatmul.mubr.f32.gmra.mxu0 %v4375
  %v4701 = vpop.f32.mrf.mxu0
  %v4702 = vadd.f32 0.0, %v4701
  %v4703 = vpop.f32.mrf.mxu0
  %4704 = vmatprep.mubr.f32.mxu0 0.0
  %4705 = vmatmul.mubr.f32.gmra.mxu0 %v4376
  %v4706 = vpop.f32.mrf.mxu0
  %v4707 = vadd.f32 0.0, %v4706
  %v4708 = vpop.f32.mrf.mxu0
  %4709 = vmatprep.mubr.f32.mxu0 0.0
  %4710 = vmatmul.mubr.f32.gmra.mxu0 %v4377
  %v4711 = vpop.f32.mrf.mxu0
  %v4712 = vadd.f32 0.0, %v4711
  %v4713 = vpop.f32.mrf.mxu0
  %4714 = vmatprep.mubr.f32.mxu0 0.0
  %4715 = vmatmul.mubr.f32.gmra.mxu0 %v4378
  %v4716 = vpop.f32.mrf.mxu0
  %v4717 = vadd.f32 0.0, %v4716
  %v4718 = vpop.f32.mrf.mxu0
  %4719 = vmatprep.mubr.f32.mxu0 0.0
  %4720 = vmatmul.mubr.f32.gmra.mxu0 %v4379
  %v4721 = vpop.f32.mrf.mxu0
  %v4722 = vadd.f32 0.0, %v4721
  %v4723 = vpop.f32.mrf.mxu0
  %4724 = vmatprep.mubr.f32.mxu0 0.0
  %4725 = vmatmul.mubr.f32.gmra.mxu0 %v4380
  %v4726 = vpop.f32.mrf.mxu0
  %v4727 = vadd.f32 0.0, %v4726
  %v4728 = vpop.f32.mrf.mxu0
  %4729 = vmatprep.mubr.f32.mxu0 0.0
  %4730 = vmatmul.mubr.f32.gmra.mxu0 %v4381
  %v4731 = vpop.f32.mrf.mxu0
  %v4732 = vadd.f32 0.0, %v4731
  %v4733 = vpop.f32.mrf.mxu0
  %4734 = vmatprep.mubr.f32.mxu0 0.0
  %4735 = vmatmul.mubr.f32.gmra.mxu0 %v4382
  %v4736 = vpop.f32.mrf.mxu0
  %v4737 = vadd.f32 0.0, %v4736
  %v4738 = vpop.f32.mrf.mxu0
  %4739 = vmatprep.mubr.f32.mxu0 0.0
  %4740 = vmatmul.mubr.f32.gmra.mxu0 %v4383
  %v4741 = vpop.f32.mrf.mxu0
  %v4742 = vadd.f32 0.0, %v4741
  %v4743 = vpop.f32.mrf.mxu0
  %4744 = vmatprep.mubr.f32.mxu0 0.0
  %4745 = vmatmul.mubr.f32.gmra.mxu0 %v4384
  %v4746 = vpop.f32.mrf.mxu0
  %v4747 = vadd.f32 0.0, %v4746
  %v4748 = vpop.f32.mrf.mxu0
  %4749 = vmatprep.mubr.f32.mxu0 0.0
  %4750 = vmatmul.mubr.f32.gmra.mxu0 %v4385
  %v4751 = vpop.f32.mrf.mxu0
  %v4752 = vadd.f32 0.0, %v4751
  %v4753 = vpop.f32.mrf.mxu0
  %4754 = vmatprep.mubr.f32.mxu0 0.0
  %4755 = vmatmul.mubr.f32.gmra.mxu0 %v4386
  %v4756 = vpop.f32.mrf.mxu0
  %v4757 = vadd.f32 0.0, %v4756
  %v4758 = vpop.f32.mrf.mxu0
  %4759 = vmatprep.mubr.f32.mxu0 0.0
  %4760 = vmatmul.mubr.f32.gmra.mxu0 %v4387
  %v4761 = vpop.f32.mrf.mxu0
  %v4762 = vadd.f32 0.0, %v4761
  %v4763 = vpop.f32.mrf.mxu0
  %4764 = vmatprep.mubr.f32.mxu0 0.0
  %4765 = vmatmul.mubr.f32.gmra.mxu0 %v4388
  %v4766 = vpop.f32.mrf.mxu0
  %v4767 = vadd.f32 0.0, %v4766
  %v4768 = vpop.f32.mrf.mxu0
  %4769 = vmatprep.mubr.f32.mxu0 0.0
  %4770 = vmatmul.mubr.f32.gmra.mxu0 %v4389
  %v4771 = vpop.f32.mrf.mxu0
  %v4772 = vadd.f32 0.0, %v4771
  %v4773 = vpop.f32.mrf.mxu0
  %4774 = vmatprep.mubr.f32.mxu0 0.0
  %4775 = vmatmul.mubr.f32.gmra.mxu0 %v4390
  %v4776 = vpop.f32.mrf.mxu0
  %v4777 = vadd.f32 0.0, %v4776
  %v4778 = vpop.f32.mrf.mxu0
  %4779 = vmatprep.mubr.f32.mxu0 0.0
  %4780 = vmatmul.mubr.f32.gmra.mxu0 %v4391
  %v4781 = vpop.f32.mrf.mxu0
  %v4782 = vadd.f32 0.0, %v4781
  %v4783 = vpop.f32.mrf.mxu0
  %4784 = vmatprep.mubr.f32.mxu0 0.0
  %4785 = vmatmul.mubr.f32.gmra.mxu0 %v4392
  %v4786 = vpop.f32.mrf.mxu0
  %v4787 = vadd.f32 0.0, %v4786
  %v4788 = vpop.f32.mrf.mxu0
  %4789 = vmatprep.mubr.f32.mxu0 0.0
  %4790 = vmatmul.mubr.f32.gmra.mxu0 %v4393
  %v4791 = vpop.f32.mrf.mxu0
  %v4792 = vadd.f32 0.0, %v4791
  %v4793 = vpop.f32.mrf.mxu0
  %4794 = vdwg.mxu0
  %v4795 = vadd.f32 %v4266, %v4477
  %v4796 = vadd.f32 %v4267, %v4482
  %v4797 = vadd.f32 %v4268, %v4487
  %v4798 = vadd.f32 %v4269, %v4492
  %v4799 = vadd.f32 %v4270, %v4497
  %v4800 = vadd.f32 %v4271, %v4502
  %v4801 = vadd.f32 %v4272, %v4507
  %v4802 = vadd.f32 %v4273, %v4512
  %v4803 = vadd.f32 %v4274, %v4517
  %v4804 = vadd.f32 %v4275, %v4522
  %v4805 = vadd.f32 %v4276, %v4527
  %v4806 = vadd.f32 %v4277, %v4532
  %v4807 = vadd.f32 %v4278, %v4537
  %v4808 = vadd.f32 %v4279, %v4542
  %v4809 = vadd.f32 %v4280, %v4547
  %v4810 = vadd.f32 %v4281, %v4552
  %v4811 = vadd.f32 %v4282, %v4557
  %v4812 = vadd.f32 %v4283, %v4562
  %v4813 = vadd.f32 %v4284, %v4567
  %v4814 = vadd.f32 %v4285, %v4572
  %v4815 = vadd.f32 %v4286, %v4577
  %v4816 = vadd.f32 %v4287, %v4582
  %v4817 = vadd.f32 %v4288, %v4587
  %v4818 = vadd.f32 %v4289, %v4592
  %v4819 = vadd.f32 %v4290, %v4597
  %v4820 = vadd.f32 %v4291, %v4602
  %v4821 = vadd.f32 %v4292, %v4607
  %v4822 = vadd.f32 %v4293, %v4612
  %v4823 = vadd.f32 %v4294, %v4617
  %v4824 = vadd.f32 %v4295, %v4622
  %v4825 = vadd.f32 %v4296, %v4627
  %v4826 = vadd.f32 %v4297, %v4632
  %v4827 = vadd.f32 %v4298, %v4637
  %v4828 = vadd.f32 %v4299, %v4642
  %v4829 = vadd.f32 %v4300, %v4647
  %v4830 = vadd.f32 %v4301, %v4652
  %v4831 = vadd.f32 %v4302, %v4657
  %v4832 = vadd.f32 %v4303, %v4662
  %v4833 = vadd.f32 %v4304, %v4667
  %v4834 = vadd.f32 %v4305, %v4672
  %v4835 = vadd.f32 %v4306, %v4677
  %v4836 = vadd.f32 %v4307, %v4682
  %v4837 = vadd.f32 %v4308, %v4687
  %v4838 = vadd.f32 %v4309, %v4692
  %v4839 = vadd.f32 %v4310, %v4697
  %v4840 = vadd.f32 %v4311, %v4702
  %v4841 = vadd.f32 %v4312, %v4707
  %v4842 = vadd.f32 %v4313, %v4712
  %v4843 = vadd.f32 %v4314, %v4717
  %v4844 = vadd.f32 %v4315, %v4722
  %v4845 = vadd.f32 %v4316, %v4727
  %v4846 = vadd.f32 %v4317, %v4732
  %v4847 = vadd.f32 %v4318, %v4737
  %v4848 = vadd.f32 %v4319, %v4742
  %v4849 = vadd.f32 %v4320, %v4747
  %v4850 = vadd.f32 %v4321, %v4752
  %v4851 = vadd.f32 %v4322, %v4757
  %v4852 = vadd.f32 %v4323, %v4762
  %v4853 = vadd.f32 %v4324, %v4767
  %v4854 = vadd.f32 %v4325, %v4772
  %v4855 = vadd.f32 %v4326, %v4777
  %v4856 = vadd.f32 %v4327, %v4782
  %v4857 = vadd.f32 %v4328, %v4787
  %v4858 = vadd.f32 %v4329, %v4792
  %4859 = vst [vmem:[%s4] sm:$0xff] %v4795
  %4860 = vst [vmem:[%s4 + $0x8] sm:$0xff] %v4796
  %4861 = vst [vmem:[%s4 + $0x10] sm:$0xff] %v4797
  %4862 = vst [vmem:[%s4 + $0x18] sm:$0xff] %v4798
  %4863 = vst [vmem:[%s4 + $0x20] sm:$0xff] %v4799
  %4864 = vst [vmem:[%s4 + $0x28] sm:$0xff] %v4800
  %4865 = vst [vmem:[%s4 + $0x30] sm:$0xff] %v4801
  %4866 = vst [vmem:[%s4 + $0x38] sm:$0xff] %v4802
  %4867 = vst [vmem:[%s4 + $0x40] sm:$0xff] %v4803
  %4868 = vst [vmem:[%s4 + $0x48] sm:$0xff] %v4804
  %4869 = vst [vmem:[%s4 + $0x50] sm:$0xff] %v4805
  %4870 = vst [vmem:[%s4 + $0x58] sm:$0xff] %v4806
  %4871 = vst [vmem:[%s4 + $0x60] sm:$0xff] %v4807
  %4872 = vst [vmem:[%s4 + $0x68] sm:$0xff] %v4808
  %4873 = vst [vmem:[%s4 + $0x70] sm:$0xff] %v4809
  %4874 = vst [vmem:[%s4 + $0x78] sm:$0xff] %v4810
  %4875 = vst [vmem:[%s4 + $0x80] sm:$0xff] %v4811
  %4876 = vst [vmem:[%s4 + $0x88] sm:$0xff] %v4812
  %4877 = vst [vmem:[%s4 + $0x90] sm:$0xff] %v4813
  %4878 = vst [vmem:[%s4 + $0x98] sm:$0xff] %v4814
  %4879 = vst [vmem:[%s4 + $0xa0] sm:$0xff] %v4815
  %4880 = vst [vmem:[%s4 + $0xa8] sm:$0xff] %v4816
  %4881 = vst [vmem:[%s4 + $0xb0] sm:$0xff] %v4817
  %4882 = vst [vmem:[%s4 + $0xb8] sm:$0xff] %v4818
  %4883 = vst [vmem:[%s4 + $0xc0] sm:$0xff] %v4819
  %4884 = vst [vmem:[%s4 + $0xc8] sm:$0xff] %v4820
  %4885 = vst [vmem:[%s4 + $0xd0] sm:$0xff] %v4821
  %4886 = vst [vmem:[%s4 + $0xd8] sm:$0xff] %v4822
  %4887 = vst [vmem:[%s4 + $0xe0] sm:$0xff] %v4823
  %4888 = vst [vmem:[%s4 + $0xe8] sm:$0xff] %v4824
  %4889 = vst [vmem:[%s4 + $0xf0] sm:$0xff] %v4825
  %4890 = vst [vmem:[%s4 + $0xf8] sm:$0xff] %v4826
  %4891 = vst [vmem:[%s4 + $0x100] sm:$0xff] %v4827
  %4892 = vst [vmem:[%s4 + $0x108] sm:$0xff] %v4828
  %4893 = vst [vmem:[%s4 + $0x110] sm:$0xff] %v4829
  %4894 = vst [vmem:[%s4 + $0x118] sm:$0xff] %v4830
  %4895 = vst [vmem:[%s4 + $0x120] sm:$0xff] %v4831
  %4896 = vst [vmem:[%s4 + $0x128] sm:$0xff] %v4832
  %4897 = vst [vmem:[%s4 + $0x130] sm:$0xff] %v4833
  %4898 = vst [vmem:[%s4 + $0x138] sm:$0xff] %v4834
  %4899 = vst [vmem:[%s4 + $0x140] sm:$0xff] %v4835
  %4900 = vst [vmem:[%s4 + $0x148] sm:$0xff] %v4836
  %4901 = vst [vmem:[%s4 + $0x150] sm:$0xff] %v4837
  %4902 = vst [vmem:[%s4 + $0x158] sm:$0xff] %v4838
  %4903 = vst [vmem:[%s4 + $0x160] sm:$0xff] %v4839
  %4904 = vst [vmem:[%s4 + $0x168] sm:$0xff] %v4840
  %4905 = vst [vmem:[%s4 + $0x170] sm:$0xff] %v4841
  %4906 = vst [vmem:[%s4 + $0x178] sm:$0xff] %v4842
  %4907 = vst [vmem:[%s4 + $0x180] sm:$0xff] %v4843
  %4908 = vst [vmem:[%s4 + $0x188] sm:$0xff] %v4844
  %4909 = vst [vmem:[%s4 + $0x190] sm:$0xff] %v4845
  %4910 = vst [vmem:[%s4 + $0x198] sm:$0xff] %v4846
  %4911 = vst [vmem:[%s4 + $0x1a0] sm:$0xff] %v4847
  %4912 = vst [vmem:[%s4 + $0x1a8] sm:$0xff] %v4848
  %4913 = vst [vmem:[%s4 + $0x1b0] sm:$0xff] %v4849
  %4914 = vst [vmem:[%s4 + $0x1b8] sm:$0xff] %v4850
  %4915 = vst [vmem:[%s4 + $0x1c0] sm:$0xff] %v4851
  %4916 = vst [vmem:[%s4 + $0x1c8] sm:$0xff] %v4852
  %4917 = vst [vmem:[%s4 + $0x1d0] sm:$0xff] %v4853
  %4918 = vst [vmem:[%s4 + $0x1d8] sm:$0xff] %v4854
  %4919 = vst [vmem:[%s4 + $0x1e0] sm:$0xff] %v4855
  %4920 = vst [vmem:[%s4 + $0x1e8] sm:$0xff] %v4856
  %4921 = vst [vmem:[%s4 + $0x1f0] sm:$0xff] %v4857
  %4922 = vst [vmem:[%s4 + $0x1f8] sm:$0xff] %v4858
  %v4923 = vadd.f32 %v4795, %v4796
  %v4924 = vadd.f32 %v4923, %v4797
  %v4925 = vadd.f32 %v4924, %v4798
  %v4926 = vadd.f32 %v4925, %v4799
  %v4927 = vadd.f32 %v4926, %v4800
  %v4928 = vadd.f32 %v4927, %v4801
  %v4929 = vadd.f32 %v4928, %v4802
  %v4930 = vadd.f32 %v4929, %v4803
  %v4931 = vadd.f32 %v4930, %v4804
  %v4932 = vadd.f32 %v4931, %v4805
  %v4933 = vadd.f32 %v4932, %v4806
  %v4934 = vadd.f32 %v4933, %v4807
  %v4935 = vadd.f32 %v4934, %v4808
  %v4936 = vadd.f32 %v4935, %v4809
  %v4937 = vadd.f32 %v4936, %v4810
  %v4938 = vadd.f32 %v4937, %v4811
  %v4939 = vadd.f32 %v4938, %v4812
  %v4940 = vadd.f32 %v4939, %v4813
  %v4941 = vadd.f32 %v4940, %v4814
  %v4942 = vadd.f32 %v4941, %v4815
  %v4943 = vadd.f32 %v4942, %v4816
  %v4944 = vadd.f32 %v4943, %v4817
  %v4945 = vadd.f32 %v4944, %v4818
  %v4946 = vadd.f32 %v4945, %v4819
  %v4947 = vadd.f32 %v4946, %v4820
  %v4948 = vadd.f32 %v4947, %v4821
  %v4949 = vadd.f32 %v4948, %v4822
  %v4950 = vadd.f32 %v4949, %v4823
  %v4951 = vadd.f32 %v4950, %v4824
  %v4952 = vadd.f32 %v4951, %v4825
  %v4953 = vadd.f32 %v4952, %v4826
  %v4954 = vadd.f32 %v4953, %v4827
  %v4955 = vadd.f32 %v4954, %v4828
  %v4956 = vadd.f32 %v4955, %v4829
  %v4957 = vadd.f32 %v4956, %v4830
  %v4958 = vadd.f32 %v4957, %v4831
  %v4959 = vadd.f32 %v4958, %v4832
  %v4960 = vadd.f32 %v4959, %v4833
  %v4961 = vadd.f32 %v4960, %v4834
  %v4962 = vadd.f32 %v4961, %v4835
  %v4963 = vadd.f32 %v4962, %v4836
  %v4964 = vadd.f32 %v4963, %v4837
  %v4965 = vadd.f32 %v4964, %v4838
  %v4966 = vadd.f32 %v4965, %v4839
  %v4967 = vadd.f32 %v4966, %v4840
  %v4968 = vadd.f32 %v4967, %v4841
  %v4969 = vadd.f32 %v4968, %v4842
  %v4970 = vadd.f32 %v4969, %v4843
  %v4971 = vadd.f32 %v4970, %v4844
  %v4972 = vadd.f32 %v4971, %v4845
  %v4973 = vadd.f32 %v4972, %v4846
  %v4974 = vadd.f32 %v4973, %v4847
  %v4975 = vadd.f32 %v4974, %v4848
  %v4976 = vadd.f32 %v4975, %v4849
  %v4977 = vadd.f32 %v4976, %v4850
  %v4978 = vadd.f32 %v4977, %v4851
  %v4979 = vadd.f32 %v4978, %v4852
  %v4980 = vadd.f32 %v4979, %v4853
  %v4981 = vadd.f32 %v4980, %v4854
  %v4982 = vadd.f32 %v4981, %v4855
  %v4983 = vadd.f32 %v4982, %v4856
  %v4984 = vadd.f32 %v4983, %v4857
  %v4985 = vadd.f32 %v4984, %v4858
  %v4986 = vrot.slane %v4985, 4
  %v4987 = vadd.f32 %v4985, %v4986
  %v4988 = vrot.slane %v4987, 2
  %v4989 = vadd.f32 %v4987, %v4988
  %v4990 = vrot.slane %v4989, 1
  %v4991 = vadd.f32 %v4989, %v4990
  %v4992 = vmul.f32 %v4795, %v4795
  %v4993 = vmul.f32 %v4796, %v4796
  %v4994 = vmul.f32 %v4797, %v4797
  %v4995 = vmul.f32 %v4798, %v4798
  %v4996 = vmul.f32 %v4799, %v4799
  %v4997 = vmul.f32 %v4800, %v4800
  %v4998 = vmul.f32 %v4801, %v4801
  %v4999 = vmul.f32 %v4802, %v4802
  %v5000 = vmul.f32 %v4803, %v4803
  %v5001 = vmul.f32 %v4804, %v4804
  %v5002 = vmul.f32 %v4805, %v4805
  %v5003 = vmul.f32 %v4806, %v4806
  %v5004 = vmul.f32 %v4807, %v4807
  %v5005 = vmul.f32 %v4808, %v4808
  %v5006 = vmul.f32 %v4809, %v4809
  %v5007 = vmul.f32 %v4810, %v4810
  %v5008 = vmul.f32 %v4811, %v4811
  %v5009 = vmul.f32 %v4812, %v4812
  %v5010 = vmul.f32 %v4813, %v4813
  %v5011 = vmul.f32 %v4814, %v4814
  %v5012 = vmul.f32 %v4815, %v4815
  %v5013 = vmul.f32 %v4816, %v4816
  %v5014 = vmul.f32 %v4817, %v4817
  %v5015 = vmul.f32 %v4818, %v4818
  %v5016 = vmul.f32 %v4819, %v4819
  %v5017 = vmul.f32 %v4820, %v4820
  %v5018 = vmul.f32 %v4821, %v4821
  %v5019 = vmul.f32 %v4822, %v4822
  %v5020 = vmul.f32 %v4823, %v4823
  %v5021 = vmul.f32 %v4824, %v4824
  %v5022 = vmul.f32 %v4825, %v4825
  %v5023 = vmul.f32 %v4826, %v4826
  %v5024 = vmul.f32 %v4827, %v4827
  %v5025 = vmul.f32 %v4828, %v4828
  %v5026 = vmul.f32 %v4829, %v4829
  %v5027 = vmul.f32 %v4830, %v4830
  %v5028 = vmul.f32 %v4831, %v4831
  %v5029 = vmul.f32 %v4832, %v4832
  %v5030 = vmul.f32 %v4833, %v4833
  %v5031 = vmul.f32 %v4834, %v4834
  %v5032 = vmul.f32 %v4835, %v4835
  %v5033 = vmul.f32 %v4836, %v4836
  %v5034 = vmul.f32 %v4837, %v4837
  %v5035 = vmul.f32 %v4838, %v4838
  %v5036 = vmul.f32 %v4839, %v4839
  %v5037 = vmul.f32 %v4840, %v4840
  %v5038 = vmul.f32 %v4841, %v4841
  %v5039 = vmul.f32 %v4842, %v4842
  %v5040 = vmul.f32 %v4843, %v4843
  %v5041 = vmul.f32 %v4844, %v4844
  %v5042 = vmul.f32 %v4845, %v4845
  %v5043 = vmul.f32 %v4846, %v4846
  %v5044 = vmul.f32 %v4847, %v4847
  %v5045 = vmul.f32 %v4848, %v4848
  %v5046 = vmul.f32 %v4849, %v4849
  %v5047 = vmul.f32 %v4850, %v4850
  %v5048 = vmul.f32 %v4851, %v4851
  %v5049 = vmul.f32 %v4852, %v4852
  %v5050 = vmul.f32 %v4853, %v4853
  %v5051 = vmul.f32 %v4854, %v4854
  %v5052 = vmul.f32 %v4855, %v4855
  %v5053 = vmul.f32 %v4856, %v4856
  %v5054 = vmul.f32 %v4857, %v4857
  %v5055 = vmul.f32 %v4858, %v4858
  %v5056 = vadd.f32 %v4992, %v4993
  %v5057 = vadd.f32 %v5056, %v4994
  %v5058 = vadd.f32 %v5057, %v4995
  %v5059 = vadd.f32 %v5058, %v4996
  %v5060 = vadd.f32 %v5059, %v4997
  %v5061 = vadd.f32 %v5060, %v4998
  %v5062 = vadd.f32 %v5061, %v4999
  %v5063 = vadd.f32 %v5062, %v5000
  %v5064 = vadd.f32 %v5063, %v5001
  %v5065 = vadd.f32 %v5064, %v5002
  %v5066 = vadd.f32 %v5065, %v5003
  %v5067 = vadd.f32 %v5066, %v5004
  %v5068 = vadd.f32 %v5067, %v5005
  %v5069 = vadd.f32 %v5068, %v5006
  %v5070 = vadd.f32 %v5069, %v5007
  %v5071 = vadd.f32 %v5070, %v5008
  %v5072 = vadd.f32 %v5071, %v5009
  %v5073 = vadd.f32 %v5072, %v5010
  %v5074 = vadd.f32 %v5073, %v5011
  %v5075 = vadd.f32 %v5074, %v5012
  %v5076 = vadd.f32 %v5075, %v5013
  %v5077 = vadd.f32 %v5076, %v5014
  %v5078 = vadd.f32 %v5077, %v5015
  %v5079 = vadd.f32 %v5078, %v5016
  %v5080 = vadd.f32 %v5079, %v5017
  %v5081 = vadd.f32 %v5080, %v5018
  %v5082 = vadd.f32 %v5081, %v5019
  %v5083 = vadd.f32 %v5082, %v5020
  %v5084 = vadd.f32 %v5083, %v5021
  %v5085 = vadd.f32 %v5084, %v5022
  %v5086 = vadd.f32 %v5085, %v5023
  %v5087 = vadd.f32 %v5086, %v5024
  %v5088 = vadd.f32 %v5087, %v5025
  %v5089 = vadd.f32 %v5088, %v5026
  %v5090 = vadd.f32 %v5089, %v5027
  %v5091 = vadd.f32 %v5090, %v5028
  %v5092 = vadd.f32 %v5091, %v5029
  %v5093 = vadd.f32 %v5092, %v5030
  %v5094 = vadd.f32 %v5093, %v5031
  %v5095 = vadd.f32 %v5094, %v5032
  %v5096 = vadd.f32 %v5095, %v5033
  %v5097 = vadd.f32 %v5096, %v5034
  %v5098 = vadd.f32 %v5097, %v5035
  %v5099 = vadd.f32 %v5098, %v5036
  %v5100 = vadd.f32 %v5099, %v5037
  %v5101 = vadd.f32 %v5100, %v5038
  %v5102 = vadd.f32 %v5101, %v5039
  %v5103 = vadd.f32 %v5102, %v5040
  %v5104 = vadd.f32 %v5103, %v5041
  %v5105 = vadd.f32 %v5104, %v5042
  %v5106 = vadd.f32 %v5105, %v5043
  %v5107 = vadd.f32 %v5106, %v5044
  %v5108 = vadd.f32 %v5107, %v5045
  %v5109 = vadd.f32 %v5108, %v5046
  %v5110 = vadd.f32 %v5109, %v5047
  %v5111 = vadd.f32 %v5110, %v5048
  %v5112 = vadd.f32 %v5111, %v5049
  %v5113 = vadd.f32 %v5112, %v5050
  %v5114 = vadd.f32 %v5113, %v5051
  %v5115 = vadd.f32 %v5114, %v5052
  %v5116 = vadd.f32 %v5115, %v5053
  %v5117 = vadd.f32 %v5116, %v5054
  %v5118 = vadd.f32 %v5117, %v5055
  %v5119 = vrot.slane %v5118, 4
  %v5120 = vadd.f32 %v5118, %v5119
  %v5121 = vrot.slane %v5120, 2
  %v5122 = vadd.f32 %v5120, %v5121
  %v5123 = vrot.slane %v5122, 1
  %v5124 = vadd.f32 %v5122, %v5123
  %vm5125 = vcmask 1040384
  %v5126 = vsel %vm5125, %v4991, %v5124
  %5127 = vst [vmem:[%s5] sm:$0x3] %v5126
  // Predicated region
  $region18: #{residual_block.3} parent=0 // pred_check
    _
  $region19: #{residual_block.3} parent=0 // pred_check_branch
    %5129 = sbr.rel (0) target = $region21
  $region20: #{residual_block.3} parent=0 // pred_region
    _
  $region21: #{residual_block.3} parent=0 // pred_fallthru
    _
  // Predicated region
  $region22: #{residual_block.3} parent=0 // pred_check
    _
  $region23: #{residual_block.3} parent=0 // pred_check_branch
    %5131 = sbr.rel (0) target = $region25
  $region24: #{residual_block.3} parent=0 // pred_region
    _
  $region25: #{residual_block.3} parent=0 // pred_fallthru
    _
  // Predicated region
  $region26: #{residual_block.3} parent=0 // pred_check
    _
  $region27: #{residual_block.3} parent=0 // pred_check_branch
    %5133 = sbr.rel (0) target = $region29
  $region28: #{residual_block.3} parent=0 // pred_region
    _
  $region29: #{residual_block.3} parent=0 // pred_fallthru
    _
  // Predicated region
  $region30: #{residual_block.3} parent=0 // pred_check
    _
  $region31: #{residual_block.3} parent=0 // pred_check_branch
    %5135 = sbr.rel (0) target = $region33
  $region32: #{residual_block.3} parent=0 // pred_region
    _
  $region33: #{residual_block.3} parent=0 // pred_fallthru
    _

// kernel: residual_block.4
$region0: #{residual_block.4}
  #allocation0 [shape = 'u32[]', space=smem, size = 0x4, offset = 0x4, fixed_abs, tag = 'smem constant byte address 0x4 - core index']
  #allocation1 [shape = 'u32[144,128]{1,0:T(1,128)}', space=vmem, size = 0x12000, scoped, tag = 'internal scratch']
  #allocation2 [shape = 'f32[2,18,18,128]{3,2,1,0:T(8,128)}', space=vmem, size = 0x6c000, scoped, tag = 'scratch operand']
  %s0 = inlined_call_operand.vmem [shape: f32[1,128], index: 0, kind: input, shape index: {}]
  %s1 = inlined_call_operand.vmem [shape: f32[1,128], index: 1, kind: input, shape index: {}]
  %s2 = inlined_call_operand.vmem [shape: f32[2,16,16,128], index: 2, kind: input, shape index: {}]
  %s3 = inlined_call_operand.vmem [shape: f32[1152,128], index: 3, kind: input, shape index: {}]
  %s4 = inlined_call_operand.vmem [shape: f32[2,16,16,128], index: 4, kind: output, shape index: {0}]
  %s5 = inlined_call_operand.vmem [shape: f32[1,2,128], index: 5, kind: output, shape index: {1}]
  %6 = xla_tuple %s4, %s5
  %s7 = sld [smem:[#allocation0]]
  $region34: #{residual_block.4} parent=0
    _
  %s9 = ssub.s32 1, %s7
  %s10 = scalar_select 0, %s9, %s7
  // Predicated region
  $region2: #{residual_block.4} parent=0 // pred_check
    _
  $region3: #{residual_block.4} parent=0 // pred_check_branch
    %12 = sbr.rel (0) target = $region5
  $region4: #{residual_block.4} parent=0 // pred_region
    _
  $region5: #{residual_block.4} parent=0 // pred_fallthru
    _
  // Predicated region
  $region6: #{residual_block.4} parent=0 // pred_check
    _
  $region7: #{residual_block.4} parent=0 // pred_check_branch
    %14 = sbr.rel (0) target = $region9
  $region8: #{residual_block.4} parent=0 // pred_region
    _
  $region9: #{residual_block.4} parent=0 // pred_fallthru
    _
  // Predicated region
  $region10: #{residual_block.4} parent=0 // pred_check
    _
  $region11: #{residual_block.4} parent=0 // pred_check_branch
    %16 = sbr.rel (0) target = $region13
  $region12: #{residual_block.4} parent=0 // pred_region
    _
  $region13: #{residual_block.4} parent=0 // pred_fallthru
    _
  // Predicated region
  $region14: #{residual_block.4} parent=0 // pred_check
    _
  $region15: #{residual_block.4} parent=0 // pred_check_branch
    %18 = sbr.rel (0) target = $region17
  $region16: #{residual_block.4} parent=0 // pred_region
    _
  $region17: #{residual_block.4} parent=0 // pred_fallthru
    _
  %v19 = vld [vmem:[%s2] sm:$0xff]
  %v20 = vld [vmem:[%s2 + $0x8] sm:$0xff]
  %v21 = vld [vmem:[%s2 + $0x10] sm:$0xff]
  %v22 = vld [vmem:[%s2 + $0x18] sm:$0xff]
  %v23 = vld [vmem:[%s2 + $0x20] sm:$0xff]
  %v24 = vld [vmem:[%s2 + $0x28] sm:$0xff]
  %v25 = vld [vmem:[%s2 + $0x30] sm:$0xff]
  %v26 = vld [vmem:[%s2 + $0x38] sm:$0xff]
  %v27 = vld [vmem:[%s2 + $0x40] sm:$0xff]
  %v28 = vld [vmem:[%s2 + $0x48] sm:$0xff]
  %v29 = vld [vmem:[%s2 + $0x50] sm:$0xff]
  %v30 = vld [vmem:[%s2 + $0x58] sm:$0xff]
  %v31 = vld [vmem:[%s2 + $0x60] sm:$0xff]
  %v32 = vld [vmem:[%s2 + $0x68] sm:$0xff]
  %v33 = vld [vmem:[%s2 + $0x70] sm:$0xff]
  %v34 = vld [vmem:[%s2 + $0x78] sm:$0xff]
  %v35 = vld [vmem:[%s2 + $0x80] sm:$0xff]
  %v36 = vld [vmem:[%s2 + $0x88] sm:$0xff]
  %v37 = vld [vmem:[%s2 + $0x90] sm:$0xff]
  %v38 = vld [vmem:[%s2 + $0x98] sm:$0xff]
  %v39 = vld [vmem:[%s2 + $0xa0] sm:$0xff]
  %v40 = vld [vmem:[%s2 + $0xa8] sm:$0xff]
  %v41 = vld [vmem:[%s2 + $0xb0] sm:$0xff]
  %v42 = vld [vmem:[%s2 + $0xb8] sm:$0xff]
  %v43 = vld [vmem:[%s2 + $0xc0] sm:$0xff]
  %v44 = vld [vmem:[%s2 + $0xc8] sm:$0xff]
  %v45 = vld [vmem:[%s2 + $0xd0] sm:$0xff]
  %v46 = vld [vmem:[%s2 + $0xd8] sm:$0xff]
  %v47 = vld [vmem:[%s2 + $0xe0] sm:$0xff]
  %v48 = vld [vmem:[%s2 + $0xe8] sm:$0xff]
  %v49 = vld [vmem:[%s2 + $0xf0] sm:$0xff]
  %v50 = vld [vmem:[%s2 + $0xf8] sm:$0xff]
  %v51 = vld [vmem:[%s2 + $0x100] sm:$0xff]
  %v52 = vld [vmem:[%s2 + $0x108] sm:$0xff]
  %v53 = vld [vmem:[%s2 + $0x110] sm:$0xff]
  %v54 = vld [vmem:[%s2 + $0x118] sm:$0xff]
  %v55 = vld [vmem:[%s2 + $0x120] sm:$0xff]
  %v56 = vld [vmem:[%s2 + $0x128] sm:$0xff]
  %v57 = vld [vmem:[%s2 + $0x130] sm:$0xff]
  %v58 = vld [vmem:[%s2 + $0x138] sm:$0xff]
  %v59 = vld [vmem:[%s2 + $0x140] sm:$0xff]
  %v60 = vld [vmem:[%s2 + $0x148] sm:$0xff]
  %v61 = vld [vmem:[%s2 + $0x150] sm:$0xff]
  %v62 = vld [vmem:[%s2 + $0x158] sm:$0xff]
  %v63 = vld [vmem:[%s2 + $0x160] sm:$0xff]
  %v64 = vld [vmem:[%s2 + $0x168] sm:$0xff]
  %v65 = vld [vmem:[%s2 + $0x170] sm:$0xff]
  %v66 = vld [vmem:[%s2 + $0x178] sm:$0xff]
  %v67 = vld [vmem:[%s2 + $0x180] sm:$0xff]
  %v68 = vld [vmem:[%s2 + $0x188] sm:$0xff]
  %v69 = vld [vmem:[%s2 + $0x190] sm:$0xff]
  %v70 = vld [vmem:[%s2 + $0x198] sm:$0xff]
  %v71 = vld [vmem:[%s2 + $0x1a0] sm:$0xff]
  %v72 = vld [vmem:[%s2 + $0x1a8] sm:$0xff]
  %v73 = vld [vmem:[%s2 + $0x1b0] sm:$0xff]
  %v74 = vld [vmem:[%s2 + $0x1b8] sm:$0xff]
  %v75 = vld [vmem:[%s2 + $0x1c0] sm:$0xff]
  %v76 = vld [vmem:[%s2 + $0x1c8] sm:$0xff]
  %v77 = vld [vmem:[%s2 + $0x1d0] sm:$0xff]
  %v78 = vld [vmem:[%s2 + $0x1d8] sm:$0xff]
  %v79 = vld [vmem:[%s2 + $0x1e0] sm:$0xff]
  %v80 = vld [vmem:[%s2 + $0x1e8] sm:$0xff]
  %v81 = vld [vmem:[%s2 + $0x1f0] sm:$0xff]
  %v82 = vld [vmem:[%s2 + $0x1f8] sm:$0xff]
  %v83 = vld [vmem:[%s0] sm:$0x1]
  %v85 = vlaneseq
  %v86 = vshrl.u32 %v85, 7
  %v87 = vsub.s32 0, %v86
  %v88 = vrot.slane %v83, %v87
  %v90 = vmul.f32 %v19, %v88
  %v91 = vmul.f32 %v20, %v88
  %v92 = vmul.f32 %v21, %v88
  %v93 = vmul.f32 %v22, %v88
  %v94 = vmul.f32 %v23, %v88
  %v95 = vmul.f32 %v24, %v88
  %v96 = vmul.f32 %v25, %v88
  %v97 = vmul.f32 %v26, %v88
  %v98 = vmul.f32 %v27, %v88
  %v99 = vmul.f32 %v28, %v88
  %v100 = vmul.f32 %v29, %v88
  %v101 = vmul.f32 %v30, %v88
  %v102 = vmul.f32 %v31, %v88
  %v103 = vmul.f32 %v32, %v88
  %v104 = vmul.f32 %v33, %v88
  %v105 = vmul.f32 %v34, %v88
  %v106 = vmul.f32 %v35, %v88
  %v107 = vmul.f32 %v36, %v88
  %v108 = vmul.f32 %v37, %v88
  %v109 = vmul.f32 %v38, %v88
  %v110 = vmul.f32 %v39, %v88
  %v111 = vmul.f32 %v40, %v88
  %v112 = vmul.f32 %v41, %v88
  %v113 = vmul.f32 %v42, %v88
  %v114 = vmul.f32 %v43, %v88
  %v115 = vmul.f32 %v44, %v88
  %v116 = vmul.f32 %v45, %v88
  %v117 = vmul.f32 %v46, %v88
  %v118 = vmul.f32 %v47, %v88
  %v119 = vmul.f32 %v48, %v88
  %v120 = vmul.f32 %v49, %v88
  %v121 = vmul.f32 %v50, %v88
  %v122 = vmul.f32 %v51, %v88
  %v123 = vmul.f32 %v52, %v88
  %v124 = vmul.f32 %v53, %v88
  %v125 = vmul.f32 %v54, %v88
  %v126 = vmul.f32 %v55, %v88
  %v127 = vmul.f32 %v56, %v88
  %v128 = vmul.f32 %v57, %v88
  %v129 = vmul.f32 %v58, %v88
  %v130 = vmul.f32 %v59, %v88
  %v131 = vmul.f32 %v60, %v88
  %v132 = vmul.f32 %v61, %v88
  %v133 = vmul.f32 %v62, %v88
  %v134 = vmul.f32 %v63, %v88
  %v135 = vmul.f32 %v64, %v88
  %v136 = vmul.f32 %v65, %v88
  %v137 = vmul.f32 %v66, %v88
  %v138 = vmul.f32 %v67, %v88
  %v139 = vmul.f32 %v68, %v88
  %v140 = vmul.f32 %v69, %v88
  %v141 = vmul.f32 %v70, %v88
  %v142 = vmul.f32 %v71, %v88
  %v143 = vmul.f32 %v72, %v88
  %v144 = vmul.f32 %v73, %v88
  %v145 = vmul.f32 %v74, %v88
  %v146 = vmul.f32 %v75, %v88
  %v147 = vmul.f32 %v76, %v88
  %v148 = vmul.f32 %v77, %v88
  %v149 = vmul.f32 %v78, %v88
  %v150 = vmul.f32 %v79, %v88
  %v151 = vmul.f32 %v80, %v88
  %v152 = vmul.f32 %v81, %v88
  %v153 = vmul.f32 %v82, %v88
  %v154 = vld [vmem:[%s1] sm:$0x1]
  %v156 = vlaneseq
  %v157 = vshrl.u32 %v156, 7
  %v158 = vsub.s32 0, %v157
  %v159 = vrot.slane %v154, %v158
  %v161 = vadd.f32 %v90, %v159
  %v162 = vadd.f32 %v91, %v159
  %v163 = vadd.f32 %v92, %v159
  %v164 = vadd.f32 %v93, %v159
  %v165 = vadd.f32 %v94, %v159
  %v166 = vadd.f32 %v95, %v159
  %v167 = vadd.f32 %v96, %v159
  %v168 = vadd.f32 %v97, %v159
  %v169 = vadd.f32 %v98, %v159
  %v170 = vadd.f32 %v99, %v159
  %v171 = vadd.f32 %v100, %v159
  %v172 = vadd.f32 %v101, %v159
  %v173 = vadd.f32 %v102, %v159
  %v174 = vadd.f32 %v103, %v159
  %v175 = vadd.f32 %v104, %v159
  %v176 = vadd.f32 %v105, %v159
  %v177 = vadd.f32 %v106, %v159
  %v178 = vadd.f32 %v107, %v159
  %v179 = vadd.f32 %v108, %v159
  %v180 = vadd.f32 %v109, %v159
  %v181 = vadd.f32 %v110, %v159
  %v182 = vadd.f32 %v111, %v159
  %v183 = vadd.f32 %v112, %v159
  %v184 = vadd.f32 %v113, %v159
  %v185 = vadd.f32 %v114, %v159
  %v186 = vadd.f32 %v115, %v159
  %v187 = vadd.f32 %v116, %v159
  %v188 = vadd.f32 %v117, %v159
  %v189 = vadd.f32 %v118, %v159
  %v190 = vadd.f32 %v119, %v159
  %v191 = vadd.f32 %v120, %v159
  %v192 = vadd.f32 %v121, %v159
  %v193 = vadd.f32 %v122, %v159
  %v194 = vadd.f32 %v123, %v159
  %v195 = vadd.f32 %v124, %v159
  %v196 = vadd.f32 %v125, %v159
  %v197 = vadd.f32 %v126, %v159
  %v198 = vadd.f32 %v127, %v159
  %v199 = vadd.f32 %v128, %v159
  %v200 = vadd.f32 %v129, %v159
  %v201 = vadd.f32 %v130, %v159
  %v202 = vadd.f32 %v131, %v159
  %v203 = vadd.f32 %v132, %v159
  %v204 = vadd.f32 %v133, %v159
  %v205 = vadd.f32 %v134, %v159
  %v206 = vadd.f32 %v135, %v159
  %v207 = vadd.f32 %v136, %v159
  %v208 = vadd.f32 %v137, %v159
  %v209 = vadd.f32 %v138, %v159
  %v210 = vadd.f32 %v139, %v159
  %v211 = vadd.f32 %v140, %v159
  %v212 = vadd.f32 %v141, %v159
  %v213 = vadd.f32 %v142, %v159
  %v214 = vadd.f32 %v143, %v159
  %v215 = vadd.f32 %v144, %v159
  %v216 = vadd.f32 %v145, %v159
  %v217 = vadd.f32 %v146, %v159
  %v218 = vadd.f32 %v147, %v159
  %v219 = vadd.f32 %v148, %v159
  %v220 = vadd.f32 %v149, %v159
  %v221 = vadd.f32 %v150, %v159
  %v222 = vadd.f32 %v151, %v159
  %v223 = vadd.f32 %v152, %v159
  %v224 = vadd.f32 %v153, %v159
  %v225 = vmax.f32 %v161, 0.0
  %v226 = vmax.f32 %v162, 0.0
  %v227 = vmax.f32 %v163, 0.0
  %v228 = vmax.f32 %v164, 0.0
  %v229 = vmax.f32 %v165, 0.0
  %v230 = vmax.f32 %v166, 0.0
  %v231 = vmax.f32 %v167, 0.0
  %v232 = vmax.f32 %v168, 0.0
  %v233 = vmax.f32 %v169, 0.0
  %v234 = vmax.f32 %v170, 0.0
  %v235 = vmax.f32 %v171, 0.0
  %v236 = vmax.f32 %v172, 0.0
  %v237 = vmax.f32 %v173, 0.0
  %v238 = vmax.f32 %v174, 0.0
  %v239 = vmax.f32 %v175, 0.0
  %v240 = vmax.f32 %v176, 0.0
  %v241 = vmax.f32 %v177, 0.0
  %v242 = vmax.f32 %v178, 0.0
  %v243 = vmax.f32 %v179, 0.0
  %v244 = vmax.f32 %v180, 0.0
  %v245 = vmax.f32 %v181, 0.0
  %v246 = vmax.f32 %v182, 0.0
  %v247 = vmax.f32 %v183, 0.0
  %v248 = vmax.f32 %v184, 0.0
  %v249 = vmax.f32 %v185, 0.0
  %v250 = vmax.f32 %v186, 0.0
  %v251 = vmax.f32 %v187, 0.0
  %v252 = vmax.f32 %v188, 0.0
  %v253 = vmax.f32 %v189, 0.0
  %v254 = vmax.f32 %v190, 0.0
  %v255 = vmax.f32 %v191, 0.0
  %v256 = vmax.f32 %v192, 0.0
  %v257 = vmax.f32 %v193, 0.0
  %v258 = vmax.f32 %v194, 0.0
  %v259 = vmax.f32 %v195, 0.0
  %v260 = vmax.f32 %v196, 0.0
  %v261 = vmax.f32 %v197, 0.0
  %v262 = vmax.f32 %v198, 0.0
  %v263 = vmax.f32 %v199, 0.0
  %v264 = vmax.f32 %v200, 0.0
  %v265 = vmax.f32 %v201, 0.0
  %v266 = vmax.f32 %v202, 0.0
  %v267 = vmax.f32 %v203, 0.0
  %v268 = vmax.f32 %v204, 0.0
  %v269 = vmax.f32 %v205, 0.0
  %v270 = vmax.f32 %v206, 0.0
  %v271 = vmax.f32 %v207, 0.0
  %v272 = vmax.f32 %v208, 0.0
  %v273 = vmax.f32 %v209, 0.0
  %v274 = vmax.f32 %v210, 0.0
  %v275 = vmax.f32 %v211, 0.0
  %v276 = vmax.f32 %v212, 0.0
  %v277 = vmax.f32 %v213, 0.0
  %v278 = vmax.f32 %v214, 0.0
  %v279 = vmax.f32 %v215, 0.0
  %v280 = vmax.f32 %v216, 0.0
  %v281 = vmax.f32 %v217, 0.0
  %v282 = vmax.f32 %v218, 0.0
  %v283 = vmax.f32 %v219, 0.0
  %v284 = vmax.f32 %v220, 0.0
  %v285 = vmax.f32 %v221, 0.0
  %v286 = vmax.f32 %v222, 0.0
  %v287 = vmax.f32 %v223, 0.0
  %v288 = vmax.f32 %v224, 0.0
  %s289 = scalar_lea.vmem [#allocation2], 24
  %290 = vst [vmem:[%s289 + $0x1] sm:$0xff] %v225
  %291 = vst [vmem:[%s289 + $0x9] sm:$0xff] %v226
  %292 = vst [vmem:[%s289 + $0x19] sm:$0xff] %v227
  %293 = vst [vmem:[%s289 + $0x21] sm:$0xff] %v228
  %294 = vst [vmem:[%s289 + $0x31] sm:$0xff] %v229
  %295 = vst [vmem:[%s289 + $0x39] sm:$0xff] %v230
  %296 = vst [vmem:[%s289 + $0x49] sm:$0xff] %v231
  %297 = vst [vmem:[%s289 + $0x51] sm:$0xff] %v232
  %298 = vst [vmem:[%s289 + $0x61] sm:$0xff] %v233
  %299 = vst [vmem:[%s289 + $0x69] sm:$0xff] %v234
  %300 = vst [vmem:[%s289 + $0x79] sm:$0xff] %v235
  %301 = vst [vmem:[%s289 + $0x81] sm:$0xff] %v236
  %302 = vst [vmem:[%s289 + $0x91] sm:$0xff] %v237
  %303 = vst [vmem:[%s289 + $0x99] sm:$0xff] %v238
  %304 = vst [vmem:[%s289 + $0xa9] sm:$0xff] %v239
  %305 = vst [vmem:[%s289 + $0xb1] sm:$0xff] %v240
  %306 = vst [vmem:[%s289 + $0xc1] sm:$0xff] %v241
  %307 = vst [vmem:[%s289 + $0xc9] sm:$0xff] %v242
  %308 = vst [vmem:[%s289 + $0xd9] sm:$0xff] %v243
  %309 = vst [vmem:[%s289 + $0xe1] sm:$0xff] %v244
  %310 = vst [vmem:[%s289 + $0xf1] sm:$0xff] %v245
  %311 = vst [vmem:[%s289 + $0xf9] sm:$0xff] %v246
  %312 = vst [vmem:[%s289 + $0x109] sm:$0xff] %v247
  %313 = vst [vmem:[%s289 + $0x111] sm:$0xff] %v248
  %314 = vst [vmem:[%s289 + $0x121] sm:$0xff] %v249
  %315 = vst [vmem:[%s289 + $0x129] sm:$0xff] %v250
  %316 = vst [vmem:[%s289 + $0x139] sm:$0xff] %v251
  %317 = vst [vmem:[%s289 + $0x141] sm:$0xff] %v252
  %318 = vst [vmem:[%s289 + $0x151] sm:$0xff] %v253
  %319 = vst [vmem:[%s289 + $0x159] sm:$0xff] %v254
  %320 = vst [vmem:[%s289 + $0x169] sm:$0xff] %v255
  %321 = vst [vmem:[%s289 + $0x171] sm:$0xff] %v256
  %322 = vst [vmem:[%s289 + $0x1b1] sm:$0xff] %v257
  %323 = vst [vmem:[%s289 + $0x1b9] sm:$0xff] %v258
  %324 = vst [vmem:[%s289 + $0x1c9] sm:$0xff] %v259
  %325 = vst [vmem:[%s289 + $0x1d1] sm:$0xff] %v260
  %326 = vst [vmem:[%s289 + $0x1e1] sm:$0xff] %v261
  %327 = vst [vmem:[%s289 + $0x1e9] sm:$0xff] %v262
  %328 = vst [vmem:[%s289 + $0x1f9] sm:$0xff] %v263
  %329 = vst [vmem:[%s289 + $0x201] sm:$0xff] %v264
  %330 = vst [vmem:[%s289 + $0x211] sm:$0xff] %v265
  %331 = vst [vmem:[%s289 + $0x219] sm:$0xff] %v266
  %332 = vst [vmem:[%s289 + $0x229] sm:$0xff] %v267
  %333 = vst [vmem:[%s289 + $0x231] sm:$0xff] %v268
  %334 = vst [vmem:[%s289 + $0x241] sm:$0xff] %v269
  %335 = vst [vmem:[%s289 + $0x249] sm:$0xff] %v270
  %336 = vst [vmem:[%s289 + $0x259] sm:$0xff] %v271
  %337 = vst [vmem:[%s289 + $0x261] sm:$0xff] %v272
  %338 = vst [vmem:[%s289 + $0x271] sm:$0xff] %v273
  %339 = vst [vmem:[%s289 + $0x279] sm:$0xff] %v274
  %340 = vst [vmem:[%s289 + $0x289] sm:$0xff] %v275
  %341 = vst [vmem:[%s289 + $0x291] sm:$0xff] %v276
  %342 = vst [vmem:[%s289 + $0x2a1] sm:$0xff] %v277
  %343 = vst [vmem:[%s289 + $0x2a9] sm:$0xff] %v278
  %344 = vst [vmem:[%s289 + $0x2b9] sm:$0xff] %v279
  %345 = vst [vmem:[%s289 + $0x2c1] sm:$0xff] %v280
  %346 = vst [vmem:[%s289 + $0x2d1] sm:$0xff] %v281
  %347 = vst [vmem:[%s289 + $0x2d9] sm:$0xff] %v282
  %348 = vst [vmem:[%s289 + $0x2e9] sm:$0xff] %v283
  %349 = vst [vmem:[%s289 + $0x2f1] sm:$0xff] %v284
  %350 = vst [vmem:[%s289 + $0x301] sm:$0xff] %v285
  %351 = vst [vmem:[%s289 + $0x309] sm:$0xff] %v286
  %352 = vst [vmem:[%s289 + $0x319] sm:$0xff] %v287
  %353 = vst [vmem:[%s289 + $0x321] sm:$0xff] %v288
  %354 = vst [vmem:[#allocation2] sm:$0xff] 0.0
  %355 = vst [vmem:[#allocation2 + $0x8] sm:$0xff] 0.0
  %356 = vst [vmem:[#allocation2 + $0x10] sm:$0x3] 0.0
  %357 = vst [vmem:[#allocation2 + $0x1b0] sm:$0xff] 0.0
  %358 = vst [vmem:[#allocation2 + $0x1b8] sm:$0xff] 0.0
  %359 = vst [vmem:[#allocation2 + $0x1c0] sm:$0x3] 0.0
  %s360 = scalar_lea.vmem [#allocation2], 408
  %361 = vst [vmem:[%s360] sm:$0xff] 0.0
  %362 = vst [vmem:[%s360 + $0x8] sm:$0xff] 0.0
  %363 = vst [vmem:[%s360 + $0x10] sm:$0x3] 0.0
  %364 = vst [vmem:[%s360 + $0x1b0] sm:$0xff] 0.0
  %365 = vst [vmem:[%s360 + $0x1b8] sm:$0xff] 0.0
  %366 = vst [vmem:[%s360 + $0x1c0] sm:$0x3] 0.0
  %367 = vst [vmem:[%s289] sm:$0x1] 0.0
  %368 = vst [vmem:[%s289 + $0x18] sm:$0x1] 0.0
  %369 = vst [vmem:[%s289 + $0x30] sm:$0x1] 0.0
  %370 = vst [vmem:[%s289 + $0x48] sm:$0x1] 0.0
  %371 = vst [vmem:[%s289 + $0x60] sm:$0x1] 0.0
  %372 = vst [vmem:[%s289 + $0x78] sm:$0x1] 0.0
  %373 = vst [vmem:[%s289 + $0x90] sm:$0x1] 0.0
  %374 = vst [vmem:[%s289 + $0xa8] sm:$0x1] 0.0
  %375 = vst [vmem:[%s289 + $0xc0] sm:$0x1] 0.0
  %376 = vst [vmem:[%s289 + $0xd8] sm:$0x1] 0.0
  %377 = vst [vmem:[%s289 + $0xf0] sm:$0x1] 0.0
  %378 = vst [vmem:[%s289 + $0x108] sm:$0x1] 0.0
  %379 = vst [vmem:[%s289 + $0x120] sm:$0x1] 0.0
  %380 = vst [vmem:[%s289 + $0x138] sm:$0x1] 0.0
  %381 = vst [vmem:[%s289 + $0x150] sm:$0x1] 0.0
  %382 = vst [vmem:[%s289 + $0x168] sm:$0x1] 0.0
  %383 = vst [vmem:[%s289 + $0x1b0] sm:$0x1] 0.0
  %384 = vst [vmem:[%s289 + $0x1c8] sm:$0x1] 0.0
  %385 = vst [vmem:[%s289 + $0x1e0] sm:$0x1] 0.0
  %386 = vst [vmem:[%s289 + $0x1f8] sm:$0x1] 0.0
  %387 = vst [vmem:[%s289 + $0x210] sm:$0x1] 0.0
  %388 = vst [vmem:[%s289 + $0x228] sm:$0x1] 0.0
  %389 = vst [vmem:[%s289 + $0x240] sm:$0x1] 0.0
  %390 = vst [vmem:[%s289 + $0x258] sm:$0x1] 0.0
  %391 = vst [vmem:[%s289 + $0x270] sm:$0x1] 0.0
  %392 = vst [vmem:[%s289 + $0x288] sm:$0x1] 0.0
  %393 = vst [vmem:[%s289 + $0x2a0] sm:$0x1] 0.0
  %394 = vst [vmem:[%s289 + $0x2b8] sm:$0x1] 0.0
  %395 = vst [vmem:[%s289 + $0x2d0] sm:$0x1] 0.0
  %396 = vst [vmem:[%s289 + $0x2e8] sm:$0x1] 0.0
  %397 = vst [vmem:[%s289 + $0x300] sm:$0x1] 0.0
  %398 = vst [vmem:[%s289 + $0x318] sm:$0x1] 0.0
  %399 = vst [vmem:[%s289 + $0x11] sm:$0x1] 0.0
  %400 = vst [vmem:[%s289 + $0x29] sm:$0x1] 0.0
  %401 = vst [vmem:[%s289 + $0x41] sm:$0x1] 0.0
  %402 = vst [vmem:[%s289 + $0x59] sm:$0x1] 0.0
  %403 = vst [vmem:[%s289 + $0x71] sm:$0x1] 0.0
  %404 = vst [vmem:[%s289 + $0x89] sm:$0x1] 0.0
  %405 = vst [vmem:[%s289 + $0xa1] sm:$0x1] 0.0
  %406 = vst [vmem:[%s289 + $0xb9] sm:$0x1] 0.0
  %407 = vst [vmem:[%s289 + $0xd1] sm:$0x1] 0.0
  %408 = vst [vmem:[%s289 + $0xe9] sm:$0x1] 0.0
  %409 = vst [vmem:[%s289 + $0x101] sm:$0x1] 0.0
  %410 = vst [vmem:[%s289 + $0x119] sm:$0x1] 0.0
  %411 = vst [vmem:[%s289 + $0x131] sm:$0x1] 0.0
  %412 = vst [vmem:[%s289 + $0x149] sm:$0x1] 0.0
  %413 = vst [vmem:[%s289 + $0x161] sm:$0x1] 0.0
  %414 = vst [vmem:[%s289 + $0x179] sm:$0x1] 0.0
  %415 = vst [vmem:[%s289 + $0x1c1] sm:$0x1] 0.0
  %416 = vst [vmem:[%s289 + $0x1d9] sm:$0x1] 0.0
  %417 = vst [vmem:[%s289 + $0x1f1] sm:$0x1] 0.0
  %418 = vst [vmem:[%s289 + $0x209] sm:$0x1] 0.0
  %419 = vst [vmem:[%s289 + $0x221] sm:$0x1] 0.0
  %420 = vst [vmem:[%s289 + $0x239] sm:$0x1] 0.0
  %421 = vst [vmem:[%s289 + $0x251] sm:$0x1] 0.0
  %422 = vst [vmem:[%s289 + $0x269] sm:$0x1] 0.0
  %423 = vst [vmem:[%s289 + $0x281] sm:$0x1] 0.0
  %424 = vst [vmem:[%s289 + $0x299] sm:$0x1] 0.0
  %425 = vst [vmem:[%s289 + $0x2b1] sm:$0x1] 0.0
  %426 = vst [vmem:[%s289 + $0x2c9] sm:$0x1] 0.0
  %427 = vst [vmem:[%s289 + $0x2e1] sm:$0x1] 0.0
  %428 = vst [vmem:[%s289 + $0x2f9] sm:$0x1] 0.0
  %429 = vst [vmem:[%s289 + $0x311] sm:$0x1] 0.0
  %430 = vst [vmem:[%s289 + $0x329] sm:$0x1] 0.0
  %v431 = vld [vmem:[#allocation2] sm:$0xff]
  %v432 = vld [vmem:[#allocation2 + $0x8] sm:$0xff]
  %v433 = vld [vmem:[#allocation2 + $0x18] sm:$0xff]
  %v434 = vld [vmem:[#allocation2 + $0x20] sm:$0xff]
  %v435 = vld [vmem:[#allocation2 + $0x30] sm:$0xff]
  %v436 = vld [vmem:[#allocation2 + $0x38] sm:$0xff]
  %v437 = vld [vmem:[#allocation2 + $0x48] sm:$0xff]
  %v438 = vld [vmem:[#allocation2 + $0x50] sm:$0xff]
  %v439 = vld [vmem:[#allocation2 + $0x60] sm:$0xff]
  %v440 = vld [vmem:[#allocation2 + $0x68] sm:$0xff]
  %v441 = vld [vmem:[#allocation2 + $0x78] sm:$0xff]
  %v442 = vld [vmem:[#allocation2 + $0x80] sm:$0xff]
  %v443 = vld [vmem:[#allocation2 + $0x90] sm:$0xff]
  %v444 = vld [vmem:[#allocation2 + $0x98] sm:$0xff]
  %v445 = vld [vmem:[#allocation2 + $0xa8] sm:$0xff]
  %v446 = vld [vmem:[#allocation2 + $0xb0] sm:$0xff]
  %v447 = vld [vmem:[#allocation2 + $0xc0] sm:$0xff]
  %v448 = vld [vmem:[#allocation2 + $0xc8] sm:$0xff]
  %v449 = vld [vmem:[#allocation2 + $0xd8] sm:$0xff]
  %v450 = vld [vmem:[#allocation2 + $0xe0] sm:$0xff]
  %v451 = vld [vmem:[#allocation2 + $0xf0] sm:$0xff]
  %v452 = vld [vmem:[#allocation2 + $0xf8] sm:$0xff]
  %v453 = vld [vmem:[#allocation2 + $0x108] sm:$0xff]
  %v454 = vld [vmem:[#allocation2 + $0x110] sm:$0xff]
  %v455 = vld [vmem:[#allocation2 + $0x120] sm:$0xff]
  %v456 = vld [vmem:[#allocation2 + $0x128] sm:$0xff]
  %v457 = vld [vmem:[#allocation2 + $0x138] sm:$0xff]
  %v458 = vld [vmem:[#allocation2 + $0x140] sm:$0xff]
  %v459 = vld [vmem:[#allocation2 + $0x150] sm:$0xff]
  %v460 = vld [vmem:[#allocation2 + $0x158] sm:$0xff]
  %v461 = vld [vmem:[#allocation2 + $0x168] sm:$0xff]
  %v462 = vld [vmem:[#allocation2 + $0x170] sm:$0xff]
  %v463 = vld [vmem:[#allocation2 + $0x1b0] sm:$0xff]
  %v464 = vld [vmem:[#allocation2 + $0x1b8] sm:$0xff]
  %v465 = vld [vmem:[#allocation2 + $0x1c8] sm:$0xff]
  %v466 = vld [vmem:[#allocation2 + $0x1d0] sm:$0xff]
  %v467 = vld [vmem:[#allocation2 + $0x1e0] sm:$0xff]
  %v468 = vld [vmem:[#allocation2 + $0x1e8] sm:$0xff]
  %v469 = vld [vmem:[#allocation2 + $0x1f8] sm:$0xff]
  %v470 = vld [vmem:[#allocation2 + $0x200] sm:$0xff]
  %v471 = vld [vmem:[#allocation2 + $0x210] sm:$0xff]
  %v472 = vld [vmem:[#allocation2 + $0x218] sm:$0xff]
  %v473 = vld [vmem:[#allocation2 + $0x228] sm:$0xff]
  %v474 = vld [vmem:[#allocation2 + $0x230] sm:$0xff]
  %v475 = vld [vmem:[#allocation2 + $0x240] sm:$0xff]
  %v476 = vld [vmem:[#allocation2 + $0x248] sm:$0xff]
  %v477 = vld [vmem:[#allocation2 + $0x258] sm:$0xff]
  %v478 = vld [vmem:[#allocation2 + $0x260] sm:$0xff]
  %v479 = vld [vmem:[#allocation2 + $0x270] sm:$0xff]
  %v480 = vld [vmem:[#allocation2 + $0x278] sm:$0xff]
  %v481 = vld [vmem:[#allocation2 + $0x288] sm:$0xff]
  %v482 = vld [vmem:[#allocation2 + $0x290] sm:$0xff]
  %v483 = vld [vmem:[#allocation2 + $0x2a0] sm:$0xff]
  %v484 = vld [vmem:[#allocation2 + $0x2a8] sm:$0xff]
  %v485 = vld [vmem:[#allocation2 + $0x2b8] sm:$0xff]
  %v486 = vld [vmem:[#allocation2 + $0x2c0] sm:$0xff]
  %v487 = vld [vmem:[#allocation2 + $0x2d0] sm:$0xff]
  %v488 = vld [vmem:[#allocation2 + $0x2d8] sm:$0xff]
  %v489 = vld [vmem:[#allocation2 + $0x2e8] sm:$0xff]
  %v490 = vld [vmem:[#allocation2 + $0x2f0] sm:$0xff]
  %v491 = vld [vmem:[#allocation2 + $0x300] sm:$0xff]
  %v492 = vld [vmem:[#allocation2 + $0x308] sm:$0xff]
  %v493 = vld [vmem:[#allocation2 + $0x318] sm:$0xff]
  %v494 = vld [vmem:[#allocation2 + $0x320] sm:$0xff]
  %v495 = vld [vmem:[%s3] sm:$0xff]
  %v496 = vld [vmem:[%s3 + $0x8] sm:$0xff]
  %v497 = vld [vmem:[%s3 + $0x10] sm:$0xff]
  %v498 = vld [vmem:[%s3 + $0x18] sm:$0xff]
  %v499 = vld [vmem:[%s3 + $0x20] sm:$0xff]
  %v500 = vld [vmem:[%s3 + $0x28] sm:$0xff]
  %v501 = vld [vmem:[%s3 + $0x30] sm:$0xff]
  %v502 = vld [vmem:[%s3 + $0x38] sm:$0xff]
  %v503 = vld [vmem:[%s3 + $0x40] sm:$0xff]
  %v504 = vld [vmem:[%s3 + $0x48] sm:$0xff]
  %v505 = vld [vmem:[%s3 + $0x50] sm:$0xff]
  %v506 = vld [vmem:[%s3 + $0x58] sm:$0xff]
  %v507 = vld [vmem:[%s3 + $0x60] sm:$0xff]
  %v508 = vld [vmem:[%s3 + $0x68] sm:$0xff]
  %v509 = vld [vmem:[%s3 + $0x70] sm:$0xff]
  %v510 = vld [vmem:[%s3 + $0x78] sm:$0xff]
  %v511 = vld [vmem:[#allocation2 + $0x1] sm:$0xff]
  %v512 = vld [vmem:[#allocation2 + $0x9] sm:$0xff]
  %v513 = vld [vmem:[#allocation2 + $0x19] sm:$0xff]
  %v514 = vld [vmem:[#allocation2 + $0x21] sm:$0xff]
  %v515 = vld [vmem:[#allocation2 + $0x31] sm:$0xff]
  %v516 = vld [vmem:[#allocation2 + $0x39] sm:$0xff]
  %v517 = vld [vmem:[#allocation2 + $0x49] sm:$0xff]
  %v518 = vld [vmem:[#allocation2 + $0x51] sm:$0xff]
  %v519 = vld [vmem:[#allocation2 + $0x61] sm:$0xff]
  %v520 = vld [vmem:[#allocation2 + $0x69] sm:$0xff]
  %v521 = vld [vmem:[#allocation2 + $0x79] sm:$0xff]
  %v522 = vld [vmem:[#allocation2 + $0x81] sm:$0xff]
  %v523 = vld [vmem:[#allocation2 + $0x91] sm:$0xff]
  %v524 = vld [vmem:[#allocation2 + $0x99] sm:$0xff]
  %v525 = vld [vmem:[#allocation2 + $0xa9] sm:$0xff]
  %v526 = vld [vmem:[#allocation2 + $0xb1] sm:$0xff]
  %v527 = vld [vmem:[#allocation2 + $0xc1] sm:$0xff]
  %v528 = vld [vmem:[#allocation2 + $0xc9] sm:$0xff]
  %v529 = vld [vmem:[#allocation2 + $0xd9] sm:$0xff]
  %v530 = vld [vmem:[#allocation2 + $0xe1] sm:$0xff]
  %v531 = vld [vmem:[#allocation2 + $0xf1] sm:$0xff]
  %v532 = vld [vmem:[#allocation2 + $0xf9] sm:$0xff]
  %v533 = vld [vmem:[#allocation2 + $0x109] sm:$0xff]
  %v534 = vld [vmem:[#allocation2 + $0x111] sm:$0xff]
  %v535 = vld [vmem:[#allocation2 + $0x121] sm:$0xff]
  %v536 = vld [vmem:[#allocation2 + $0x129] sm:$0xff]
  %v537 = vld [vmem:[#allocation2 + $0x139] sm:$0xff]
  %v538 = vld [vmem:[#allocation2 + $0x141] sm:$0xff]
  %v539 = vld [vmem:[#allocation2 + $0x151] sm:$0xff]
  %v540 = vld [vmem:[#allocation2 + $0x159] sm:$0xff]
  %v541 = vld [vmem:[#allocation2 + $0x169] sm:$0xff]
  %v542 = vld [vmem:[#allocation2 + $0x171] sm:$0xff]
  %v543 = vld [vmem:[#allocation2 + $0x1b1] sm:$0xff]
  %v544 = vld [vmem:[#allocation2 + $0x1b9] sm:$0xff]
  %v545 = vld [vmem:[#allocation2 + $0x1c9] sm:$0xff]
  %v546 = vld [vmem:[#allocation2 + $0x1d1] sm:$0xff]
  %v547 = vld [vmem:[#allocation2 + $0x1e1] sm:$0xff]
  %v548 = vld [vmem:[#allocation2 + $0x1e9] sm:$0xff]
  %v549 = vld [vmem:[#allocation2 + $0x1f9] sm:$0xff]
  %v550 = vld [vmem:[#allocation2 + $0x201] sm:$0xff]
  %v551 = vld [vmem:[#allocation2 + $0x211] sm:$0xff]
  %v552 = vld [vmem:[#allocation2 + $0x219] sm:$0xff]
  %v553 = vld [vmem:[#allocation2 + $0x229] sm:$0xff]
  %v554 = vld [vmem:[#allocation2 + $0x231] sm:$0xff]
  %v555 = vld [vmem:[#allocation2 + $0x241] sm:$0xff]
  %v556 = vld [vmem:[#allocation2 + $0x249] sm:$0xff]
  %v557 = vld [vmem:[#allocation2 + $0x259] sm:$0xff]
  %v558 = vld [vmem:[#allocation2 + $0x261] sm:$0xff]
  %v559 = vld [vmem:[#allocation2 + $0x271] sm:$0xff]
  %v560 = vld [vmem:[#allocation2 + $0x279] sm:$0xff]
  %v561 = vld [vmem:[#allocation2 + $0x289] sm:$0xff]
  %v562 = vld [vmem:[#allocation2 + $0x291] sm:$0xff]
  %v563 = vld [vmem:[#allocation2 + $0x2a1] sm:$0xff]
  %v564 = vld [vmem:[#allocation2 + $0x2a9] sm:$0xff]
  %v565 = vld [vmem:[#allocation2 + $0x2b9] sm:$0xff]
  %v566 = vld [vmem:[#allocation2 + $0x2c1] sm:$0xff]
  %v567 = vld [vmem:[#allocation2 + $0x2d1] sm:$0xff]
  %v568 = vld [vmem:[#allocation2 + $0x2d9] sm:$0xff]
  %v569 = vld [vmem:[#allocation2 + $0x2e9] sm:$0xff]
  %v570 = vld [vmem:[#allocation2 + $0x2f1] sm:$0xff]
  %v571 = vld [vmem:[#allocation2 + $0x301] sm:$0xff]
  %v572 = vld [vmem:[#allocation2 + $0x309] sm:$0xff]
  %v573 = vld [vmem:[#allocation2 + $0x319] sm:$0xff]
  %v574 = vld [vmem:[#allocation2 + $0x321] sm:$0xff]
  %v575 = vld [vmem:[%s3 + $0x80] sm:$0xff]
  %v576 = vld [vmem:[%s3 + $0x88] sm:$0xff]
  %v577 = vld [vmem:[%s3 + $0x90] sm:$0xff]
  %v578 = vld [vmem:[%s3 + $0x98] sm:$0xff]
  %v579 = vld [vmem:[%s3 + $0xa0] sm:$0xff]
  %v580 = vld [vmem:[%s3 + $0xa8] sm:$0xff]
  %v581 = vld [vmem:[%s3 + $0xb0] sm:$0xff]
  %v582 = vld [vmem:[%s3 + $0xb8] sm:$0xff]
  %v583 = vld [vmem:[%s3 + $0xc0] sm:$0xff]
  %v584 = vld [vmem:[%s3 + $0xc8] sm:$0xff]
  %v585 = vld [vmem:[%s3 + $0xd0] sm:$0xff]
  %v586 = vld [vmem:[%s3 + $0xd8] sm:$0xff]
  %v587 = vld [vmem:[%s3 + $0xe0] sm:$0xff]
  %v588 = vld [vmem:[%s3 + $0xe8] sm:$0xff]
  %v589 = vld [vmem:[%s3 + $0xf0] sm:$0xff]
  %v590 = vld [vmem:[%s3 + $0xf8] sm:$0xff]
  %591 = vmatprep.subr.mxu0 0.0
  %592 = vmatpush1.msra.mxu0 %v590
  %593 = vmatprep.subr.mxu0 0.0
  %594 = vmatpush1.msra.mxu0 %v589
  %595 = vmatprep.subr.mxu0 0.0
  %596 = vmatpush1.msra.mxu0 %v588
  %597 = vmatprep.subr.mxu0 0.0
  %598 = vmatpush1.msra.mxu0 %v587
  %599 = vmatprep.subr.mxu0 0.0
  %600 = vmatpush1.msra.mxu0 %v586
  %601 = vmatprep.subr.mxu0 0.0
  %602 = vmatpush1.msra.mxu0 %v585
  %603 = vmatprep.subr.mxu0 0.0
  %604 = vmatpush1.msra.mxu0 %v584
  %605 = vmatprep.subr.mxu0 0.0
  %606 = vmatpush1.msra.mxu0 %v583
  %607 = vmatprep.subr.mxu0 0.0
  %608 = vmatpush1.msra.mxu0 %v582
  %609 = vmatprep.subr.mxu0 0.0
  %610 = vmatpush1.msra.mxu0 %v581
  %611 = vmatprep.subr.mxu0 0.0
  %612 = vmatpush1.msra.mxu0 %v580
  %613 = vmatprep.subr.mxu0 0.0
  %614 = vmatpush1.msra.mxu0 %v579
  %615 = vmatprep.subr.mxu0 0.0
  %616 = vmatpush1.msra.mxu0 %v578
  %617 = vmatprep.subr.mxu0 0.0
  %618 = vmatpush1.msra.mxu0 %v577
  %619 = vmatprep.subr.mxu0 0.0
  %620 = vmatpush1.msra.mxu0 %v576
  %621 = vmatprep.subr.mxu0 0.0
  %622 = vmatpush1.msra.mxu0 %v575
  %623 = vmatprep.subr.mxu0 0.0
  %624 = vmatpush2.msra.mxu0 0.0
  %625 = vmatprep.subr.mxu0 0.0
  %626 = vmatpush2.msra.mxu0 0.0
  %627 = vmatprep.subr.mxu0 0.0
  %628 = vmatpush2.msra.mxu0 0.0
  %629 = vmatprep.subr.mxu0 0.0
  %630 = vmatpush2.msra.mxu0 0.0
  %631 = vmatprep.subr.mxu0 0.0
  %632 = vmatpush2.msra.mxu0 0.0
  %633 = vmatprep.subr.mxu0 0.0
  %634 = vmatpush2.msra.mxu0 0.0
  %635 = vmatprep.subr.mxu0 0.0
  %636 = vmatpush2.msra.mxu0 0.0
  %637 = vmatprep.subr.mxu0 0.0
  %638 = vmatpush2.msra.mxu0 0.0
  %639 = vmatprep.subr.mxu0 0.0
  %640 = vmatpush2.msra.mxu0 0.0
  %641 = vmatprep.subr.mxu0 0.0
  %642 = vmatpush2.msra.mxu0 0.0
  %643 = vmatprep.subr.mxu0 0.0
  %644 = vmatpush2.msra.mxu0 0.0
  %645 = vmatprep.subr.mxu0 0.0
  %646 = vmatpush2.msra.mxu0 0.0
  %647 = vmatprep.subr.mxu0 0.0
  %648 = vmatpush2.msra.mxu0 0.0
  %649 = vmatprep.subr.mxu0 0.0
  %650 = vmatpush2.msra.mxu0 0.0
  %651 = vmatprep.subr.mxu0 0.0
  %652 = vmatpush2.msra.mxu0 0.0
  %653 = vmatprep.subr.mxu0 0.0
  %654 = vmatpush2.msra.mxu0 0.0
  %655 = vmatprep.mubr.f32.mxu0 0.0
  %656 = vmatmul.mubr.f32.gmra.mxu0 %v511
  %v657 = vpop.f32.mrf.mxu0
  %v658 = vadd.f32 0.0, %v657
  %v659 = vpop.f32.mrf.mxu0
  %660 = vmatprep.mubr.f32.mxu0 0.0
  %661 = vmatmul.mubr.f32.gmra.mxu0 %v512
  %v662 = vpop.f32.mrf.mxu0
  %v663 = vadd.f32 0.0, %v662
  %v664 = vpop.f32.mrf.mxu0
  %665 = vmatprep.mubr.f32.mxu0 0.0
  %666 = vmatmul.mubr.f32.gmra.mxu0 %v513
  %v667 = vpop.f32.mrf.mxu0
  %v668 = vadd.f32 0.0, %v667
  %v669 = vpop.f32.mrf.mxu0
  %670 = vmatprep.mubr.f32.mxu0 0.0
  %671 = vmatmul.mubr.f32.gmra.mxu0 %v514
  %v672 = vpop.f32.mrf.mxu0
  %v673 = vadd.f32 0.0, %v672
  %v674 = vpop.f32.mrf.mxu0
  %675 = vmatprep.mubr.f32.mxu0 0.0
  %676 = vmatmul.mubr.f32.gmra.mxu0 %v515
  %v677 = vpop.f32.mrf.mxu0
  %v678 = vadd.f32 0.0, %v677
  %v679 = vpop.f32.mrf.mxu0
  %680 = vmatprep.mubr.f32.mxu0 0.0
  %681 = vmatmul.mubr.f32.gmra.mxu0 %v516
  %v682 = vpop.f32.mrf.mxu0
  %v683 = vadd.f32 0.0, %v682
  %v684 = vpop.f32.mrf.mxu0
  %685 = vmatprep.mubr.f32.mxu0 0.0
  %686 = vmatmul.mubr.f32.gmra.mxu0 %v517
  %v687 = vpop.f32.mrf.mxu0
  %v688 = vadd.f32 0.0, %v687
  %v689 = vpop.f32.mrf.mxu0
  %690 = vmatprep.mubr.f32.mxu0 0.0
  %691 = vmatmul.mubr.f32.gmra.mxu0 %v518
  %v692 = vpop.f32.mrf.mxu0
  %v693 = vadd.f32 0.0, %v692
  %v694 = vpop.f32.mrf.mxu0
  %695 = vmatprep.mubr.f32.mxu0 0.0
  %696 = vmatmul.mubr.f32.gmra.mxu0 %v519
  %v697 = vpop.f32.mrf.mxu0
  %v698 = vadd.f32 0.0, %v697
  %v699 = vpop.f32.mrf.mxu0
  %700 = vmatprep.mubr.f32.mxu0 0.0
  %701 = vmatmul.mubr.f32.gmra.mxu0 %v520
  %v702 = vpop.f32.mrf.mxu0
  %v703 = vadd.f32 0.0, %v702
  %v704 = vpop.f32.mrf.mxu0
  %705 = vmatprep.mubr.f32.mxu0 0.0
  %706 = vmatmul.mubr.f32.gmra.mxu0 %v521
  %v707 = vpop.f32.mrf.mxu0
  %v708 = vadd.f32 0.0, %v707
  %v709 = vpop.f32.mrf.mxu0
  %710 = vmatprep.mubr.f32.mxu0 0.0
  %711 = vmatmul.mubr.f32.gmra.mxu0 %v522
  %v712 = vpop.f32.mrf.mxu0
  %v713 = vadd.f32 0.0, %v712
  %v714 = vpop.f32.mrf.mxu0
  %715 = vmatprep.mubr.f32.mxu0 0.0
  %716 = vmatmul.mubr.f32.gmra.mxu0 %v523
  %v717 = vpop.f32.mrf.mxu0
  %v718 = vadd.f32 0.0, %v717
  %v719 = vpop.f32.mrf.mxu0
  %720 = vmatprep.mubr.f32.mxu0 0.0
  %721 = vmatmul.mubr.f32.gmra.mxu0 %v524
  %v722 = vpop.f32.mrf.mxu0
  %v723 = vadd.f32 0.0, %v722
  %v724 = vpop.f32.mrf.mxu0
  %725 = vmatprep.mubr.f32.mxu0 0.0
  %726 = vmatmul.mubr.f32.gmra.mxu0 %v525
  %v727 = vpop.f32.mrf.mxu0
  %v728 = vadd.f32 0.0, %v727
  %v729 = vpop.f32.mrf.mxu0
  %730 = vmatprep.mubr.f32.mxu0 0.0
  %731 = vmatmul.mubr.f32.gmra.mxu0 %v526
  %v732 = vpop.f32.mrf.mxu0
  %v733 = vadd.f32 0.0, %v732
  %v734 = vpop.f32.mrf.mxu0
  %735 = vmatprep.mubr.f32.mxu0 0.0
  %736 = vmatmul.mubr.f32.gmra.mxu0 %v527
  %v737 = vpop.f32.mrf.mxu0
  %v738 = vadd.f32 0.0, %v737
  %v739 = vpop.f32.mrf.mxu0
  %740 = vmatprep.mubr.f32.mxu0 0.0
  %741 = vmatmul.mubr.f32.gmra.mxu0 %v528
  %v742 = vpop.f32.mrf.mxu0
  %v743 = vadd.f32 0.0, %v742
  %v744 = vpop.f32.mrf.mxu0
  %745 = vmatprep.mubr.f32.mxu0 0.0
  %746 = vmatmul.mubr.f32.gmra.mxu0 %v529
  %v747 = vpop.f32.mrf.mxu0
  %v748 = vadd.f32 0.0, %v747
  %v749 = vpop.f32.mrf.mxu0
  %750 = vmatprep.mubr.f32.mxu0 0.0
  %751 = vmatmul.mubr.f32.gmra.mxu0 %v530
  %v752 = vpop.f32.mrf.mxu0
  %v753 = vadd.f32 0.0, %v752
  %v754 = vpop.f32.mrf.mxu0
  %755 = vmatprep.mubr.f32.mxu0 0.0
  %756 = vmatmul.mubr.f32.gmra.mxu0 %v531
  %v757 = vpop.f32.mrf.mxu0
  %v758 = vadd.f32 0.0, %v757
  %v759 = vpop.f32.mrf.mxu0
  %760 = vmatprep.mubr.f32.mxu0 0.0
  %761 = vmatmul.mubr.f32.gmra.mxu0 %v532
  %v762 = vpop.f32.mrf.mxu0
  %v763 = vadd.f32 0.0, %v762
  %v764 = vpop.f32.mrf.mxu0
  %765 = vmatprep.mubr.f32.mxu0 0.0
  %766 = vmatmul.mubr.f32.gmra.mxu0 %v533
  %v767 = vpop.f32.mrf.mxu0
  %v768 = vadd.f32 0.0, %v767
  %v769 = vpop.f32.mrf.mxu0
  %770 = vmatprep.mubr.f32.mxu0 0.0
  %771 = vmatmul.mubr.f32.gmra.mxu0 %v534
  %v772 = vpop.f32.mrf.mxu0
  %v773 = vadd.f32 0.0, %v772
  %v774 = vpop.f32.mrf.mxu0
  %775 = vmatprep.mubr.f32.mxu0 0.0
  %776 = vmatmul.mubr.f32.gmra.mxu0 %v535
  %v777 = vpop.f32.mrf.mxu0
  %v778 = vadd.f32 0.0, %v777
  %v779 = vpop.f32.mrf.mxu0
  %780 = vmatprep.mubr.f32.mxu0 0.0
  %781 = vmatmul.mubr.f32.gmra.mxu0 %v536
  %v782 = vpop.f32.mrf.mxu0
  %v783 = vadd.f32 0.0, %v782
  %v784 = vpop.f32.mrf.mxu0
  %785 = vmatprep.mubr.f32.mxu0 0.0
  %786 = vmatmul.mubr.f32.gmra.mxu0 %v537
  %v787 = vpop.f32.mrf.mxu0
  %v788 = vadd.f32 0.0, %v787
  %v789 = vpop.f32.mrf.mxu0
  %790 = vmatprep.mubr.f32.mxu0 0.0
  %791 = vmatmul.mubr.f32.gmra.mxu0 %v538
  %v792 = vpop.f32.mrf.mxu0
  %v793 = vadd.f32 0.0, %v792
  %v794 = vpop.f32.mrf.mxu0
  %795 = vmatprep.mubr.f32.mxu0 0.0
  %796 = vmatmul.mubr.f32.gmra.mxu0 %v539
  %v797 = vpop.f32.mrf.mxu0
  %v798 = vadd.f32 0.0, %v797
  %v799 = vpop.f32.mrf.mxu0
  %800 = vmatprep.mubr.f32.mxu0 0.0
  %801 = vmatmul.mubr.f32.gmra.mxu0 %v540
  %v802 = vpop.f32.mrf.mxu0
  %v803 = vadd.f32 0.0, %v802
  %v804 = vpop.f32.mrf.mxu0
  %805 = vmatprep.mubr.f32.mxu0 0.0
  %806 = vmatmul.mubr.f32.gmra.mxu0 %v541
  %v807 = vpop.f32.mrf.mxu0
  %v808 = vadd.f32 0.0, %v807
  %v809 = vpop.f32.mrf.mxu0
  %810 = vmatprep.mubr.f32.mxu0 0.0
  %811 = vmatmul.mubr.f32.gmra.mxu0 %v542
  %v812 = vpop.f32.mrf.mxu0
  %v813 = vadd.f32 0.0, %v812
  %v814 = vpop.f32.mrf.mxu0
  %815 = vmatprep.mubr.f32.mxu0 0.0
  %816 = vmatmul.mubr.f32.gmra.mxu0 %v543
  %v817 = vpop.f32.mrf.mxu0
  %v818 = vadd.f32 0.0, %v817
  %v819 = vpop.f32.mrf.mxu0
  %820 = vmatprep.mubr.f32.mxu0 0.0
  %821 = vmatmul.mubr.f32.gmra.mxu0 %v544
  %v822 = vpop.f32.mrf.mxu0
  %v823 = vadd.f32 0.0, %v822
  %v824 = vpop.f32.mrf.mxu0
  %825 = vmatprep.mubr.f32.mxu0 0.0
  %826 = vmatmul.mubr.f32.gmra.mxu0 %v545
  %v827 = vpop.f32.mrf.mxu0
  %v828 = vadd.f32 0.0, %v827
  %v829 = vpop.f32.mrf.mxu0
  %830 = vmatprep.mubr.f32.mxu0 0.0
  %831 = vmatmul.mubr.f32.gmra.mxu0 %v546
  %v832 = vpop.f32.mrf.mxu0
  %v833 = vadd.f32 0.0, %v832
  %v834 = vpop.f32.mrf.mxu0
  %835 = vmatprep.mubr.f32.mxu0 0.0
  %836 = vmatmul.mubr.f32.gmra.mxu0 %v547
  %v837 = vpop.f32.mrf.mxu0
  %v838 = vadd.f32 0.0, %v837
  %v839 = vpop.f32.mrf.mxu0
  %840 = vmatprep.mubr.f32.mxu0 0.0
  %841 = vmatmul.mubr.f32.gmra.mxu0 %v548
  %v842 = vpop.f32.mrf.mxu0
  %v843 = vadd.f32 0.0, %v842
  %v844 = vpop.f32.mrf.mxu0
  %845 = vmatprep.mubr.f32.mxu0 0.0
  %846 = vmatmul.mubr.f32.gmra.mxu0 %v549
  %v847 = vpop.f32.mrf.mxu0
  %v848 = vadd.f32 0.0, %v847
  %v849 = vpop.f32.mrf.mxu0
  %850 = vmatprep.mubr.f32.mxu0 0.0
  %851 = vmatmul.mubr.f32.gmra.mxu0 %v550
  %v852 = vpop.f32.mrf.mxu0
  %v853 = vadd.f32 0.0, %v852
  %v854 = vpop.f32.mrf.mxu0
  %855 = vmatprep.mubr.f32.mxu0 0.0
  %856 = vmatmul.mubr.f32.gmra.mxu0 %v551
  %v857 = vpop.f32.mrf.mxu0
  %v858 = vadd.f32 0.0, %v857
  %v859 = vpop.f32.mrf.mxu0
  %860 = vmatprep.mubr.f32.mxu0 0.0
  %861 = vmatmul.mubr.f32.gmra.mxu0 %v552
  %v862 = vpop.f32.mrf.mxu0
  %v863 = vadd.f32 0.0, %v862
  %v864 = vpop.f32.mrf.mxu0
  %865 = vmatprep.mubr.f32.mxu0 0.0
  %866 = vmatmul.mubr.f32.gmra.mxu0 %v553
  %v867 = vpop.f32.mrf.mxu0
  %v868 = vadd.f32 0.0, %v867
  %v869 = vpop.f32.mrf.mxu0
  %870 = vmatprep.mubr.f32.mxu0 0.0
  %871 = vmatmul.mubr.f32.gmra.mxu0 %v554
  %v872 = vpop.f32.mrf.mxu0
  %v873 = vadd.f32 0.0, %v872
  %v874 = vpop.f32.mrf.mxu0
  %875 = vmatprep.mubr.f32.mxu0 0.0
  %876 = vmatmul.mubr.f32.gmra.mxu0 %v555
  %v877 = vpop.f32.mrf.mxu0
  %v878 = vadd.f32 0.0, %v877
  %v879 = vpop.f32.mrf.mxu0
  %880 = vmatprep.mubr.f32.mxu0 0.0
  %881 = vmatmul.mubr.f32.gmra.mxu0 %v556
  %v882 = vpop.f32.mrf.mxu0
  %v883 = vadd.f32 0.0, %v882
  %v884 = vpop.f32.mrf.mxu0
  %885 = vmatprep.mubr.f32.mxu0 0.0
  %886 = vmatmul.mubr.f32.gmra.mxu0 %v557
  %v887 = vpop.f32.mrf.mxu0
  %v888 = vadd.f32 0.0, %v887
  %v889 = vpop.f32.mrf.mxu0
  %890 = vmatprep.mubr.f32.mxu0 0.0
  %891 = vmatmul.mubr.f32.gmra.mxu0 %v558
  %v892 = vpop.f32.mrf.mxu0
  %v893 = vadd.f32 0.0, %v892
  %v894 = vpop.f32.mrf.mxu0
  %895 = vmatprep.mubr.f32.mxu0 0.0
  %896 = vmatmul.mubr.f32.gmra.mxu0 %v559
  %v897 = vpop.f32.mrf.mxu0
  %v898 = vadd.f32 0.0, %v897
  %v899 = vpop.f32.mrf.mxu0
  %900 = vmatprep.mubr.f32.mxu0 0.0
  %901 = vmatmul.mubr.f32.gmra.mxu0 %v560
  %v902 = vpop.f32.mrf.mxu0
  %v903 = vadd.f32 0.0, %v902
  %v904 = vpop.f32.mrf.mxu0
  %905 = vmatprep.mubr.f32.mxu0 0.0
  %906 = vmatmul.mubr.f32.gmra.mxu0 %v561
  %v907 = vpop.f32.mrf.mxu0
  %v908 = vadd.f32 0.0, %v907
  %v909 = vpop.f32.mrf.mxu0
  %910 = vmatprep.mubr.f32.mxu0 0.0
  %911 = vmatmul.mubr.f32.gmra.mxu0 %v562
  %v912 = vpop.f32.mrf.mxu0
  %v913 = vadd.f32 0.0, %v912
  %v914 = vpop.f32.mrf.mxu0
  %915 = vmatprep.mubr.f32.mxu0 0.0
  %916 = vmatmul.mubr.f32.gmra.mxu0 %v563
  %v917 = vpop.f32.mrf.mxu0
  %v918 = vadd.f32 0.0, %v917
  %v919 = vpop.f32.mrf.mxu0
  %920 = vmatprep.mubr.f32.mxu0 0.0
  %921 = vmatmul.mubr.f32.gmra.mxu0 %v564
  %v922 = vpop.f32.mrf.mxu0
  %v923 = vadd.f32 0.0, %v922
  %v924 = vpop.f32.mrf.mxu0
  %925 = vmatprep.mubr.f32.mxu0 0.0
  %926 = vmatmul.mubr.f32.gmra.mxu0 %v565
  %v927 = vpop.f32.mrf.mxu0
  %v928 = vadd.f32 0.0, %v927
  %v929 = vpop.f32.mrf.mxu0
  %930 = vmatprep.mubr.f32.mxu0 0.0
  %931 = vmatmul.mubr.f32.gmra.mxu0 %v566
  %v932 = vpop.f32.mrf.mxu0
  %v933 = vadd.f32 0.0, %v932
  %v934 = vpop.f32.mrf.mxu0
  %935 = vmatprep.mubr.f32.mxu0 0.0
  %936 = vmatmul.mubr.f32.gmra.mxu0 %v567
  %v937 = vpop.f32.mrf.mxu0
  %v938 = vadd.f32 0.0, %v937
  %v939 = vpop.f32.mrf.mxu0
  %940 = vmatprep.mubr.f32.mxu0 0.0
  %941 = vmatmul.mubr.f32.gmra.mxu0 %v568
  %v942 = vpop.f32.mrf.mxu0
  %v943 = vadd.f32 0.0, %v942
  %v944 = vpop.f32.mrf.mxu0
  %945 = vmatprep.mubr.f32.mxu0 0.0
  %946 = vmatmul.mubr.f32.gmra.mxu0 %v569
  %v947 = vpop.f32.mrf.mxu0
  %v948 = vadd.f32 0.0, %v947
  %v949 = vpop.f32.mrf.mxu0
  %950 = vmatprep.mubr.f32.mxu0 0.0
  %951 = vmatmul.mubr.f32.gmra.mxu0 %v570
  %v952 = vpop.f32.mrf.mxu0
  %v953 = vadd.f32 0.0, %v952
  %v954 = vpop.f32.mrf.mxu0
  %955 = vmatprep.mubr.f32.mxu0 0.0
  %956 = vmatmul.mubr.f32.gmra.mxu0 %v571
  %v957 = vpop.f32.mrf.mxu0
  %v958 = vadd.f32 0.0, %v957
  %v959 = vpop.f32.mrf.mxu0
  %960 = vmatprep.mubr.f32.mxu0 0.0
  %961 = vmatmul.mubr.f32.gmra.mxu0 %v572
  %v962 = vpop.f32.mrf.mxu0
  %v963 = vadd.f32 0.0, %v962
  %v964 = vpop.f32.mrf.mxu0
  %965 = vmatprep.mubr.f32.mxu0 0.0
  %966 = vmatmul.mubr.f32.gmra.mxu0 %v573
  %v967 = vpop.f32.mrf.mxu0
  %v968 = vadd.f32 0.0, %v967
  %v969 = vpop.f32.mrf.mxu0
  %970 = vmatprep.mubr.f32.mxu0 0.0
  %971 = vmatmul.mubr.f32.gmra.mxu0 %v574
  %v972 = vpop.f32.mrf.mxu0
  %v973 = vadd.f32 0.0, %v972
  %v974 = vpop.f32.mrf.mxu0
  %975 = vdwg.mxu0
  %976 = vmatprep.subr.mxu0 0.0
  %977 = vmatpush1.msra.mxu0 %v510
  %978 = vmatprep.subr.mxu0 0.0
  %979 = vmatpush1.msra.mxu0 %v509
  %980 = vmatprep.subr.mxu0 0.0
  %981 = vmatpush1.msra.mxu0 %v508
  %982 = vmatprep.subr.mxu0 0.0
  %983 = vmatpush1.msra.mxu0 %v507
  %984 = vmatprep.subr.mxu0 0.0
  %985 = vmatpush1.msra.mxu0 %v506
  %986 = vmatprep.subr.mxu0 0.0
  %987 = vmatpush1.msra.mxu0 %v505
  %988 = vmatprep.subr.mxu0 0.0
  %989 = vmatpush1.msra.mxu0 %v504
  %990 = vmatprep.subr.mxu0 0.0
  %991 = vmatpush1.msra.mxu0 %v503
  %992 = vmatprep.subr.mxu0 0.0
  %993 = vmatpush1.msra.mxu0 %v502
  %994 = vmatprep.subr.mxu0 0.0
  %995 = vmatpush1.msra.mxu0 %v501
  %996 = vmatprep.subr.mxu0 0.0
  %997 = vmatpush1.msra.mxu0 %v500
  %998 = vmatprep.subr.mxu0 0.0
  %999 = vmatpush1.msra.mxu0 %v499
  %1000 = vmatprep.subr.mxu0 0.0
  %1001 = vmatpush1.msra.mxu0 %v498
  %1002 = vmatprep.subr.mxu0 0.0
  %1003 = vmatpush1.msra.mxu0 %v497
  %1004 = vmatprep.subr.mxu0 0.0
  %1005 = vmatpush1.msra.mxu0 %v496
  %1006 = vmatprep.subr.mxu0 0.0
  %1007 = vmatpush1.msra.mxu0 %v495
  %1008 = vmatprep.subr.mxu0 0.0
  %1009 = vmatpush2.msra.mxu0 0.0
  %1010 = vmatprep.subr.mxu0 0.0
  %1011 = vmatpush2.msra.mxu0 0.0
  %1012 = vmatprep.subr.mxu0 0.0
  %1013 = vmatpush2.msra.mxu0 0.0
  %1014 = vmatprep.subr.mxu0 0.0
  %1015 = vmatpush2.msra.mxu0 0.0
  %1016 = vmatprep.subr.mxu0 0.0
  %1017 = vmatpush2.msra.mxu0 0.0
  %1018 = vmatprep.subr.mxu0 0.0
  %1019 = vmatpush2.msra.mxu0 0.0
  %1020 = vmatprep.subr.mxu0 0.0
  %1021 = vmatpush2.msra.mxu0 0.0
  %1022 = vmatprep.subr.mxu0 0.0
  %1023 = vmatpush2.msra.mxu0 0.0
  %1024 = vmatprep.subr.mxu0 0.0
  %1025 = vmatpush2.msra.mxu0 0.0
  %1026 = vmatprep.subr.mxu0 0.0
  %1027 = vmatpush2.msra.mxu0 0.0
  %1028 = vmatprep.subr.mxu0 0.0
  %1029 = vmatpush2.msra.mxu0 0.0
  %1030 = vmatprep.subr.mxu0 0.0
  %1031 = vmatpush2.msra.mxu0 0.0
  %1032 = vmatprep.subr.mxu0 0.0
  %1033 = vmatpush2.msra.mxu0 0.0
  %1034 = vmatprep.subr.mxu0 0.0
  %1035 = vmatpush2.msra.mxu0 0.0
  %1036 = vmatprep.subr.mxu0 0.0
  %1037 = vmatpush2.msra.mxu0 0.0
  %1038 = vmatprep.subr.mxu0 0.0
  %1039 = vmatpush2.msra.mxu0 0.0
  %1040 = vmatprep.mubr.f32.mxu0 0.0
  %1041 = vmatmul.mubr.f32.gmra.mxu0 %v431
  %v1042 = vpop.f32.mrf.mxu0
  %v1043 = vadd.f32 %v658, %v1042
  %v1044 = vpop.f32.mrf.mxu0
  %1045 = vmatprep.mubr.f32.mxu0 0.0
  %1046 = vmatmul.mubr.f32.gmra.mxu0 %v432
  %v1047 = vpop.f32.mrf.mxu0
  %v1048 = vadd.f32 %v663, %v1047
  %v1049 = vpop.f32.mrf.mxu0
  %1050 = vmatprep.mubr.f32.mxu0 0.0
  %1051 = vmatmul.mubr.f32.gmra.mxu0 %v433
  %v1052 = vpop.f32.mrf.mxu0
  %v1053 = vadd.f32 %v668, %v1052
  %v1054 = vpop.f32.mrf.mxu0
  %1055 = vmatprep.mubr.f32.mxu0 0.0
  %1056 = vmatmul.mubr.f32.gmra.mxu0 %v434
  %v1057 = vpop.f32.mrf.mxu0
  %v1058 = vadd.f32 %v673, %v1057
  %v1059 = vpop.f32.mrf.mxu0
  %1060 = vmatprep.mubr.f32.mxu0 0.0
  %1061 = vmatmul.mubr.f32.gmra.mxu0 %v435
  %v1062 = vpop.f32.mrf.mxu0
  %v1063 = vadd.f32 %v678, %v1062
  %v1064 = vpop.f32.mrf.mxu0
  %1065 = vmatprep.mubr.f32.mxu0 0.0
  %1066 = vmatmul.mubr.f32.gmra.mxu0 %v436
  %v1067 = vpop.f32.mrf.mxu0
  %v1068 = vadd.f32 %v683, %v1067
  %v1069 = vpop.f32.mrf.mxu0
  %1070 = vmatprep.mubr.f32.mxu0 0.0
  %1071 = vmatmul.mubr.f32.gmra.mxu0 %v437
  %v1072 = vpop.f32.mrf.mxu0
  %v1073 = vadd.f32 %v688, %v1072
  %v1074 = vpop.f32.mrf.mxu0
  %1075 = vmatprep.mubr.f32.mxu0 0.0
  %1076 = vmatmul.mubr.f32.gmra.mxu0 %v438
  %v1077 = vpop.f32.mrf.mxu0
  %v1078 = vadd.f32 %v693, %v1077
  %v1079 = vpop.f32.mrf.mxu0
  %1080 = vmatprep.mubr.f32.mxu0 0.0
  %1081 = vmatmul.mubr.f32.gmra.mxu0 %v439
  %v1082 = vpop.f32.mrf.mxu0
  %v1083 = vadd.f32 %v698, %v1082
  %v1084 = vpop.f32.mrf.mxu0
  %1085 = vmatprep.mubr.f32.mxu0 0.0
  %1086 = vmatmul.mubr.f32.gmra.mxu0 %v440
  %v1087 = vpop.f32.mrf.mxu0
  %v1088 = vadd.f32 %v703, %v1087
  %v1089 = vpop.f32.mrf.mxu0
  %1090 = vmatprep.mubr.f32.mxu0 0.0
  %1091 = vmatmul.mubr.f32.gmra.mxu0 %v441
  %v1092 = vpop.f32.mrf.mxu0
  %v1093 = vadd.f32 %v708, %v1092
  %v1094 = vpop.f32.mrf.mxu0
  %1095 = vmatprep.mubr.f32.mxu0 0.0
  %1096 = vmatmul.mubr.f32.gmra.mxu0 %v442
  %v1097 = vpop.f32.mrf.mxu0
  %v1098 = vadd.f32 %v713, %v1097
  %v1099 = vpop.f32.mrf.mxu0
  %1100 = vmatprep.mubr.f32.mxu0 0.0
  %1101 = vmatmul.mubr.f32.gmra.mxu0 %v443
  %v1102 = vpop.f32.mrf.mxu0
  %v1103 = vadd.f32 %v718, %v1102
  %v1104 = vpop.f32.mrf.mxu0
  %1105 = vmatprep.mubr.f32.mxu0 0.0
  %1106 = vmatmul.mubr.f32.gmra.mxu0 %v444
  %v1107 = vpop.f32.mrf.mxu0
  %v1108 = vadd.f32 %v723, %v1107
  %v1109 = vpop.f32.mrf.mxu0
  %1110 = vmatprep.mubr.f32.mxu0 0.0
  %1111 = vmatmul.mubr.f32.gmra.mxu0 %v445
  %v1112 = vpop.f32.mrf.mxu0
  %v1113 = vadd.f32 %v728, %v1112
  %v1114 = vpop.f32.mrf.mxu0
  %1115 = vmatprep.mubr.f32.mxu0 0.0
  %1116 = vmatmul.mubr.f32.gmra.mxu0 %v446
  %v1117 = vpop.f32.mrf.mxu0
  %v1118 = vadd.f32 %v733, %v1117
  %v1119 = vpop.f32.mrf.mxu0
  %1120 = vmatprep.mubr.f32.mxu0 0.0
  %1121 = vmatmul.mubr.f32.gmra.mxu0 %v447
  %v1122 = vpop.f32.mrf.mxu0
  %v1123 = vadd.f32 %v738, %v1122
  %v1124 = vpop.f32.mrf.mxu0
  %1125 = vmatprep.mubr.f32.mxu0 0.0
  %1126 = vmatmul.mubr.f32.gmra.mxu0 %v448
  %v1127 = vpop.f32.mrf.mxu0
  %v1128 = vadd.f32 %v743, %v1127
  %v1129 = vpop.f32.mrf.mxu0
  %1130 = vmatprep.mubr.f32.mxu0 0.0
  %1131 = vmatmul.mubr.f32.gmra.mxu0 %v449
  %v1132 = vpop.f32.mrf.mxu0
  %v1133 = vadd.f32 %v748, %v1132
  %v1134 = vpop.f32.mrf.mxu0
  %1135 = vmatprep.mubr.f32.mxu0 0.0
  %1136 = vmatmul.mubr.f32.gmra.mxu0 %v450
  %v1137 = vpop.f32.mrf.mxu0
  %v1138 = vadd.f32 %v753, %v1137
  %v1139 = vpop.f32.mrf.mxu0
  %1140 = vmatprep.mubr.f32.mxu0 0.0
  %1141 = vmatmul.mubr.f32.gmra.mxu0 %v451
  %v1142 = vpop.f32.mrf.mxu0
  %v1143 = vadd.f32 %v758, %v1142
  %v1144 = vpop.f32.mrf.mxu0
  %1145 = vmatprep.mubr.f32.mxu0 0.0
  %1146 = vmatmul.mubr.f32.gmra.mxu0 %v452
  %v1147 = vpop.f32.mrf.mxu0
  %v1148 = vadd.f32 %v763, %v1147
  %v1149 = vpop.f32.mrf.mxu0
  %1150 = vmatprep.mubr.f32.mxu0 0.0
  %1151 = vmatmul.mubr.f32.gmra.mxu0 %v453
  %v1152 = vpop.f32.mrf.mxu0
  %v1153 = vadd.f32 %v768, %v1152
  %v1154 = vpop.f32.mrf.mxu0
  %1155 = vmatprep.mubr.f32.mxu0 0.0
  %1156 = vmatmul.mubr.f32.gmra.mxu0 %v454
  %v1157 = vpop.f32.mrf.mxu0
  %v1158 = vadd.f32 %v773, %v1157
  %v1159 = vpop.f32.mrf.mxu0
  %1160 = vmatprep.mubr.f32.mxu0 0.0
  %1161 = vmatmul.mubr.f32.gmra.mxu0 %v455
  %v1162 = vpop.f32.mrf.mxu0
  %v1163 = vadd.f32 %v778, %v1162
  %v1164 = vpop.f32.mrf.mxu0
  %1165 = vmatprep.mubr.f32.mxu0 0.0
  %1166 = vmatmul.mubr.f32.gmra.mxu0 %v456
  %v1167 = vpop.f32.mrf.mxu0
  %v1168 = vadd.f32 %v783, %v1167
  %v1169 = vpop.f32.mrf.mxu0
  %1170 = vmatprep.mubr.f32.mxu0 0.0
  %1171 = vmatmul.mubr.f32.gmra.mxu0 %v457
  %v1172 = vpop.f32.mrf.mxu0
  %v1173 = vadd.f32 %v788, %v1172
  %v1174 = vpop.f32.mrf.mxu0
  %1175 = vmatprep.mubr.f32.mxu0 0.0
  %1176 = vmatmul.mubr.f32.gmra.mxu0 %v458
  %v1177 = vpop.f32.mrf.mxu0
  %v1178 = vadd.f32 %v793, %v1177
  %v1179 = vpop.f32.mrf.mxu0
  %1180 = vmatprep.mubr.f32.mxu0 0.0
  %1181 = vmatmul.mubr.f32.gmra.mxu0 %v459
  %v1182 = vpop.f32.mrf.mxu0
  %v1183 = vadd.f32 %v798, %v1182
  %v1184 = vpop.f32.mrf.mxu0
  %1185 = vmatprep.mubr.f32.mxu0 0.0
  %1186 = vmatmul.mubr.f32.gmra.mxu0 %v460
  %v1187 = vpop.f32.mrf.mxu0
  %v1188 = vadd.f32 %v803, %v1187
  %v1189 = vpop.f32.mrf.mxu0
  %1190 = vmatprep.mubr.f32.mxu0 0.0
  %1191 = vmatmul.mubr.f32.gmra.mxu0 %v461
  %v1192 = vpop.f32.mrf.mxu0
  %v1193 = vadd.f32 %v808, %v1192
  %v1194 = vpop.f32.mrf.mxu0
  %1195 = vmatprep.mubr.f32.mxu0 0.0
  %1196 = vmatmul.mubr.f32.gmra.mxu0 %v462
  %v1197 = vpop.f32.mrf.mxu0
  %v1198 = vadd.f32 %v813, %v1197
  %v1199 = vpop.f32.mrf.mxu0
  %1200 = vmatprep.mubr.f32.mxu0 0.0
  %1201 = vmatmul.mubr.f32.gmra.mxu0 %v463
  %v1202 = vpop.f32.mrf.mxu0
  %v1203 = vadd.f32 %v818, %v1202
  %v1204 = vpop.f32.mrf.mxu0
  %1205 = vmatprep.mubr.f32.mxu0 0.0
  %1206 = vmatmul.mubr.f32.gmra.mxu0 %v464
  %v1207 = vpop.f32.mrf.mxu0
  %v1208 = vadd.f32 %v823, %v1207
  %v1209 = vpop.f32.mrf.mxu0
  %1210 = vmatprep.mubr.f32.mxu0 0.0
  %1211 = vmatmul.mubr.f32.gmra.mxu0 %v465
  %v1212 = vpop.f32.mrf.mxu0
  %v1213 = vadd.f32 %v828, %v1212
  %v1214 = vpop.f32.mrf.mxu0
  %1215 = vmatprep.mubr.f32.mxu0 0.0
  %1216 = vmatmul.mubr.f32.gmra.mxu0 %v466
  %v1217 = vpop.f32.mrf.mxu0
  %v1218 = vadd.f32 %v833, %v1217
  %v1219 = vpop.f32.mrf.mxu0
  %1220 = vmatprep.mubr.f32.mxu0 0.0
  %1221 = vmatmul.mubr.f32.gmra.mxu0 %v467
  %v1222 = vpop.f32.mrf.mxu0
  %v1223 = vadd.f32 %v838, %v1222
  %v1224 = vpop.f32.mrf.mxu0
  %1225 = vmatprep.mubr.f32.mxu0 0.0
  %1226 = vmatmul.mubr.f32.gmra.mxu0 %v468
  %v1227 = vpop.f32.mrf.mxu0
  %v1228 = vadd.f32 %v843, %v1227
  %v1229 = vpop.f32.mrf.mxu0
  %1230 = vmatprep.mubr.f32.mxu0 0.0
  %1231 = vmatmul.mubr.f32.gmra.mxu0 %v469
  %v1232 = vpop.f32.mrf.mxu0
  %v1233 = vadd.f32 %v848, %v1232
  %v1234 = vpop.f32.mrf.mxu0
  %1235 = vmatprep.mubr.f32.mxu0 0.0
  %1236 = vmatmul.mubr.f32.gmra.mxu0 %v470
  %v1237 = vpop.f32.mrf.mxu0
  %v1238 = vadd.f32 %v853, %v1237
  %v1239 = vpop.f32.mrf.mxu0
  %1240 = vmatprep.mubr.f32.mxu0 0.0
  %1241 = vmatmul.mubr.f32.gmra.mxu0 %v471
  %v1242 = vpop.f32.mrf.mxu0
  %v1243 = vadd.f32 %v858, %v1242
  %v1244 = vpop.f32.mrf.mxu0
  %1245 = vmatprep.mubr.f32.mxu0 0.0
  %1246 = vmatmul.mubr.f32.gmra.mxu0 %v472
  %v1247 = vpop.f32.mrf.mxu0
  %v1248 = vadd.f32 %v863, %v1247
  %v1249 = vpop.f32.mrf.mxu0
  %1250 = vmatprep.mubr.f32.mxu0 0.0
  %1251 = vmatmul.mubr.f32.gmra.mxu0 %v473
  %v1252 = vpop.f32.mrf.mxu0
  %v1253 = vadd.f32 %v868, %v1252
  %v1254 = vpop.f32.mrf.mxu0
  %1255 = vmatprep.mubr.f32.mxu0 0.0
  %1256 = vmatmul.mubr.f32.gmra.mxu0 %v474
  %v1257 = vpop.f32.mrf.mxu0
  %v1258 = vadd.f32 %v873, %v1257
  %v1259 = vpop.f32.mrf.mxu0
  %1260 = vmatprep.mubr.f32.mxu0 0.0
  %1261 = vmatmul.mubr.f32.gmra.mxu0 %v475
  %v1262 = vpop.f32.mrf.mxu0
  %v1263 = vadd.f32 %v878, %v1262
  %v1264 = vpop.f32.mrf.mxu0
  %1265 = vmatprep.mubr.f32.mxu0 0.0
  %1266 = vmatmul.mubr.f32.gmra.mxu0 %v476
  %v1267 = vpop.f32.mrf.mxu0
  %v1268 = vadd.f32 %v883, %v1267
  %v1269 = vpop.f32.mrf.mxu0
  %1270 = vmatprep.mubr.f32.mxu0 0.0
  %1271 = vmatmul.mubr.f32.gmra.mxu0 %v477
  %v1272 = vpop.f32.mrf.mxu0
  %v1273 = vadd.f32 %v888, %v1272
  %v1274 = vpop.f32.mrf.mxu0
  %1275 = vmatprep.mubr.f32.mxu0 0.0
  %1276 = vmatmul.mubr.f32.gmra.mxu0 %v478
  %v1277 = vpop.f32.mrf.mxu0
  %v1278 = vadd.f32 %v893, %v1277
  %v1279 = vpop.f32.mrf.mxu0
  %1280 = vmatprep.mubr.f32.mxu0 0.0
  %1281 = vmatmul.mubr.f32.gmra.mxu0 %v479
  %v1282 = vpop.f32.mrf.mxu0
  %v1283 = vadd.f32 %v898, %v1282
  %v1284 = vpop.f32.mrf.mxu0
  %1285 = vmatprep.mubr.f32.mxu0 0.0
  %1286 = vmatmul.mubr.f32.gmra.mxu0 %v480
  %v1287 = vpop.f32.mrf.mxu0
  %v1288 = vadd.f32 %v903, %v1287
  %v1289 = vpop.f32.mrf.mxu0
  %1290 = vmatprep.mubr.f32.mxu0 0.0
  %1291 = vmatmul.mubr.f32.gmra.mxu0 %v481
  %v1292 = vpop.f32.mrf.mxu0
  %v1293 = vadd.f32 %v908, %v1292
  %v1294 = vpop.f32.mrf.mxu0
  %1295 = vmatprep.mubr.f32.mxu0 0.0
  %1296 = vmatmul.mubr.f32.gmra.mxu0 %v482
  %v1297 = vpop.f32.mrf.mxu0
  %v1298 = vadd.f32 %v913, %v1297
  %v1299 = vpop.f32.mrf.mxu0
  %1300 = vmatprep.mubr.f32.mxu0 0.0
  %1301 = vmatmul.mubr.f32.gmra.mxu0 %v483
  %v1302 = vpop.f32.mrf.mxu0
  %v1303 = vadd.f32 %v918, %v1302
  %v1304 = vpop.f32.mrf.mxu0
  %1305 = vmatprep.mubr.f32.mxu0 0.0
  %1306 = vmatmul.mubr.f32.gmra.mxu0 %v484
  %v1307 = vpop.f32.mrf.mxu0
  %v1308 = vadd.f32 %v923, %v1307
  %v1309 = vpop.f32.mrf.mxu0
  %1310 = vmatprep.mubr.f32.mxu0 0.0
  %1311 = vmatmul.mubr.f32.gmra.mxu0 %v485
  %v1312 = vpop.f32.mrf.mxu0
  %v1313 = vadd.f32 %v928, %v1312
  %v1314 = vpop.f32.mrf.mxu0
  %1315 = vmatprep.mubr.f32.mxu0 0.0
  %1316 = vmatmul.mubr.f32.gmra.mxu0 %v486
  %v1317 = vpop.f32.mrf.mxu0
  %v1318 = vadd.f32 %v933, %v1317
  %v1319 = vpop.f32.mrf.mxu0
  %1320 = vmatprep.mubr.f32.mxu0 0.0
  %1321 = vmatmul.mubr.f32.gmra.mxu0 %v487
  %v1322 = vpop.f32.mrf.mxu0
  %v1323 = vadd.f32 %v938, %v1322
  %v1324 = vpop.f32.mrf.mxu0
  %1325 = vmatprep.mubr.f32.mxu0 0.0
  %1326 = vmatmul.mubr.f32.gmra.mxu0 %v488
  %v1327 = vpop.f32.mrf.mxu0
  %v1328 = vadd.f32 %v943, %v1327
  %v1329 = vpop.f32.mrf.mxu0
  %1330 = vmatprep.mubr.f32.mxu0 0.0
  %1331 = vmatmul.mubr.f32.gmra.mxu0 %v489
  %v1332 = vpop.f32.mrf.mxu0
  %v1333 = vadd.f32 %v948, %v1332
  %v1334 = vpop.f32.mrf.mxu0
  %1335 = vmatprep.mubr.f32.mxu0 0.0
  %1336 = vmatmul.mubr.f32.gmra.mxu0 %v490
  %v1337 = vpop.f32.mrf.mxu0
  %v1338 = vadd.f32 %v953, %v1337
  %v1339 = vpop.f32.mrf.mxu0
  %1340 = vmatprep.mubr.f32.mxu0 0.0
  %1341 = vmatmul.mubr.f32.gmra.mxu0 %v491
  %v1342 = vpop.f32.mrf.mxu0
  %v1343 = vadd.f32 %v958, %v1342
  %v1344 = vpop.f32.mrf.mxu0
  %1345 = vmatprep.mubr.f32.mxu0 0.0
  %1346 = vmatmul.mubr.f32.gmra.mxu0 %v492
  %v1347 = vpop.f32.mrf.mxu0
  %v1348 = vadd.f32 %v963, %v1347
  %v1349 = vpop.f32.mrf.mxu0
  %1350 = vmatprep.mubr.f32.mxu0 0.0
  %1351 = vmatmul.mubr.f32.gmra.mxu0 %v493
  %v1352 = vpop.f32.mrf.mxu0
  %v1353 = vadd.f32 %v968, %v1352
  %v1354 = vpop.f32.mrf.mxu0
  %1355 = vmatprep.mubr.f32.mxu0 0.0
  %1356 = vmatmul.mubr.f32.gmra.mxu0 %v494
  %v1357 = vpop.f32.mrf.mxu0
  %v1358 = vadd.f32 %v973, %v1357
  %v1359 = vpop.f32.mrf.mxu0
  %1360 = vdwg.mxu0
  %v1361 = vld [vmem:[#allocation2 + $0x2] sm:$0xff]
  %v1362 = vld [vmem:[#allocation2 + $0xa] sm:$0xff]
  %v1363 = vld [vmem:[#allocation2 + $0x1a] sm:$0xff]
  %v1364 = vld [vmem:[#allocation2 + $0x22] sm:$0xff]
  %v1365 = vld [vmem:[#allocation2 + $0x32] sm:$0xff]
  %v1366 = vld [vmem:[#allocation2 + $0x3a] sm:$0xff]
  %v1367 = vld [vmem:[#allocation2 + $0x4a] sm:$0xff]
  %v1368 = vld [vmem:[#allocation2 + $0x52] sm:$0xff]
  %v1369 = vld [vmem:[#allocation2 + $0x62] sm:$0xff]
  %v1370 = vld [vmem:[#allocation2 + $0x6a] sm:$0xff]
  %v1371 = vld [vmem:[#allocation2 + $0x7a] sm:$0xff]
  %v1372 = vld [vmem:[#allocation2 + $0x82] sm:$0xff]
  %v1373 = vld [vmem:[#allocation2 + $0x92] sm:$0xff]
  %v1374 = vld [vmem:[#allocation2 + $0x9a] sm:$0xff]
  %v1375 = vld [vmem:[#allocation2 + $0xaa] sm:$0xff]
  %v1376 = vld [vmem:[#allocation2 + $0xb2] sm:$0xff]
  %v1377 = vld [vmem:[#allocation2 + $0xc2] sm:$0xff]
  %v1378 = vld [vmem:[#allocation2 + $0xca] sm:$0xff]
  %v1379 = vld [vmem:[#allocation2 + $0xda] sm:$0xff]
  %v1380 = vld [vmem:[#allocation2 + $0xe2] sm:$0xff]
  %v1381 = vld [vmem:[#allocation2 + $0xf2] sm:$0xff]
  %v1382 = vld [vmem:[#allocation2 + $0xfa] sm:$0xff]
  %v1383 = vld [vmem:[#allocation2 + $0x10a] sm:$0xff]
  %v1384 = vld [vmem:[#allocation2 + $0x112] sm:$0xff]
  %v1385 = vld [vmem:[#allocation2 + $0x122] sm:$0xff]
  %v1386 = vld [vmem:[#allocation2 + $0x12a] sm:$0xff]
  %v1387 = vld [vmem:[#allocation2 + $0x13a] sm:$0xff]
  %v1388 = vld [vmem:[#allocation2 + $0x142] sm:$0xff]
  %v1389 = vld [vmem:[#allocation2 + $0x152] sm:$0xff]
  %v1390 = vld [vmem:[#allocation2 + $0x15a] sm:$0xff]
  %v1391 = vld [vmem:[#allocation2 + $0x16a] sm:$0xff]
  %v1392 = vld [vmem:[#allocation2 + $0x172] sm:$0xff]
  %v1393 = vld [vmem:[#allocation2 + $0x1b2] sm:$0xff]
  %v1394 = vld [vmem:[#allocation2 + $0x1ba] sm:$0xff]
  %v1395 = vld [vmem:[#allocation2 + $0x1ca] sm:$0xff]
  %v1396 = vld [vmem:[#allocation2 + $0x1d2] sm:$0xff]
  %v1397 = vld [vmem:[#allocation2 + $0x1e2] sm:$0xff]
  %v1398 = vld [vmem:[#allocation2 + $0x1ea] sm:$0xff]
  %v1399 = vld [vmem:[#allocation2 + $0x1fa] sm:$0xff]
  %v1400 = vld [vmem:[#allocation2 + $0x202] sm:$0xff]
  %v1401 = vld [vmem:[#allocation2 + $0x212] sm:$0xff]
  %v1402 = vld [vmem:[#allocation2 + $0x21a] sm:$0xff]
  %v1403 = vld [vmem:[#allocation2 + $0x22a] sm:$0xff]
  %v1404 = vld [vmem:[#allocation2 + $0x232] sm:$0xff]
  %v1405 = vld [vmem:[#allocation2 + $0x242] sm:$0xff]
  %v1406 = vld [vmem:[#allocation2 + $0x24a] sm:$0xff]
  %v1407 = vld [vmem:[#allocation2 + $0x25a] sm:$0xff]
  %v1408 = vld [vmem:[#allocation2 + $0x262] sm:$0xff]
  %v1409 = vld [vmem:[#allocation2 + $0x272] sm:$0xff]
  %v1410 = vld [vmem:[#allocation2 + $0x27a] sm:$0xff]
  %v1411 = vld [vmem:[#allocation2 + $0x28a] sm:$0xff]
  %v1412 = vld [vmem:[#allocation2 + $0x292] sm:$0xff]
  %v1413 = vld [vmem:[#allocation2 + $0x2a2] sm:$0xff]
  %v1414 = vld [vmem:[#allocation2 + $0x2aa] sm:$0xff]
  %v1415 = vld [vmem:[#allocation2 + $0x2ba] sm:$0xff]
  %v1416 = vld [vmem:[#allocation2 + $0x2c2] sm:$0xff]
  %v1417 = vld [vmem:[#allocation2 + $0x2d2] sm:$0xff]
  %v1418 = vld [vmem:[#allocation2 + $0x2da] sm:$0xff]
  %v1419 = vld [vmem:[#allocation2 + $0x2ea] sm:$0xff]
  %v1420 = vld [vmem:[#allocation2 + $0x2f2] sm:$0xff]
  %v1421 = vld [vmem:[#allocation2 + $0x302] sm:$0xff]
  %v1422 = vld [vmem:[#allocation2 + $0x30a] sm:$0xff]
  %v1423 = vld [vmem:[#allocation2 + $0x31a] sm:$0xff]
  %v1424 = vld [vmem:[#allocation2 + $0x322] sm:$0xff]
  %v1425 = vld [vmem:[%s3 + $0x100] sm:$0xff]
  %v1426 = vld [vmem:[%s3 + $0x108] sm:$0xff]
  %v1427 = vld [vmem:[%s3 + $0x110] sm:$0xff]
  %v1428 = vld [vmem:[%s3 + $0x118] sm:$0xff]
  %v1429 = vld [vmem:[%s3 + $0x120] sm:$0xff]
  %v1430 = vld [vmem:[%s3 + $0x128] sm:$0xff]
  %v1431 = vld [vmem:[%s3 + $0x130] sm:$0xff]
  %v1432 = vld [vmem:[%s3 + $0x138] sm:$0xff]
  %v1433 = vld [vmem:[%s3 + $0x140] sm:$0xff]
  %v1434 = vld [vmem:[%s3 + $0x148] sm:$0xff]
  %v1435 = vld [vmem:[%s3 + $0x150] sm:$0xff]
  %v1436 = vld [vmem:[%s3 + $0x158] sm:$0xff]
  %v1437 = vld [vmem:[%s3 + $0x160] sm:$0xff]
  %v1438 = vld [vmem:[%s3 + $0x168] sm:$0xff]
  %v1439 = vld [vmem:[%s3 + $0x170] sm:$0xff]
  %v1440 = vld [vmem:[%s3 + $0x178] sm:$0xff]
  %1441 = vmatprep.subr.mxu0 0.0
  %1442 = vmatpush1.msra.mxu0 %v1440
  %1443 = vmatprep.subr.mxu0 0.0
  %1444 = vmatpush1.msra.mxu0 %v1439
  %1445 = vmatprep.subr.mxu0 0.0
  %1446 = vmatpush1.msra.mxu0 %v1438
  %1447 = vmatprep.subr.mxu0 0.0
  %1448 = vmatpush1.msra.mxu0 %v1437
  %1449 = vmatprep.subr.mxu0 0.0
  %1450 = vmatpush1.msra.mxu0 %v1436
  %1451 = vmatprep.subr.mxu0 0.0
  %1452 = vmatpush1.msra.mxu0 %v1435
  %1453 = vmatprep.subr.mxu0 0.0
  %1454 = vmatpush1.msra.mxu0 %v1434
  %1455 = vmatprep.subr.mxu0 0.0
  %1456 = vmatpush1.msra.mxu0 %v1433
  %1457 = vmatprep.subr.mxu0 0.0
  %1458 = vmatpush1.msra.mxu0 %v1432
  %1459 = vmatprep.subr.mxu0 0.0
  %1460 = vmatpush1.msra.mxu0 %v1431
  %1461 = vmatprep.subr.mxu0 0.0
  %1462 = vmatpush1.msra.mxu0 %v1430
  %1463 = vmatprep.subr.mxu0 0.0
  %1464 = vmatpush1.msra.mxu0 %v1429
  %1465 = vmatprep.subr.mxu0 0.0
  %1466 = vmatpush1.msra.mxu0 %v1428
  %1467 = vmatprep.subr.mxu0 0.0
  %1468 = vmatpush1.msra.mxu0 %v1427
  %1469 = vmatprep.subr.mxu0 0.0
  %1470 = vmatpush1.msra.mxu0 %v1426
  %1471 = vmatprep.subr.mxu0 0.0
  %1472 = vmatpush1.msra.mxu0 %v1425
  %1473 = vmatprep.subr.mxu0 0.0
  %1474 = vmatpush2.msra.mxu0 0.0
  %1475 = vmatprep.subr.mxu0 0.0
  %1476 = vmatpush2.msra.mxu0 0.0
  %1477 = vmatprep.subr.mxu0 0.0
  %1478 = vmatpush2.msra.mxu0 0.0
  %1479 = vmatprep.subr.mxu0 0.0
  %1480 = vmatpush2.msra.mxu0 0.0
  %1481 = vmatprep.subr.mxu0 0.0
  %1482 = vmatpush2.msra.mxu0 0.0
  %1483 = vmatprep.subr.mxu0 0.0
  %1484 = vmatpush2.msra.mxu0 0.0
  %1485 = vmatprep.subr.mxu0 0.0
  %1486 = vmatpush2.msra.mxu0 0.0
  %1487 = vmatprep.subr.mxu0 0.0
  %1488 = vmatpush2.msra.mxu0 0.0
  %1489 = vmatprep.subr.mxu0 0.0
  %1490 = vmatpush2.msra.mxu0 0.0
  %1491 = vmatprep.subr.mxu0 0.0
  %1492 = vmatpush2.msra.mxu0 0.0
  %1493 = vmatprep.subr.mxu0 0.0
  %1494 = vmatpush2.msra.mxu0 0.0
  %1495 = vmatprep.subr.mxu0 0.0
  %1496 = vmatpush2.msra.mxu0 0.0
  %1497 = vmatprep.subr.mxu0 0.0
  %1498 = vmatpush2.msra.mxu0 0.0
  %1499 = vmatprep.subr.mxu0 0.0
  %1500 = vmatpush2.msra.mxu0 0.0
  %1501 = vmatprep.subr.mxu0 0.0
  %1502 = vmatpush2.msra.mxu0 0.0
  %1503 = vmatprep.subr.mxu0 0.0
  %1504 = vmatpush2.msra.mxu0 0.0
  %1505 = vmatprep.mubr.f32.mxu0 0.0
  %1506 = vmatmul.mubr.f32.gmra.mxu0 %v1361
  %v1507 = vpop.f32.mrf.mxu0
  %v1508 = vadd.f32 0.0, %v1507
  %v1509 = vpop.f32.mrf.mxu0
  %1510 = vmatprep.mubr.f32.mxu0 0.0
  %1511 = vmatmul.mubr.f32.gmra.mxu0 %v1362
  %v1512 = vpop.f32.mrf.mxu0
  %v1513 = vadd.f32 0.0, %v1512
  %v1514 = vpop.f32.mrf.mxu0
  %1515 = vmatprep.mubr.f32.mxu0 0.0
  %1516 = vmatmul.mubr.f32.gmra.mxu0 %v1363
  %v1517 = vpop.f32.mrf.mxu0
  %v1518 = vadd.f32 0.0, %v1517
  %v1519 = vpop.f32.mrf.mxu0
  %1520 = vmatprep.mubr.f32.mxu0 0.0
  %1521 = vmatmul.mubr.f32.gmra.mxu0 %v1364
  %v1522 = vpop.f32.mrf.mxu0
  %v1523 = vadd.f32 0.0, %v1522
  %v1524 = vpop.f32.mrf.mxu0
  %1525 = vmatprep.mubr.f32.mxu0 0.0
  %1526 = vmatmul.mubr.f32.gmra.mxu0 %v1365
  %v1527 = vpop.f32.mrf.mxu0
  %v1528 = vadd.f32 0.0, %v1527
  %v1529 = vpop.f32.mrf.mxu0
  %1530 = vmatprep.mubr.f32.mxu0 0.0
  %1531 = vmatmul.mubr.f32.gmra.mxu0 %v1366
  %v1532 = vpop.f32.mrf.mxu0
  %v1533 = vadd.f32 0.0, %v1532
  %v1534 = vpop.f32.mrf.mxu0
  %1535 = vmatprep.mubr.f32.mxu0 0.0
  %1536 = vmatmul.mubr.f32.gmra.mxu0 %v1367
  %v1537 = vpop.f32.mrf.mxu0
  %v1538 = vadd.f32 0.0, %v1537
  %v1539 = vpop.f32.mrf.mxu0
  %1540 = vmatprep.mubr.f32.mxu0 0.0
  %1541 = vmatmul.mubr.f32.gmra.mxu0 %v1368
  %v1542 = vpop.f32.mrf.mxu0
  %v1543 = vadd.f32 0.0, %v1542
  %v1544 = vpop.f32.mrf.mxu0
  %1545 = vmatprep.mubr.f32.mxu0 0.0
  %1546 = vmatmul.mubr.f32.gmra.mxu0 %v1369
  %v1547 = vpop.f32.mrf.mxu0
  %v1548 = vadd.f32 0.0, %v1547
  %v1549 = vpop.f32.mrf.mxu0
  %1550 = vmatprep.mubr.f32.mxu0 0.0
  %1551 = vmatmul.mubr.f32.gmra.mxu0 %v1370
  %v1552 = vpop.f32.mrf.mxu0
  %v1553 = vadd.f32 0.0, %v1552
  %v1554 = vpop.f32.mrf.mxu0
  %1555 = vmatprep.mubr.f32.mxu0 0.0
  %1556 = vmatmul.mubr.f32.gmra.mxu0 %v1371
  %v1557 = vpop.f32.mrf.mxu0
  %v1558 = vadd.f32 0.0, %v1557
  %v1559 = vpop.f32.mrf.mxu0
  %1560 = vmatprep.mubr.f32.mxu0 0.0
  %1561 = vmatmul.mubr.f32.gmra.mxu0 %v1372
  %v1562 = vpop.f32.mrf.mxu0
  %v1563 = vadd.f32 0.0, %v1562
  %v1564 = vpop.f32.mrf.mxu0
  %1565 = vmatprep.mubr.f32.mxu0 0.0
  %1566 = vmatmul.mubr.f32.gmra.mxu0 %v1373
  %v1567 = vpop.f32.mrf.mxu0
  %v1568 = vadd.f32 0.0, %v1567
  %v1569 = vpop.f32.mrf.mxu0
  %1570 = vmatprep.mubr.f32.mxu0 0.0
  %1571 = vmatmul.mubr.f32.gmra.mxu0 %v1374
  %v1572 = vpop.f32.mrf.mxu0
  %v1573 = vadd.f32 0.0, %v1572
  %v1574 = vpop.f32.mrf.mxu0
  %1575 = vmatprep.mubr.f32.mxu0 0.0
  %1576 = vmatmul.mubr.f32.gmra.mxu0 %v1375
  %v1577 = vpop.f32.mrf.mxu0
  %v1578 = vadd.f32 0.0, %v1577
  %v1579 = vpop.f32.mrf.mxu0
  %1580 = vmatprep.mubr.f32.mxu0 0.0
  %1581 = vmatmul.mubr.f32.gmra.mxu0 %v1376
  %v1582 = vpop.f32.mrf.mxu0
  %v1583 = vadd.f32 0.0, %v1582
  %v1584 = vpop.f32.mrf.mxu0
  %1585 = vmatprep.mubr.f32.mxu0 0.0
  %1586 = vmatmul.mubr.f32.gmra.mxu0 %v1377
  %v1587 = vpop.f32.mrf.mxu0
  %v1588 = vadd.f32 0.0, %v1587
  %v1589 = vpop.f32.mrf.mxu0
  %1590 = vmatprep.mubr.f32.mxu0 0.0
  %1591 = vmatmul.mubr.f32.gmra.mxu0 %v1378
  %v1592 = vpop.f32.mrf.mxu0
  %v1593 = vadd.f32 0.0, %v1592
  %v1594 = vpop.f32.mrf.mxu0
  %1595 = vmatprep.mubr.f32.mxu0 0.0
  %1596 = vmatmul.mubr.f32.gmra.mxu0 %v1379
  %v1597 = vpop.f32.mrf.mxu0
  %v1598 = vadd.f32 0.0, %v1597
  %v1599 = vpop.f32.mrf.mxu0
  %1600 = vmatprep.mubr.f32.mxu0 0.0
  %1601 = vmatmul.mubr.f32.gmra.mxu0 %v1380
  %v1602 = vpop.f32.mrf.mxu0
  %v1603 = vadd.f32 0.0, %v1602
  %v1604 = vpop.f32.mrf.mxu0
  %1605 = vmatprep.mubr.f32.mxu0 0.0
  %1606 = vmatmul.mubr.f32.gmra.mxu0 %v1381
  %v1607 = vpop.f32.mrf.mxu0
  %v1608 = vadd.f32 0.0, %v1607
  %v1609 = vpop.f32.mrf.mxu0
  %1610 = vmatprep.mubr.f32.mxu0 0.0
  %1611 = vmatmul.mubr.f32.gmra.mxu0 %v1382
  %v1612 = vpop.f32.mrf.mxu0
  %v1613 = vadd.f32 0.0, %v1612
  %v1614 = vpop.f32.mrf.mxu0
  %1615 = vmatprep.mubr.f32.mxu0 0.0
  %1616 = vmatmul.mubr.f32.gmra.mxu0 %v1383
  %v1617 = vpop.f32.mrf.mxu0
  %v1618 = vadd.f32 0.0, %v1617
  %v1619 = vpop.f32.mrf.mxu0
  %1620 = vmatprep.mubr.f32.mxu0 0.0
  %1621 = vmatmul.mubr.f32.gmra.mxu0 %v1384
  %v1622 = vpop.f32.mrf.mxu0
  %v1623 = vadd.f32 0.0, %v1622
  %v1624 = vpop.f32.mrf.mxu0
  %1625 = vmatprep.mubr.f32.mxu0 0.0
  %1626 = vmatmul.mubr.f32.gmra.mxu0 %v1385
  %v1627 = vpop.f32.mrf.mxu0
  %v1628 = vadd.f32 0.0, %v1627
  %v1629 = vpop.f32.mrf.mxu0
  %1630 = vmatprep.mubr.f32.mxu0 0.0
  %1631 = vmatmul.mubr.f32.gmra.mxu0 %v1386
  %v1632 = vpop.f32.mrf.mxu0
  %v1633 = vadd.f32 0.0, %v1632
  %v1634 = vpop.f32.mrf.mxu0
  %1635 = vmatprep.mubr.f32.mxu0 0.0
  %1636 = vmatmul.mubr.f32.gmra.mxu0 %v1387
  %v1637 = vpop.f32.mrf.mxu0
  %v1638 = vadd.f32 0.0, %v1637
  %v1639 = vpop.f32.mrf.mxu0
  %1640 = vmatprep.mubr.f32.mxu0 0.0
  %1641 = vmatmul.mubr.f32.gmra.mxu0 %v1388
  %v1642 = vpop.f32.mrf.mxu0
  %v1643 = vadd.f32 0.0, %v1642
  %v1644 = vpop.f32.mrf.mxu0
  %1645 = vmatprep.mubr.f32.mxu0 0.0
  %1646 = vmatmul.mubr.f32.gmra.mxu0 %v1389
  %v1647 = vpop.f32.mrf.mxu0
  %v1648 = vadd.f32 0.0, %v1647
  %v1649 = vpop.f32.mrf.mxu0
  %1650 = vmatprep.mubr.f32.mxu0 0.0
  %1651 = vmatmul.mubr.f32.gmra.mxu0 %v1390
  %v1652 = vpop.f32.mrf.mxu0
  %v1653 = vadd.f32 0.0, %v1652
  %v1654 = vpop.f32.mrf.mxu0
  %1655 = vmatprep.mubr.f32.mxu0 0.0
  %1656 = vmatmul.mubr.f32.gmra.mxu0 %v1391
  %v1657 = vpop.f32.mrf.mxu0
  %v1658 = vadd.f32 0.0, %v1657
  %v1659 = vpop.f32.mrf.mxu0
  %1660 = vmatprep.mubr.f32.mxu0 0.0
  %1661 = vmatmul.mubr.f32.gmra.mxu0 %v1392
  %v1662 = vpop.f32.mrf.mxu0
  %v1663 = vadd.f32 0.0, %v1662
  %v1664 = vpop.f32.mrf.mxu0
  %1665 = vmatprep.mubr.f32.mxu0 0.0
  %1666 = vmatmul.mubr.f32.gmra.mxu0 %v1393
  %v1667 = vpop.f32.mrf.mxu0
  %v1668 = vadd.f32 0.0, %v1667
  %v1669 = vpop.f32.mrf.mxu0
  %1670 = vmatprep.mubr.f32.mxu0 0.0
  %1671 = vmatmul.mubr.f32.gmra.mxu0 %v1394
  %v1672 = vpop.f32.mrf.mxu0
  %v1673 = vadd.f32 0.0, %v1672
  %v1674 = vpop.f32.mrf.mxu0
  %1675 = vmatprep.mubr.f32.mxu0 0.0
  %1676 = vmatmul.mubr.f32.gmra.mxu0 %v1395
  %v1677 = vpop.f32.mrf.mxu0
  %v1678 = vadd.f32 0.0, %v1677
  %v1679 = vpop.f32.mrf.mxu0
  %1680 = vmatprep.mubr.f32.mxu0 0.0
  %1681 = vmatmul.mubr.f32.gmra.mxu0 %v1396
  %v1682 = vpop.f32.mrf.mxu0
  %v1683 = vadd.f32 0.0, %v1682
  %v1684 = vpop.f32.mrf.mxu0
  %1685 = vmatprep.mubr.f32.mxu0 0.0
  %1686 = vmatmul.mubr.f32.gmra.mxu0 %v1397
  %v1687 = vpop.f32.mrf.mxu0
  %v1688 = vadd.f32 0.0, %v1687
  %v1689 = vpop.f32.mrf.mxu0
  %1690 = vmatprep.mubr.f32.mxu0 0.0
  %1691 = vmatmul.mubr.f32.gmra.mxu0 %v1398
  %v1692 = vpop.f32.mrf.mxu0
  %v1693 = vadd.f32 0.0, %v1692
  %v1694 = vpop.f32.mrf.mxu0
  %1695 = vmatprep.mubr.f32.mxu0 0.0
  %1696 = vmatmul.mubr.f32.gmra.mxu0 %v1399
  %v1697 = vpop.f32.mrf.mxu0
  %v1698 = vadd.f32 0.0, %v1697
  %v1699 = vpop.f32.mrf.mxu0
  %1700 = vmatprep.mubr.f32.mxu0 0.0
  %1701 = vmatmul.mubr.f32.gmra.mxu0 %v1400
  %v1702 = vpop.f32.mrf.mxu0
  %v1703 = vadd.f32 0.0, %v1702
  %v1704 = vpop.f32.mrf.mxu0
  %1705 = vmatprep.mubr.f32.mxu0 0.0
  %1706 = vmatmul.mubr.f32.gmra.mxu0 %v1401
  %v1707 = vpop.f32.mrf.mxu0
  %v1708 = vadd.f32 0.0, %v1707
  %v1709 = vpop.f32.mrf.mxu0
  %1710 = vmatprep.mubr.f32.mxu0 0.0
  %1711 = vmatmul.mubr.f32.gmra.mxu0 %v1402
  %v1712 = vpop.f32.mrf.mxu0
  %v1713 = vadd.f32 0.0, %v1712
  %v1714 = vpop.f32.mrf.mxu0
  %1715 = vmatprep.mubr.f32.mxu0 0.0
  %1716 = vmatmul.mubr.f32.gmra.mxu0 %v1403
  %v1717 = vpop.f32.mrf.mxu0
  %v1718 = vadd.f32 0.0, %v1717
  %v1719 = vpop.f32.mrf.mxu0
  %1720 = vmatprep.mubr.f32.mxu0 0.0
  %1721 = vmatmul.mubr.f32.gmra.mxu0 %v1404
  %v1722 = vpop.f32.mrf.mxu0
  %v1723 = vadd.f32 0.0, %v1722
  %v1724 = vpop.f32.mrf.mxu0
  %1725 = vmatprep.mubr.f32.mxu0 0.0
  %1726 = vmatmul.mubr.f32.gmra.mxu0 %v1405
  %v1727 = vpop.f32.mrf.mxu0
  %v1728 = vadd.f32 0.0, %v1727
  %v1729 = vpop.f32.mrf.mxu0
  %1730 = vmatprep.mubr.f32.mxu0 0.0
  %1731 = vmatmul.mubr.f32.gmra.mxu0 %v1406
  %v1732 = vpop.f32.mrf.mxu0
  %v1733 = vadd.f32 0.0, %v1732
  %v1734 = vpop.f32.mrf.mxu0
  %1735 = vmatprep.mubr.f32.mxu0 0.0
  %1736 = vmatmul.mubr.f32.gmra.mxu0 %v1407
  %v1737 = vpop.f32.mrf.mxu0
  %v1738 = vadd.f32 0.0, %v1737
  %v1739 = vpop.f32.mrf.mxu0
  %1740 = vmatprep.mubr.f32.mxu0 0.0
  %1741 = vmatmul.mubr.f32.gmra.mxu0 %v1408
  %v1742 = vpop.f32.mrf.mxu0
  %v1743 = vadd.f32 0.0, %v1742
  %v1744 = vpop.f32.mrf.mxu0
  %1745 = vmatprep.mubr.f32.mxu0 0.0
  %1746 = vmatmul.mubr.f32.gmra.mxu0 %v1409
  %v1747 = vpop.f32.mrf.mxu0
  %v1748 = vadd.f32 0.0, %v1747
  %v1749 = vpop.f32.mrf.mxu0
  %1750 = vmatprep.mubr.f32.mxu0 0.0
  %1751 = vmatmul.mubr.f32.gmra.mxu0 %v1410
  %v1752 = vpop.f32.mrf.mxu0
  %v1753 = vadd.f32 0.0, %v1752
  %v1754 = vpop.f32.mrf.mxu0
  %1755 = vmatprep.mubr.f32.mxu0 0.0
  %1756 = vmatmul.mubr.f32.gmra.mxu0 %v1411
  %v1757 = vpop.f32.mrf.mxu0
  %v1758 = vadd.f32 0.0, %v1757
  %v1759 = vpop.f32.mrf.mxu0
  %1760 = vmatprep.mubr.f32.mxu0 0.0
  %1761 = vmatmul.mubr.f32.gmra.mxu0 %v1412
  %v1762 = vpop.f32.mrf.mxu0
  %v1763 = vadd.f32 0.0, %v1762
  %v1764 = vpop.f32.mrf.mxu0
  %1765 = vmatprep.mubr.f32.mxu0 0.0
  %1766 = vmatmul.mubr.f32.gmra.mxu0 %v1413
  %v1767 = vpop.f32.mrf.mxu0
  %v1768 = vadd.f32 0.0, %v1767
  %v1769 = vpop.f32.mrf.mxu0
  %1770 = vmatprep.mubr.f32.mxu0 0.0
  %1771 = vmatmul.mubr.f32.gmra.mxu0 %v1414
  %v1772 = vpop.f32.mrf.mxu0
  %v1773 = vadd.f32 0.0, %v1772
  %v1774 = vpop.f32.mrf.mxu0
  %1775 = vmatprep.mubr.f32.mxu0 0.0
  %1776 = vmatmul.mubr.f32.gmra.mxu0 %v1415
  %v1777 = vpop.f32.mrf.mxu0
  %v1778 = vadd.f32 0.0, %v1777
  %v1779 = vpop.f32.mrf.mxu0
  %1780 = vmatprep.mubr.f32.mxu0 0.0
  %1781 = vmatmul.mubr.f32.gmra.mxu0 %v1416
  %v1782 = vpop.f32.mrf.mxu0
  %v1783 = vadd.f32 0.0, %v1782
  %v1784 = vpop.f32.mrf.mxu0
  %1785 = vmatprep.mubr.f32.mxu0 0.0
  %1786 = vmatmul.mubr.f32.gmra.mxu0 %v1417
  %v1787 = vpop.f32.mrf.mxu0
  %v1788 = vadd.f32 0.0, %v1787
  %v1789 = vpop.f32.mrf.mxu0
  %1790 = vmatprep.mubr.f32.mxu0 0.0
  %1791 = vmatmul.mubr.f32.gmra.mxu0 %v1418
  %v1792 = vpop.f32.mrf.mxu0
  %v1793 = vadd.f32 0.0, %v1792
  %v1794 = vpop.f32.mrf.mxu0
  %1795 = vmatprep.mubr.f32.mxu0 0.0
  %1796 = vmatmul.mubr.f32.gmra.mxu0 %v1419
  %v1797 = vpop.f32.mrf.mxu0
  %v1798 = vadd.f32 0.0, %v1797
  %v1799 = vpop.f32.mrf.mxu0
  %1800 = vmatprep.mubr.f32.mxu0 0.0
  %1801 = vmatmul.mubr.f32.gmra.mxu0 %v1420
  %v1802 = vpop.f32.mrf.mxu0
  %v1803 = vadd.f32 0.0, %v1802
  %v1804 = vpop.f32.mrf.mxu0
  %1805 = vmatprep.mubr.f32.mxu0 0.0
  %1806 = vmatmul.mubr.f32.gmra.mxu0 %v1421
  %v1807 = vpop.f32.mrf.mxu0
  %v1808 = vadd.f32 0.0, %v1807
  %v1809 = vpop.f32.mrf.mxu0
  %1810 = vmatprep.mubr.f32.mxu0 0.0
  %1811 = vmatmul.mubr.f32.gmra.mxu0 %v1422
  %v1812 = vpop.f32.mrf.mxu0
  %v1813 = vadd.f32 0.0, %v1812
  %v1814 = vpop.f32.mrf.mxu0
  %1815 = vmatprep.mubr.f32.mxu0 0.0
  %1816 = vmatmul.mubr.f32.gmra.mxu0 %v1423
  %v1817 = vpop.f32.mrf.mxu0
  %v1818 = vadd.f32 0.0, %v1817
  %v1819 = vpop.f32.mrf.mxu0
  %1820 = vmatprep.mubr.f32.mxu0 0.0
  %1821 = vmatmul.mubr.f32.gmra.mxu0 %v1424
  %v1822 = vpop.f32.mrf.mxu0
  %v1823 = vadd.f32 0.0, %v1822
  %v1824 = vpop.f32.mrf.mxu0
  %1825 = vdwg.mxu0
  %v1826 = vadd.f32 %v1043, %v1508
  %v1827 = vadd.f32 %v1048, %v1513
  %v1828 = vadd.f32 %v1053, %v1518
  %v1829 = vadd.f32 %v1058, %v1523
  %v1830 = vadd.f32 %v1063, %v1528
  %v1831 = vadd.f32 %v1068, %v1533
  %v1832 = vadd.f32 %v1073, %v1538
  %v1833 = vadd.f32 %v1078, %v1543
  %v1834 = vadd.f32 %v1083, %v1548
  %v1835 = vadd.f32 %v1088, %v1553
  %v1836 = vadd.f32 %v1093, %v1558
  %v1837 = vadd.f32 %v1098, %v1563
  %v1838 = vadd.f32 %v1103, %v1568
  %v1839 = vadd.f32 %v1108, %v1573
  %v1840 = vadd.f32 %v1113, %v1578
  %v1841 = vadd.f32 %v1118, %v1583
  %v1842 = vadd.f32 %v1123, %v1588
  %v1843 = vadd.f32 %v1128, %v1593
  %v1844 = vadd.f32 %v1133, %v1598
  %v1845 = vadd.f32 %v1138, %v1603
  %v1846 = vadd.f32 %v1143, %v1608
  %v1847 = vadd.f32 %v1148, %v1613
  %v1848 = vadd.f32 %v1153, %v1618
  %v1849 = vadd.f32 %v1158, %v1623
  %v1850 = vadd.f32 %v1163, %v1628
  %v1851 = vadd.f32 %v1168, %v1633
  %v1852 = vadd.f32 %v1173, %v1638
  %v1853 = vadd.f32 %v1178, %v1643
  %v1854 = vadd.f32 %v1183, %v1648
  %v1855 = vadd.f32 %v1188, %v1653
  %v1856 = vadd.f32 %v1193, %v1658
  %v1857 = vadd.f32 %v1198, %v1663
  %v1858 = vadd.f32 %v1203, %v1668
  %v1859 = vadd.f32 %v1208, %v1673
  %v1860 = vadd.f32 %v1213, %v1678
  %v1861 = vadd.f32 %v1218, %v1683
  %v1862 = vadd.f32 %v1223, %v1688
  %v1863 = vadd.f32 %v1228, %v1693
  %v1864 = vadd.f32 %v1233, %v1698
  %v1865 = vadd.f32 %v1238, %v1703
  %v1866 = vadd.f32 %v1243, %v1708
  %v1867 = vadd.f32 %v1248, %v1713
  %v1868 = vadd.f32 %v1253, %v1718
  %v1869 = vadd.f32 %v1258, %v1723
  %v1870 = vadd.f32 %v1263, %v1728
  %v1871 = vadd.f32 %v1268, %v1733
  %v1872 = vadd.f32 %v1273, %v1738
  %v1873 = vadd.f32 %v1278, %v1743
  %v1874 = vadd.f32 %v1283, %v1748
  %v1875 = vadd.f32 %v1288, %v1753
  %v1876 = vadd.f32 %v1293, %v1758
  %v1877 = vadd.f32 %v1298, %v1763
  %v1878 = vadd.f32 %v1303, %v1768
  %v1879 = vadd.f32 %v1308, %v1773
  %v1880 = vadd.f32 %v1313, %v1778
  %v1881 = vadd.f32 %v1318, %v1783
  %v1882 = vadd.f32 %v1323, %v1788
  %v1883 = vadd.f32 %v1328, %v1793
  %v1884 = vadd.f32 %v1333, %v1798
  %v1885 = vadd.f32 %v1338, %v1803
  %v1886 = vadd.f32 %v1343, %v1808
  %v1887 = vadd.f32 %v1348, %v1813
  %v1888 = vadd.f32 %v1353, %v1818
  %v1889 = vadd.f32 %v1358, %v1823
  %v1890 = vld [vmem:[%s289] sm:$0xff]
  %v1891 = vld [vmem:[%s289 + $0x8] sm:$0xff]
  %v1892 = vld [vmem:[%s289 + $0x18] sm:$0xff]
  %v1893 = vld [vmem:[%s289 + $0x20] sm:$0xff]
  %v1894 = vld [vmem:[%s289 + $0x30] sm:$0xff]
  %v1895 = vld [vmem:[%s289 + $0x38] sm:$0xff]
  %v1896 = vld [vmem:[%s289 + $0x48] sm:$0xff]
  %v1897 = vld [vmem:[%s289 + $0x50] sm:$0xff]
  %v1898 = vld [vmem:[%s289 + $0x60] sm:$0xff]
  %v1899 = vld [vmem:[%s289 + $0x68] sm:$0xff]
  %v1900 = vld [vmem:[%s289 + $0x78] sm:$0xff]
  %v1901 = vld [vmem:[%s289 + $0x80] sm:$0xff]
  %v1902 = vld [vmem:[%s289 + $0x90] sm:$0xff]
  %v1903 = vld [vmem:[%s289 + $0x98] sm:$0xff]
  %v1904 = vld [vmem:[%s289 + $0xa8] sm:$0xff]
  %v1905 = vld [vmem:[%s289 + $0xb0] sm:$0xff]
  %v1906 = vld [vmem:[%s289 + $0xc0] sm:$0xff]
  %v1907 = vld [vmem:[%s289 + $0xc8] sm:$0xff]
  %v1908 = vld [vmem:[%s289 + $0xd8] sm:$0xff]
  %v1909 = vld [vmem:[%s289 + $0xe0] sm:$0xff]
  %v1910 = vld [vmem:[%s289 + $0xf0] sm:$0xff]
  %v1911 = vld [vmem:[%s289 + $0xf8] sm:$0xff]
  %v1912 = vld [vmem:[%s289 + $0x108] sm:$0xff]
  %v1913 = vld [vmem:[%s289 + $0x110] sm:$0xff]
  %v1914 = vld [vmem:[%s289 + $0x120] sm:$0xff]
  %v1915 = vld [vmem:[%s289 + $0x128] sm:$0xff]
  %v1916 = vld [vmem:[%s289 + $0x138] sm:$0xff]
  %v1917 = vld [vmem:[%s289 + $0x140] sm:$0xff]
  %v1918 = vld [vmem:[%s289 + $0x150] sm:$0xff]
  %v1919 = vld [vmem:[%s289 + $0x158] sm:$0xff]
  %v1920 = vld [vmem:[%s289 + $0x168] sm:$0xff]
  %v1921 = vld [vmem:[%s289 + $0x170] sm:$0xff]
  %v1922 = vld [vmem:[%s289 + $0x1b0] sm:$0xff]
  %v1923 = vld [vmem:[%s289 + $0x1b8] sm:$0xff]
  %v1924 = vld [vmem:[%s289 + $0x1c8] sm:$0xff]
  %v1925 = vld [vmem:[%s289 + $0x1d0] sm:$0xff]
  %v1926 = vld [vmem:[%s289 + $0x1e0] sm:$0xff]
  %v1927 = vld [vmem:[%s289 + $0x1e8] sm:$0xff]
  %v1928 = vld [vmem:[%s289 + $0x1f8] sm:$0xff]
  %v1929 = vld [vmem:[%s289 + $0x200] sm:$0xff]
  %v1930 = vld [vmem:[%s289 + $0x210] sm:$0xff]
  %v1931 = vld [vmem:[%s289 + $0x218] sm:$0xff]
  %v1932 = vld [vmem:[%s289 + $0x228] sm:$0xff]
  %v1933 = vld [vmem:[%s289 + $0x230] sm:$0xff]
  %v1934 = vld [vmem:[%s289 + $0x240] sm:$0xff]
  %v1935 = vld [vmem:[%s289 + $0x248] sm:$0xff]
  %v1936 = vld [vmem:[%s289 + $0x258] sm:$0xff]
  %v1937 = vld [vmem:[%s289 + $0x260] sm:$0xff]
  %v1938 = vld [vmem:[%s289 + $0x270] sm:$0xff]
  %v1939 = vld [vmem:[%s289 + $0x278] sm:$0xff]
  %v1940 = vld [vmem:[%s289 + $0x288] sm:$0xff]
  %v1941 = vld [vmem:[%s289 + $0x290] sm:$0xff]
  %v1942 = vld [vmem:[%s289 + $0x2a0] sm:$0xff]
  %v1943 = vld [vmem:[%s289 + $0x2a8] sm:$0xff]
  %v1944 = vld [vmem:[%s289 + $0x2b8] sm:$0xff]
  %v1945 = vld [vmem:[%s289 + $0x2c0] sm:$0xff]
  %v1946 = vld [vmem:[%s289 + $0x2d0] sm:$0xff]
  %v1947 = vld [vmem:[%s289 + $0x2d8] sm:$0xff]
  %v1948 = vld [vmem:[%s289 + $0x2e8] sm:$0xff]
  %v1949 = vld [vmem:[%s289 + $0x2f0] sm:$0xff]
  %v1950 = vld [vmem:[%s289 + $0x300] sm:$0xff]
  %v1951 = vld [vmem:[%s289 + $0x308] sm:$0xff]
  %v1952 = vld [vmem:[%s289 + $0x318] sm:$0xff]
  %v1953 = vld [vmem:[%s289 + $0x320] sm:$0xff]
  %v1954 = vld [vmem:[%s3 + $0x180] sm:$0xff]
  %v1955 = vld [vmem:[%s3 + $0x188] sm:$0xff]
  %v1956 = vld [vmem:[%s3 + $0x190] sm:$0xff]
  %v1957 = vld [vmem:[%s3 + $0x198] sm:$0xff]
  %v1958 = vld [vmem:[%s3 + $0x1a0] sm:$0xff]
  %v1959 = vld [vmem:[%s3 + $0x1a8] sm:$0xff]
  %v1960 = vld [vmem:[%s3 + $0x1b0] sm:$0xff]
  %v1961 = vld [vmem:[%s3 + $0x1b8] sm:$0xff]
  %v1962 = vld [vmem:[%s3 + $0x1c0] sm:$0xff]
  %v1963 = vld [vmem:[%s3 + $0x1c8] sm:$0xff]
  %v1964 = vld [vmem:[%s3 + $0x1d0] sm:$0xff]
  %v1965 = vld [vmem:[%s3 + $0x1d8] sm:$0xff]
  %v1966 = vld [vmem:[%s3 + $0x1e0] sm:$0xff]
  %v1967 = vld [vmem:[%s3 + $0x1e8] sm:$0xff]
  %v1968 = vld [vmem:[%s3 + $0x1f0] sm:$0xff]
  %v1969 = vld [vmem:[%s3 + $0x1f8] sm:$0xff]
  %1970 = vmatprep.subr.mxu0 0.0
  %1971 = vmatpush1.msra.mxu0 %v1969
  %1972 = vmatprep.subr.mxu0 0.0
  %1973 = vmatpush1.msra.mxu0 %v1968
  %1974 = vmatprep.subr.mxu0 0.0
  %1975 = vmatpush1.msra.mxu0 %v1967
  %1976 = vmatprep.subr.mxu0 0.0
  %1977 = vmatpush1.msra.mxu0 %v1966
  %1978 = vmatprep.subr.mxu0 0.0
  %1979 = vmatpush1.msra.mxu0 %v1965
  %1980 = vmatprep.subr.mxu0 0.0
  %1981 = vmatpush1.msra.mxu0 %v1964
  %1982 = vmatprep.subr.mxu0 0.0
  %1983 = vmatpush1.msra.mxu0 %v1963
  %1984 = vmatprep.subr.mxu0 0.0
  %1985 = vmatpush1.msra.mxu0 %v1962
  %1986 = vmatprep.subr.mxu0 0.0
  %1987 = vmatpush1.msra.mxu0 %v1961
  %1988 = vmatprep.subr.mxu0 0.0
  %1989 = vmatpush1.msra.mxu0 %v1960
  %1990 = vmatprep.subr.mxu0 0.0
  %1991 = vmatpush1.msra.mxu0 %v1959
  %1992 = vmatprep.subr.mxu0 0.0
  %1993 = vmatpush1.msra.mxu0 %v1958
  %1994 = vmatprep.subr.mxu0 0.0
  %1995 = vmatpush1.msra.mxu0 %v1957
  %1996 = vmatprep.subr.mxu0 0.0
  %1997 = vmatpush1.msra.mxu0 %v1956
  %1998 = vmatprep.subr.mxu0 0.0
  %1999 = vmatpush1.msra.mxu0 %v1955
  %2000 = vmatprep.subr.mxu0 0.0
  %2001 = vmatpush1.msra.mxu0 %v1954
  %2002 = vmatprep.subr.mxu0 0.0
  %2003 = vmatpush2.msra.mxu0 0.0
  %2004 = vmatprep.subr.mxu0 0.0
  %2005 = vmatpush2.msra.mxu0 0.0
  %2006 = vmatprep.subr.mxu0 0.0
  %2007 = vmatpush2.msra.mxu0 0.0
  %2008 = vmatprep.subr.mxu0 0.0
  %2009 = vmatpush2.msra.mxu0 0.0
  %2010 = vmatprep.subr.mxu0 0.0
  %2011 = vmatpush2.msra.mxu0 0.0
  %2012 = vmatprep.subr.mxu0 0.0
  %2013 = vmatpush2.msra.mxu0 0.0
  %2014 = vmatprep.subr.mxu0 0.0
  %2015 = vmatpush2.msra.mxu0 0.0
  %2016 = vmatprep.subr.mxu0 0.0
  %2017 = vmatpush2.msra.mxu0 0.0
  %2018 = vmatprep.subr.mxu0 0.0
  %2019 = vmatpush2.msra.mxu0 0.0
  %2020 = vmatprep.subr.mxu0 0.0
  %2021 = vmatpush2.msra.mxu0 0.0
  %2022 = vmatprep.subr.mxu0 0.0
  %2023 = vmatpush2.msra.mxu0 0.0
  %2024 = vmatprep.subr.mxu0 0.0
  %2025 = vmatpush2.msra.mxu0 0.0
  %2026 = vmatprep.subr.mxu0 0.0
  %2027 = vmatpush2.msra.mxu0 0.0
  %2028 = vmatprep.subr.mxu0 0.0
  %2029 = vmatpush2.msra.mxu0 0.0
  %2030 = vmatprep.subr.mxu0 0.0
  %2031 = vmatpush2.msra.mxu0 0.0
  %2032 = vmatprep.subr.mxu0 0.0
  %2033 = vmatpush2.msra.mxu0 0.0
  %2034 = vmatprep.mubr.f32.mxu0 0.0
  %2035 = vmatmul.mubr.f32.gmra.mxu0 %v1890
  %v2036 = vpop.f32.mrf.mxu0
  %v2037 = vadd.f32 0.0, %v2036
  %v2038 = vpop.f32.mrf.mxu0
  %2039 = vmatprep.mubr.f32.mxu0 0.0
  %2040 = vmatmul.mubr.f32.gmra.mxu0 %v1891
  %v2041 = vpop.f32.mrf.mxu0
  %v2042 = vadd.f32 0.0, %v2041
  %v2043 = vpop.f32.mrf.mxu0
  %2044 = vmatprep.mubr.f32.mxu0 0.0
  %2045 = vmatmul.mubr.f32.gmra.mxu0 %v1892
  %v2046 = vpop.f32.mrf.mxu0
  %v2047 = vadd.f32 0.0, %v2046
  %v2048 = vpop.f32.mrf.mxu0
  %2049 = vmatprep.mubr.f32.mxu0 0.0
  %2050 = vmatmul.mubr.f32.gmra.mxu0 %v1893
  %v2051 = vpop.f32.mrf.mxu0
  %v2052 = vadd.f32 0.0, %v2051
  %v2053 = vpop.f32.mrf.mxu0
  %2054 = vmatprep.mubr.f32.mxu0 0.0
  %2055 = vmatmul.mubr.f32.gmra.mxu0 %v1894
  %v2056 = vpop.f32.mrf.mxu0
  %v2057 = vadd.f32 0.0, %v2056
  %v2058 = vpop.f32.mrf.mxu0
  %2059 = vmatprep.mubr.f32.mxu0 0.0
  %2060 = vmatmul.mubr.f32.gmra.mxu0 %v1895
  %v2061 = vpop.f32.mrf.mxu0
  %v2062 = vadd.f32 0.0, %v2061
  %v2063 = vpop.f32.mrf.mxu0
  %2064 = vmatprep.mubr.f32.mxu0 0.0
  %2065 = vmatmul.mubr.f32.gmra.mxu0 %v1896
  %v2066 = vpop.f32.mrf.mxu0
  %v2067 = vadd.f32 0.0, %v2066
  %v2068 = vpop.f32.mrf.mxu0
  %2069 = vmatprep.mubr.f32.mxu0 0.0
  %2070 = vmatmul.mubr.f32.gmra.mxu0 %v1897
  %v2071 = vpop.f32.mrf.mxu0
  %v2072 = vadd.f32 0.0, %v2071
  %v2073 = vpop.f32.mrf.mxu0
  %2074 = vmatprep.mubr.f32.mxu0 0.0
  %2075 = vmatmul.mubr.f32.gmra.mxu0 %v1898
  %v2076 = vpop.f32.mrf.mxu0
  %v2077 = vadd.f32 0.0, %v2076
  %v2078 = vpop.f32.mrf.mxu0
  %2079 = vmatprep.mubr.f32.mxu0 0.0
  %2080 = vmatmul.mubr.f32.gmra.mxu0 %v1899
  %v2081 = vpop.f32.mrf.mxu0
  %v2082 = vadd.f32 0.0, %v2081
  %v2083 = vpop.f32.mrf.mxu0
  %2084 = vmatprep.mubr.f32.mxu0 0.0
  %2085 = vmatmul.mubr.f32.gmra.mxu0 %v1900
  %v2086 = vpop.f32.mrf.mxu0
  %v2087 = vadd.f32 0.0, %v2086
  %v2088 = vpop.f32.mrf.mxu0
  %2089 = vmatprep.mubr.f32.mxu0 0.0
  %2090 = vmatmul.mubr.f32.gmra.mxu0 %v1901
  %v2091 = vpop.f32.mrf.mxu0
  %v2092 = vadd.f32 0.0, %v2091
  %v2093 = vpop.f32.mrf.mxu0
  %2094 = vmatprep.mubr.f32.mxu0 0.0
  %2095 = vmatmul.mubr.f32.gmra.mxu0 %v1902
  %v2096 = vpop.f32.mrf.mxu0
  %v2097 = vadd.f32 0.0, %v2096
  %v2098 = vpop.f32.mrf.mxu0
  %2099 = vmatprep.mubr.f32.mxu0 0.0
  %2100 = vmatmul.mubr.f32.gmra.mxu0 %v1903
  %v2101 = vpop.f32.mrf.mxu0
  %v2102 = vadd.f32 0.0, %v2101
  %v2103 = vpop.f32.mrf.mxu0
  %2104 = vmatprep.mubr.f32.mxu0 0.0
  %2105 = vmatmul.mubr.f32.gmra.mxu0 %v1904
  %v2106 = vpop.f32.mrf.mxu0
  %v2107 = vadd.f32 0.0, %v2106
  %v2108 = vpop.f32.mrf.mxu0
  %2109 = vmatprep.mubr.f32.mxu0 0.0
  %2110 = vmatmul.mubr.f32.gmra.mxu0 %v1905
  %v2111 = vpop.f32.mrf.mxu0
  %v2112 = vadd.f32 0.0, %v2111
  %v2113 = vpop.f32.mrf.mxu0
  %2114 = vmatprep.mubr.f32.mxu0 0.0
  %2115 = vmatmul.mubr.f32.gmra.mxu0 %v1906
  %v2116 = vpop.f32.mrf.mxu0
  %v2117 = vadd.f32 0.0, %v2116
  %v2118 = vpop.f32.mrf.mxu0
  %2119 = vmatprep.mubr.f32.mxu0 0.0
  %2120 = vmatmul.mubr.f32.gmra.mxu0 %v1907
  %v2121 = vpop.f32.mrf.mxu0
  %v2122 = vadd.f32 0.0, %v2121
  %v2123 = vpop.f32.mrf.mxu0
  %2124 = vmatprep.mubr.f32.mxu0 0.0
  %2125 = vmatmul.mubr.f32.gmra.mxu0 %v1908
  %v2126 = vpop.f32.mrf.mxu0
  %v2127 = vadd.f32 0.0, %v2126
  %v2128 = vpop.f32.mrf.mxu0
  %2129 = vmatprep.mubr.f32.mxu0 0.0
  %2130 = vmatmul.mubr.f32.gmra.mxu0 %v1909
  %v2131 = vpop.f32.mrf.mxu0
  %v2132 = vadd.f32 0.0, %v2131
  %v2133 = vpop.f32.mrf.mxu0
  %2134 = vmatprep.mubr.f32.mxu0 0.0
  %2135 = vmatmul.mubr.f32.gmra.mxu0 %v1910
  %v2136 = vpop.f32.mrf.mxu0
  %v2137 = vadd.f32 0.0, %v2136
  %v2138 = vpop.f32.mrf.mxu0
  %2139 = vmatprep.mubr.f32.mxu0 0.0
  %2140 = vmatmul.mubr.f32.gmra.mxu0 %v1911
  %v2141 = vpop.f32.mrf.mxu0
  %v2142 = vadd.f32 0.0, %v2141
  %v2143 = vpop.f32.mrf.mxu0
  %2144 = vmatprep.mubr.f32.mxu0 0.0
  %2145 = vmatmul.mubr.f32.gmra.mxu0 %v1912
  %v2146 = vpop.f32.mrf.mxu0
  %v2147 = vadd.f32 0.0, %v2146
  %v2148 = vpop.f32.mrf.mxu0
  %2149 = vmatprep.mubr.f32.mxu0 0.0
  %2150 = vmatmul.mubr.f32.gmra.mxu0 %v1913
  %v2151 = vpop.f32.mrf.mxu0
  %v2152 = vadd.f32 0.0, %v2151
  %v2153 = vpop.f32.mrf.mxu0
  %2154 = vmatprep.mubr.f32.mxu0 0.0
  %2155 = vmatmul.mubr.f32.gmra.mxu0 %v1914
  %v2156 = vpop.f32.mrf.mxu0
  %v2157 = vadd.f32 0.0, %v2156
  %v2158 = vpop.f32.mrf.mxu0
  %2159 = vmatprep.mubr.f32.mxu0 0.0
  %2160 = vmatmul.mubr.f32.gmra.mxu0 %v1915
  %v2161 = vpop.f32.mrf.mxu0
  %v2162 = vadd.f32 0.0, %v2161
  %v2163 = vpop.f32.mrf.mxu0
  %2164 = vmatprep.mubr.f32.mxu0 0.0
  %2165 = vmatmul.mubr.f32.gmra.mxu0 %v1916
  %v2166 = vpop.f32.mrf.mxu0
  %v2167 = vadd.f32 0.0, %v2166
  %v2168 = vpop.f32.mrf.mxu0
  %2169 = vmatprep.mubr.f32.mxu0 0.0
  %2170 = vmatmul.mubr.f32.gmra.mxu0 %v1917
  %v2171 = vpop.f32.mrf.mxu0
  %v2172 = vadd.f32 0.0, %v2171
  %v2173 = vpop.f32.mrf.mxu0
  %2174 = vmatprep.mubr.f32.mxu0 0.0
  %2175 = vmatmul.mubr.f32.gmra.mxu0 %v1918
  %v2176 = vpop.f32.mrf.mxu0
  %v2177 = vadd.f32 0.0, %v2176
  %v2178 = vpop.f32.mrf.mxu0
  %2179 = vmatprep.mubr.f32.mxu0 0.0
  %2180 = vmatmul.mubr.f32.gmra.mxu0 %v1919
  %v2181 = vpop.f32.mrf.mxu0
  %v2182 = vadd.f32 0.0, %v2181
  %v2183 = vpop.f32.mrf.mxu0
  %2184 = vmatprep.mubr.f32.mxu0 0.0
  %2185 = vmatmul.mubr.f32.gmra.mxu0 %v1920
  %v2186 = vpop.f32.mrf.mxu0
  %v2187 = vadd.f32 0.0, %v2186
  %v2188 = vpop.f32.mrf.mxu0
  %2189 = vmatprep.mubr.f32.mxu0 0.0
  %2190 = vmatmul.mubr.f32.gmra.mxu0 %v1921
  %v2191 = vpop.f32.mrf.mxu0
  %v2192 = vadd.f32 0.0, %v2191
  %v2193 = vpop.f32.mrf.mxu0
  %2194 = vmatprep.mubr.f32.mxu0 0.0
  %2195 = vmatmul.mubr.f32.gmra.mxu0 %v1922
  %v2196 = vpop.f32.mrf.mxu0
  %v2197 = vadd.f32 0.0, %v2196
  %v2198 = vpop.f32.mrf.mxu0
  %2199 = vmatprep.mubr.f32.mxu0 0.0
  %2200 = vmatmul.mubr.f32.gmra.mxu0 %v1923
  %v2201 = vpop.f32.mrf.mxu0
  %v2202 = vadd.f32 0.0, %v2201
  %v2203 = vpop.f32.mrf.mxu0
  %2204 = vmatprep.mubr.f32.mxu0 0.0
  %2205 = vmatmul.mubr.f32.gmra.mxu0 %v1924
  %v2206 = vpop.f32.mrf.mxu0
  %v2207 = vadd.f32 0.0, %v2206
  %v2208 = vpop.f32.mrf.mxu0
  %2209 = vmatprep.mubr.f32.mxu0 0.0
  %2210 = vmatmul.mubr.f32.gmra.mxu0 %v1925
  %v2211 = vpop.f32.mrf.mxu0
  %v2212 = vadd.f32 0.0, %v2211
  %v2213 = vpop.f32.mrf.mxu0
  %2214 = vmatprep.mubr.f32.mxu0 0.0
  %2215 = vmatmul.mubr.f32.gmra.mxu0 %v1926
  %v2216 = vpop.f32.mrf.mxu0
  %v2217 = vadd.f32 0.0, %v2216
  %v2218 = vpop.f32.mrf.mxu0
  %2219 = vmatprep.mubr.f32.mxu0 0.0
  %2220 = vmatmul.mubr.f32.gmra.mxu0 %v1927
  %v2221 = vpop.f32.mrf.mxu0
  %v2222 = vadd.f32 0.0, %v2221
  %v2223 = vpop.f32.mrf.mxu0
  %2224 = vmatprep.mubr.f32.mxu0 0.0
  %2225 = vmatmul.mubr.f32.gmra.mxu0 %v1928
  %v2226 = vpop.f32.mrf.mxu0
  %v2227 = vadd.f32 0.0, %v2226
  %v2228 = vpop.f32.mrf.mxu0
  %2229 = vmatprep.mubr.f32.mxu0 0.0
  %2230 = vmatmul.mubr.f32.gmra.mxu0 %v1929
  %v2231 = vpop.f32.mrf.mxu0
  %v2232 = vadd.f32 0.0, %v2231
  %v2233 = vpop.f32.mrf.mxu0
  %2234 = vmatprep.mubr.f32.mxu0 0.0
  %2235 = vmatmul.mubr.f32.gmra.mxu0 %v1930
  %v2236 = vpop.f32.mrf.mxu0
  %v2237 = vadd.f32 0.0, %v2236
  %v2238 = vpop.f32.mrf.mxu0
  %2239 = vmatprep.mubr.f32.mxu0 0.0
  %2240 = vmatmul.mubr.f32.gmra.mxu0 %v1931
  %v2241 = vpop.f32.mrf.mxu0
  %v2242 = vadd.f32 0.0, %v2241
  %v2243 = vpop.f32.mrf.mxu0
  %2244 = vmatprep.mubr.f32.mxu0 0.0
  %2245 = vmatmul.mubr.f32.gmra.mxu0 %v1932
  %v2246 = vpop.f32.mrf.mxu0
  %v2247 = vadd.f32 0.0, %v2246
  %v2248 = vpop.f32.mrf.mxu0
  %2249 = vmatprep.mubr.f32.mxu0 0.0
  %2250 = vmatmul.mubr.f32.gmra.mxu0 %v1933
  %v2251 = vpop.f32.mrf.mxu0
  %v2252 = vadd.f32 0.0, %v2251
  %v2253 = vpop.f32.mrf.mxu0
  %2254 = vmatprep.mubr.f32.mxu0 0.0
  %2255 = vmatmul.mubr.f32.gmra.mxu0 %v1934
  %v2256 = vpop.f32.mrf.mxu0
  %v2257 = vadd.f32 0.0, %v2256
  %v2258 = vpop.f32.mrf.mxu0
  %2259 = vmatprep.mubr.f32.mxu0 0.0
  %2260 = vmatmul.mubr.f32.gmra.mxu0 %v1935
  %v2261 = vpop.f32.mrf.mxu0
  %v2262 = vadd.f32 0.0, %v2261
  %v2263 = vpop.f32.mrf.mxu0
  %2264 = vmatprep.mubr.f32.mxu0 0.0
  %2265 = vmatmul.mubr.f32.gmra.mxu0 %v1936
  %v2266 = vpop.f32.mrf.mxu0
  %v2267 = vadd.f32 0.0, %v2266
  %v2268 = vpop.f32.mrf.mxu0
  %2269 = vmatprep.mubr.f32.mxu0 0.0
  %2270 = vmatmul.mubr.f32.gmra.mxu0 %v1937
  %v2271 = vpop.f32.mrf.mxu0
  %v2272 = vadd.f32 0.0, %v2271
  %v2273 = vpop.f32.mrf.mxu0
  %2274 = vmatprep.mubr.f32.mxu0 0.0
  %2275 = vmatmul.mubr.f32.gmra.mxu0 %v1938
  %v2276 = vpop.f32.mrf.mxu0
  %v2277 = vadd.f32 0.0, %v2276
  %v2278 = vpop.f32.mrf.mxu0
  %2279 = vmatprep.mubr.f32.mxu0 0.0
  %2280 = vmatmul.mubr.f32.gmra.mxu0 %v1939
  %v2281 = vpop.f32.mrf.mxu0
  %v2282 = vadd.f32 0.0, %v2281
  %v2283 = vpop.f32.mrf.mxu0
  %2284 = vmatprep.mubr.f32.mxu0 0.0
  %2285 = vmatmul.mubr.f32.gmra.mxu0 %v1940
  %v2286 = vpop.f32.mrf.mxu0
  %v2287 = vadd.f32 0.0, %v2286
  %v2288 = vpop.f32.mrf.mxu0
  %2289 = vmatprep.mubr.f32.mxu0 0.0
  %2290 = vmatmul.mubr.f32.gmra.mxu0 %v1941
  %v2291 = vpop.f32.mrf.mxu0
  %v2292 = vadd.f32 0.0, %v2291
  %v2293 = vpop.f32.mrf.mxu0
  %2294 = vmatprep.mubr.f32.mxu0 0.0
  %2295 = vmatmul.mubr.f32.gmra.mxu0 %v1942
  %v2296 = vpop.f32.mrf.mxu0
  %v2297 = vadd.f32 0.0, %v2296
  %v2298 = vpop.f32.mrf.mxu0
  %2299 = vmatprep.mubr.f32.mxu0 0.0
  %2300 = vmatmul.mubr.f32.gmra.mxu0 %v1943
  %v2301 = vpop.f32.mrf.mxu0
  %v2302 = vadd.f32 0.0, %v2301
  %v2303 = vpop.f32.mrf.mxu0
  %2304 = vmatprep.mubr.f32.mxu0 0.0
  %2305 = vmatmul.mubr.f32.gmra.mxu0 %v1944
  %v2306 = vpop.f32.mrf.mxu0
  %v2307 = vadd.f32 0.0, %v2306
  %v2308 = vpop.f32.mrf.mxu0
  %2309 = vmatprep.mubr.f32.mxu0 0.0
  %2310 = vmatmul.mubr.f32.gmra.mxu0 %v1945
  %v2311 = vpop.f32.mrf.mxu0
  %v2312 = vadd.f32 0.0, %v2311
  %v2313 = vpop.f32.mrf.mxu0
  %2314 = vmatprep.mubr.f32.mxu0 0.0
  %2315 = vmatmul.mubr.f32.gmra.mxu0 %v1946
  %v2316 = vpop.f32.mrf.mxu0
  %v2317 = vadd.f32 0.0, %v2316
  %v2318 = vpop.f32.mrf.mxu0
  %2319 = vmatprep.mubr.f32.mxu0 0.0
  %2320 = vmatmul.mubr.f32.gmra.mxu0 %v1947
  %v2321 = vpop.f32.mrf.mxu0
  %v2322 = vadd.f32 0.0, %v2321
  %v2323 = vpop.f32.mrf.mxu0
  %2324 = vmatprep.mubr.f32.mxu0 0.0
  %2325 = vmatmul.mubr.f32.gmra.mxu0 %v1948
  %v2326 = vpop.f32.mrf.mxu0
  %v2327 = vadd.f32 0.0, %v2326
  %v2328 = vpop.f32.mrf.mxu0
  %2329 = vmatprep.mubr.f32.mxu0 0.0
  %2330 = vmatmul.mubr.f32.gmra.mxu0 %v1949
  %v2331 = vpop.f32.mrf.mxu0
  %v2332 = vadd.f32 0.0, %v2331
  %v2333 = vpop.f32.mrf.mxu0
  %2334 = vmatprep.mubr.f32.mxu0 0.0
  %2335 = vmatmul.mubr.f32.gmra.mxu0 %v1950
  %v2336 = vpop.f32.mrf.mxu0
  %v2337 = vadd.f32 0.0, %v2336
  %v2338 = vpop.f32.mrf.mxu0
  %2339 = vmatprep.mubr.f32.mxu0 0.0
  %2340 = vmatmul.mubr.f32.gmra.mxu0 %v1951
  %v2341 = vpop.f32.mrf.mxu0
  %v2342 = vadd.f32 0.0, %v2341
  %v2343 = vpop.f32.mrf.mxu0
  %2344 = vmatprep.mubr.f32.mxu0 0.0
  %2345 = vmatmul.mubr.f32.gmra.mxu0 %v1952
  %v2346 = vpop.f32.mrf.mxu0
  %v2347 = vadd.f32 0.0, %v2346
  %v2348 = vpop.f32.mrf.mxu0
  %2349 = vmatprep.mubr.f32.mxu0 0.0
  %2350 = vmatmul.mubr.f32.gmra.mxu0 %v1953
  %v2351 = vpop.f32.mrf.mxu0
  %v2352 = vadd.f32 0.0, %v2351
  %v2353 = vpop.f32.mrf.mxu0
  %2354 = vdwg.mxu0
  %v2355 = vadd.f32 %v1826, %v2037
  %v2356 = vadd.f32 %v1827, %v2042
  %v2357 = vadd.f32 %v1828, %v2047
  %v2358 = vadd.f32 %v1829, %v2052
  %v2359 = vadd.f32 %v1830, %v2057
  %v2360 = vadd.f32 %v1831, %v2062
  %v2361 = vadd.f32 %v1832, %v2067
  %v2362 = vadd.f32 %v1833, %v2072
  %v2363 = vadd.f32 %v1834, %v2077
  %v2364 = vadd.f32 %v1835, %v2082
  %v2365 = vadd.f32 %v1836, %v2087
  %v2366 = vadd.f32 %v1837, %v2092
  %v2367 = vadd.f32 %v1838, %v2097
  %v2368 = vadd.f32 %v1839, %v2102
  %v2369 = vadd.f32 %v1840, %v2107
  %v2370 = vadd.f32 %v1841, %v2112
  %v2371 = vadd.f32 %v1842, %v2117
  %v2372 = vadd.f32 %v1843, %v2122
  %v2373 = vadd.f32 %v1844, %v2127
  %v2374 = vadd.f32 %v1845, %v2132
  %v2375 = vadd.f32 %v1846, %v2137
  %v2376 = vadd.f32 %v1847, %v2142
  %v2377 = vadd.f32 %v1848, %v2147
  %v2378 = vadd.f32 %v1849, %v2152
  %v2379 = vadd.f32 %v1850, %v2157
  %v2380 = vadd.f32 %v1851, %v2162
  %v2381 = vadd.f32 %v1852, %v2167
  %v2382 = vadd.f32 %v1853, %v2172
  %v2383 = vadd.f32 %v1854, %v2177
  %v2384 = vadd.f32 %v1855, %v2182
  %v2385 = vadd.f32 %v1856, %v2187
  %v2386 = vadd.f32 %v1857, %v2192
  %v2387 = vadd.f32 %v1858, %v2197
  %v2388 = vadd.f32 %v1859, %v2202
  %v2389 = vadd.f32 %v1860, %v2207
  %v2390 = vadd.f32 %v1861, %v2212
  %v2391 = vadd.f32 %v1862, %v2217
  %v2392 = vadd.f32 %v1863, %v2222
  %v2393 = vadd.f32 %v1864, %v2227
  %v2394 = vadd.f32 %v1865, %v2232
  %v2395 = vadd.f32 %v1866, %v2237
  %v2396 = vadd.f32 %v1867, %v2242
  %v2397 = vadd.f32 %v1868, %v2247
  %v2398 = vadd.f32 %v1869, %v2252
  %v2399 = vadd.f32 %v1870, %v2257
  %v2400 = vadd.f32 %v1871, %v2262
  %v2401 = vadd.f32 %v1872, %v2267
  %v2402 = vadd.f32 %v1873, %v2272
  %v2403 = vadd.f32 %v1874, %v2277
  %v2404 = vadd.f32 %v1875, %v2282
  %v2405 = vadd.f32 %v1876, %v2287
  %v2406 = vadd.f32 %v1877, %v2292
  %v2407 = vadd.f32 %v1878, %v2297
  %v2408 = vadd.f32 %v1879, %v2302
  %v2409 = vadd.f32 %v1880, %v2307
  %v2410 = vadd.f32 %v1881, %v2312
  %v2411 = vadd.f32 %v1882, %v2317
  %v2412 = vadd.f32 %v1883, %v2322
  %v2413 = vadd.f32 %v1884, %v2327
  %v2414 = vadd.f32 %v1885, %v2332
  %v2415 = vadd.f32 %v1886, %v2337
  %v2416 = vadd.f32 %v1887, %v2342
  %v2417 = vadd.f32 %v1888, %v2347
  %v2418 = vadd.f32 %v1889, %v2352
  %v2419 = vld [vmem:[%s289 + $0x1] sm:$0xff]
  %v2420 = vld [vmem:[%s289 + $0x9] sm:$0xff]
  %v2421 = vld [vmem:[%s289 + $0x19] sm:$0xff]
  %v2422 = vld [vmem:[%s289 + $0x21] sm:$0xff]
  %v2423 = vld [vmem:[%s289 + $0x31] sm:$0xff]
  %v2424 = vld [vmem:[%s289 + $0x39] sm:$0xff]
  %v2425 = vld [vmem:[%s289 + $0x49] sm:$0xff]
  %v2426 = vld [vmem:[%s289 + $0x51] sm:$0xff]
  %v2427 = vld [vmem:[%s289 + $0x61] sm:$0xff]
  %v2428 = vld [vmem:[%s289 + $0x69] sm:$0xff]
  %v2429 = vld [vmem:[%s289 + $0x79] sm:$0xff]
  %v2430 = vld [vmem:[%s289 + $0x81] sm:$0xff]
  %v2431 = vld [vmem:[%s289 + $0x91] sm:$0xff]
  %v2432 = vld [vmem:[%s289 + $0x99] sm:$0xff]
  %v2433 = vld [vmem:[%s289 + $0xa9] sm:$0xff]
  %v2434 = vld [vmem:[%s289 + $0xb1] sm:$0xff]
  %v2435 = vld [vmem:[%s289 + $0xc1] sm:$0xff]
  %v2436 = vld [vmem:[%s289 + $0xc9] sm:$0xff]
  %v2437 = vld [vmem:[%s289 + $0xd9] sm:$0xff]
  %v2438 = vld [vmem:[%s289 + $0xe1] sm:$0xff]
  %v2439 = vld [vmem:[%s289 + $0xf1] sm:$0xff]
  %v2440 = vld [vmem:[%s289 + $0xf9] sm:$0xff]
  %v2441 = vld [vmem:[%s289 + $0x109] sm:$0xff]
  %v2442 = vld [vmem:[%s289 + $0x111] sm:$0xff]
  %v2443 = vld [vmem:[%s289 + $0x121] sm:$0xff]
  %v2444 = vld [vmem:[%s289 + $0x129] sm:$0xff]
  %v2445 = vld [vmem:[%s289 + $0x139] sm:$0xff]
  %v2446 = vld [vmem:[%s289 + $0x141] sm:$0xff]
  %v2447 = vld [vmem:[%s289 + $0x151] sm:$0xff]
  %v2448 = vld [vmem:[%s289 + $0x159] sm:$0xff]
  %v2449 = vld [vmem:[%s289 + $0x169] sm:$0xff]
  %v2450 = vld [vmem:[%s289 + $0x171] sm:$0xff]
  %v2451 = vld [vmem:[%s289 + $0x1b1] sm:$0xff]
  %v2452 = vld [vmem:[%s289 + $0x1b9] sm:$0xff]
  %v2453 = vld [vmem:[%s289 + $0x1c9] sm:$0xff]
  %v2454 = vld [vmem:[%s289 + $0x1d1] sm:$0xff]
  %v2455 = vld [vmem:[%s289 + $0x1e1] sm:$0xff]
  %v2456 = vld [vmem:[%s289 + $0x1e9] sm:$0xff]
  %v2457 = vld [vmem:[%s289 + $0x1f9] sm:$0xff]
  %v2458 = vld [vmem:[%s289 + $0x201] sm:$0xff]
  %v2459 = vld [vmem:[%s289 + $0x211] sm:$0xff]
  %v2460 = vld [vmem:[%s289 + $0x219] sm:$0xff]
  %v2461 = vld [vmem:[%s289 + $0x229] sm:$0xff]
  %v2462 = vld [vmem:[%s289 + $0x231] sm:$0xff]
  %v2463 = vld [vmem:[%s289 + $0x241] sm:$0xff]
  %v2464 = vld [vmem:[%s289 + $0x249] sm:$0xff]
  %v2465 = vld [vmem:[%s289 + $0x259] sm:$0xff]
  %v2466 = vld [vmem:[%s289 + $0x261] sm:$0xff]
  %v2467 = vld [vmem:[%s289 + $0x271] sm:$0xff]
  %v2468 = vld [vmem:[%s289 + $0x279] sm:$0xff]
  %v2469 = vld [vmem:[%s289 + $0x289] sm:$0xff]
  %v2470 = vld [vmem:[%s289 + $0x291] sm:$0xff]
  %v2471 = vld [vmem:[%s289 + $0x2a1] sm:$0xff]
  %v2472 = vld [vmem:[%s289 + $0x2a9] sm:$0xff]
  %v2473 = vld [vmem:[%s289 + $0x2b9] sm:$0xff]
  %v2474 = vld [vmem:[%s289 + $0x2c1] sm:$0xff]
  %v2475 = vld [vmem:[%s289 + $0x2d1] sm:$0xff]
  %v2476 = vld [vmem:[%s289 + $0x2d9] sm:$0xff]
  %v2477 = vld [vmem:[%s289 + $0x2e9] sm:$0xff]
  %v2478 = vld [vmem:[%s289 + $0x2f1] sm:$0xff]
  %v2479 = vld [vmem:[%s289 + $0x301] sm:$0xff]
  %v2480 = vld [vmem:[%s289 + $0x309] sm:$0xff]
  %v2481 = vld [vmem:[%s289 + $0x319] sm:$0xff]
  %v2482 = vld [vmem:[%s289 + $0x321] sm:$0xff]
  %v2483 = vld [vmem:[%s3 + $0x200] sm:$0xff]
  %v2484 = vld [vmem:[%s3 + $0x208] sm:$0xff]
  %v2485 = vld [vmem:[%s3 + $0x210] sm:$0xff]
  %v2486 = vld [vmem:[%s3 + $0x218] sm:$0xff]
  %v2487 = vld [vmem:[%s3 + $0x220] sm:$0xff]
  %v2488 = vld [vmem:[%s3 + $0x228] sm:$0xff]
  %v2489 = vld [vmem:[%s3 + $0x230] sm:$0xff]
  %v2490 = vld [vmem:[%s3 + $0x238] sm:$0xff]
  %v2491 = vld [vmem:[%s3 + $0x240] sm:$0xff]
  %v2492 = vld [vmem:[%s3 + $0x248] sm:$0xff]
  %v2493 = vld [vmem:[%s3 + $0x250] sm:$0xff]
  %v2494 = vld [vmem:[%s3 + $0x258] sm:$0xff]
  %v2495 = vld [vmem:[%s3 + $0x260] sm:$0xff]
  %v2496 = vld [vmem:[%s3 + $0x268] sm:$0xff]
  %v2497 = vld [vmem:[%s3 + $0x270] sm:$0xff]
  %v2498 = vld [vmem:[%s3 + $0x278] sm:$0xff]
  %2499 = vmatprep.subr.mxu0 0.0
  %2500 = vmatpush1.msra.mxu0 %v2498
  %2501 = vmatprep.subr.mxu0 0.0
  %2502 = vmatpush1.msra.mxu0 %v2497
  %2503 = vmatprep.subr.mxu0 0.0
  %2504 = vmatpush1.msra.mxu0 %v2496
  %2505 = vmatprep.subr.mxu0 0.0
  %2506 = vmatpush1.msra.mxu0 %v2495
  %2507 = vmatprep.subr.mxu0 0.0
  %2508 = vmatpush1.msra.mxu0 %v2494
  %2509 = vmatprep.subr.mxu0 0.0
  %2510 = vmatpush1.msra.mxu0 %v2493
  %2511 = vmatprep.subr.mxu0 0.0
  %2512 = vmatpush1.msra.mxu0 %v2492
  %2513 = vmatprep.subr.mxu0 0.0
  %2514 = vmatpush1.msra.mxu0 %v2491
  %2515 = vmatprep.subr.mxu0 0.0
  %2516 = vmatpush1.msra.mxu0 %v2490
  %2517 = vmatprep.subr.mxu0 0.0
  %2518 = vmatpush1.msra.mxu0 %v2489
  %2519 = vmatprep.subr.mxu0 0.0
  %2520 = vmatpush1.msra.mxu0 %v2488
  %2521 = vmatprep.subr.mxu0 0.0
  %2522 = vmatpush1.msra.mxu0 %v2487
  %2523 = vmatprep.subr.mxu0 0.0
  %2524 = vmatpush1.msra.mxu0 %v2486
  %2525 = vmatprep.subr.mxu0 0.0
  %2526 = vmatpush1.msra.mxu0 %v2485
  %2527 = vmatprep.subr.mxu0 0.0
  %2528 = vmatpush1.msra.mxu0 %v2484
  %2529 = vmatprep.subr.mxu0 0.0
  %2530 = vmatpush1.msra.mxu0 %v2483
  %2531 = vmatprep.subr.mxu0 0.0
  %2532 = vmatpush2.msra.mxu0 0.0
  %2533 = vmatprep.subr.mxu0 0.0
  %2534 = vmatpush2.msra.mxu0 0.0
  %2535 = vmatprep.subr.mxu0 0.0
  %2536 = vmatpush2.msra.mxu0 0.0
  %2537 = vmatprep.subr.mxu0 0.0
  %2538 = vmatpush2.msra.mxu0 0.0
  %2539 = vmatprep.subr.mxu0 0.0
  %2540 = vmatpush2.msra.mxu0 0.0
  %2541 = vmatprep.subr.mxu0 0.0
  %2542 = vmatpush2.msra.mxu0 0.0
  %2543 = vmatprep.subr.mxu0 0.0
  %2544 = vmatpush2.msra.mxu0 0.0
  %2545 = vmatprep.subr.mxu0 0.0
  %2546 = vmatpush2.msra.mxu0 0.0
  %2547 = vmatprep.subr.mxu0 0.0
  %2548 = vmatpush2.msra.mxu0 0.0
  %2549 = vmatprep.subr.mxu0 0.0
  %2550 = vmatpush2.msra.mxu0 0.0
  %2551 = vmatprep.subr.mxu0 0.0
  %2552 = vmatpush2.msra.mxu0 0.0
  %2553 = vmatprep.subr.mxu0 0.0
  %2554 = vmatpush2.msra.mxu0 0.0
  %2555 = vmatprep.subr.mxu0 0.0
  %2556 = vmatpush2.msra.mxu0 0.0
  %2557 = vmatprep.subr.mxu0 0.0
  %2558 = vmatpush2.msra.mxu0 0.0
  %2559 = vmatprep.subr.mxu0 0.0
  %2560 = vmatpush2.msra.mxu0 0.0
  %2561 = vmatprep.subr.mxu0 0.0
  %2562 = vmatpush2.msra.mxu0 0.0
  %2563 = vmatprep.mubr.f32.mxu0 0.0
  %2564 = vmatmul.mubr.f32.gmra.mxu0 %v2419
  %v2565 = vpop.f32.mrf.mxu0
  %v2566 = vadd.f32 0.0, %v2565
  %v2567 = vpop.f32.mrf.mxu0
  %2568 = vmatprep.mubr.f32.mxu0 0.0
  %2569 = vmatmul.mubr.f32.gmra.mxu0 %v2420
  %v2570 = vpop.f32.mrf.mxu0
  %v2571 = vadd.f32 0.0, %v2570
  %v2572 = vpop.f32.mrf.mxu0
  %2573 = vmatprep.mubr.f32.mxu0 0.0
  %2574 = vmatmul.mubr.f32.gmra.mxu0 %v2421
  %v2575 = vpop.f32.mrf.mxu0
  %v2576 = vadd.f32 0.0, %v2575
  %v2577 = vpop.f32.mrf.mxu0
  %2578 = vmatprep.mubr.f32.mxu0 0.0
  %2579 = vmatmul.mubr.f32.gmra.mxu0 %v2422
  %v2580 = vpop.f32.mrf.mxu0
  %v2581 = vadd.f32 0.0, %v2580
  %v2582 = vpop.f32.mrf.mxu0
  %2583 = vmatprep.mubr.f32.mxu0 0.0
  %2584 = vmatmul.mubr.f32.gmra.mxu0 %v2423
  %v2585 = vpop.f32.mrf.mxu0
  %v2586 = vadd.f32 0.0, %v2585
  %v2587 = vpop.f32.mrf.mxu0
  %2588 = vmatprep.mubr.f32.mxu0 0.0
  %2589 = vmatmul.mubr.f32.gmra.mxu0 %v2424
  %v2590 = vpop.f32.mrf.mxu0
  %v2591 = vadd.f32 0.0, %v2590
  %v2592 = vpop.f32.mrf.mxu0
  %2593 = vmatprep.mubr.f32.mxu0 0.0
  %2594 = vmatmul.mubr.f32.gmra.mxu0 %v2425
  %v2595 = vpop.f32.mrf.mxu0
  %v2596 = vadd.f32 0.0, %v2595
  %v2597 = vpop.f32.mrf.mxu0
  %2598 = vmatprep.mubr.f32.mxu0 0.0
  %2599 = vmatmul.mubr.f32.gmra.mxu0 %v2426
  %v2600 = vpop.f32.mrf.mxu0
  %v2601 = vadd.f32 0.0, %v2600
  %v2602 = vpop.f32.mrf.mxu0
  %2603 = vmatprep.mubr.f32.mxu0 0.0
  %2604 = vmatmul.mubr.f32.gmra.mxu0 %v2427
  %v2605 = vpop.f32.mrf.mxu0
  %v2606 = vadd.f32 0.0, %v2605
  %v2607 = vpop.f32.mrf.mxu0
  %2608 = vmatprep.mubr.f32.mxu0 0.0
  %2609 = vmatmul.mubr.f32.gmra.mxu0 %v2428
  %v2610 = vpop.f32.mrf.mxu0
  %v2611 = vadd.f32 0.0, %v2610
  %v2612 = vpop.f32.mrf.mxu0
  %2613 = vmatprep.mubr.f32.mxu0 0.0
  %2614 = vmatmul.mubr.f32.gmra.mxu0 %v2429
  %v2615 = vpop.f32.mrf.mxu0
  %v2616 = vadd.f32 0.0, %v2615
  %v2617 = vpop.f32.mrf.mxu0
  %2618 = vmatprep.mubr.f32.mxu0 0.0
  %2619 = vmatmul.mubr.f32.gmra.mxu0 %v2430
  %v2620 = vpop.f32.mrf.mxu0
  %v2621 = vadd.f32 0.0, %v2620
  %v2622 = vpop.f32.mrf.mxu0
  %2623 = vmatprep.mubr.f32.mxu0 0.0
  %2624 = vmatmul.mubr.f32.gmra.mxu0 %v2431
  %v2625 = vpop.f32.mrf.mxu0
  %v2626 = vadd.f32 0.0, %v2625
  %v2627 = vpop.f32.mrf.mxu0
  %2628 = vmatprep.mubr.f32.mxu0 0.0
  %2629 = vmatmul.mubr.f32.gmra.mxu0 %v2432
  %v2630 = vpop.f32.mrf.mxu0
  %v2631 = vadd.f32 0.0, %v2630
  %v2632 = vpop.f32.mrf.mxu0
  %2633 = vmatprep.mubr.f32.mxu0 0.0
  %2634 = vmatmul.mubr.f32.gmra.mxu0 %v2433
  %v2635 = vpop.f32.mrf.mxu0
  %v2636 = vadd.f32 0.0, %v2635
  %v2637 = vpop.f32.mrf.mxu0
  %2638 = vmatprep.mubr.f32.mxu0 0.0
  %2639 = vmatmul.mubr.f32.gmra.mxu0 %v2434
  %v2640 = vpop.f32.mrf.mxu0
  %v2641 = vadd.f32 0.0, %v2640
  %v2642 = vpop.f32.mrf.mxu0
  %2643 = vmatprep.mubr.f32.mxu0 0.0
  %2644 = vmatmul.mubr.f32.gmra.mxu0 %v2435
  %v2645 = vpop.f32.mrf.mxu0
  %v2646 = vadd.f32 0.0, %v2645
  %v2647 = vpop.f32.mrf.mxu0
  %2648 = vmatprep.mubr.f32.mxu0 0.0
  %2649 = vmatmul.mubr.f32.gmra.mxu0 %v2436
  %v2650 = vpop.f32.mrf.mxu0
  %v2651 = vadd.f32 0.0, %v2650
  %v2652 = vpop.f32.mrf.mxu0
  %2653 = vmatprep.mubr.f32.mxu0 0.0
  %2654 = vmatmul.mubr.f32.gmra.mxu0 %v2437
  %v2655 = vpop.f32.mrf.mxu0
  %v2656 = vadd.f32 0.0, %v2655
  %v2657 = vpop.f32.mrf.mxu0
  %2658 = vmatprep.mubr.f32.mxu0 0.0
  %2659 = vmatmul.mubr.f32.gmra.mxu0 %v2438
  %v2660 = vpop.f32.mrf.mxu0
  %v2661 = vadd.f32 0.0, %v2660
  %v2662 = vpop.f32.mrf.mxu0
  %2663 = vmatprep.mubr.f32.mxu0 0.0
  %2664 = vmatmul.mubr.f32.gmra.mxu0 %v2439
  %v2665 = vpop.f32.mrf.mxu0
  %v2666 = vadd.f32 0.0, %v2665
  %v2667 = vpop.f32.mrf.mxu0
  %2668 = vmatprep.mubr.f32.mxu0 0.0
  %2669 = vmatmul.mubr.f32.gmra.mxu0 %v2440
  %v2670 = vpop.f32.mrf.mxu0
  %v2671 = vadd.f32 0.0, %v2670
  %v2672 = vpop.f32.mrf.mxu0
  %2673 = vmatprep.mubr.f32.mxu0 0.0
  %2674 = vmatmul.mubr.f32.gmra.mxu0 %v2441
  %v2675 = vpop.f32.mrf.mxu0
  %v2676 = vadd.f32 0.0, %v2675
  %v2677 = vpop.f32.mrf.mxu0
  %2678 = vmatprep.mubr.f32.mxu0 0.0
  %2679 = vmatmul.mubr.f32.gmra.mxu0 %v2442
  %v2680 = vpop.f32.mrf.mxu0
  %v2681 = vadd.f32 0.0, %v2680
  %v2682 = vpop.f32.mrf.mxu0
  %2683 = vmatprep.mubr.f32.mxu0 0.0
  %2684 = vmatmul.mubr.f32.gmra.mxu0 %v2443
  %v2685 = vpop.f32.mrf.mxu0
  %v2686 = vadd.f32 0.0, %v2685
  %v2687 = vpop.f32.mrf.mxu0
  %2688 = vmatprep.mubr.f32.mxu0 0.0
  %2689 = vmatmul.mubr.f32.gmra.mxu0 %v2444
  %v2690 = vpop.f32.mrf.mxu0
  %v2691 = vadd.f32 0.0, %v2690
  %v2692 = vpop.f32.mrf.mxu0
  %2693 = vmatprep.mubr.f32.mxu0 0.0
  %2694 = vmatmul.mubr.f32.gmra.mxu0 %v2445
  %v2695 = vpop.f32.mrf.mxu0
  %v2696 = vadd.f32 0.0, %v2695
  %v2697 = vpop.f32.mrf.mxu0
  %2698 = vmatprep.mubr.f32.mxu0 0.0
  %2699 = vmatmul.mubr.f32.gmra.mxu0 %v2446
  %v2700 = vpop.f32.mrf.mxu0
  %v2701 = vadd.f32 0.0, %v2700
  %v2702 = vpop.f32.mrf.mxu0
  %2703 = vmatprep.mubr.f32.mxu0 0.0
  %2704 = vmatmul.mubr.f32.gmra.mxu0 %v2447
  %v2705 = vpop.f32.mrf.mxu0
  %v2706 = vadd.f32 0.0, %v2705
  %v2707 = vpop.f32.mrf.mxu0
  %2708 = vmatprep.mubr.f32.mxu0 0.0
  %2709 = vmatmul.mubr.f32.gmra.mxu0 %v2448
  %v2710 = vpop.f32.mrf.mxu0
  %v2711 = vadd.f32 0.0, %v2710
  %v2712 = vpop.f32.mrf.mxu0
  %2713 = vmatprep.mubr.f32.mxu0 0.0
  %2714 = vmatmul.mubr.f32.gmra.mxu0 %v2449
  %v2715 = vpop.f32.mrf.mxu0
  %v2716 = vadd.f32 0.0, %v2715
  %v2717 = vpop.f32.mrf.mxu0
  %2718 = vmatprep.mubr.f32.mxu0 0.0
  %2719 = vmatmul.mubr.f32.gmra.mxu0 %v2450
  %v2720 = vpop.f32.mrf.mxu0
  %v2721 = vadd.f32 0.0, %v2720
  %v2722 = vpop.f32.mrf.mxu0
  %2723 = vmatprep.mubr.f32.mxu0 0.0
  %2724 = vmatmul.mubr.f32.gmra.mxu0 %v2451
  %v2725 = vpop.f32.mrf.mxu0
  %v2726 = vadd.f32 0.0, %v2725
  %v2727 = vpop.f32.mrf.mxu0
  %2728 = vmatprep.mubr.f32.mxu0 0.0
  %2729 = vmatmul.mubr.f32.gmra.mxu0 %v2452
  %v2730 = vpop.f32.mrf.mxu0
  %v2731 = vadd.f32 0.0, %v2730
  %v2732 = vpop.f32.mrf.mxu0
  %2733 = vmatprep.mubr.f32.mxu0 0.0
  %2734 = vmatmul.mubr.f32.gmra.mxu0 %v2453
  %v2735 = vpop.f32.mrf.mxu0
  %v2736 = vadd.f32 0.0, %v2735
  %v2737 = vpop.f32.mrf.mxu0
  %2738 = vmatprep.mubr.f32.mxu0 0.0
  %2739 = vmatmul.mubr.f32.gmra.mxu0 %v2454
  %v2740 = vpop.f32.mrf.mxu0
  %v2741 = vadd.f32 0.0, %v2740
  %v2742 = vpop.f32.mrf.mxu0
  %2743 = vmatprep.mubr.f32.mxu0 0.0
  %2744 = vmatmul.mubr.f32.gmra.mxu0 %v2455
  %v2745 = vpop.f32.mrf.mxu0
  %v2746 = vadd.f32 0.0, %v2745
  %v2747 = vpop.f32.mrf.mxu0
  %2748 = vmatprep.mubr.f32.mxu0 0.0
  %2749 = vmatmul.mubr.f32.gmra.mxu0 %v2456
  %v2750 = vpop.f32.mrf.mxu0
  %v2751 = vadd.f32 0.0, %v2750
  %v2752 = vpop.f32.mrf.mxu0
  %2753 = vmatprep.mubr.f32.mxu0 0.0
  %2754 = vmatmul.mubr.f32.gmra.mxu0 %v2457
  %v2755 = vpop.f32.mrf.mxu0
  %v2756 = vadd.f32 0.0, %v2755
  %v2757 = vpop.f32.mrf.mxu0
  %2758 = vmatprep.mubr.f32.mxu0 0.0
  %2759 = vmatmul.mubr.f32.gmra.mxu0 %v2458
  %v2760 = vpop.f32.mrf.mxu0
  %v2761 = vadd.f32 0.0, %v2760
  %v2762 = vpop.f32.mrf.mxu0
  %2763 = vmatprep.mubr.f32.mxu0 0.0
  %2764 = vmatmul.mubr.f32.gmra.mxu0 %v2459
  %v2765 = vpop.f32.mrf.mxu0
  %v2766 = vadd.f32 0.0, %v2765
  %v2767 = vpop.f32.mrf.mxu0
  %2768 = vmatprep.mubr.f32.mxu0 0.0
  %2769 = vmatmul.mubr.f32.gmra.mxu0 %v2460
  %v2770 = vpop.f32.mrf.mxu0
  %v2771 = vadd.f32 0.0, %v2770
  %v2772 = vpop.f32.mrf.mxu0
  %2773 = vmatprep.mubr.f32.mxu0 0.0
  %2774 = vmatmul.mubr.f32.gmra.mxu0 %v2461
  %v2775 = vpop.f32.mrf.mxu0
  %v2776 = vadd.f32 0.0, %v2775
  %v2777 = vpop.f32.mrf.mxu0
  %2778 = vmatprep.mubr.f32.mxu0 0.0
  %2779 = vmatmul.mubr.f32.gmra.mxu0 %v2462
  %v2780 = vpop.f32.mrf.mxu0
  %v2781 = vadd.f32 0.0, %v2780
  %v2782 = vpop.f32.mrf.mxu0
  %2783 = vmatprep.mubr.f32.mxu0 0.0
  %2784 = vmatmul.mubr.f32.gmra.mxu0 %v2463
  %v2785 = vpop.f32.mrf.mxu0
  %v2786 = vadd.f32 0.0, %v2785
  %v2787 = vpop.f32.mrf.mxu0
  %2788 = vmatprep.mubr.f32.mxu0 0.0
  %2789 = vmatmul.mubr.f32.gmra.mxu0 %v2464
  %v2790 = vpop.f32.mrf.mxu0
  %v2791 = vadd.f32 0.0, %v2790
  %v2792 = vpop.f32.mrf.mxu0
  %2793 = vmatprep.mubr.f32.mxu0 0.0
  %2794 = vmatmul.mubr.f32.gmra.mxu0 %v2465
  %v2795 = vpop.f32.mrf.mxu0
  %v2796 = vadd.f32 0.0, %v2795
  %v2797 = vpop.f32.mrf.mxu0
  %2798 = vmatprep.mubr.f32.mxu0 0.0
  %2799 = vmatmul.mubr.f32.gmra.mxu0 %v2466
  %v2800 = vpop.f32.mrf.mxu0
  %v2801 = vadd.f32 0.0, %v2800
  %v2802 = vpop.f32.mrf.mxu0
  %2803 = vmatprep.mubr.f32.mxu0 0.0
  %2804 = vmatmul.mubr.f32.gmra.mxu0 %v2467
  %v2805 = vpop.f32.mrf.mxu0
  %v2806 = vadd.f32 0.0, %v2805
  %v2807 = vpop.f32.mrf.mxu0
  %2808 = vmatprep.mubr.f32.mxu0 0.0
  %2809 = vmatmul.mubr.f32.gmra.mxu0 %v2468
  %v2810 = vpop.f32.mrf.mxu0
  %v2811 = vadd.f32 0.0, %v2810
  %v2812 = vpop.f32.mrf.mxu0
  %2813 = vmatprep.mubr.f32.mxu0 0.0
  %2814 = vmatmul.mubr.f32.gmra.mxu0 %v2469
  %v2815 = vpop.f32.mrf.mxu0
  %v2816 = vadd.f32 0.0, %v2815
  %v2817 = vpop.f32.mrf.mxu0
  %2818 = vmatprep.mubr.f32.mxu0 0.0
  %2819 = vmatmul.mubr.f32.gmra.mxu0 %v2470
  %v2820 = vpop.f32.mrf.mxu0
  %v2821 = vadd.f32 0.0, %v2820
  %v2822 = vpop.f32.mrf.mxu0
  %2823 = vmatprep.mubr.f32.mxu0 0.0
  %2824 = vmatmul.mubr.f32.gmra.mxu0 %v2471
  %v2825 = vpop.f32.mrf.mxu0
  %v2826 = vadd.f32 0.0, %v2825
  %v2827 = vpop.f32.mrf.mxu0
  %2828 = vmatprep.mubr.f32.mxu0 0.0
  %2829 = vmatmul.mubr.f32.gmra.mxu0 %v2472
  %v2830 = vpop.f32.mrf.mxu0
  %v2831 = vadd.f32 0.0, %v2830
  %v2832 = vpop.f32.mrf.mxu0
  %2833 = vmatprep.mubr.f32.mxu0 0.0
  %2834 = vmatmul.mubr.f32.gmra.mxu0 %v2473
  %v2835 = vpop.f32.mrf.mxu0
  %v2836 = vadd.f32 0.0, %v2835
  %v2837 = vpop.f32.mrf.mxu0
  %2838 = vmatprep.mubr.f32.mxu0 0.0
  %2839 = vmatmul.mubr.f32.gmra.mxu0 %v2474
  %v2840 = vpop.f32.mrf.mxu0
  %v2841 = vadd.f32 0.0, %v2840
  %v2842 = vpop.f32.mrf.mxu0
  %2843 = vmatprep.mubr.f32.mxu0 0.0
  %2844 = vmatmul.mubr.f32.gmra.mxu0 %v2475
  %v2845 = vpop.f32.mrf.mxu0
  %v2846 = vadd.f32 0.0, %v2845
  %v2847 = vpop.f32.mrf.mxu0
  %2848 = vmatprep.mubr.f32.mxu0 0.0
  %2849 = vmatmul.mubr.f32.gmra.mxu0 %v2476
  %v2850 = vpop.f32.mrf.mxu0
  %v2851 = vadd.f32 0.0, %v2850
  %v2852 = vpop.f32.mrf.mxu0
  %2853 = vmatprep.mubr.f32.mxu0 0.0
  %2854 = vmatmul.mubr.f32.gmra.mxu0 %v2477
  %v2855 = vpop.f32.mrf.mxu0
  %v2856 = vadd.f32 0.0, %v2855
  %v2857 = vpop.f32.mrf.mxu0
  %2858 = vmatprep.mubr.f32.mxu0 0.0
  %2859 = vmatmul.mubr.f32.gmra.mxu0 %v2478
  %v2860 = vpop.f32.mrf.mxu0
  %v2861 = vadd.f32 0.0, %v2860
  %v2862 = vpop.f32.mrf.mxu0
  %2863 = vmatprep.mubr.f32.mxu0 0.0
  %2864 = vmatmul.mubr.f32.gmra.mxu0 %v2479
  %v2865 = vpop.f32.mrf.mxu0
  %v2866 = vadd.f32 0.0, %v2865
  %v2867 = vpop.f32.mrf.mxu0
  %2868 = vmatprep.mubr.f32.mxu0 0.0
  %2869 = vmatmul.mubr.f32.gmra.mxu0 %v2480
  %v2870 = vpop.f32.mrf.mxu0
  %v2871 = vadd.f32 0.0, %v2870
  %v2872 = vpop.f32.mrf.mxu0
  %2873 = vmatprep.mubr.f32.mxu0 0.0
  %2874 = vmatmul.mubr.f32.gmra.mxu0 %v2481
  %v2875 = vpop.f32.mrf.mxu0
  %v2876 = vadd.f32 0.0, %v2875
  %v2877 = vpop.f32.mrf.mxu0
  %2878 = vmatprep.mubr.f32.mxu0 0.0
  %2879 = vmatmul.mubr.f32.gmra.mxu0 %v2482
  %v2880 = vpop.f32.mrf.mxu0
  %v2881 = vadd.f32 0.0, %v2880
  %v2882 = vpop.f32.mrf.mxu0
  %2883 = vdwg.mxu0
  %v2884 = vadd.f32 %v2355, %v2566
  %v2885 = vadd.f32 %v2356, %v2571
  %v2886 = vadd.f32 %v2357, %v2576
  %v2887 = vadd.f32 %v2358, %v2581
  %v2888 = vadd.f32 %v2359, %v2586
  %v2889 = vadd.f32 %v2360, %v2591
  %v2890 = vadd.f32 %v2361, %v2596
  %v2891 = vadd.f32 %v2362, %v2601
  %v2892 = vadd.f32 %v2363, %v2606
  %v2893 = vadd.f32 %v2364, %v2611
  %v2894 = vadd.f32 %v2365, %v2616
  %v2895 = vadd.f32 %v2366, %v2621
  %v2896 = vadd.f32 %v2367, %v2626
  %v2897 = vadd.f32 %v2368, %v2631
  %v2898 = vadd.f32 %v2369, %v2636
  %v2899 = vadd.f32 %v2370, %v2641
  %v2900 = vadd.f32 %v2371, %v2646
  %v2901 = vadd.f32 %v2372, %v2651
  %v2902 = vadd.f32 %v2373, %v2656
  %v2903 = vadd.f32 %v2374, %v2661
  %v2904 = vadd.f32 %v2375, %v2666
  %v2905 = vadd.f32 %v2376, %v2671
  %v2906 = vadd.f32 %v2377, %v2676
  %v2907 = vadd.f32 %v2378, %v2681
  %v2908 = vadd.f32 %v2379, %v2686
  %v2909 = vadd.f32 %v2380, %v2691
  %v2910 = vadd.f32 %v2381, %v2696
  %v2911 = vadd.f32 %v2382, %v2701
  %v2912 = vadd.f32 %v2383, %v2706
  %v2913 = vadd.f32 %v2384, %v2711
  %v2914 = vadd.f32 %v2385, %v2716
  %v2915 = vadd.f32 %v2386, %v2721
  %v2916 = vadd.f32 %v2387, %v2726
  %v2917 = vadd.f32 %v2388, %v2731
  %v2918 = vadd.f32 %v2389, %v2736
  %v2919 = vadd.f32 %v2390, %v2741
  %v2920 = vadd.f32 %v2391, %v2746
  %v2921 = vadd.f32 %v2392, %v2751
  %v2922 = vadd.f32 %v2393, %v2756
  %v2923 = vadd.f32 %v2394, %v2761
  %v2924 = vadd.f32 %v2395, %v2766
  %v2925 = vadd.f32 %v2396, %v2771
  %v2926 = vadd.f32 %v2397, %v2776
  %v2927 = vadd.f32 %v2398, %v2781
  %v2928 = vadd.f32 %v2399, %v2786
  %v2929 = vadd.f32 %v2400, %v2791
  %v2930 = vadd.f32 %v2401, %v2796
  %v2931 = vadd.f32 %v2402, %v2801
  %v2932 = vadd.f32 %v2403, %v2806
  %v2933 = vadd.f32 %v2404, %v2811
  %v2934 = vadd.f32 %v2405, %v2816
  %v2935 = vadd.f32 %v2406, %v2821
  %v2936 = vadd.f32 %v2407, %v2826
  %v2937 = vadd.f32 %v2408, %v2831
  %v2938 = vadd.f32 %v2409, %v2836
  %v2939 = vadd.f32 %v2410, %v2841
  %v2940 = vadd.f32 %v2411, %v2846
  %v2941 = vadd.f32 %v2412, %v2851
  %v2942 = vadd.f32 %v2413, %v2856
  %v2943 = vadd.f32 %v2414, %v2861
  %v2944 = vadd.f32 %v2415, %v2866
  %v2945 = vadd.f32 %v2416, %v2871
  %v2946 = vadd.f32 %v2417, %v2876
  %v2947 = vadd.f32 %v2418, %v2881
  %v2948 = vld [vmem:[%s289 + $0x2] sm:$0xff]
  %v2949 = vld [vmem:[%s289 + $0xa] sm:$0xff]
  %v2950 = vld [vmem:[%s289 + $0x1a] sm:$0xff]
  %v2951 = vld [vmem:[%s289 + $0x22] sm:$0xff]
  %v2952 = vld [vmem:[%s289 + $0x32] sm:$0xff]
  %v2953 = vld [vmem:[%s289 + $0x3a] sm:$0xff]
  %v2954 = vld [vmem:[%s289 + $0x4a] sm:$0xff]
  %v2955 = vld [vmem:[%s289 + $0x52] sm:$0xff]
  %v2956 = vld [vmem:[%s289 + $0x62] sm:$0xff]
  %v2957 = vld [vmem:[%s289 + $0x6a] sm:$0xff]
  %v2958 = vld [vmem:[%s289 + $0x7a] sm:$0xff]
  %v2959 = vld [vmem:[%s289 + $0x82] sm:$0xff]
  %v2960 = vld [vmem:[%s289 + $0x92] sm:$0xff]
  %v2961 = vld [vmem:[%s289 + $0x9a] sm:$0xff]
  %v2962 = vld [vmem:[%s289 + $0xaa] sm:$0xff]
  %v2963 = vld [vmem:[%s289 + $0xb2] sm:$0xff]
  %v2964 = vld [vmem:[%s289 + $0xc2] sm:$0xff]
  %v2965 = vld [vmem:[%s289 + $0xca] sm:$0xff]
  %v2966 = vld [vmem:[%s289 + $0xda] sm:$0xff]
  %v2967 = vld [vmem:[%s289 + $0xe2] sm:$0xff]
  %v2968 = vld [vmem:[%s289 + $0xf2] sm:$0xff]
  %v2969 = vld [vmem:[%s289 + $0xfa] sm:$0xff]
  %v2970 = vld [vmem:[%s289 + $0x10a] sm:$0xff]
  %v2971 = vld [vmem:[%s289 + $0x112] sm:$0xff]
  %v2972 = vld [vmem:[%s289 + $0x122] sm:$0xff]
  %v2973 = vld [vmem:[%s289 + $0x12a] sm:$0xff]
  %v2974 = vld [vmem:[%s289 + $0x13a] sm:$0xff]
  %v2975 = vld [vmem:[%s289 + $0x142] sm:$0xff]
  %v2976 = vld [vmem:[%s289 + $0x152] sm:$0xff]
  %v2977 = vld [vmem:[%s289 + $0x15a] sm:$0xff]
  %v2978 = vld [vmem:[%s289 + $0x16a] sm:$0xff]
  %v2979 = vld [vmem:[%s289 + $0x172] sm:$0xff]
  %v2980 = vld [vmem:[%s289 + $0x1b2] sm:$0xff]
  %v2981 = vld [vmem:[%s289 + $0x1ba] sm:$0xff]
  %v2982 = vld [vmem:[%s289 + $0x1ca] sm:$0xff]
  %v2983 = vld [vmem:[%s289 + $0x1d2] sm:$0xff]
  %v2984 = vld [vmem:[%s289 + $0x1e2] sm:$0xff]
  %v2985 = vld [vmem:[%s289 + $0x1ea] sm:$0xff]
  %v2986 = vld [vmem:[%s289 + $0x1fa] sm:$0xff]
  %v2987 = vld [vmem:[%s289 + $0x202] sm:$0xff]
  %v2988 = vld [vmem:[%s289 + $0x212] sm:$0xff]
  %v2989 = vld [vmem:[%s289 + $0x21a] sm:$0xff]
  %v2990 = vld [vmem:[%s289 + $0x22a] sm:$0xff]
  %v2991 = vld [vmem:[%s289 + $0x232] sm:$0xff]
  %v2992 = vld [vmem:[%s289 + $0x242] sm:$0xff]
  %v2993 = vld [vmem:[%s289 + $0x24a] sm:$0xff]
  %v2994 = vld [vmem:[%s289 + $0x25a] sm:$0xff]
  %v2995 = vld [vmem:[%s289 + $0x262] sm:$0xff]
  %v2996 = vld [vmem:[%s289 + $0x272] sm:$0xff]
  %v2997 = vld [vmem:[%s289 + $0x27a] sm:$0xff]
  %v2998 = vld [vmem:[%s289 + $0x28a] sm:$0xff]
  %v2999 = vld [vmem:[%s289 + $0x292] sm:$0xff]
  %v3000 = vld [vmem:[%s289 + $0x2a2] sm:$0xff]
  %v3001 = vld [vmem:[%s289 + $0x2aa] sm:$0xff]
  %v3002 = vld [vmem:[%s289 + $0x2ba] sm:$0xff]
  %v3003 = vld [vmem:[%s289 + $0x2c2] sm:$0xff]
  %v3004 = vld [vmem:[%s289 + $0x2d2] sm:$0xff]
  %v3005 = vld [vmem:[%s289 + $0x2da] sm:$0xff]
  %v3006 = vld [vmem:[%s289 + $0x2ea] sm:$0xff]
  %v3007 = vld [vmem:[%s289 + $0x2f2] sm:$0xff]
  %v3008 = vld [vmem:[%s289 + $0x302] sm:$0xff]
  %v3009 = vld [vmem:[%s289 + $0x30a] sm:$0xff]
  %v3010 = vld [vmem:[%s289 + $0x31a] sm:$0xff]
  %v3011 = vld [vmem:[%s289 + $0x322] sm:$0xff]
  %v3012 = vld [vmem:[%s3 + $0x280] sm:$0xff]
  %v3013 = vld [vmem:[%s3 + $0x288] sm:$0xff]
  %v3014 = vld [vmem:[%s3 + $0x290] sm:$0xff]
  %v3015 = vld [vmem:[%s3 + $0x298] sm:$0xff]
  %v3016 = vld [vmem:[%s3 + $0x2a0] sm:$0xff]
  %v3017 = vld [vmem:[%s3 + $0x2a8] sm:$0xff]
  %v3018 = vld [vmem:[%s3 + $0x2b0] sm:$0xff]
  %v3019 = vld [vmem:[%s3 + $0x2b8] sm:$0xff]
  %v3020 = vld [vmem:[%s3 + $0x2c0] sm:$0xff]
  %v3021 = vld [vmem:[%s3 + $0x2c8] sm:$0xff]
  %v3022 = vld [vmem:[%s3 + $0x2d0] sm:$0xff]
  %v3023 = vld [vmem:[%s3 + $0x2d8] sm:$0xff]
  %v3024 = vld [vmem:[%s3 + $0x2e0] sm:$0xff]
  %v3025 = vld [vmem:[%s3 + $0x2e8] sm:$0xff]
  %v3026 = vld [vmem:[%s3 + $0x2f0] sm:$0xff]
  %v3027 = vld [vmem:[%s3 + $0x2f8] sm:$0xff]
  %3028 = vmatprep.subr.mxu0 0.0
  %3029 = vmatpush1.msra.mxu0 %v3027
  %3030 = vmatprep.subr.mxu0 0.0
  %3031 = vmatpush1.msra.mxu0 %v3026
  %3032 = vmatprep.subr.mxu0 0.0
  %3033 = vmatpush1.msra.mxu0 %v3025
  %3034 = vmatprep.subr.mxu0 0.0
  %3035 = vmatpush1.msra.mxu0 %v3024
  %3036 = vmatprep.subr.mxu0 0.0
  %3037 = vmatpush1.msra.mxu0 %v3023
  %3038 = vmatprep.subr.mxu0 0.0
  %3039 = vmatpush1.msra.mxu0 %v3022
  %3040 = vmatprep.subr.mxu0 0.0
  %3041 = vmatpush1.msra.mxu0 %v3021
  %3042 = vmatprep.subr.mxu0 0.0
  %3043 = vmatpush1.msra.mxu0 %v3020
  %3044 = vmatprep.subr.mxu0 0.0
  %3045 = vmatpush1.msra.mxu0 %v3019
  %3046 = vmatprep.subr.mxu0 0.0
  %3047 = vmatpush1.msra.mxu0 %v3018
  %3048 = vmatprep.subr.mxu0 0.0
  %3049 = vmatpush1.msra.mxu0 %v3017
  %3050 = vmatprep.subr.mxu0 0.0
  %3051 = vmatpush1.msra.mxu0 %v3016
  %3052 = vmatprep.subr.mxu0 0.0
  %3053 = vmatpush1.msra.mxu0 %v3015
  %3054 = vmatprep.subr.mxu0 0.0
  %3055 = vmatpush1.msra.mxu0 %v3014
  %3056 = vmatprep.subr.mxu0 0.0
  %3057 = vmatpush1.msra.mxu0 %v3013
  %3058 = vmatprep.subr.mxu0 0.0
  %3059 = vmatpush1.msra.mxu0 %v3012
  %3060 = vmatprep.subr.mxu0 0.0
  %3061 = vmatpush2.msra.mxu0 0.0
  %3062 = vmatprep.subr.mxu0 0.0
  %3063 = vmatpush2.msra.mxu0 0.0
  %3064 = vmatprep.subr.mxu0 0.0
  %3065 = vmatpush2.msra.mxu0 0.0
  %3066 = vmatprep.subr.mxu0 0.0
  %3067 = vmatpush2.msra.mxu0 0.0
  %3068 = vmatprep.subr.mxu0 0.0
  %3069 = vmatpush2.msra.mxu0 0.0
  %3070 = vmatprep.subr.mxu0 0.0
  %3071 = vmatpush2.msra.mxu0 0.0
  %3072 = vmatprep.subr.mxu0 0.0
  %3073 = vmatpush2.msra.mxu0 0.0
  %3074 = vmatprep.subr.mxu0 0.0
  %3075 = vmatpush2.msra.mxu0 0.0
  %3076 = vmatprep.subr.mxu0 0.0
  %3077 = vmatpush2.msra.mxu0 0.0
  %3078 = vmatprep.subr.mxu0 0.0
  %3079 = vmatpush2.msra.mxu0 0.0
  %3080 = vmatprep.subr.mxu0 0.0
  %3081 = vmatpush2.msra.mxu0 0.0
  %3082 = vmatprep.subr.mxu0 0.0
  %3083 = vmatpush2.msra.mxu0 0.0
  %3084 = vmatprep.subr.mxu0 0.0
  %3085 = vmatpush2.msra.mxu0 0.0
  %3086 = vmatprep.subr.mxu0 0.0
  %3087 = vmatpush2.msra.mxu0 0.0
  %3088 = vmatprep.subr.mxu0 0.0
  %3089 = vmatpush2.msra.mxu0 0.0
  %3090 = vmatprep.subr.mxu0 0.0
  %3091 = vmatpush2.msra.mxu0 0.0
  %3092 = vmatprep.mubr.f32.mxu0 0.0
  %3093 = vmatmul.mubr.f32.gmra.mxu0 %v2948
  %v3094 = vpop.f32.mrf.mxu0
  %v3095 = vadd.f32 0.0, %v3094
  %v3096 = vpop.f32.mrf.mxu0
  %3097 = vmatprep.mubr.f32.mxu0 0.0
  %3098 = vmatmul.mubr.f32.gmra.mxu0 %v2949
  %v3099 = vpop.f32.mrf.mxu0
  %v3100 = vadd.f32 0.0, %v3099
  %v3101 = vpop.f32.mrf.mxu0
  %3102 = vmatprep.mubr.f32.mxu0 0.0
  %3103 = vmatmul.mubr.f32.gmra.mxu0 %v2950
  %v3104 = vpop.f32.mrf.mxu0
  %v3105 = vadd.f32 0.0, %v3104
  %v3106 = vpop.f32.mrf.mxu0
  %3107 = vmatprep.mubr.f32.mxu0 0.0
  %3108 = vmatmul.mubr.f32.gmra.mxu0 %v2951
  %v3109 = vpop.f32.mrf.mxu0
  %v3110 = vadd.f32 0.0, %v3109
  %v3111 = vpop.f32.mrf.mxu0
  %3112 = vmatprep.mubr.f32.mxu0 0.0
  %3113 = vmatmul.mubr.f32.gmra.mxu0 %v2952
  %v3114 = vpop.f32.mrf.mxu0
  %v3115 = vadd.f32 0.0, %v3114
  %v3116 = vpop.f32.mrf.mxu0
  %3117 = vmatprep.mubr.f32.mxu0 0.0
  %3118 = vmatmul.mubr.f32.gmra.mxu0 %v2953
  %v3119 = vpop.f32.mrf.mxu0
  %v3120 = vadd.f32 0.0, %v3119
  %v3121 = vpop.f32.mrf.mxu0
  %3122 = vmatprep.mubr.f32.mxu0 0.0
  %3123 = vmatmul.mubr.f32.gmra.mxu0 %v2954
  %v3124 = vpop.f32.mrf.mxu0
  %v3125 = vadd.f32 0.0, %v3124
  %v3126 = vpop.f32.mrf.mxu0
  %3127 = vmatprep.mubr.f32.mxu0 0.0
  %3128 = vmatmul.mubr.f32.gmra.mxu0 %v2955
  %v3129 = vpop.f32.mrf.mxu0
  %v3130 = vadd.f32 0.0, %v3129
  %v3131 = vpop.f32.mrf.mxu0
  %3132 = vmatprep.mubr.f32.mxu0 0.0
  %3133 = vmatmul.mubr.f32.gmra.mxu0 %v2956
  %v3134 = vpop.f32.mrf.mxu0
  %v3135 = vadd.f32 0.0, %v3134
  %v3136 = vpop.f32.mrf.mxu0
  %3137 = vmatprep.mubr.f32.mxu0 0.0
  %3138 = vmatmul.mubr.f32.gmra.mxu0 %v2957
  %v3139 = vpop.f32.mrf.mxu0
  %v3140 = vadd.f32 0.0, %v3139
  %v3141 = vpop.f32.mrf.mxu0
  %3142 = vmatprep.mubr.f32.mxu0 0.0
  %3143 = vmatmul.mubr.f32.gmra.mxu0 %v2958
  %v3144 = vpop.f32.mrf.mxu0
  %v3145 = vadd.f32 0.0, %v3144
  %v3146 = vpop.f32.mrf.mxu0
  %3147 = vmatprep.mubr.f32.mxu0 0.0
  %3148 = vmatmul.mubr.f32.gmra.mxu0 %v2959
  %v3149 = vpop.f32.mrf.mxu0
  %v3150 = vadd.f32 0.0, %v3149
  %v3151 = vpop.f32.mrf.mxu0
  %3152 = vmatprep.mubr.f32.mxu0 0.0
  %3153 = vmatmul.mubr.f32.gmra.mxu0 %v2960
  %v3154 = vpop.f32.mrf.mxu0
  %v3155 = vadd.f32 0.0, %v3154
  %v3156 = vpop.f32.mrf.mxu0
  %3157 = vmatprep.mubr.f32.mxu0 0.0
  %3158 = vmatmul.mubr.f32.gmra.mxu0 %v2961
  %v3159 = vpop.f32.mrf.mxu0
  %v3160 = vadd.f32 0.0, %v3159
  %v3161 = vpop.f32.mrf.mxu0
  %3162 = vmatprep.mubr.f32.mxu0 0.0
  %3163 = vmatmul.mubr.f32.gmra.mxu0 %v2962
  %v3164 = vpop.f32.mrf.mxu0
  %v3165 = vadd.f32 0.0, %v3164
  %v3166 = vpop.f32.mrf.mxu0
  %3167 = vmatprep.mubr.f32.mxu0 0.0
  %3168 = vmatmul.mubr.f32.gmra.mxu0 %v2963
  %v3169 = vpop.f32.mrf.mxu0
  %v3170 = vadd.f32 0.0, %v3169
  %v3171 = vpop.f32.mrf.mxu0
  %3172 = vmatprep.mubr.f32.mxu0 0.0
  %3173 = vmatmul.mubr.f32.gmra.mxu0 %v2964
  %v3174 = vpop.f32.mrf.mxu0
  %v3175 = vadd.f32 0.0, %v3174
  %v3176 = vpop.f32.mrf.mxu0
  %3177 = vmatprep.mubr.f32.mxu0 0.0
  %3178 = vmatmul.mubr.f32.gmra.mxu0 %v2965
  %v3179 = vpop.f32.mrf.mxu0
  %v3180 = vadd.f32 0.0, %v3179
  %v3181 = vpop.f32.mrf.mxu0
  %3182 = vmatprep.mubr.f32.mxu0 0.0
  %3183 = vmatmul.mubr.f32.gmra.mxu0 %v2966
  %v3184 = vpop.f32.mrf.mxu0
  %v3185 = vadd.f32 0.0, %v3184
  %v3186 = vpop.f32.mrf.mxu0
  %3187 = vmatprep.mubr.f32.mxu0 0.0
  %3188 = vmatmul.mubr.f32.gmra.mxu0 %v2967
  %v3189 = vpop.f32.mrf.mxu0
  %v3190 = vadd.f32 0.0, %v3189
  %v3191 = vpop.f32.mrf.mxu0
  %3192 = vmatprep.mubr.f32.mxu0 0.0
  %3193 = vmatmul.mubr.f32.gmra.mxu0 %v2968
  %v3194 = vpop.f32.mrf.mxu0
  %v3195 = vadd.f32 0.0, %v3194
  %v3196 = vpop.f32.mrf.mxu0
  %3197 = vmatprep.mubr.f32.mxu0 0.0
  %3198 = vmatmul.mubr.f32.gmra.mxu0 %v2969
  %v3199 = vpop.f32.mrf.mxu0
  %v3200 = vadd.f32 0.0, %v3199
  %v3201 = vpop.f32.mrf.mxu0
  %3202 = vmatprep.mubr.f32.mxu0 0.0
  %3203 = vmatmul.mubr.f32.gmra.mxu0 %v2970
  %v3204 = vpop.f32.mrf.mxu0
  %v3205 = vadd.f32 0.0, %v3204
  %v3206 = vpop.f32.mrf.mxu0
  %3207 = vmatprep.mubr.f32.mxu0 0.0
  %3208 = vmatmul.mubr.f32.gmra.mxu0 %v2971
  %v3209 = vpop.f32.mrf.mxu0
  %v3210 = vadd.f32 0.0, %v3209
  %v3211 = vpop.f32.mrf.mxu0
  %3212 = vmatprep.mubr.f32.mxu0 0.0
  %3213 = vmatmul.mubr.f32.gmra.mxu0 %v2972
  %v3214 = vpop.f32.mrf.mxu0
  %v3215 = vadd.f32 0.0, %v3214
  %v3216 = vpop.f32.mrf.mxu0
  %3217 = vmatprep.mubr.f32.mxu0 0.0
  %3218 = vmatmul.mubr.f32.gmra.mxu0 %v2973
  %v3219 = vpop.f32.mrf.mxu0
  %v3220 = vadd.f32 0.0, %v3219
  %v3221 = vpop.f32.mrf.mxu0
  %3222 = vmatprep.mubr.f32.mxu0 0.0
  %3223 = vmatmul.mubr.f32.gmra.mxu0 %v2974
  %v3224 = vpop.f32.mrf.mxu0
  %v3225 = vadd.f32 0.0, %v3224
  %v3226 = vpop.f32.mrf.mxu0
  %3227 = vmatprep.mubr.f32.mxu0 0.0
  %3228 = vmatmul.mubr.f32.gmra.mxu0 %v2975
  %v3229 = vpop.f32.mrf.mxu0
  %v3230 = vadd.f32 0.0, %v3229
  %v3231 = vpop.f32.mrf.mxu0
  %3232 = vmatprep.mubr.f32.mxu0 0.0
  %3233 = vmatmul.mubr.f32.gmra.mxu0 %v2976
  %v3234 = vpop.f32.mrf.mxu0
  %v3235 = vadd.f32 0.0, %v3234
  %v3236 = vpop.f32.mrf.mxu0
  %3237 = vmatprep.mubr.f32.mxu0 0.0
  %3238 = vmatmul.mubr.f32.gmra.mxu0 %v2977
  %v3239 = vpop.f32.mrf.mxu0
  %v3240 = vadd.f32 0.0, %v3239
  %v3241 = vpop.f32.mrf.mxu0
  %3242 = vmatprep.mubr.f32.mxu0 0.0
  %3243 = vmatmul.mubr.f32.gmra.mxu0 %v2978
  %v3244 = vpop.f32.mrf.mxu0
  %v3245 = vadd.f32 0.0, %v3244
  %v3246 = vpop.f32.mrf.mxu0
  %3247 = vmatprep.mubr.f32.mxu0 0.0
  %3248 = vmatmul.mubr.f32.gmra.mxu0 %v2979
  %v3249 = vpop.f32.mrf.mxu0
  %v3250 = vadd.f32 0.0, %v3249
  %v3251 = vpop.f32.mrf.mxu0
  %3252 = vmatprep.mubr.f32.mxu0 0.0
  %3253 = vmatmul.mubr.f32.gmra.mxu0 %v2980
  %v3254 = vpop.f32.mrf.mxu0
  %v3255 = vadd.f32 0.0, %v3254
  %v3256 = vpop.f32.mrf.mxu0
  %3257 = vmatprep.mubr.f32.mxu0 0.0
  %3258 = vmatmul.mubr.f32.gmra.mxu0 %v2981
  %v3259 = vpop.f32.mrf.mxu0
  %v3260 = vadd.f32 0.0, %v3259
  %v3261 = vpop.f32.mrf.mxu0
  %3262 = vmatprep.mubr.f32.mxu0 0.0
  %3263 = vmatmul.mubr.f32.gmra.mxu0 %v2982
  %v3264 = vpop.f32.mrf.mxu0
  %v3265 = vadd.f32 0.0, %v3264
  %v3266 = vpop.f32.mrf.mxu0
  %3267 = vmatprep.mubr.f32.mxu0 0.0
  %3268 = vmatmul.mubr.f32.gmra.mxu0 %v2983
  %v3269 = vpop.f32.mrf.mxu0
  %v3270 = vadd.f32 0.0, %v3269
  %v3271 = vpop.f32.mrf.mxu0
  %3272 = vmatprep.mubr.f32.mxu0 0.0
  %3273 = vmatmul.mubr.f32.gmra.mxu0 %v2984
  %v3274 = vpop.f32.mrf.mxu0
  %v3275 = vadd.f32 0.0, %v3274
  %v3276 = vpop.f32.mrf.mxu0
  %3277 = vmatprep.mubr.f32.mxu0 0.0
  %3278 = vmatmul.mubr.f32.gmra.mxu0 %v2985
  %v3279 = vpop.f32.mrf.mxu0
  %v3280 = vadd.f32 0.0, %v3279
  %v3281 = vpop.f32.mrf.mxu0
  %3282 = vmatprep.mubr.f32.mxu0 0.0
  %3283 = vmatmul.mubr.f32.gmra.mxu0 %v2986
  %v3284 = vpop.f32.mrf.mxu0
  %v3285 = vadd.f32 0.0, %v3284
  %v3286 = vpop.f32.mrf.mxu0
  %3287 = vmatprep.mubr.f32.mxu0 0.0
  %3288 = vmatmul.mubr.f32.gmra.mxu0 %v2987
  %v3289 = vpop.f32.mrf.mxu0
  %v3290 = vadd.f32 0.0, %v3289
  %v3291 = vpop.f32.mrf.mxu0
  %3292 = vmatprep.mubr.f32.mxu0 0.0
  %3293 = vmatmul.mubr.f32.gmra.mxu0 %v2988
  %v3294 = vpop.f32.mrf.mxu0
  %v3295 = vadd.f32 0.0, %v3294
  %v3296 = vpop.f32.mrf.mxu0
  %3297 = vmatprep.mubr.f32.mxu0 0.0
  %3298 = vmatmul.mubr.f32.gmra.mxu0 %v2989
  %v3299 = vpop.f32.mrf.mxu0
  %v3300 = vadd.f32 0.0, %v3299
  %v3301 = vpop.f32.mrf.mxu0
  %3302 = vmatprep.mubr.f32.mxu0 0.0
  %3303 = vmatmul.mubr.f32.gmra.mxu0 %v2990
  %v3304 = vpop.f32.mrf.mxu0
  %v3305 = vadd.f32 0.0, %v3304
  %v3306 = vpop.f32.mrf.mxu0
  %3307 = vmatprep.mubr.f32.mxu0 0.0
  %3308 = vmatmul.mubr.f32.gmra.mxu0 %v2991
  %v3309 = vpop.f32.mrf.mxu0
  %v3310 = vadd.f32 0.0, %v3309
  %v3311 = vpop.f32.mrf.mxu0
  %3312 = vmatprep.mubr.f32.mxu0 0.0
  %3313 = vmatmul.mubr.f32.gmra.mxu0 %v2992
  %v3314 = vpop.f32.mrf.mxu0
  %v3315 = vadd.f32 0.0, %v3314
  %v3316 = vpop.f32.mrf.mxu0
  %3317 = vmatprep.mubr.f32.mxu0 0.0
  %3318 = vmatmul.mubr.f32.gmra.mxu0 %v2993
  %v3319 = vpop.f32.mrf.mxu0
  %v3320 = vadd.f32 0.0, %v3319
  %v3321 = vpop.f32.mrf.mxu0
  %3322 = vmatprep.mubr.f32.mxu0 0.0
  %3323 = vmatmul.mubr.f32.gmra.mxu0 %v2994
  %v3324 = vpop.f32.mrf.mxu0
  %v3325 = vadd.f32 0.0, %v3324
  %v3326 = vpop.f32.mrf.mxu0
  %3327 = vmatprep.mubr.f32.mxu0 0.0
  %3328 = vmatmul.mubr.f32.gmra.mxu0 %v2995
  %v3329 = vpop.f32.mrf.mxu0
  %v3330 = vadd.f32 0.0, %v3329
  %v3331 = vpop.f32.mrf.mxu0
  %3332 = vmatprep.mubr.f32.mxu0 0.0
  %3333 = vmatmul.mubr.f32.gmra.mxu0 %v2996
  %v3334 = vpop.f32.mrf.mxu0
  %v3335 = vadd.f32 0.0, %v3334
  %v3336 = vpop.f32.mrf.mxu0
  %3337 = vmatprep.mubr.f32.mxu0 0.0
  %3338 = vmatmul.mubr.f32.gmra.mxu0 %v2997
  %v3339 = vpop.f32.mrf.mxu0
  %v3340 = vadd.f32 0.0, %v3339
  %v3341 = vpop.f32.mrf.mxu0
  %3342 = vmatprep.mubr.f32.mxu0 0.0
  %3343 = vmatmul.mubr.f32.gmra.mxu0 %v2998
  %v3344 = vpop.f32.mrf.mxu0
  %v3345 = vadd.f32 0.0, %v3344
  %v3346 = vpop.f32.mrf.mxu0
  %3347 = vmatprep.mubr.f32.mxu0 0.0
  %3348 = vmatmul.mubr.f32.gmra.mxu0 %v2999
  %v3349 = vpop.f32.mrf.mxu0
  %v3350 = vadd.f32 0.0, %v3349
  %v3351 = vpop.f32.mrf.mxu0
  %3352 = vmatprep.mubr.f32.mxu0 0.0
  %3353 = vmatmul.mubr.f32.gmra.mxu0 %v3000
  %v3354 = vpop.f32.mrf.mxu0
  %v3355 = vadd.f32 0.0, %v3354
  %v3356 = vpop.f32.mrf.mxu0
  %3357 = vmatprep.mubr.f32.mxu0 0.0
  %3358 = vmatmul.mubr.f32.gmra.mxu0 %v3001
  %v3359 = vpop.f32.mrf.mxu0
  %v3360 = vadd.f32 0.0, %v3359
  %v3361 = vpop.f32.mrf.mxu0
  %3362 = vmatprep.mubr.f32.mxu0 0.0
  %3363 = vmatmul.mubr.f32.gmra.mxu0 %v3002
  %v3364 = vpop.f32.mrf.mxu0
  %v3365 = vadd.f32 0.0, %v3364
  %v3366 = vpop.f32.mrf.mxu0
  %3367 = vmatprep.mubr.f32.mxu0 0.0
  %3368 = vmatmul.mubr.f32.gmra.mxu0 %v3003
  %v3369 = vpop.f32.mrf.mxu0
  %v3370 = vadd.f32 0.0, %v3369
  %v3371 = vpop.f32.mrf.mxu0
  %3372 = vmatprep.mubr.f32.mxu0 0.0
  %3373 = vmatmul.mubr.f32.gmra.mxu0 %v3004
  %v3374 = vpop.f32.mrf.mxu0
  %v3375 = vadd.f32 0.0, %v3374
  %v3376 = vpop.f32.mrf.mxu0
  %3377 = vmatprep.mubr.f32.mxu0 0.0
  %3378 = vmatmul.mubr.f32.gmra.mxu0 %v3005
  %v3379 = vpop.f32.mrf.mxu0
  %v3380 = vadd.f32 0.0, %v3379
  %v3381 = vpop.f32.mrf.mxu0
  %3382 = vmatprep.mubr.f32.mxu0 0.0
  %3383 = vmatmul.mubr.f32.gmra.mxu0 %v3006
  %v3384 = vpop.f32.mrf.mxu0
  %v3385 = vadd.f32 0.0, %v3384
  %v3386 = vpop.f32.mrf.mxu0
  %3387 = vmatprep.mubr.f32.mxu0 0.0
  %3388 = vmatmul.mubr.f32.gmra.mxu0 %v3007
  %v3389 = vpop.f32.mrf.mxu0
  %v3390 = vadd.f32 0.0, %v3389
  %v3391 = vpop.f32.mrf.mxu0
  %3392 = vmatprep.mubr.f32.mxu0 0.0
  %3393 = vmatmul.mubr.f32.gmra.mxu0 %v3008
  %v3394 = vpop.f32.mrf.mxu0
  %v3395 = vadd.f32 0.0, %v3394
  %v3396 = vpop.f32.mrf.mxu0
  %3397 = vmatprep.mubr.f32.mxu0 0.0
  %3398 = vmatmul.mubr.f32.gmra.mxu0 %v3009
  %v3399 = vpop.f32.mrf.mxu0
  %v3400 = vadd.f32 0.0, %v3399
  %v3401 = vpop.f32.mrf.mxu0
  %3402 = vmatprep.mubr.f32.mxu0 0.0
  %3403 = vmatmul.mubr.f32.gmra.mxu0 %v3010
  %v3404 = vpop.f32.mrf.mxu0
  %v3405 = vadd.f32 0.0, %v3404
  %v3406 = vpop.f32.mrf.mxu0
  %3407 = vmatprep.mubr.f32.mxu0 0.0
  %3408 = vmatmul.mubr.f32.gmra.mxu0 %v3011
  %v3409 = vpop.f32.mrf.mxu0
  %v3410 = vadd.f32 0.0, %v3409
  %v3411 = vpop.f32.mrf.mxu0
  %3412 = vdwg.mxu0
  %v3413 = vadd.f32 %v2884, %v3095
  %v3414 = vadd.f32 %v2885, %v3100
  %v3415 = vadd.f32 %v2886, %v3105
  %v3416 = vadd.f32 %v2887, %v3110
  %v3417 = vadd.f32 %v2888, %v3115
  %v3418 = vadd.f32 %v2889, %v3120
  %v3419 = vadd.f32 %v2890, %v3125
  %v3420 = vadd.f32 %v2891, %v3130
  %v3421 = vadd.f32 %v2892, %v3135
  %v3422 = vadd.f32 %v2893, %v3140
  %v3423 = vadd.f32 %v2894, %v3145
  %v3424 = vadd.f32 %v2895, %v3150
  %v3425 = vadd.f32 %v2896, %v3155
  %v3426 = vadd.f32 %v2897, %v3160
  %v3427 = vadd.f32 %v2898, %v3165
  %v3428 = vadd.f32 %v2899, %v3170
  %v3429 = vadd.f32 %v2900, %v3175
  %v3430 = vadd.f32 %v2901, %v3180
  %v3431 = vadd.f32 %v2902, %v3185
  %v3432 = vadd.f32 %v2903, %v3190
  %v3433 = vadd.f32 %v2904, %v3195
  %v3434 = vadd.f32 %v2905, %v3200
  %v3435 = vadd.f32 %v2906, %v3205
  %v3436 = vadd.f32 %v2907, %v3210
  %v3437 = vadd.f32 %v2908, %v3215
  %v3438 = vadd.f32 %v2909, %v3220
  %v3439 = vadd.f32 %v2910, %v3225
  %v3440 = vadd.f32 %v2911, %v3230
  %v3441 = vadd.f32 %v2912, %v3235
  %v3442 = vadd.f32 %v2913, %v3240
  %v3443 = vadd.f32 %v2914, %v3245
  %v3444 = vadd.f32 %v2915, %v3250
  %v3445 = vadd.f32 %v2916, %v3255
  %v3446 = vadd.f32 %v2917, %v3260
  %v3447 = vadd.f32 %v2918, %v3265
  %v3448 = vadd.f32 %v2919, %v3270
  %v3449 = vadd.f32 %v2920, %v3275
  %v3450 = vadd.f32 %v2921, %v3280
  %v3451 = vadd.f32 %v2922, %v3285
  %v3452 = vadd.f32 %v2923, %v3290
  %v3453 = vadd.f32 %v2924, %v3295
  %v3454 = vadd.f32 %v2925, %v3300
  %v3455 = vadd.f32 %v2926, %v3305
  %v3456 = vadd.f32 %v2927, %v3310
  %v3457 = vadd.f32 %v2928, %v3315
  %v3458 = vadd.f32 %v2929, %v3320
  %v3459 = vadd.f32 %v2930, %v3325
  %v3460 = vadd.f32 %v2931, %v3330
  %v3461 = vadd.f32 %v2932, %v3335
  %v3462 = vadd.f32 %v2933, %v3340
  %v3463 = vadd.f32 %v2934, %v3345
  %v3464 = vadd.f32 %v2935, %v3350
  %v3465 = vadd.f32 %v2936, %v3355
  %v3466 = vadd.f32 %v2937, %v3360
  %v3467 = vadd.f32 %v2938, %v3365
  %v3468 = vadd.f32 %v2939, %v3370
  %v3469 = vadd.f32 %v2940, %v3375
  %v3470 = vadd.f32 %v2941, %v3380
  %v3471 = vadd.f32 %v2942, %v3385
  %v3472 = vadd.f32 %v2943, %v3390
  %v3473 = vadd.f32 %v2944, %v3395
  %v3474 = vadd.f32 %v2945, %v3400
  %v3475 = vadd.f32 %v2946, %v3405
  %v3476 = vadd.f32 %v2947, %v3410
  %s3477 = scalar_lea.vmem [#allocation2], 48
  %v3478 = vld [vmem:[%s3477] sm:$0xff]
  %v3479 = vld [vmem:[%s3477 + $0x8] sm:$0xff]
  %v3480 = vld [vmem:[%s3477 + $0x18] sm:$0xff]
  %v3481 = vld [vmem:[%s3477 + $0x20] sm:$0xff]
  %v3482 = vld [vmem:[%s3477 + $0x30] sm:$0xff]
  %v3483 = vld [vmem:[%s3477 + $0x38] sm:$0xff]
  %v3484 = vld [vmem:[%s3477 + $0x48] sm:$0xff]
  %v3485 = vld [vmem:[%s3477 + $0x50] sm:$0xff]
  %v3486 = vld [vmem:[%s3477 + $0x60] sm:$0xff]
  %v3487 = vld [vmem:[%s3477 + $0x68] sm:$0xff]
  %v3488 = vld [vmem:[%s3477 + $0x78] sm:$0xff]
  %v3489 = vld [vmem:[%s3477 + $0x80] sm:$0xff]
  %v3490 = vld [vmem:[%s3477 + $0x90] sm:$0xff]
  %v3491 = vld [vmem:[%s3477 + $0x98] sm:$0xff]
  %v3492 = vld [vmem:[%s3477 + $0xa8] sm:$0xff]
  %v3493 = vld [vmem:[%s3477 + $0xb0] sm:$0xff]
  %v3494 = vld [vmem:[%s3477 + $0xc0] sm:$0xff]
  %v3495 = vld [vmem:[%s3477 + $0xc8] sm:$0xff]
  %v3496 = vld [vmem:[%s3477 + $0xd8] sm:$0xff]
  %v3497 = vld [vmem:[%s3477 + $0xe0] sm:$0xff]
  %v3498 = vld [vmem:[%s3477 + $0xf0] sm:$0xff]
  %v3499 = vld [vmem:[%s3477 + $0xf8] sm:$0xff]
  %v3500 = vld [vmem:[%s3477 + $0x108] sm:$0xff]
  %v3501 = vld [vmem:[%s3477 + $0x110] sm:$0xff]
  %v3502 = vld [vmem:[%s3477 + $0x120] sm:$0xff]
  %v3503 = vld [vmem:[%s3477 + $0x128] sm:$0xff]
  %v3504 = vld [vmem:[%s3477 + $0x138] sm:$0xff]
  %v3505 = vld [vmem:[%s3477 + $0x140] sm:$0xff]
  %v3506 = vld [vmem:[%s3477 + $0x150] sm:$0xff]
  %v3507 = vld [vmem:[%s3477 + $0x158] sm:$0xff]
  %v3508 = vld [vmem:[%s3477 + $0x168] sm:$0xff]
  %v3509 = vld [vmem:[%s3477 + $0x170] sm:$0xff]
  %v3510 = vld [vmem:[%s3477 + $0x1b0] sm:$0xff]
  %v3511 = vld [vmem:[%s3477 + $0x1b8] sm:$0xff]
  %v3512 = vld [vmem:[%s3477 + $0x1c8] sm:$0xff]
  %v3513 = vld [vmem:[%s3477 + $0x1d0] sm:$0xff]
  %v3514 = vld [vmem:[%s3477 + $0x1e0] sm:$0xff]
  %v3515 = vld [vmem:[%s3477 + $0x1e8] sm:$0xff]
  %v3516 = vld [vmem:[%s3477 + $0x1f8] sm:$0xff]
  %v3517 = vld [vmem:[%s3477 + $0x200] sm:$0xff]
  %v3518 = vld [vmem:[%s3477 + $0x210] sm:$0xff]
  %v3519 = vld [vmem:[%s3477 + $0x218] sm:$0xff]
  %v3520 = vld [vmem:[%s3477 + $0x228] sm:$0xff]
  %v3521 = vld [vmem:[%s3477 + $0x230] sm:$0xff]
  %v3522 = vld [vmem:[%s3477 + $0x240] sm:$0xff]
  %v3523 = vld [vmem:[%s3477 + $0x248] sm:$0xff]
  %v3524 = vld [vmem:[%s3477 + $0x258] sm:$0xff]
  %v3525 = vld [vmem:[%s3477 + $0x260] sm:$0xff]
  %v3526 = vld [vmem:[%s3477 + $0x270] sm:$0xff]
  %v3527 = vld [vmem:[%s3477 + $0x278] sm:$0xff]
  %v3528 = vld [vmem:[%s3477 + $0x288] sm:$0xff]
  %v3529 = vld [vmem:[%s3477 + $0x290] sm:$0xff]
  %v3530 = vld [vmem:[%s3477 + $0x2a0] sm:$0xff]
  %v3531 = vld [vmem:[%s3477 + $0x2a8] sm:$0xff]
  %v3532 = vld [vmem:[%s3477 + $0x2b8] sm:$0xff]
  %v3533 = vld [vmem:[%s3477 + $0x2c0] sm:$0xff]
  %v3534 = vld [vmem:[%s3477 + $0x2d0] sm:$0xff]
  %v3535 = vld [vmem:[%s3477 + $0x2d8] sm:$0xff]
  %v3536 = vld [vmem:[%s3477 + $0x2e8] sm:$0xff]
  %v3537 = vld [vmem:[%s3477 + $0x2f0] sm:$0xff]
  %v3538 = vld [vmem:[%s3477 + $0x300] sm:$0xff]
  %v3539 = vld [vmem:[%s3477 + $0x308] sm:$0xff]
  %v3540 = vld [vmem:[%s3477 + $0x318] sm:$0xff]
  %v3541 = vld [vmem:[%s3477 + $0x320] sm:$0xff]
  %v3542 = vld [vmem:[%s3 + $0x300] sm:$0xff]
  %v3543 = vld [vmem:[%s3 + $0x308] sm:$0xff]
  %v3544 = vld [vmem:[%s3 + $0x310] sm:$0xff]
  %v3545 = vld [vmem:[%s3 + $0x318] sm:$0xff]
  %v3546 = vld [vmem:[%s3 + $0x320] sm:$0xff]
  %v3547 = vld [vmem:[%s3 + $0x328] sm:$0xff]
  %v3548 = vld [vmem:[%s3 + $0x330] sm:$0xff]
  %v3549 = vld [vmem:[%s3 + $0x338] sm:$0xff]
  %v3550 = vld [vmem:[%s3 + $0x340] sm:$0xff]
  %v3551 = vld [vmem:[%s3 + $0x348] sm:$0xff]
  %v3552 = vld [vmem:[%s3 + $0x350] sm:$0xff]
  %v3553 = vld [vmem:[%s3 + $0x358] sm:$0xff]
  %v3554 = vld [vmem:[%s3 + $0x360] sm:$0xff]
  %v3555 = vld [vmem:[%s3 + $0x368] sm:$0xff]
  %v3556 = vld [vmem:[%s3 + $0x370] sm:$0xff]
  %v3557 = vld [vmem:[%s3 + $0x378] sm:$0xff]
  %3558 = vmatprep.subr.mxu0 0.0
  %3559 = vmatpush1.msra.mxu0 %v3557
  %3560 = vmatprep.subr.mxu0 0.0
  %3561 = vmatpush1.msra.mxu0 %v3556
  %3562 = vmatprep.subr.mxu0 0.0
  %3563 = vmatpush1.msra.mxu0 %v3555
  %3564 = vmatprep.subr.mxu0 0.0
  %3565 = vmatpush1.msra.mxu0 %v3554
  %3566 = vmatprep.subr.mxu0 0.0
  %3567 = vmatpush1.msra.mxu0 %v3553
  %3568 = vmatprep.subr.mxu0 0.0
  %3569 = vmatpush1.msra.mxu0 %v3552
  %3570 = vmatprep.subr.mxu0 0.0
  %3571 = vmatpush1.msra.mxu0 %v3551
  %3572 = vmatprep.subr.mxu0 0.0
  %3573 = vmatpush1.msra.mxu0 %v3550
  %3574 = vmatprep.subr.mxu0 0.0
  %3575 = vmatpush1.msra.mxu0 %v3549
  %3576 = vmatprep.subr.mxu0 0.0
  %3577 = vmatpush1.msra.mxu0 %v3548
  %3578 = vmatprep.subr.mxu0 0.0
  %3579 = vmatpush1.msra.mxu0 %v3547
  %3580 = vmatprep.subr.mxu0 0.0
  %3581 = vmatpush1.msra.mxu0 %v3546
  %3582 = vmatprep.subr.mxu0 0.0
  %3583 = vmatpush1.msra.mxu0 %v3545
  %3584 = vmatprep.subr.mxu0 0.0
  %3585 = vmatpush1.msra.mxu0 %v3544
  %3586 = vmatprep.subr.mxu0 0.0
  %3587 = vmatpush1.msra.mxu0 %v3543
  %3588 = vmatprep.subr.mxu0 0.0
  %3589 = vmatpush1.msra.mxu0 %v3542
  %3590 = vmatprep.subr.mxu0 0.0
  %3591 = vmatpush2.msra.mxu0 0.0
  %3592 = vmatprep.subr.mxu0 0.0
  %3593 = vmatpush2.msra.mxu0 0.0
  %3594 = vmatprep.subr.mxu0 0.0
  %3595 = vmatpush2.msra.mxu0 0.0
  %3596 = vmatprep.subr.mxu0 0.0
  %3597 = vmatpush2.msra.mxu0 0.0
  %3598 = vmatprep.subr.mxu0 0.0
  %3599 = vmatpush2.msra.mxu0 0.0
  %3600 = vmatprep.subr.mxu0 0.0
  %3601 = vmatpush2.msra.mxu0 0.0
  %3602 = vmatprep.subr.mxu0 0.0
  %3603 = vmatpush2.msra.mxu0 0.0
  %3604 = vmatprep.subr.mxu0 0.0
  %3605 = vmatpush2.msra.mxu0 0.0
  %3606 = vmatprep.subr.mxu0 0.0
  %3607 = vmatpush2.msra.mxu0 0.0
  %3608 = vmatprep.subr.mxu0 0.0
  %3609 = vmatpush2.msra.mxu0 0.0
  %3610 = vmatprep.subr.mxu0 0.0
  %3611 = vmatpush2.msra.mxu0 0.0
  %3612 = vmatprep.subr.mxu0 0.0
  %3613 = vmatpush2.msra.mxu0 0.0
  %3614 = vmatprep.subr.mxu0 0.0
  %3615 = vmatpush2.msra.mxu0 0.0
  %3616 = vmatprep.subr.mxu0 0.0
  %3617 = vmatpush2.msra.mxu0 0.0
  %3618 = vmatprep.subr.mxu0 0.0
  %3619 = vmatpush2.msra.mxu0 0.0
  %3620 = vmatprep.subr.mxu0 0.0
  %3621 = vmatpush2.msra.mxu0 0.0
  %3622 = vmatprep.mubr.f32.mxu0 0.0
  %3623 = vmatmul.mubr.f32.gmra.mxu0 %v3478
  %v3624 = vpop.f32.mrf.mxu0
  %v3625 = vadd.f32 0.0, %v3624
  %v3626 = vpop.f32.mrf.mxu0
  %3627 = vmatprep.mubr.f32.mxu0 0.0
  %3628 = vmatmul.mubr.f32.gmra.mxu0 %v3479
  %v3629 = vpop.f32.mrf.mxu0
  %v3630 = vadd.f32 0.0, %v3629
  %v3631 = vpop.f32.mrf.mxu0
  %3632 = vmatprep.mubr.f32.mxu0 0.0
  %3633 = vmatmul.mubr.f32.gmra.mxu0 %v3480
  %v3634 = vpop.f32.mrf.mxu0
  %v3635 = vadd.f32 0.0, %v3634
  %v3636 = vpop.f32.mrf.mxu0
  %3637 = vmatprep.mubr.f32.mxu0 0.0
  %3638 = vmatmul.mubr.f32.gmra.mxu0 %v3481
  %v3639 = vpop.f32.mrf.mxu0
  %v3640 = vadd.f32 0.0, %v3639
  %v3641 = vpop.f32.mrf.mxu0
  %3642 = vmatprep.mubr.f32.mxu0 0.0
  %3643 = vmatmul.mubr.f32.gmra.mxu0 %v3482
  %v3644 = vpop.f32.mrf.mxu0
  %v3645 = vadd.f32 0.0, %v3644
  %v3646 = vpop.f32.mrf.mxu0
  %3647 = vmatprep.mubr.f32.mxu0 0.0
  %3648 = vmatmul.mubr.f32.gmra.mxu0 %v3483
  %v3649 = vpop.f32.mrf.mxu0
  %v3650 = vadd.f32 0.0, %v3649
  %v3651 = vpop.f32.mrf.mxu0
  %3652 = vmatprep.mubr.f32.mxu0 0.0
  %3653 = vmatmul.mubr.f32.gmra.mxu0 %v3484
  %v3654 = vpop.f32.mrf.mxu0
  %v3655 = vadd.f32 0.0, %v3654
  %v3656 = vpop.f32.mrf.mxu0
  %3657 = vmatprep.mubr.f32.mxu0 0.0
  %3658 = vmatmul.mubr.f32.gmra.mxu0 %v3485
  %v3659 = vpop.f32.mrf.mxu0
  %v3660 = vadd.f32 0.0, %v3659
  %v3661 = vpop.f32.mrf.mxu0
  %3662 = vmatprep.mubr.f32.mxu0 0.0
  %3663 = vmatmul.mubr.f32.gmra.mxu0 %v3486
  %v3664 = vpop.f32.mrf.mxu0
  %v3665 = vadd.f32 0.0, %v3664
  %v3666 = vpop.f32.mrf.mxu0
  %3667 = vmatprep.mubr.f32.mxu0 0.0
  %3668 = vmatmul.mubr.f32.gmra.mxu0 %v3487
  %v3669 = vpop.f32.mrf.mxu0
  %v3670 = vadd.f32 0.0, %v3669
  %v3671 = vpop.f32.mrf.mxu0
  %3672 = vmatprep.mubr.f32.mxu0 0.0
  %3673 = vmatmul.mubr.f32.gmra.mxu0 %v3488
  %v3674 = vpop.f32.mrf.mxu0
  %v3675 = vadd.f32 0.0, %v3674
  %v3676 = vpop.f32.mrf.mxu0
  %3677 = vmatprep.mubr.f32.mxu0 0.0
  %3678 = vmatmul.mubr.f32.gmra.mxu0 %v3489
  %v3679 = vpop.f32.mrf.mxu0
  %v3680 = vadd.f32 0.0, %v3679
  %v3681 = vpop.f32.mrf.mxu0
  %3682 = vmatprep.mubr.f32.mxu0 0.0
  %3683 = vmatmul.mubr.f32.gmra.mxu0 %v3490
  %v3684 = vpop.f32.mrf.mxu0
  %v3685 = vadd.f32 0.0, %v3684
  %v3686 = vpop.f32.mrf.mxu0
  %3687 = vmatprep.mubr.f32.mxu0 0.0
  %3688 = vmatmul.mubr.f32.gmra.mxu0 %v3491
  %v3689 = vpop.f32.mrf.mxu0
  %v3690 = vadd.f32 0.0, %v3689
  %v3691 = vpop.f32.mrf.mxu0
  %3692 = vmatprep.mubr.f32.mxu0 0.0
  %3693 = vmatmul.mubr.f32.gmra.mxu0 %v3492
  %v3694 = vpop.f32.mrf.mxu0
  %v3695 = vadd.f32 0.0, %v3694
  %v3696 = vpop.f32.mrf.mxu0
  %3697 = vmatprep.mubr.f32.mxu0 0.0
  %3698 = vmatmul.mubr.f32.gmra.mxu0 %v3493
  %v3699 = vpop.f32.mrf.mxu0
  %v3700 = vadd.f32 0.0, %v3699
  %v3701 = vpop.f32.mrf.mxu0
  %3702 = vmatprep.mubr.f32.mxu0 0.0
  %3703 = vmatmul.mubr.f32.gmra.mxu0 %v3494
  %v3704 = vpop.f32.mrf.mxu0
  %v3705 = vadd.f32 0.0, %v3704
  %v3706 = vpop.f32.mrf.mxu0
  %3707 = vmatprep.mubr.f32.mxu0 0.0
  %3708 = vmatmul.mubr.f32.gmra.mxu0 %v3495
  %v3709 = vpop.f32.mrf.mxu0
  %v3710 = vadd.f32 0.0, %v3709
  %v3711 = vpop.f32.mrf.mxu0
  %3712 = vmatprep.mubr.f32.mxu0 0.0
  %3713 = vmatmul.mubr.f32.gmra.mxu0 %v3496
  %v3714 = vpop.f32.mrf.mxu0
  %v3715 = vadd.f32 0.0, %v3714
  %v3716 = vpop.f32.mrf.mxu0
  %3717 = vmatprep.mubr.f32.mxu0 0.0
  %3718 = vmatmul.mubr.f32.gmra.mxu0 %v3497
  %v3719 = vpop.f32.mrf.mxu0
  %v3720 = vadd.f32 0.0, %v3719
  %v3721 = vpop.f32.mrf.mxu0
  %3722 = vmatprep.mubr.f32.mxu0 0.0
  %3723 = vmatmul.mubr.f32.gmra.mxu0 %v3498
  %v3724 = vpop.f32.mrf.mxu0
  %v3725 = vadd.f32 0.0, %v3724
  %v3726 = vpop.f32.mrf.mxu0
  %3727 = vmatprep.mubr.f32.mxu0 0.0
  %3728 = vmatmul.mubr.f32.gmra.mxu0 %v3499
  %v3729 = vpop.f32.mrf.mxu0
  %v3730 = vadd.f32 0.0, %v3729
  %v3731 = vpop.f32.mrf.mxu0
  %3732 = vmatprep.mubr.f32.mxu0 0.0
  %3733 = vmatmul.mubr.f32.gmra.mxu0 %v3500
  %v3734 = vpop.f32.mrf.mxu0
  %v3735 = vadd.f32 0.0, %v3734
  %v3736 = vpop.f32.mrf.mxu0
  %3737 = vmatprep.mubr.f32.mxu0 0.0
  %3738 = vmatmul.mubr.f32.gmra.mxu0 %v3501
  %v3739 = vpop.f32.mrf.mxu0
  %v3740 = vadd.f32 0.0, %v3739
  %v3741 = vpop.f32.mrf.mxu0
  %3742 = vmatprep.mubr.f32.mxu0 0.0
  %3743 = vmatmul.mubr.f32.gmra.mxu0 %v3502
  %v3744 = vpop.f32.mrf.mxu0
  %v3745 = vadd.f32 0.0, %v3744
  %v3746 = vpop.f32.mrf.mxu0
  %3747 = vmatprep.mubr.f32.mxu0 0.0
  %3748 = vmatmul.mubr.f32.gmra.mxu0 %v3503
  %v3749 = vpop.f32.mrf.mxu0
  %v3750 = vadd.f32 0.0, %v3749
  %v3751 = vpop.f32.mrf.mxu0
  %3752 = vmatprep.mubr.f32.mxu0 0.0
  %3753 = vmatmul.mubr.f32.gmra.mxu0 %v3504
  %v3754 = vpop.f32.mrf.mxu0
  %v3755 = vadd.f32 0.0, %v3754
  %v3756 = vpop.f32.mrf.mxu0
  %3757 = vmatprep.mubr.f32.mxu0 0.0
  %3758 = vmatmul.mubr.f32.gmra.mxu0 %v3505
  %v3759 = vpop.f32.mrf.mxu0
  %v3760 = vadd.f32 0.0, %v3759
  %v3761 = vpop.f32.mrf.mxu0
  %3762 = vmatprep.mubr.f32.mxu0 0.0
  %3763 = vmatmul.mubr.f32.gmra.mxu0 %v3506
  %v3764 = vpop.f32.mrf.mxu0
  %v3765 = vadd.f32 0.0, %v3764
  %v3766 = vpop.f32.mrf.mxu0
  %3767 = vmatprep.mubr.f32.mxu0 0.0
  %3768 = vmatmul.mubr.f32.gmra.mxu0 %v3507
  %v3769 = vpop.f32.mrf.mxu0
  %v3770 = vadd.f32 0.0, %v3769
  %v3771 = vpop.f32.mrf.mxu0
  %3772 = vmatprep.mubr.f32.mxu0 0.0
  %3773 = vmatmul.mubr.f32.gmra.mxu0 %v3508
  %v3774 = vpop.f32.mrf.mxu0
  %v3775 = vadd.f32 0.0, %v3774
  %v3776 = vpop.f32.mrf.mxu0
  %3777 = vmatprep.mubr.f32.mxu0 0.0
  %3778 = vmatmul.mubr.f32.gmra.mxu0 %v3509
  %v3779 = vpop.f32.mrf.mxu0
  %v3780 = vadd.f32 0.0, %v3779
  %v3781 = vpop.f32.mrf.mxu0
  %3782 = vmatprep.mubr.f32.mxu0 0.0
  %3783 = vmatmul.mubr.f32.gmra.mxu0 %v3510
  %v3784 = vpop.f32.mrf.mxu0
  %v3785 = vadd.f32 0.0, %v3784
  %v3786 = vpop.f32.mrf.mxu0
  %3787 = vmatprep.mubr.f32.mxu0 0.0
  %3788 = vmatmul.mubr.f32.gmra.mxu0 %v3511
  %v3789 = vpop.f32.mrf.mxu0
  %v3790 = vadd.f32 0.0, %v3789
  %v3791 = vpop.f32.mrf.mxu0
  %3792 = vmatprep.mubr.f32.mxu0 0.0
  %3793 = vmatmul.mubr.f32.gmra.mxu0 %v3512
  %v3794 = vpop.f32.mrf.mxu0
  %v3795 = vadd.f32 0.0, %v3794
  %v3796 = vpop.f32.mrf.mxu0
  %3797 = vmatprep.mubr.f32.mxu0 0.0
  %3798 = vmatmul.mubr.f32.gmra.mxu0 %v3513
  %v3799 = vpop.f32.mrf.mxu0
  %v3800 = vadd.f32 0.0, %v3799
  %v3801 = vpop.f32.mrf.mxu0
  %3802 = vmatprep.mubr.f32.mxu0 0.0
  %3803 = vmatmul.mubr.f32.gmra.mxu0 %v3514
  %v3804 = vpop.f32.mrf.mxu0
  %v3805 = vadd.f32 0.0, %v3804
  %v3806 = vpop.f32.mrf.mxu0
  %3807 = vmatprep.mubr.f32.mxu0 0.0
  %3808 = vmatmul.mubr.f32.gmra.mxu0 %v3515
  %v3809 = vpop.f32.mrf.mxu0
  %v3810 = vadd.f32 0.0, %v3809
  %v3811 = vpop.f32.mrf.mxu0
  %3812 = vmatprep.mubr.f32.mxu0 0.0
  %3813 = vmatmul.mubr.f32.gmra.mxu0 %v3516
  %v3814 = vpop.f32.mrf.mxu0
  %v3815 = vadd.f32 0.0, %v3814
  %v3816 = vpop.f32.mrf.mxu0
  %3817 = vmatprep.mubr.f32.mxu0 0.0
  %3818 = vmatmul.mubr.f32.gmra.mxu0 %v3517
  %v3819 = vpop.f32.mrf.mxu0
  %v3820 = vadd.f32 0.0, %v3819
  %v3821 = vpop.f32.mrf.mxu0
  %3822 = vmatprep.mubr.f32.mxu0 0.0
  %3823 = vmatmul.mubr.f32.gmra.mxu0 %v3518
  %v3824 = vpop.f32.mrf.mxu0
  %v3825 = vadd.f32 0.0, %v3824
  %v3826 = vpop.f32.mrf.mxu0
  %3827 = vmatprep.mubr.f32.mxu0 0.0
  %3828 = vmatmul.mubr.f32.gmra.mxu0 %v3519
  %v3829 = vpop.f32.mrf.mxu0
  %v3830 = vadd.f32 0.0, %v3829
  %v3831 = vpop.f32.mrf.mxu0
  %3832 = vmatprep.mubr.f32.mxu0 0.0
  %3833 = vmatmul.mubr.f32.gmra.mxu0 %v3520
  %v3834 = vpop.f32.mrf.mxu0
  %v3835 = vadd.f32 0.0, %v3834
  %v3836 = vpop.f32.mrf.mxu0
  %3837 = vmatprep.mubr.f32.mxu0 0.0
  %3838 = vmatmul.mubr.f32.gmra.mxu0 %v3521
  %v3839 = vpop.f32.mrf.mxu0
  %v3840 = vadd.f32 0.0, %v3839
  %v3841 = vpop.f32.mrf.mxu0
  %3842 = vmatprep.mubr.f32.mxu0 0.0
  %3843 = vmatmul.mubr.f32.gmra.mxu0 %v3522
  %v3844 = vpop.f32.mrf.mxu0
  %v3845 = vadd.f32 0.0, %v3844
  %v3846 = vpop.f32.mrf.mxu0
  %3847 = vmatprep.mubr.f32.mxu0 0.0
  %3848 = vmatmul.mubr.f32.gmra.mxu0 %v3523
  %v3849 = vpop.f32.mrf.mxu0
  %v3850 = vadd.f32 0.0, %v3849
  %v3851 = vpop.f32.mrf.mxu0
  %3852 = vmatprep.mubr.f32.mxu0 0.0
  %3853 = vmatmul.mubr.f32.gmra.mxu0 %v3524
  %v3854 = vpop.f32.mrf.mxu0
  %v3855 = vadd.f32 0.0, %v3854
  %v3856 = vpop.f32.mrf.mxu0
  %3857 = vmatprep.mubr.f32.mxu0 0.0
  %3858 = vmatmul.mubr.f32.gmra.mxu0 %v3525
  %v3859 = vpop.f32.mrf.mxu0
  %v3860 = vadd.f32 0.0, %v3859
  %v3861 = vpop.f32.mrf.mxu0
  %3862 = vmatprep.mubr.f32.mxu0 0.0
  %3863 = vmatmul.mubr.f32.gmra.mxu0 %v3526
  %v3864 = vpop.f32.mrf.mxu0
  %v3865 = vadd.f32 0.0, %v3864
  %v3866 = vpop.f32.mrf.mxu0
  %3867 = vmatprep.mubr.f32.mxu0 0.0
  %3868 = vmatmul.mubr.f32.gmra.mxu0 %v3527
  %v3869 = vpop.f32.mrf.mxu0
  %v3870 = vadd.f32 0.0, %v3869
  %v3871 = vpop.f32.mrf.mxu0
  %3872 = vmatprep.mubr.f32.mxu0 0.0
  %3873 = vmatmul.mubr.f32.gmra.mxu0 %v3528
  %v3874 = vpop.f32.mrf.mxu0
  %v3875 = vadd.f32 0.0, %v3874
  %v3876 = vpop.f32.mrf.mxu0
  %3877 = vmatprep.mubr.f32.mxu0 0.0
  %3878 = vmatmul.mubr.f32.gmra.mxu0 %v3529
  %v3879 = vpop.f32.mrf.mxu0
  %v3880 = vadd.f32 0.0, %v3879
  %v3881 = vpop.f32.mrf.mxu0
  %3882 = vmatprep.mubr.f32.mxu0 0.0
  %3883 = vmatmul.mubr.f32.gmra.mxu0 %v3530
  %v3884 = vpop.f32.mrf.mxu0
  %v3885 = vadd.f32 0.0, %v3884
  %v3886 = vpop.f32.mrf.mxu0
  %3887 = vmatprep.mubr.f32.mxu0 0.0
  %3888 = vmatmul.mubr.f32.gmra.mxu0 %v3531
  %v3889 = vpop.f32.mrf.mxu0
  %v3890 = vadd.f32 0.0, %v3889
  %v3891 = vpop.f32.mrf.mxu0
  %3892 = vmatprep.mubr.f32.mxu0 0.0
  %3893 = vmatmul.mubr.f32.gmra.mxu0 %v3532
  %v3894 = vpop.f32.mrf.mxu0
  %v3895 = vadd.f32 0.0, %v3894
  %v3896 = vpop.f32.mrf.mxu0
  %3897 = vmatprep.mubr.f32.mxu0 0.0
  %3898 = vmatmul.mubr.f32.gmra.mxu0 %v3533
  %v3899 = vpop.f32.mrf.mxu0
  %v3900 = vadd.f32 0.0, %v3899
  %v3901 = vpop.f32.mrf.mxu0
  %3902 = vmatprep.mubr.f32.mxu0 0.0
  %3903 = vmatmul.mubr.f32.gmra.mxu0 %v3534
  %v3904 = vpop.f32.mrf.mxu0
  %v3905 = vadd.f32 0.0, %v3904
  %v3906 = vpop.f32.mrf.mxu0
  %3907 = vmatprep.mubr.f32.mxu0 0.0
  %3908 = vmatmul.mubr.f32.gmra.mxu0 %v3535
  %v3909 = vpop.f32.mrf.mxu0
  %v3910 = vadd.f32 0.0, %v3909
  %v3911 = vpop.f32.mrf.mxu0
  %3912 = vmatprep.mubr.f32.mxu0 0.0
  %3913 = vmatmul.mubr.f32.gmra.mxu0 %v3536
  %v3914 = vpop.f32.mrf.mxu0
  %v3915 = vadd.f32 0.0, %v3914
  %v3916 = vpop.f32.mrf.mxu0
  %3917 = vmatprep.mubr.f32.mxu0 0.0
  %3918 = vmatmul.mubr.f32.gmra.mxu0 %v3537
  %v3919 = vpop.f32.mrf.mxu0
  %v3920 = vadd.f32 0.0, %v3919
  %v3921 = vpop.f32.mrf.mxu0
  %3922 = vmatprep.mubr.f32.mxu0 0.0
  %3923 = vmatmul.mubr.f32.gmra.mxu0 %v3538
  %v3924 = vpop.f32.mrf.mxu0
  %v3925 = vadd.f32 0.0, %v3924
  %v3926 = vpop.f32.mrf.mxu0
  %3927 = vmatprep.mubr.f32.mxu0 0.0
  %3928 = vmatmul.mubr.f32.gmra.mxu0 %v3539
  %v3929 = vpop.f32.mrf.mxu0
  %v3930 = vadd.f32 0.0, %v3929
  %v3931 = vpop.f32.mrf.mxu0
  %3932 = vmatprep.mubr.f32.mxu0 0.0
  %3933 = vmatmul.mubr.f32.gmra.mxu0 %v3540
  %v3934 = vpop.f32.mrf.mxu0
  %v3935 = vadd.f32 0.0, %v3934
  %v3936 = vpop.f32.mrf.mxu0
  %3937 = vmatprep.mubr.f32.mxu0 0.0
  %3938 = vmatmul.mubr.f32.gmra.mxu0 %v3541
  %v3939 = vpop.f32.mrf.mxu0
  %v3940 = vadd.f32 0.0, %v3939
  %v3941 = vpop.f32.mrf.mxu0
  %3942 = vdwg.mxu0
  %v3943 = vadd.f32 %v3413, %v3625
  %v3944 = vadd.f32 %v3414, %v3630
  %v3945 = vadd.f32 %v3415, %v3635
  %v3946 = vadd.f32 %v3416, %v3640
  %v3947 = vadd.f32 %v3417, %v3645
  %v3948 = vadd.f32 %v3418, %v3650
  %v3949 = vadd.f32 %v3419, %v3655
  %v3950 = vadd.f32 %v3420, %v3660
  %v3951 = vadd.f32 %v3421, %v3665
  %v3952 = vadd.f32 %v3422, %v3670
  %v3953 = vadd.f32 %v3423, %v3675
  %v3954 = vadd.f32 %v3424, %v3680
  %v3955 = vadd.f32 %v3425, %v3685
  %v3956 = vadd.f32 %v3426, %v3690
  %v3957 = vadd.f32 %v3427, %v3695
  %v3958 = vadd.f32 %v3428, %v3700
  %v3959 = vadd.f32 %v3429, %v3705
  %v3960 = vadd.f32 %v3430, %v3710
  %v3961 = vadd.f32 %v3431, %v3715
  %v3962 = vadd.f32 %v3432, %v3720
  %v3963 = vadd.f32 %v3433, %v3725
  %v3964 = vadd.f32 %v3434, %v3730
  %v3965 = vadd.f32 %v3435, %v3735
  %v3966 = vadd.f32 %v3436, %v3740
  %v3967 = vadd.f32 %v3437, %v3745
  %v3968 = vadd.f32 %v3438, %v3750
  %v3969 = vadd.f32 %v3439, %v3755
  %v3970 = vadd.f32 %v3440, %v3760
  %v3971 = vadd.f32 %v3441, %v3765
  %v3972 = vadd.f32 %v3442, %v3770
  %v3973 = vadd.f32 %v3443, %v3775
  %v3974 = vadd.f32 %v3444, %v3780
  %v3975 = vadd.f32 %v3445, %v3785
  %v3976 = vadd.f32 %v3446, %v3790
  %v3977 = vadd.f32 %v3447, %v3795
  %v3978 = vadd.f32 %v3448, %v3800
  %v3979 = vadd.f32 %v3449, %v3805
  %v3980 = vadd.f32 %v3450, %v3810
  %v3981 = vadd.f32 %v3451, %v3815
  %v3982 = vadd.f32 %v3452, %v3820
  %v3983 = vadd.f32 %v3453, %v3825
  %v3984 = vadd.f32 %v3454, %v3830
  %v3985 = vadd.f32 %v3455, %v3835
  %v3986 = vadd.f32 %v3456, %v3840
  %v3987 = vadd.f32 %v3457, %v3845
  %v3988 = vadd.f32 %v3458, %v3850
  %v3989 = vadd.f32 %v3459, %v3855
  %v3990 = vadd.f32 %v3460, %v3860
  %v3991 = vadd.f32 %v3461, %v3865
  %v3992 = vadd.f32 %v3462, %v3870
  %v3993 = vadd.f32 %v3463, %v3875
  %v3994 = vadd.f32 %v3464, %v3880
  %v3995 = vadd.f32 %v3465, %v3885
  %v3996 = vadd.f32 %v3466, %v3890
  %v3997 = vadd.f32 %v3467, %v3895
  %v3998 = vadd.f32 %v3468, %v3900
  %v3999 = vadd.f32 %v3469, %v3905
  %v4000 = vadd.f32 %v3470, %v3910
  %v4001 = vadd.f32 %v3471, %v3915
  %v4002 = vadd.f32 %v3472, %v3920
  %v4003 = vadd.f32 %v3473, %v3925
  %v4004 = vadd.f32 %v3474, %v3930
  %v4005 = vadd.f32 %v3475, %v3935
  %v4006 = vadd.f32 %v3476, %v3940
  %v4007 = vld [vmem:[%s3477 + $0x1] sm:$0xff]
  %v4008 = vld [vmem:[%s3477 + $0x9] sm:$0xff]
  %v4009 = vld [vmem:[%s3477 + $0x19] sm:$0xff]
  %v4010 = vld [vmem:[%s3477 + $0x21] sm:$0xff]
  %v4011 = vld [vmem:[%s3477 + $0x31] sm:$0xff]
  %v4012 = vld [vmem:[%s3477 + $0x39] sm:$0xff]
  %v4013 = vld [vmem:[%s3477 + $0x49] sm:$0xff]
  %v4014 = vld [vmem:[%s3477 + $0x51] sm:$0xff]
  %v4015 = vld [vmem:[%s3477 + $0x61] sm:$0xff]
  %v4016 = vld [vmem:[%s3477 + $0x69] sm:$0xff]
  %v4017 = vld [vmem:[%s3477 + $0x79] sm:$0xff]
  %v4018 = vld [vmem:[%s3477 + $0x81] sm:$0xff]
  %v4019 = vld [vmem:[%s3477 + $0x91] sm:$0xff]
  %v4020 = vld [vmem:[%s3477 + $0x99] sm:$0xff]
  %v4021 = vld [vmem:[%s3477 + $0xa9] sm:$0xff]
  %v4022 = vld [vmem:[%s3477 + $0xb1] sm:$0xff]
  %v4023 = vld [vmem:[%s3477 + $0xc1] sm:$0xff]
  %v4024 = vld [vmem:[%s3477 + $0xc9] sm:$0xff]
  %v4025 = vld [vmem:[%s3477 + $0xd9] sm:$0xff]
  %v4026 = vld [vmem:[%s3477 + $0xe1] sm:$0xff]
  %v4027 = vld [vmem:[%s3477 + $0xf1] sm:$0xff]
  %v4028 = vld [vmem:[%s3477 + $0xf9] sm:$0xff]
  %v4029 = vld [vmem:[%s3477 + $0x109] sm:$0xff]
  %v4030 = vld [vmem:[%s3477 + $0x111] sm:$0xff]
  %v4031 = vld [vmem:[%s3477 + $0x121] sm:$0xff]
  %v4032 = vld [vmem:[%s3477 + $0x129] sm:$0xff]
  %v4033 = vld [vmem:[%s3477 + $0x139] sm:$0xff]
  %v4034 = vld [vmem:[%s3477 + $0x141] sm:$0xff]
  %v4035 = vld [vmem:[%s3477 + $0x151] sm:$0xff]
  %v4036 = vld [vmem:[%s3477 + $0x159] sm:$0xff]
  %v4037 = vld [vmem:[%s3477 + $0x169] sm:$0xff]
  %v4038 = vld [vmem:[%s3477 + $0x171] sm:$0xff]
  %v4039 = vld [vmem:[%s3477 + $0x1b1] sm:$0xff]
  %v4040 = vld [vmem:[%s3477 + $0x1b9] sm:$0xff]
  %v4041 = vld [vmem:[%s3477 + $0x1c9] sm:$0xff]
  %v4042 = vld [vmem:[%s3477 + $0x1d1] sm:$0xff]
  %v4043 = vld [vmem:[%s3477 + $0x1e1] sm:$0xff]
  %v4044 = vld [vmem:[%s3477 + $0x1e9] sm:$0xff]
  %v4045 = vld [vmem:[%s3477 + $0x1f9] sm:$0xff]
  %v4046 = vld [vmem:[%s3477 + $0x201] sm:$0xff]
  %v4047 = vld [vmem:[%s3477 + $0x211] sm:$0xff]
  %v4048 = vld [vmem:[%s3477 + $0x219] sm:$0xff]
  %v4049 = vld [vmem:[%s3477 + $0x229] sm:$0xff]
  %v4050 = vld [vmem:[%s3477 + $0x231] sm:$0xff]
  %v4051 = vld [vmem:[%s3477 + $0x241] sm:$0xff]
  %v4052 = vld [vmem:[%s3477 + $0x249] sm:$0xff]
  %v4053 = vld [vmem:[%s3477 + $0x259] sm:$0xff]
  %v4054 = vld [vmem:[%s3477 + $0x261] sm:$0xff]
  %v4055 = vld [vmem:[%s3477 + $0x271] sm:$0xff]
  %v4056 = vld [vmem:[%s3477 + $0x279] sm:$0xff]
  %v4057 = vld [vmem:[%s3477 + $0x289] sm:$0xff]
  %v4058 = vld [vmem:[%s3477 + $0x291] sm:$0xff]
  %v4059 = vld [vmem:[%s3477 + $0x2a1] sm:$0xff]
  %v4060 = vld [vmem:[%s3477 + $0x2a9] sm:$0xff]
  %v4061 = vld [vmem:[%s3477 + $0x2b9] sm:$0xff]
  %v4062 = vld [vmem:[%s3477 + $0x2c1] sm:$0xff]
  %v4063 = vld [vmem:[%s3477 + $0x2d1] sm:$0xff]
  %v4064 = vld [vmem:[%s3477 + $0x2d9] sm:$0xff]
  %v4065 = vld [vmem:[%s3477 + $0x2e9] sm:$0xff]
  %v4066 = vld [vmem:[%s3477 + $0x2f1] sm:$0xff]
  %v4067 = vld [vmem:[%s3477 + $0x301] sm:$0xff]
  %v4068 = vld [vmem:[%s3477 + $0x309] sm:$0xff]
  %v4069 = vld [vmem:[%s3477 + $0x319] sm:$0xff]
  %v4070 = vld [vmem:[%s3477 + $0x321] sm:$0xff]
  %v4071 = vld [vmem:[%s3 + $0x380] sm:$0xff]
  %v4072 = vld [vmem:[%s3 + $0x388] sm:$0xff]
  %v4073 = vld [vmem:[%s3 + $0x390] sm:$0xff]
  %v4074 = vld [vmem:[%s3 + $0x398] sm:$0xff]
  %v4075 = vld [vmem:[%s3 + $0x3a0] sm:$0xff]
  %v4076 = vld [vmem:[%s3 + $0x3a8] sm:$0xff]
  %v4077 = vld [vmem:[%s3 + $0x3b0] sm:$0xff]
  %v4078 = vld [vmem:[%s3 + $0x3b8] sm:$0xff]
  %v4079 = vld [vmem:[%s3 + $0x3c0] sm:$0xff]
  %v4080 = vld [vmem:[%s3 + $0x3c8] sm:$0xff]
  %v4081 = vld [vmem:[%s3 + $0x3d0] sm:$0xff]
  %v4082 = vld [vmem:[%s3 + $0x3d8] sm:$0xff]
  %v4083 = vld [vmem:[%s3 + $0x3e0] sm:$0xff]
  %v4084 = vld [vmem:[%s3 + $0x3e8] sm:$0xff]
  %v4085 = vld [vmem:[%s3 + $0x3f0] sm:$0xff]
  %v4086 = vld [vmem:[%s3 + $0x3f8] sm:$0xff]
  %4087 = vmatprep.subr.mxu0 0.0
  %4088 = vmatpush1.msra.mxu0 %v4086
  %4089 = vmatprep.subr.mxu0 0.0
  %4090 = vmatpush1.msra.mxu0 %v4085
  %4091 = vmatprep.subr.mxu0 0.0
  %4092 = vmatpush1.msra.mxu0 %v4084
  %4093 = vmatprep.subr.mxu0 0.0
  %4094 = vmatpush1.msra.mxu0 %v4083
  %4095 = vmatprep.subr.mxu0 0.0
  %4096 = vmatpush1.msra.mxu0 %v4082
  %4097 = vmatprep.subr.mxu0 0.0
  %4098 = vmatpush1.msra.mxu0 %v4081
  %4099 = vmatprep.subr.mxu0 0.0
  %4100 = vmatpush1.msra.mxu0 %v4080
  %4101 = vmatprep.subr.mxu0 0.0
  %4102 = vmatpush1.msra.mxu0 %v4079
  %4103 = vmatprep.subr.mxu0 0.0
  %4104 = vmatpush1.msra.mxu0 %v4078
  %4105 = vmatprep.subr.mxu0 0.0
  %4106 = vmatpush1.msra.mxu0 %v4077
  %4107 = vmatprep.subr.mxu0 0.0
  %4108 = vmatpush1.msra.mxu0 %v4076
  %4109 = vmatprep.subr.mxu0 0.0
  %4110 = vmatpush1.msra.mxu0 %v4075
  %4111 = vmatprep.subr.mxu0 0.0
  %4112 = vmatpush1.msra.mxu0 %v4074
  %4113 = vmatprep.subr.mxu0 0.0
  %4114 = vmatpush1.msra.mxu0 %v4073
  %4115 = vmatprep.subr.mxu0 0.0
  %4116 = vmatpush1.msra.mxu0 %v4072
  %4117 = vmatprep.subr.mxu0 0.0
  %4118 = vmatpush1.msra.mxu0 %v4071
  %4119 = vmatprep.subr.mxu0 0.0
  %4120 = vmatpush2.msra.mxu0 0.0
  %4121 = vmatprep.subr.mxu0 0.0
  %4122 = vmatpush2.msra.mxu0 0.0
  %4123 = vmatprep.subr.mxu0 0.0
  %4124 = vmatpush2.msra.mxu0 0.0
  %4125 = vmatprep.subr.mxu0 0.0
  %4126 = vmatpush2.msra.mxu0 0.0
  %4127 = vmatprep.subr.mxu0 0.0
  %4128 = vmatpush2.msra.mxu0 0.0
  %4129 = vmatprep.subr.mxu0 0.0
  %4130 = vmatpush2.msra.mxu0 0.0
  %4131 = vmatprep.subr.mxu0 0.0
  %4132 = vmatpush2.msra.mxu0 0.0
  %4133 = vmatprep.subr.mxu0 0.0
  %4134 = vmatpush2.msra.mxu0 0.0
  %4135 = vmatprep.subr.mxu0 0.0
  %4136 = vmatpush2.msra.mxu0 0.0
  %4137 = vmatprep.subr.mxu0 0.0
  %4138 = vmatpush2.msra.mxu0 0.0
  %4139 = vmatprep.subr.mxu0 0.0
  %4140 = vmatpush2.msra.mxu0 0.0
  %4141 = vmatprep.subr.mxu0 0.0
  %4142 = vmatpush2.msra.mxu0 0.0
  %4143 = vmatprep.subr.mxu0 0.0
  %4144 = vmatpush2.msra.mxu0 0.0
  %4145 = vmatprep.subr.mxu0 0.0
  %4146 = vmatpush2.msra.mxu0 0.0
  %4147 = vmatprep.subr.mxu0 0.0
  %4148 = vmatpush2.msra.mxu0 0.0
  %4149 = vmatprep.subr.mxu0 0.0
  %4150 = vmatpush2.msra.mxu0 0.0
  %4151 = vmatprep.mubr.f32.mxu0 0.0
  %4152 = vmatmul.mubr.f32.gmra.mxu0 %v4007
  %v4153 = vpop.f32.mrf.mxu0
  %v4154 = vadd.f32 0.0, %v4153
  %v4155 = vpop.f32.mrf.mxu0
  %4156 = vmatprep.mubr.f32.mxu0 0.0
  %4157 = vmatmul.mubr.f32.gmra.mxu0 %v4008
  %v4158 = vpop.f32.mrf.mxu0
  %v4159 = vadd.f32 0.0, %v4158
  %v4160 = vpop.f32.mrf.mxu0
  %4161 = vmatprep.mubr.f32.mxu0 0.0
  %4162 = vmatmul.mubr.f32.gmra.mxu0 %v4009
  %v4163 = vpop.f32.mrf.mxu0
  %v4164 = vadd.f32 0.0, %v4163
  %v4165 = vpop.f32.mrf.mxu0
  %4166 = vmatprep.mubr.f32.mxu0 0.0
  %4167 = vmatmul.mubr.f32.gmra.mxu0 %v4010
  %v4168 = vpop.f32.mrf.mxu0
  %v4169 = vadd.f32 0.0, %v4168
  %v4170 = vpop.f32.mrf.mxu0
  %4171 = vmatprep.mubr.f32.mxu0 0.0
  %4172 = vmatmul.mubr.f32.gmra.mxu0 %v4011
  %v4173 = vpop.f32.mrf.mxu0
  %v4174 = vadd.f32 0.0, %v4173
  %v4175 = vpop.f32.mrf.mxu0
  %4176 = vmatprep.mubr.f32.mxu0 0.0
  %4177 = vmatmul.mubr.f32.gmra.mxu0 %v4012
  %v4178 = vpop.f32.mrf.mxu0
  %v4179 = vadd.f32 0.0, %v4178
  %v4180 = vpop.f32.mrf.mxu0
  %4181 = vmatprep.mubr.f32.mxu0 0.0
  %4182 = vmatmul.mubr.f32.gmra.mxu0 %v4013
  %v4183 = vpop.f32.mrf.mxu0
  %v4184 = vadd.f32 0.0, %v4183
  %v4185 = vpop.f32.mrf.mxu0
  %4186 = vmatprep.mubr.f32.mxu0 0.0
  %4187 = vmatmul.mubr.f32.gmra.mxu0 %v4014
  %v4188 = vpop.f32.mrf.mxu0
  %v4189 = vadd.f32 0.0, %v4188
  %v4190 = vpop.f32.mrf.mxu0
  %4191 = vmatprep.mubr.f32.mxu0 0.0
  %4192 = vmatmul.mubr.f32.gmra.mxu0 %v4015
  %v4193 = vpop.f32.mrf.mxu0
  %v4194 = vadd.f32 0.0, %v4193
  %v4195 = vpop.f32.mrf.mxu0
  %4196 = vmatprep.mubr.f32.mxu0 0.0
  %4197 = vmatmul.mubr.f32.gmra.mxu0 %v4016
  %v4198 = vpop.f32.mrf.mxu0
  %v4199 = vadd.f32 0.0, %v4198
  %v4200 = vpop.f32.mrf.mxu0
  %4201 = vmatprep.mubr.f32.mxu0 0.0
  %4202 = vmatmul.mubr.f32.gmra.mxu0 %v4017
  %v4203 = vpop.f32.mrf.mxu0
  %v4204 = vadd.f32 0.0, %v4203
  %v4205 = vpop.f32.mrf.mxu0
  %4206 = vmatprep.mubr.f32.mxu0 0.0
  %4207 = vmatmul.mubr.f32.gmra.mxu0 %v4018
  %v4208 = vpop.f32.mrf.mxu0
  %v4209 = vadd.f32 0.0, %v4208
  %v4210 = vpop.f32.mrf.mxu0
  %4211 = vmatprep.mubr.f32.mxu0 0.0
  %4212 = vmatmul.mubr.f32.gmra.mxu0 %v4019
  %v4213 = vpop.f32.mrf.mxu0
  %v4214 = vadd.f32 0.0, %v4213
  %v4215 = vpop.f32.mrf.mxu0
  %4216 = vmatprep.mubr.f32.mxu0 0.0
  %4217 = vmatmul.mubr.f32.gmra.mxu0 %v4020
  %v4218 = vpop.f32.mrf.mxu0
  %v4219 = vadd.f32 0.0, %v4218
  %v4220 = vpop.f32.mrf.mxu0
  %4221 = vmatprep.mubr.f32.mxu0 0.0
  %4222 = vmatmul.mubr.f32.gmra.mxu0 %v4021
  %v4223 = vpop.f32.mrf.mxu0
  %v4224 = vadd.f32 0.0, %v4223
  %v4225 = vpop.f32.mrf.mxu0
  %4226 = vmatprep.mubr.f32.mxu0 0.0
  %4227 = vmatmul.mubr.f32.gmra.mxu0 %v4022
  %v4228 = vpop.f32.mrf.mxu0
  %v4229 = vadd.f32 0.0, %v4228
  %v4230 = vpop.f32.mrf.mxu0
  %4231 = vmatprep.mubr.f32.mxu0 0.0
  %4232 = vmatmul.mubr.f32.gmra.mxu0 %v4023
  %v4233 = vpop.f32.mrf.mxu0
  %v4234 = vadd.f32 0.0, %v4233
  %v4235 = vpop.f32.mrf.mxu0
  %4236 = vmatprep.mubr.f32.mxu0 0.0
  %4237 = vmatmul.mubr.f32.gmra.mxu0 %v4024
  %v4238 = vpop.f32.mrf.mxu0
  %v4239 = vadd.f32 0.0, %v4238
  %v4240 = vpop.f32.mrf.mxu0
  %4241 = vmatprep.mubr.f32.mxu0 0.0
  %4242 = vmatmul.mubr.f32.gmra.mxu0 %v4025
  %v4243 = vpop.f32.mrf.mxu0
  %v4244 = vadd.f32 0.0, %v4243
  %v4245 = vpop.f32.mrf.mxu0
  %4246 = vmatprep.mubr.f32.mxu0 0.0
  %4247 = vmatmul.mubr.f32.gmra.mxu0 %v4026
  %v4248 = vpop.f32.mrf.mxu0
  %v4249 = vadd.f32 0.0, %v4248
  %v4250 = vpop.f32.mrf.mxu0
  %4251 = vmatprep.mubr.f32.mxu0 0.0
  %4252 = vmatmul.mubr.f32.gmra.mxu0 %v4027
  %v4253 = vpop.f32.mrf.mxu0
  %v4254 = vadd.f32 0.0, %v4253
  %v4255 = vpop.f32.mrf.mxu0
  %4256 = vmatprep.mubr.f32.mxu0 0.0
  %4257 = vmatmul.mubr.f32.gmra.mxu0 %v4028
  %v4258 = vpop.f32.mrf.mxu0
  %v4259 = vadd.f32 0.0, %v4258
  %v4260 = vpop.f32.mrf.mxu0
  %4261 = vmatprep.mubr.f32.mxu0 0.0
  %4262 = vmatmul.mubr.f32.gmra.mxu0 %v4029
  %v4263 = vpop.f32.mrf.mxu0
  %v4264 = vadd.f32 0.0, %v4263
  %v4265 = vpop.f32.mrf.mxu0
  %4266 = vmatprep.mubr.f32.mxu0 0.0
  %4267 = vmatmul.mubr.f32.gmra.mxu0 %v4030
  %v4268 = vpop.f32.mrf.mxu0
  %v4269 = vadd.f32 0.0, %v4268
  %v4270 = vpop.f32.mrf.mxu0
  %4271 = vmatprep.mubr.f32.mxu0 0.0
  %4272 = vmatmul.mubr.f32.gmra.mxu0 %v4031
  %v4273 = vpop.f32.mrf.mxu0
  %v4274 = vadd.f32 0.0, %v4273
  %v4275 = vpop.f32.mrf.mxu0
  %4276 = vmatprep.mubr.f32.mxu0 0.0
  %4277 = vmatmul.mubr.f32.gmra.mxu0 %v4032
  %v4278 = vpop.f32.mrf.mxu0
  %v4279 = vadd.f32 0.0, %v4278
  %v4280 = vpop.f32.mrf.mxu0
  %4281 = vmatprep.mubr.f32.mxu0 0.0
  %4282 = vmatmul.mubr.f32.gmra.mxu0 %v4033
  %v4283 = vpop.f32.mrf.mxu0
  %v4284 = vadd.f32 0.0, %v4283
  %v4285 = vpop.f32.mrf.mxu0
  %4286 = vmatprep.mubr.f32.mxu0 0.0
  %4287 = vmatmul.mubr.f32.gmra.mxu0 %v4034
  %v4288 = vpop.f32.mrf.mxu0
  %v4289 = vadd.f32 0.0, %v4288
  %v4290 = vpop.f32.mrf.mxu0
  %4291 = vmatprep.mubr.f32.mxu0 0.0
  %4292 = vmatmul.mubr.f32.gmra.mxu0 %v4035
  %v4293 = vpop.f32.mrf.mxu0
  %v4294 = vadd.f32 0.0, %v4293
  %v4295 = vpop.f32.mrf.mxu0
  %4296 = vmatprep.mubr.f32.mxu0 0.0
  %4297 = vmatmul.mubr.f32.gmra.mxu0 %v4036
  %v4298 = vpop.f32.mrf.mxu0
  %v4299 = vadd.f32 0.0, %v4298
  %v4300 = vpop.f32.mrf.mxu0
  %4301 = vmatprep.mubr.f32.mxu0 0.0
  %4302 = vmatmul.mubr.f32.gmra.mxu0 %v4037
  %v4303 = vpop.f32.mrf.mxu0
  %v4304 = vadd.f32 0.0, %v4303
  %v4305 = vpop.f32.mrf.mxu0
  %4306 = vmatprep.mubr.f32.mxu0 0.0
  %4307 = vmatmul.mubr.f32.gmra.mxu0 %v4038
  %v4308 = vpop.f32.mrf.mxu0
  %v4309 = vadd.f32 0.0, %v4308
  %v4310 = vpop.f32.mrf.mxu0
  %4311 = vmatprep.mubr.f32.mxu0 0.0
  %4312 = vmatmul.mubr.f32.gmra.mxu0 %v4039
  %v4313 = vpop.f32.mrf.mxu0
  %v4314 = vadd.f32 0.0, %v4313
  %v4315 = vpop.f32.mrf.mxu0
  %4316 = vmatprep.mubr.f32.mxu0 0.0
  %4317 = vmatmul.mubr.f32.gmra.mxu0 %v4040
  %v4318 = vpop.f32.mrf.mxu0
  %v4319 = vadd.f32 0.0, %v4318
  %v4320 = vpop.f32.mrf.mxu0
  %4321 = vmatprep.mubr.f32.mxu0 0.0
  %4322 = vmatmul.mubr.f32.gmra.mxu0 %v4041
  %v4323 = vpop.f32.mrf.mxu0
  %v4324 = vadd.f32 0.0, %v4323
  %v4325 = vpop.f32.mrf.mxu0
  %4326 = vmatprep.mubr.f32.mxu0 0.0
  %4327 = vmatmul.mubr.f32.gmra.mxu0 %v4042
  %v4328 = vpop.f32.mrf.mxu0
  %v4329 = vadd.f32 0.0, %v4328
  %v4330 = vpop.f32.mrf.mxu0
  %4331 = vmatprep.mubr.f32.mxu0 0.0
  %4332 = vmatmul.mubr.f32.gmra.mxu0 %v4043
  %v4333 = vpop.f32.mrf.mxu0
  %v4334 = vadd.f32 0.0, %v4333
  %v4335 = vpop.f32.mrf.mxu0
  %4336 = vmatprep.mubr.f32.mxu0 0.0
  %4337 = vmatmul.mubr.f32.gmra.mxu0 %v4044
  %v4338 = vpop.f32.mrf.mxu0
  %v4339 = vadd.f32 0.0, %v4338
  %v4340 = vpop.f32.mrf.mxu0
  %4341 = vmatprep.mubr.f32.mxu0 0.0
  %4342 = vmatmul.mubr.f32.gmra.mxu0 %v4045
  %v4343 = vpop.f32.mrf.mxu0
  %v4344 = vadd.f32 0.0, %v4343
  %v4345 = vpop.f32.mrf.mxu0
  %4346 = vmatprep.mubr.f32.mxu0 0.0
  %4347 = vmatmul.mubr.f32.gmra.mxu0 %v4046
  %v4348 = vpop.f32.mrf.mxu0
  %v4349 = vadd.f32 0.0, %v4348
  %v4350 = vpop.f32.mrf.mxu0
  %4351 = vmatprep.mubr.f32.mxu0 0.0
  %4352 = vmatmul.mubr.f32.gmra.mxu0 %v4047
  %v4353 = vpop.f32.mrf.mxu0
  %v4354 = vadd.f32 0.0, %v4353
  %v4355 = vpop.f32.mrf.mxu0
  %4356 = vmatprep.mubr.f32.mxu0 0.0
  %4357 = vmatmul.mubr.f32.gmra.mxu0 %v4048
  %v4358 = vpop.f32.mrf.mxu0
  %v4359 = vadd.f32 0.0, %v4358
  %v4360 = vpop.f32.mrf.mxu0
  %4361 = vmatprep.mubr.f32.mxu0 0.0
  %4362 = vmatmul.mubr.f32.gmra.mxu0 %v4049
  %v4363 = vpop.f32.mrf.mxu0
  %v4364 = vadd.f32 0.0, %v4363
  %v4365 = vpop.f32.mrf.mxu0
  %4366 = vmatprep.mubr.f32.mxu0 0.0
  %4367 = vmatmul.mubr.f32.gmra.mxu0 %v4050
  %v4368 = vpop.f32.mrf.mxu0
  %v4369 = vadd.f32 0.0, %v4368
  %v4370 = vpop.f32.mrf.mxu0
  %4371 = vmatprep.mubr.f32.mxu0 0.0
  %4372 = vmatmul.mubr.f32.gmra.mxu0 %v4051
  %v4373 = vpop.f32.mrf.mxu0
  %v4374 = vadd.f32 0.0, %v4373
  %v4375 = vpop.f32.mrf.mxu0
  %4376 = vmatprep.mubr.f32.mxu0 0.0
  %4377 = vmatmul.mubr.f32.gmra.mxu0 %v4052
  %v4378 = vpop.f32.mrf.mxu0
  %v4379 = vadd.f32 0.0, %v4378
  %v4380 = vpop.f32.mrf.mxu0
  %4381 = vmatprep.mubr.f32.mxu0 0.0
  %4382 = vmatmul.mubr.f32.gmra.mxu0 %v4053
  %v4383 = vpop.f32.mrf.mxu0
  %v4384 = vadd.f32 0.0, %v4383
  %v4385 = vpop.f32.mrf.mxu0
  %4386 = vmatprep.mubr.f32.mxu0 0.0
  %4387 = vmatmul.mubr.f32.gmra.mxu0 %v4054
  %v4388 = vpop.f32.mrf.mxu0
  %v4389 = vadd.f32 0.0, %v4388
  %v4390 = vpop.f32.mrf.mxu0
  %4391 = vmatprep.mubr.f32.mxu0 0.0
  %4392 = vmatmul.mubr.f32.gmra.mxu0 %v4055
  %v4393 = vpop.f32.mrf.mxu0
  %v4394 = vadd.f32 0.0, %v4393
  %v4395 = vpop.f32.mrf.mxu0
  %4396 = vmatprep.mubr.f32.mxu0 0.0
  %4397 = vmatmul.mubr.f32.gmra.mxu0 %v4056
  %v4398 = vpop.f32.mrf.mxu0
  %v4399 = vadd.f32 0.0, %v4398
  %v4400 = vpop.f32.mrf.mxu0
  %4401 = vmatprep.mubr.f32.mxu0 0.0
  %4402 = vmatmul.mubr.f32.gmra.mxu0 %v4057
  %v4403 = vpop.f32.mrf.mxu0
  %v4404 = vadd.f32 0.0, %v4403
  %v4405 = vpop.f32.mrf.mxu0
  %4406 = vmatprep.mubr.f32.mxu0 0.0
  %4407 = vmatmul.mubr.f32.gmra.mxu0 %v4058
  %v4408 = vpop.f32.mrf.mxu0
  %v4409 = vadd.f32 0.0, %v4408
  %v4410 = vpop.f32.mrf.mxu0
  %4411 = vmatprep.mubr.f32.mxu0 0.0
  %4412 = vmatmul.mubr.f32.gmra.mxu0 %v4059
  %v4413 = vpop.f32.mrf.mxu0
  %v4414 = vadd.f32 0.0, %v4413
  %v4415 = vpop.f32.mrf.mxu0
  %4416 = vmatprep.mubr.f32.mxu0 0.0
  %4417 = vmatmul.mubr.f32.gmra.mxu0 %v4060
  %v4418 = vpop.f32.mrf.mxu0
  %v4419 = vadd.f32 0.0, %v4418
  %v4420 = vpop.f32.mrf.mxu0
  %4421 = vmatprep.mubr.f32.mxu0 0.0
  %4422 = vmatmul.mubr.f32.gmra.mxu0 %v4061
  %v4423 = vpop.f32.mrf.mxu0
  %v4424 = vadd.f32 0.0, %v4423
  %v4425 = vpop.f32.mrf.mxu0
  %4426 = vmatprep.mubr.f32.mxu0 0.0
  %4427 = vmatmul.mubr.f32.gmra.mxu0 %v4062
  %v4428 = vpop.f32.mrf.mxu0
  %v4429 = vadd.f32 0.0, %v4428
  %v4430 = vpop.f32.mrf.mxu0
  %4431 = vmatprep.mubr.f32.mxu0 0.0
  %4432 = vmatmul.mubr.f32.gmra.mxu0 %v4063
  %v4433 = vpop.f32.mrf.mxu0
  %v4434 = vadd.f32 0.0, %v4433
  %v4435 = vpop.f32.mrf.mxu0
  %4436 = vmatprep.mubr.f32.mxu0 0.0
  %4437 = vmatmul.mubr.f32.gmra.mxu0 %v4064
  %v4438 = vpop.f32.mrf.mxu0
  %v4439 = vadd.f32 0.0, %v4438
  %v4440 = vpop.f32.mrf.mxu0
  %4441 = vmatprep.mubr.f32.mxu0 0.0
  %4442 = vmatmul.mubr.f32.gmra.mxu0 %v4065
  %v4443 = vpop.f32.mrf.mxu0
  %v4444 = vadd.f32 0.0, %v4443
  %v4445 = vpop.f32.mrf.mxu0
  %4446 = vmatprep.mubr.f32.mxu0 0.0
  %4447 = vmatmul.mubr.f32.gmra.mxu0 %v4066
  %v4448 = vpop.f32.mrf.mxu0
  %v4449 = vadd.f32 0.0, %v4448
  %v4450 = vpop.f32.mrf.mxu0
  %4451 = vmatprep.mubr.f32.mxu0 0.0
  %4452 = vmatmul.mubr.f32.gmra.mxu0 %v4067
  %v4453 = vpop.f32.mrf.mxu0
  %v4454 = vadd.f32 0.0, %v4453
  %v4455 = vpop.f32.mrf.mxu0
  %4456 = vmatprep.mubr.f32.mxu0 0.0
  %4457 = vmatmul.mubr.f32.gmra.mxu0 %v4068
  %v4458 = vpop.f32.mrf.mxu0
  %v4459 = vadd.f32 0.0, %v4458
  %v4460 = vpop.f32.mrf.mxu0
  %4461 = vmatprep.mubr.f32.mxu0 0.0
  %4462 = vmatmul.mubr.f32.gmra.mxu0 %v4069
  %v4463 = vpop.f32.mrf.mxu0
  %v4464 = vadd.f32 0.0, %v4463
  %v4465 = vpop.f32.mrf.mxu0
  %4466 = vmatprep.mubr.f32.mxu0 0.0
  %4467 = vmatmul.mubr.f32.gmra.mxu0 %v4070
  %v4468 = vpop.f32.mrf.mxu0
  %v4469 = vadd.f32 0.0, %v4468
  %v4470 = vpop.f32.mrf.mxu0
  %4471 = vdwg.mxu0
  %v4472 = vadd.f32 %v3943, %v4154
  %v4473 = vadd.f32 %v3944, %v4159
  %v4474 = vadd.f32 %v3945, %v4164
  %v4475 = vadd.f32 %v3946, %v4169
  %v4476 = vadd.f32 %v3947, %v4174
  %v4477 = vadd.f32 %v3948, %v4179
  %v4478 = vadd.f32 %v3949, %v4184
  %v4479 = vadd.f32 %v3950, %v4189
  %v4480 = vadd.f32 %v3951, %v4194
  %v4481 = vadd.f32 %v3952, %v4199
  %v4482 = vadd.f32 %v3953, %v4204
  %v4483 = vadd.f32 %v3954, %v4209
  %v4484 = vadd.f32 %v3955, %v4214
  %v4485 = vadd.f32 %v3956, %v4219
  %v4486 = vadd.f32 %v3957, %v4224
  %v4487 = vadd.f32 %v3958, %v4229
  %v4488 = vadd.f32 %v3959, %v4234
  %v4489 = vadd.f32 %v3960, %v4239
  %v4490 = vadd.f32 %v3961, %v4244
  %v4491 = vadd.f32 %v3962, %v4249
  %v4492 = vadd.f32 %v3963, %v4254
  %v4493 = vadd.f32 %v3964, %v4259
  %v4494 = vadd.f32 %v3965, %v4264
  %v4495 = vadd.f32 %v3966, %v4269
  %v4496 = vadd.f32 %v3967, %v4274
  %v4497 = vadd.f32 %v3968, %v4279
  %v4498 = vadd.f32 %v3969, %v4284
  %v4499 = vadd.f32 %v3970, %v4289
  %v4500 = vadd.f32 %v3971, %v4294
  %v4501 = vadd.f32 %v3972, %v4299
  %v4502 = vadd.f32 %v3973, %v4304
  %v4503 = vadd.f32 %v3974, %v4309
  %v4504 = vadd.f32 %v3975, %v4314
  %v4505 = vadd.f32 %v3976, %v4319
  %v4506 = vadd.f32 %v3977, %v4324
  %v4507 = vadd.f32 %v3978, %v4329
  %v4508 = vadd.f32 %v3979, %v4334
  %v4509 = vadd.f32 %v3980, %v4339
  %v4510 = vadd.f32 %v3981, %v4344
  %v4511 = vadd.f32 %v3982, %v4349
  %v4512 = vadd.f32 %v3983, %v4354
  %v4513 = vadd.f32 %v3984, %v4359
  %v4514 = vadd.f32 %v3985, %v4364
  %v4515 = vadd.f32 %v3986, %v4369
  %v4516 = vadd.f32 %v3987, %v4374
  %v4517 = vadd.f32 %v3988, %v4379
  %v4518 = vadd.f32 %v3989, %v4384
  %v4519 = vadd.f32 %v3990, %v4389
  %v4520 = vadd.f32 %v3991, %v4394
  %v4521 = vadd.f32 %v3992, %v4399
  %v4522 = vadd.f32 %v3993, %v4404
  %v4523 = vadd.f32 %v3994, %v4409
  %v4524 = vadd.f32 %v3995, %v4414
  %v4525 = vadd.f32 %v3996, %v4419
  %v4526 = vadd.f32 %v3997, %v4424
  %v4527 = vadd.f32 %v3998, %v4429
  %v4528 = vadd.f32 %v3999, %v4434
  %v4529 = vadd.f32 %v4000, %v4439
  %v4530 = vadd.f32 %v4001, %v4444
  %v4531 = vadd.f32 %v4002, %v4449
  %v4532 = vadd.f32 %v4003, %v4454
  %v4533 = vadd.f32 %v4004, %v4459
  %v4534 = vadd.f32 %v4005, %v4464
  %v4535 = vadd.f32 %v4006, %v4469
  %v4536 = vld [vmem:[%s3477 + $0x2] sm:$0xff]
  %v4537 = vld [vmem:[%s3477 + $0xa] sm:$0xff]
  %v4538 = vld [vmem:[%s3477 + $0x1a] sm:$0xff]
  %v4539 = vld [vmem:[%s3477 + $0x22] sm:$0xff]
  %v4540 = vld [vmem:[%s3477 + $0x32] sm:$0xff]
  %v4541 = vld [vmem:[%s3477 + $0x3a] sm:$0xff]
  %v4542 = vld [vmem:[%s3477 + $0x4a] sm:$0xff]
  %v4543 = vld [vmem:[%s3477 + $0x52] sm:$0xff]
  %v4544 = vld [vmem:[%s3477 + $0x62] sm:$0xff]
  %v4545 = vld [vmem:[%s3477 + $0x6a] sm:$0xff]
  %v4546 = vld [vmem:[%s3477 + $0x7a] sm:$0xff]
  %v4547 = vld [vmem:[%s3477 + $0x82] sm:$0xff]
  %v4548 = vld [vmem:[%s3477 + $0x92] sm:$0xff]
  %v4549 = vld [vmem:[%s3477 + $0x9a] sm:$0xff]
  %v4550 = vld [vmem:[%s3477 + $0xaa] sm:$0xff]
  %v4551 = vld [vmem:[%s3477 + $0xb2] sm:$0xff]
  %v4552 = vld [vmem:[%s3477 + $0xc2] sm:$0xff]
  %v4553 = vld [vmem:[%s3477 + $0xca] sm:$0xff]
  %v4554 = vld [vmem:[%s3477 + $0xda] sm:$0xff]
  %v4555 = vld [vmem:[%s3477 + $0xe2] sm:$0xff]
  %v4556 = vld [vmem:[%s3477 + $0xf2] sm:$0xff]
  %v4557 = vld [vmem:[%s3477 + $0xfa] sm:$0xff]
  %v4558 = vld [vmem:[%s3477 + $0x10a] sm:$0xff]
  %v4559 = vld [vmem:[%s3477 + $0x112] sm:$0xff]
  %v4560 = vld [vmem:[%s3477 + $0x122] sm:$0xff]
  %v4561 = vld [vmem:[%s3477 + $0x12a] sm:$0xff]
  %v4562 = vld [vmem:[%s3477 + $0x13a] sm:$0xff]
  %v4563 = vld [vmem:[%s3477 + $0x142] sm:$0xff]
  %v4564 = vld [vmem:[%s3477 + $0x152] sm:$0xff]
  %v4565 = vld [vmem:[%s3477 + $0x15a] sm:$0xff]
  %v4566 = vld [vmem:[%s3477 + $0x16a] sm:$0xff]
  %v4567 = vld [vmem:[%s3477 + $0x172] sm:$0xff]
  %v4568 = vld [vmem:[%s3477 + $0x1b2] sm:$0xff]
  %v4569 = vld [vmem:[%s3477 + $0x1ba] sm:$0xff]
  %v4570 = vld [vmem:[%s3477 + $0x1ca] sm:$0xff]
  %v4571 = vld [vmem:[%s3477 + $0x1d2] sm:$0xff]
  %v4572 = vld [vmem:[%s3477 + $0x1e2] sm:$0xff]
  %v4573 = vld [vmem:[%s3477 + $0x1ea] sm:$0xff]
  %v4574 = vld [vmem:[%s3477 + $0x1fa] sm:$0xff]
  %v4575 = vld [vmem:[%s3477 + $0x202] sm:$0xff]
  %v4576 = vld [vmem:[%s3477 + $0x212] sm:$0xff]
  %v4577 = vld [vmem:[%s3477 + $0x21a] sm:$0xff]
  %v4578 = vld [vmem:[%s3477 + $0x22a] sm:$0xff]
  %v4579 = vld [vmem:[%s3477 + $0x232] sm:$0xff]
  %v4580 = vld [vmem:[%s3477 + $0x242] sm:$0xff]
  %v4581 = vld [vmem:[%s3477 + $0x24a] sm:$0xff]
  %v4582 = vld [vmem:[%s3477 + $0x25a] sm:$0xff]
  %v4583 = vld [vmem:[%s3477 + $0x262] sm:$0xff]
  %v4584 = vld [vmem:[%s3477 + $0x272] sm:$0xff]
  %v4585 = vld [vmem:[%s3477 + $0x27a] sm:$0xff]
  %v4586 = vld [vmem:[%s3477 + $0x28a] sm:$0xff]
  %v4587 = vld [vmem:[%s3477 + $0x292] sm:$0xff]
  %v4588 = vld [vmem:[%s3477 + $0x2a2] sm:$0xff]
  %v4589 = vld [vmem:[%s3477 + $0x2aa] sm:$0xff]
  %v4590 = vld [vmem:[%s3477 + $0x2ba] sm:$0xff]
  %v4591 = vld [vmem:[%s3477 + $0x2c2] sm:$0xff]
  %v4592 = vld [vmem:[%s3477 + $0x2d2] sm:$0xff]
  %v4593 = vld [vmem:[%s3477 + $0x2da] sm:$0xff]
  %v4594 = vld [vmem:[%s3477 + $0x2ea] sm:$0xff]
  %v4595 = vld [vmem:[%s3477 + $0x2f2] sm:$0xff]
  %v4596 = vld [vmem:[%s3477 + $0x302] sm:$0xff]
  %v4597 = vld [vmem:[%s3477 + $0x30a] sm:$0xff]
  %v4598 = vld [vmem:[%s3477 + $0x31a] sm:$0xff]
  %v4599 = vld [vmem:[%s3477 + $0x322] sm:$0xff]
  %v4600 = vld [vmem:[%s3 + $0x400] sm:$0xff]
  %v4601 = vld [vmem:[%s3 + $0x408] sm:$0xff]
  %v4602 = vld [vmem:[%s3 + $0x410] sm:$0xff]
  %v4603 = vld [vmem:[%s3 + $0x418] sm:$0xff]
  %v4604 = vld [vmem:[%s3 + $0x420] sm:$0xff]
  %v4605 = vld [vmem:[%s3 + $0x428] sm:$0xff]
  %v4606 = vld [vmem:[%s3 + $0x430] sm:$0xff]
  %v4607 = vld [vmem:[%s3 + $0x438] sm:$0xff]
  %v4608 = vld [vmem:[%s3 + $0x440] sm:$0xff]
  %v4609 = vld [vmem:[%s3 + $0x448] sm:$0xff]
  %v4610 = vld [vmem:[%s3 + $0x450] sm:$0xff]
  %v4611 = vld [vmem:[%s3 + $0x458] sm:$0xff]
  %v4612 = vld [vmem:[%s3 + $0x460] sm:$0xff]
  %v4613 = vld [vmem:[%s3 + $0x468] sm:$0xff]
  %v4614 = vld [vmem:[%s3 + $0x470] sm:$0xff]
  %v4615 = vld [vmem:[%s3 + $0x478] sm:$0xff]
  %4616 = vmatprep.subr.mxu0 0.0
  %4617 = vmatpush1.msra.mxu0 %v4615
  %4618 = vmatprep.subr.mxu0 0.0
  %4619 = vmatpush1.msra.mxu0 %v4614
  %4620 = vmatprep.subr.mxu0 0.0
  %4621 = vmatpush1.msra.mxu0 %v4613
  %4622 = vmatprep.subr.mxu0 0.0
  %4623 = vmatpush1.msra.mxu0 %v4612
  %4624 = vmatprep.subr.mxu0 0.0
  %4625 = vmatpush1.msra.mxu0 %v4611
  %4626 = vmatprep.subr.mxu0 0.0
  %4627 = vmatpush1.msra.mxu0 %v4610
  %4628 = vmatprep.subr.mxu0 0.0
  %4629 = vmatpush1.msra.mxu0 %v4609
  %4630 = vmatprep.subr.mxu0 0.0
  %4631 = vmatpush1.msra.mxu0 %v4608
  %4632 = vmatprep.subr.mxu0 0.0
  %4633 = vmatpush1.msra.mxu0 %v4607
  %4634 = vmatprep.subr.mxu0 0.0
  %4635 = vmatpush1.msra.mxu0 %v4606
  %4636 = vmatprep.subr.mxu0 0.0
  %4637 = vmatpush1.msra.mxu0 %v4605
  %4638 = vmatprep.subr.mxu0 0.0
  %4639 = vmatpush1.msra.mxu0 %v4604
  %4640 = vmatprep.subr.mxu0 0.0
  %4641 = vmatpush1.msra.mxu0 %v4603
  %4642 = vmatprep.subr.mxu0 0.0
  %4643 = vmatpush1.msra.mxu0 %v4602
  %4644 = vmatprep.subr.mxu0 0.0
  %4645 = vmatpush1.msra.mxu0 %v4601
  %4646 = vmatprep.subr.mxu0 0.0
  %4647 = vmatpush1.msra.mxu0 %v4600
  %4648 = vmatprep.subr.mxu0 0.0
  %4649 = vmatpush2.msra.mxu0 0.0
  %4650 = vmatprep.subr.mxu0 0.0
  %4651 = vmatpush2.msra.mxu0 0.0
  %4652 = vmatprep.subr.mxu0 0.0
  %4653 = vmatpush2.msra.mxu0 0.0
  %4654 = vmatprep.subr.mxu0 0.0
  %4655 = vmatpush2.msra.mxu0 0.0
  %4656 = vmatprep.subr.mxu0 0.0
  %4657 = vmatpush2.msra.mxu0 0.0
  %4658 = vmatprep.subr.mxu0 0.0
  %4659 = vmatpush2.msra.mxu0 0.0
  %4660 = vmatprep.subr.mxu0 0.0
  %4661 = vmatpush2.msra.mxu0 0.0
  %4662 = vmatprep.subr.mxu0 0.0
  %4663 = vmatpush2.msra.mxu0 0.0
  %4664 = vmatprep.subr.mxu0 0.0
  %4665 = vmatpush2.msra.mxu0 0.0
  %4666 = vmatprep.subr.mxu0 0.0
  %4667 = vmatpush2.msra.mxu0 0.0
  %4668 = vmatprep.subr.mxu0 0.0
  %4669 = vmatpush2.msra.mxu0 0.0
  %4670 = vmatprep.subr.mxu0 0.0
  %4671 = vmatpush2.msra.mxu0 0.0
  %4672 = vmatprep.subr.mxu0 0.0
  %4673 = vmatpush2.msra.mxu0 0.0
  %4674 = vmatprep.subr.mxu0 0.0
  %4675 = vmatpush2.msra.mxu0 0.0
  %4676 = vmatprep.subr.mxu0 0.0
  %4677 = vmatpush2.msra.mxu0 0.0
  %4678 = vmatprep.subr.mxu0 0.0
  %4679 = vmatpush2.msra.mxu0 0.0
  %4680 = vmatprep.mubr.f32.mxu0 0.0
  %4681 = vmatmul.mubr.f32.gmra.mxu0 %v4536
  %v4682 = vpop.f32.mrf.mxu0
  %v4683 = vadd.f32 0.0, %v4682
  %v4684 = vpop.f32.mrf.mxu0
  %4685 = vmatprep.mubr.f32.mxu0 0.0
  %4686 = vmatmul.mubr.f32.gmra.mxu0 %v4537
  %v4687 = vpop.f32.mrf.mxu0
  %v4688 = vadd.f32 0.0, %v4687
  %v4689 = vpop.f32.mrf.mxu0
  %4690 = vmatprep.mubr.f32.mxu0 0.0
  %4691 = vmatmul.mubr.f32.gmra.mxu0 %v4538
  %v4692 = vpop.f32.mrf.mxu0
  %v4693 = vadd.f32 0.0, %v4692
  %v4694 = vpop.f32.mrf.mxu0
  %4695 = vmatprep.mubr.f32.mxu0 0.0
  %4696 = vmatmul.mubr.f32.gmra.mxu0 %v4539
  %v4697 = vpop.f32.mrf.mxu0
  %v4698 = vadd.f32 0.0, %v4697
  %v4699 = vpop.f32.mrf.mxu0
  %4700 = vmatprep.mubr.f32.mxu0 0.0
  %4701 = vmatmul.mubr.f32.gmra.mxu0 %v4540
  %v4702 = vpop.f32.mrf.mxu0
  %v4703 = vadd.f32 0.0, %v4702
  %v4704 = vpop.f32.mrf.mxu0
  %4705 = vmatprep.mubr.f32.mxu0 0.0
  %4706 = vmatmul.mubr.f32.gmra.mxu0 %v4541
  %v4707 = vpop.f32.mrf.mxu0
  %v4708 = vadd.f32 0.0, %v4707
  %v4709 = vpop.f32.mrf.mxu0
  %4710 = vmatprep.mubr.f32.mxu0 0.0
  %4711 = vmatmul.mubr.f32.gmra.mxu0 %v4542
  %v4712 = vpop.f32.mrf.mxu0
  %v4713 = vadd.f32 0.0, %v4712
  %v4714 = vpop.f32.mrf.mxu0
  %4715 = vmatprep.mubr.f32.mxu0 0.0
  %4716 = vmatmul.mubr.f32.gmra.mxu0 %v4543
  %v4717 = vpop.f32.mrf.mxu0
  %v4718 = vadd.f32 0.0, %v4717
  %v4719 = vpop.f32.mrf.mxu0
  %4720 = vmatprep.mubr.f32.mxu0 0.0
  %4721 = vmatmul.mubr.f32.gmra.mxu0 %v4544
  %v4722 = vpop.f32.mrf.mxu0
  %v4723 = vadd.f32 0.0, %v4722
  %v4724 = vpop.f32.mrf.mxu0
  %4725 = vmatprep.mubr.f32.mxu0 0.0
  %4726 = vmatmul.mubr.f32.gmra.mxu0 %v4545
  %v4727 = vpop.f32.mrf.mxu0
  %v4728 = vadd.f32 0.0, %v4727
  %v4729 = vpop.f32.mrf.mxu0
  %4730 = vmatprep.mubr.f32.mxu0 0.0
  %4731 = vmatmul.mubr.f32.gmra.mxu0 %v4546
  %v4732 = vpop.f32.mrf.mxu0
  %v4733 = vadd.f32 0.0, %v4732
  %v4734 = vpop.f32.mrf.mxu0
  %4735 = vmatprep.mubr.f32.mxu0 0.0
  %4736 = vmatmul.mubr.f32.gmra.mxu0 %v4547
  %v4737 = vpop.f32.mrf.mxu0
  %v4738 = vadd.f32 0.0, %v4737
  %v4739 = vpop.f32.mrf.mxu0
  %4740 = vmatprep.mubr.f32.mxu0 0.0
  %4741 = vmatmul.mubr.f32.gmra.mxu0 %v4548
  %v4742 = vpop.f32.mrf.mxu0
  %v4743 = vadd.f32 0.0, %v4742
  %v4744 = vpop.f32.mrf.mxu0
  %4745 = vmatprep.mubr.f32.mxu0 0.0
  %4746 = vmatmul.mubr.f32.gmra.mxu0 %v4549
  %v4747 = vpop.f32.mrf.mxu0
  %v4748 = vadd.f32 0.0, %v4747
  %v4749 = vpop.f32.mrf.mxu0
  %4750 = vmatprep.mubr.f32.mxu0 0.0
  %4751 = vmatmul.mubr.f32.gmra.mxu0 %v4550
  %v4752 = vpop.f32.mrf.mxu0
  %v4753 = vadd.f32 0.0, %v4752
  %v4754 = vpop.f32.mrf.mxu0
  %4755 = vmatprep.mubr.f32.mxu0 0.0
  %4756 = vmatmul.mubr.f32.gmra.mxu0 %v4551
  %v4757 = vpop.f32.mrf.mxu0
  %v4758 = vadd.f32 0.0, %v4757
  %v4759 = vpop.f32.mrf.mxu0
  %4760 = vmatprep.mubr.f32.mxu0 0.0
  %4761 = vmatmul.mubr.f32.gmra.mxu0 %v4552
  %v4762 = vpop.f32.mrf.mxu0
  %v4763 = vadd.f32 0.0, %v4762
  %v4764 = vpop.f32.mrf.mxu0
  %4765 = vmatprep.mubr.f32.mxu0 0.0
  %4766 = vmatmul.mubr.f32.gmra.mxu0 %v4553
  %v4767 = vpop.f32.mrf.mxu0
  %v4768 = vadd.f32 0.0, %v4767
  %v4769 = vpop.f32.mrf.mxu0
  %4770 = vmatprep.mubr.f32.mxu0 0.0
  %4771 = vmatmul.mubr.f32.gmra.mxu0 %v4554
  %v4772 = vpop.f32.mrf.mxu0
  %v4773 = vadd.f32 0.0, %v4772
  %v4774 = vpop.f32.mrf.mxu0
  %4775 = vmatprep.mubr.f32.mxu0 0.0
  %4776 = vmatmul.mubr.f32.gmra.mxu0 %v4555
  %v4777 = vpop.f32.mrf.mxu0
  %v4778 = vadd.f32 0.0, %v4777
  %v4779 = vpop.f32.mrf.mxu0
  %4780 = vmatprep.mubr.f32.mxu0 0.0
  %4781 = vmatmul.mubr.f32.gmra.mxu0 %v4556
  %v4782 = vpop.f32.mrf.mxu0
  %v4783 = vadd.f32 0.0, %v4782
  %v4784 = vpop.f32.mrf.mxu0
  %4785 = vmatprep.mubr.f32.mxu0 0.0
  %4786 = vmatmul.mubr.f32.gmra.mxu0 %v4557
  %v4787 = vpop.f32.mrf.mxu0
  %v4788 = vadd.f32 0.0, %v4787
  %v4789 = vpop.f32.mrf.mxu0
  %4790 = vmatprep.mubr.f32.mxu0 0.0
  %4791 = vmatmul.mubr.f32.gmra.mxu0 %v4558
  %v4792 = vpop.f32.mrf.mxu0
  %v4793 = vadd.f32 0.0, %v4792
  %v4794 = vpop.f32.mrf.mxu0
  %4795 = vmatprep.mubr.f32.mxu0 0.0
  %4796 = vmatmul.mubr.f32.gmra.mxu0 %v4559
  %v4797 = vpop.f32.mrf.mxu0
  %v4798 = vadd.f32 0.0, %v4797
  %v4799 = vpop.f32.mrf.mxu0
  %4800 = vmatprep.mubr.f32.mxu0 0.0
  %4801 = vmatmul.mubr.f32.gmra.mxu0 %v4560
  %v4802 = vpop.f32.mrf.mxu0
  %v4803 = vadd.f32 0.0, %v4802
  %v4804 = vpop.f32.mrf.mxu0
  %4805 = vmatprep.mubr.f32.mxu0 0.0
  %4806 = vmatmul.mubr.f32.gmra.mxu0 %v4561
  %v4807 = vpop.f32.mrf.mxu0
  %v4808 = vadd.f32 0.0, %v4807
  %v4809 = vpop.f32.mrf.mxu0
  %4810 = vmatprep.mubr.f32.mxu0 0.0
  %4811 = vmatmul.mubr.f32.gmra.mxu0 %v4562
  %v4812 = vpop.f32.mrf.mxu0
  %v4813 = vadd.f32 0.0, %v4812
  %v4814 = vpop.f32.mrf.mxu0
  %4815 = vmatprep.mubr.f32.mxu0 0.0
  %4816 = vmatmul.mubr.f32.gmra.mxu0 %v4563
  %v4817 = vpop.f32.mrf.mxu0
  %v4818 = vadd.f32 0.0, %v4817
  %v4819 = vpop.f32.mrf.mxu0
  %4820 = vmatprep.mubr.f32.mxu0 0.0
  %4821 = vmatmul.mubr.f32.gmra.mxu0 %v4564
  %v4822 = vpop.f32.mrf.mxu0
  %v4823 = vadd.f32 0.0, %v4822
  %v4824 = vpop.f32.mrf.mxu0
  %4825 = vmatprep.mubr.f32.mxu0 0.0
  %4826 = vmatmul.mubr.f32.gmra.mxu0 %v4565
  %v4827 = vpop.f32.mrf.mxu0
  %v4828 = vadd.f32 0.0, %v4827
  %v4829 = vpop.f32.mrf.mxu0
  %4830 = vmatprep.mubr.f32.mxu0 0.0
  %4831 = vmatmul.mubr.f32.gmra.mxu0 %v4566
  %v4832 = vpop.f32.mrf.mxu0
  %v4833 = vadd.f32 0.0, %v4832
  %v4834 = vpop.f32.mrf.mxu0
  %4835 = vmatprep.mubr.f32.mxu0 0.0
  %4836 = vmatmul.mubr.f32.gmra.mxu0 %v4567
  %v4837 = vpop.f32.mrf.mxu0
  %v4838 = vadd.f32 0.0, %v4837
  %v4839 = vpop.f32.mrf.mxu0
  %4840 = vmatprep.mubr.f32.mxu0 0.0
  %4841 = vmatmul.mubr.f32.gmra.mxu0 %v4568
  %v4842 = vpop.f32.mrf.mxu0
  %v4843 = vadd.f32 0.0, %v4842
  %v4844 = vpop.f32.mrf.mxu0
  %4845 = vmatprep.mubr.f32.mxu0 0.0
  %4846 = vmatmul.mubr.f32.gmra.mxu0 %v4569
  %v4847 = vpop.f32.mrf.mxu0
  %v4848 = vadd.f32 0.0, %v4847
  %v4849 = vpop.f32.mrf.mxu0
  %4850 = vmatprep.mubr.f32.mxu0 0.0
  %4851 = vmatmul.mubr.f32.gmra.mxu0 %v4570
  %v4852 = vpop.f32.mrf.mxu0
  %v4853 = vadd.f32 0.0, %v4852
  %v4854 = vpop.f32.mrf.mxu0
  %4855 = vmatprep.mubr.f32.mxu0 0.0
  %4856 = vmatmul.mubr.f32.gmra.mxu0 %v4571
  %v4857 = vpop.f32.mrf.mxu0
  %v4858 = vadd.f32 0.0, %v4857
  %v4859 = vpop.f32.mrf.mxu0
  %4860 = vmatprep.mubr.f32.mxu0 0.0
  %4861 = vmatmul.mubr.f32.gmra.mxu0 %v4572
  %v4862 = vpop.f32.mrf.mxu0
  %v4863 = vadd.f32 0.0, %v4862
  %v4864 = vpop.f32.mrf.mxu0
  %4865 = vmatprep.mubr.f32.mxu0 0.0
  %4866 = vmatmul.mubr.f32.gmra.mxu0 %v4573
  %v4867 = vpop.f32.mrf.mxu0
  %v4868 = vadd.f32 0.0, %v4867
  %v4869 = vpop.f32.mrf.mxu0
  %4870 = vmatprep.mubr.f32.mxu0 0.0
  %4871 = vmatmul.mubr.f32.gmra.mxu0 %v4574
  %v4872 = vpop.f32.mrf.mxu0
  %v4873 = vadd.f32 0.0, %v4872
  %v4874 = vpop.f32.mrf.mxu0
  %4875 = vmatprep.mubr.f32.mxu0 0.0
  %4876 = vmatmul.mubr.f32.gmra.mxu0 %v4575
  %v4877 = vpop.f32.mrf.mxu0
  %v4878 = vadd.f32 0.0, %v4877
  %v4879 = vpop.f32.mrf.mxu0
  %4880 = vmatprep.mubr.f32.mxu0 0.0
  %4881 = vmatmul.mubr.f32.gmra.mxu0 %v4576
  %v4882 = vpop.f32.mrf.mxu0
  %v4883 = vadd.f32 0.0, %v4882
  %v4884 = vpop.f32.mrf.mxu0
  %4885 = vmatprep.mubr.f32.mxu0 0.0
  %4886 = vmatmul.mubr.f32.gmra.mxu0 %v4577
  %v4887 = vpop.f32.mrf.mxu0
  %v4888 = vadd.f32 0.0, %v4887
  %v4889 = vpop.f32.mrf.mxu0
  %4890 = vmatprep.mubr.f32.mxu0 0.0
  %4891 = vmatmul.mubr.f32.gmra.mxu0 %v4578
  %v4892 = vpop.f32.mrf.mxu0
  %v4893 = vadd.f32 0.0, %v4892
  %v4894 = vpop.f32.mrf.mxu0
  %4895 = vmatprep.mubr.f32.mxu0 0.0
  %4896 = vmatmul.mubr.f32.gmra.mxu0 %v4579
  %v4897 = vpop.f32.mrf.mxu0
  %v4898 = vadd.f32 0.0, %v4897
  %v4899 = vpop.f32.mrf.mxu0
  %4900 = vmatprep.mubr.f32.mxu0 0.0
  %4901 = vmatmul.mubr.f32.gmra.mxu0 %v4580
  %v4902 = vpop.f32.mrf.mxu0
  %v4903 = vadd.f32 0.0, %v4902
  %v4904 = vpop.f32.mrf.mxu0
  %4905 = vmatprep.mubr.f32.mxu0 0.0
  %4906 = vmatmul.mubr.f32.gmra.mxu0 %v4581
  %v4907 = vpop.f32.mrf.mxu0
  %v4908 = vadd.f32 0.0, %v4907
  %v4909 = vpop.f32.mrf.mxu0
  %4910 = vmatprep.mubr.f32.mxu0 0.0
  %4911 = vmatmul.mubr.f32.gmra.mxu0 %v4582
  %v4912 = vpop.f32.mrf.mxu0
  %v4913 = vadd.f32 0.0, %v4912
  %v4914 = vpop.f32.mrf.mxu0
  %4915 = vmatprep.mubr.f32.mxu0 0.0
  %4916 = vmatmul.mubr.f32.gmra.mxu0 %v4583
  %v4917 = vpop.f32.mrf.mxu0
  %v4918 = vadd.f32 0.0, %v4917
  %v4919 = vpop.f32.mrf.mxu0
  %4920 = vmatprep.mubr.f32.mxu0 0.0
  %4921 = vmatmul.mubr.f32.gmra.mxu0 %v4584
  %v4922 = vpop.f32.mrf.mxu0
  %v4923 = vadd.f32 0.0, %v4922
  %v4924 = vpop.f32.mrf.mxu0
  %4925 = vmatprep.mubr.f32.mxu0 0.0
  %4926 = vmatmul.mubr.f32.gmra.mxu0 %v4585
  %v4927 = vpop.f32.mrf.mxu0
  %v4928 = vadd.f32 0.0, %v4927
  %v4929 = vpop.f32.mrf.mxu0
  %4930 = vmatprep.mubr.f32.mxu0 0.0
  %4931 = vmatmul.mubr.f32.gmra.mxu0 %v4586
  %v4932 = vpop.f32.mrf.mxu0
  %v4933 = vadd.f32 0.0, %v4932
  %v4934 = vpop.f32.mrf.mxu0
  %4935 = vmatprep.mubr.f32.mxu0 0.0
  %4936 = vmatmul.mubr.f32.gmra.mxu0 %v4587
  %v4937 = vpop.f32.mrf.mxu0
  %v4938 = vadd.f32 0.0, %v4937
  %v4939 = vpop.f32.mrf.mxu0
  %4940 = vmatprep.mubr.f32.mxu0 0.0
  %4941 = vmatmul.mubr.f32.gmra.mxu0 %v4588
  %v4942 = vpop.f32.mrf.mxu0
  %v4943 = vadd.f32 0.0, %v4942
  %v4944 = vpop.f32.mrf.mxu0
  %4945 = vmatprep.mubr.f32.mxu0 0.0
  %4946 = vmatmul.mubr.f32.gmra.mxu0 %v4589
  %v4947 = vpop.f32.mrf.mxu0
  %v4948 = vadd.f32 0.0, %v4947
  %v4949 = vpop.f32.mrf.mxu0
  %4950 = vmatprep.mubr.f32.mxu0 0.0
  %4951 = vmatmul.mubr.f32.gmra.mxu0 %v4590
  %v4952 = vpop.f32.mrf.mxu0
  %v4953 = vadd.f32 0.0, %v4952
  %v4954 = vpop.f32.mrf.mxu0
  %4955 = vmatprep.mubr.f32.mxu0 0.0
  %4956 = vmatmul.mubr.f32.gmra.mxu0 %v4591
  %v4957 = vpop.f32.mrf.mxu0
  %v4958 = vadd.f32 0.0, %v4957
  %v4959 = vpop.f32.mrf.mxu0
  %4960 = vmatprep.mubr.f32.mxu0 0.0
  %4961 = vmatmul.mubr.f32.gmra.mxu0 %v4592
  %v4962 = vpop.f32.mrf.mxu0
  %v4963 = vadd.f32 0.0, %v4962
  %v4964 = vpop.f32.mrf.mxu0
  %4965 = vmatprep.mubr.f32.mxu0 0.0
  %4966 = vmatmul.mubr.f32.gmra.mxu0 %v4593
  %v4967 = vpop.f32.mrf.mxu0
  %v4968 = vadd.f32 0.0, %v4967
  %v4969 = vpop.f32.mrf.mxu0
  %4970 = vmatprep.mubr.f32.mxu0 0.0
  %4971 = vmatmul.mubr.f32.gmra.mxu0 %v4594
  %v4972 = vpop.f32.mrf.mxu0
  %v4973 = vadd.f32 0.0, %v4972
  %v4974 = vpop.f32.mrf.mxu0
  %4975 = vmatprep.mubr.f32.mxu0 0.0
  %4976 = vmatmul.mubr.f32.gmra.mxu0 %v4595
  %v4977 = vpop.f32.mrf.mxu0
  %v4978 = vadd.f32 0.0, %v4977
  %v4979 = vpop.f32.mrf.mxu0
  %4980 = vmatprep.mubr.f32.mxu0 0.0
  %4981 = vmatmul.mubr.f32.gmra.mxu0 %v4596
  %v4982 = vpop.f32.mrf.mxu0
  %v4983 = vadd.f32 0.0, %v4982
  %v4984 = vpop.f32.mrf.mxu0
  %4985 = vmatprep.mubr.f32.mxu0 0.0
  %4986 = vmatmul.mubr.f32.gmra.mxu0 %v4597
  %v4987 = vpop.f32.mrf.mxu0
  %v4988 = vadd.f32 0.0, %v4987
  %v4989 = vpop.f32.mrf.mxu0
  %4990 = vmatprep.mubr.f32.mxu0 0.0
  %4991 = vmatmul.mubr.f32.gmra.mxu0 %v4598
  %v4992 = vpop.f32.mrf.mxu0
  %v4993 = vadd.f32 0.0, %v4992
  %v4994 = vpop.f32.mrf.mxu0
  %4995 = vmatprep.mubr.f32.mxu0 0.0
  %4996 = vmatmul.mubr.f32.gmra.mxu0 %v4599
  %v4997 = vpop.f32.mrf.mxu0
  %v4998 = vadd.f32 0.0, %v4997
  %v4999 = vpop.f32.mrf.mxu0
  %5000 = vdwg.mxu0
  %v5001 = vadd.f32 %v4472, %v4683
  %v5002 = vadd.f32 %v4473, %v4688
  %v5003 = vadd.f32 %v4474, %v4693
  %v5004 = vadd.f32 %v4475, %v4698
  %v5005 = vadd.f32 %v4476, %v4703
  %v5006 = vadd.f32 %v4477, %v4708
  %v5007 = vadd.f32 %v4478, %v4713
  %v5008 = vadd.f32 %v4479, %v4718
  %v5009 = vadd.f32 %v4480, %v4723
  %v5010 = vadd.f32 %v4481, %v4728
  %v5011 = vadd.f32 %v4482, %v4733
  %v5012 = vadd.f32 %v4483, %v4738
  %v5013 = vadd.f32 %v4484, %v4743
  %v5014 = vadd.f32 %v4485, %v4748
  %v5015 = vadd.f32 %v4486, %v4753
  %v5016 = vadd.f32 %v4487, %v4758
  %v5017 = vadd.f32 %v4488, %v4763
  %v5018 = vadd.f32 %v4489, %v4768
  %v5019 = vadd.f32 %v4490, %v4773
  %v5020 = vadd.f32 %v4491, %v4778
  %v5021 = vadd.f32 %v4492, %v4783
  %v5022 = vadd.f32 %v4493, %v4788
  %v5023 = vadd.f32 %v4494, %v4793
  %v5024 = vadd.f32 %v4495, %v4798
  %v5025 = vadd.f32 %v4496, %v4803
  %v5026 = vadd.f32 %v4497, %v4808
  %v5027 = vadd.f32 %v4498, %v4813
  %v5028 = vadd.f32 %v4499, %v4818
  %v5029 = vadd.f32 %v4500, %v4823
  %v5030 = vadd.f32 %v4501, %v4828
  %v5031 = vadd.f32 %v4502, %v4833
  %v5032 = vadd.f32 %v4503, %v4838
  %v5033 = vadd.f32 %v4504, %v4843
  %v5034 = vadd.f32 %v4505, %v4848
  %v5035 = vadd.f32 %v4506, %v4853
  %v5036 = vadd.f32 %v4507, %v4858
  %v5037 = vadd.f32 %v4508, %v4863
  %v5038 = vadd.f32 %v4509, %v4868
  %v5039 = vadd.f32 %v4510, %v4873
  %v5040 = vadd.f32 %v4511, %v4878
  %v5041 = vadd.f32 %v4512, %v4883
  %v5042 = vadd.f32 %v4513, %v4888
  %v5043 = vadd.f32 %v4514, %v4893
  %v5044 = vadd.f32 %v4515, %v4898
  %v5045 = vadd.f32 %v4516, %v4903
  %v5046 = vadd.f32 %v4517, %v4908
  %v5047 = vadd.f32 %v4518, %v4913
  %v5048 = vadd.f32 %v4519, %v4918
  %v5049 = vadd.f32 %v4520, %v4923
  %v5050 = vadd.f32 %v4521, %v4928
  %v5051 = vadd.f32 %v4522, %v4933
  %v5052 = vadd.f32 %v4523, %v4938
  %v5053 = vadd.f32 %v4524, %v4943
  %v5054 = vadd.f32 %v4525, %v4948
  %v5055 = vadd.f32 %v4526, %v4953
  %v5056 = vadd.f32 %v4527, %v4958
  %v5057 = vadd.f32 %v4528, %v4963
  %v5058 = vadd.f32 %v4529, %v4968
  %v5059 = vadd.f32 %v4530, %v4973
  %v5060 = vadd.f32 %v4531, %v4978
  %v5061 = vadd.f32 %v4532, %v4983
  %v5062 = vadd.f32 %v4533, %v4988
  %v5063 = vadd.f32 %v4534, %v4993
  %v5064 = vadd.f32 %v4535, %v4998
  %5065 = vst [vmem:[%s4] sm:$0xff] %v5001
  %5066 = vst [vmem:[%s4 + $0x8] sm:$0xff] %v5002
  %5067 = vst [vmem:[%s4 + $0x10] sm:$0xff] %v5003
  %5068 = vst [vmem:[%s4 + $0x18] sm:$0xff] %v5004
  %5069 = vst [vmem:[%s4 + $0x20] sm:$0xff] %v5005
  %5070 = vst [vmem:[%s4 + $0x28] sm:$0xff] %v5006
  %5071 = vst [vmem:[%s4 + $0x30] sm:$0xff] %v5007
  %5072 = vst [vmem:[%s4 + $0x38] sm:$0xff] %v5008
  %5073 = vst [vmem:[%s4 + $0x40] sm:$0xff] %v5009
  %5074 = vst [vmem:[%s4 + $0x48] sm:$0xff] %v5010
  %5075 = vst [vmem:[%s4 + $0x50] sm:$0xff] %v5011
  %5076 = vst [vmem:[%s4 + $0x58] sm:$0xff] %v5012
  %5077 = vst [vmem:[%s4 + $0x60] sm:$0xff] %v5013
  %5078 = vst [vmem:[%s4 + $0x68] sm:$0xff] %v5014
  %5079 = vst [vmem:[%s4 + $0x70] sm:$0xff] %v5015
  %5080 = vst [vmem:[%s4 + $0x78] sm:$0xff] %v5016
  %5081 = vst [vmem:[%s4 + $0x80] sm:$0xff] %v5017
  %5082 = vst [vmem:[%s4 + $0x88] sm:$0xff] %v5018
  %5083 = vst [vmem:[%s4 + $0x90] sm:$0xff] %v5019
  %5084 = vst [vmem:[%s4 + $0x98] sm:$0xff] %v5020
  %5085 = vst [vmem:[%s4 + $0xa0] sm:$0xff] %v5021
  %5086 = vst [vmem:[%s4 + $0xa8] sm:$0xff] %v5022
  %5087 = vst [vmem:[%s4 + $0xb0] sm:$0xff] %v5023
  %5088 = vst [vmem:[%s4 + $0xb8] sm:$0xff] %v5024
  %5089 = vst [vmem:[%s4 + $0xc0] sm:$0xff] %v5025
  %5090 = vst [vmem:[%s4 + $0xc8] sm:$0xff] %v5026
  %5091 = vst [vmem:[%s4 + $0xd0] sm:$0xff] %v5027
  %5092 = vst [vmem:[%s4 + $0xd8] sm:$0xff] %v5028
  %5093 = vst [vmem:[%s4 + $0xe0] sm:$0xff] %v5029
  %5094 = vst [vmem:[%s4 + $0xe8] sm:$0xff] %v5030
  %5095 = vst [vmem:[%s4 + $0xf0] sm:$0xff] %v5031
  %5096 = vst [vmem:[%s4 + $0xf8] sm:$0xff] %v5032
  %5097 = vst [vmem:[%s4 + $0x100] sm:$0xff] %v5033
  %5098 = vst [vmem:[%s4 + $0x108] sm:$0xff] %v5034
  %5099 = vst [vmem:[%s4 + $0x110] sm:$0xff] %v5035
  %5100 = vst [vmem:[%s4 + $0x118] sm:$0xff] %v5036
  %5101 = vst [vmem:[%s4 + $0x120] sm:$0xff] %v5037
  %5102 = vst [vmem:[%s4 + $0x128] sm:$0xff] %v5038
  %5103 = vst [vmem:[%s4 + $0x130] sm:$0xff] %v5039
  %5104 = vst [vmem:[%s4 + $0x138] sm:$0xff] %v5040
  %5105 = vst [vmem:[%s4 + $0x140] sm:$0xff] %v5041
  %5106 = vst [vmem:[%s4 + $0x148] sm:$0xff] %v5042
  %5107 = vst [vmem:[%s4 + $0x150] sm:$0xff] %v5043
  %5108 = vst [vmem:[%s4 + $0x158] sm:$0xff] %v5044
  %5109 = vst [vmem:[%s4 + $0x160] sm:$0xff] %v5045
  %5110 = vst [vmem:[%s4 + $0x168] sm:$0xff] %v5046
  %5111 = vst [vmem:[%s4 + $0x170] sm:$0xff] %v5047
  %5112 = vst [vmem:[%s4 + $0x178] sm:$0xff] %v5048
  %5113 = vst [vmem:[%s4 + $0x180] sm:$0xff] %v5049
  %5114 = vst [vmem:[%s4 + $0x188] sm:$0xff] %v5050
  %5115 = vst [vmem:[%s4 + $0x190] sm:$0xff] %v5051
  %5116 = vst [vmem:[%s4 + $0x198] sm:$0xff] %v5052
  %5117 = vst [vmem:[%s4 + $0x1a0] sm:$0xff] %v5053
  %5118 = vst [vmem:[%s4 + $0x1a8] sm:$0xff] %v5054
  %5119 = vst [vmem:[%s4 + $0x1b0] sm:$0xff] %v5055
  %5120 = vst [vmem:[%s4 + $0x1b8] sm:$0xff] %v5056
  %5121 = vst [vmem:[%s4 + $0x1c0] sm:$0xff] %v5057
  %5122 = vst [vmem:[%s4 + $0x1c8] sm:$0xff] %v5058
  %5123 = vst [vmem:[%s4 + $0x1d0] sm:$0xff] %v5059
  %5124 = vst [vmem:[%s4 + $0x1d8] sm:$0xff] %v5060
  %5125 = vst [vmem:[%s4 + $0x1e0] sm:$0xff] %v5061
  %5126 = vst [vmem:[%s4 + $0x1e8] sm:$0xff] %v5062
  %5127 = vst [vmem:[%s4 + $0x1f0] sm:$0xff] %v5063
  %5128 = vst [vmem:[%s4 + $0x1f8] sm:$0xff] %v5064
  %v5129 = vadd.f32 %v5001, %v5002
  %v5130 = vadd.f32 %v5129, %v5003
  %v5131 = vadd.f32 %v5130, %v5004
  %v5132 = vadd.f32 %v5131, %v5005
  %v5133 = vadd.f32 %v5132, %v5006
  %v5134 = vadd.f32 %v5133, %v5007
  %v5135 = vadd.f32 %v5134, %v5008
  %v5136 = vadd.f32 %v5135, %v5009
  %v5137 = vadd.f32 %v5136, %v5010
  %v5138 = vadd.f32 %v5137, %v5011
  %v5139 = vadd.f32 %v5138, %v5012
  %v5140 = vadd.f32 %v5139, %v5013
  %v5141 = vadd.f32 %v5140, %v5014
  %v5142 = vadd.f32 %v5141, %v5015
  %v5143 = vadd.f32 %v5142, %v5016
  %v5144 = vadd.f32 %v5143, %v5017
  %v5145 = vadd.f32 %v5144, %v5018
  %v5146 = vadd.f32 %v5145, %v5019
  %v5147 = vadd.f32 %v5146, %v5020
  %v5148 = vadd.f32 %v5147, %v5021
  %v5149 = vadd.f32 %v5148, %v5022
  %v5150 = vadd.f32 %v5149, %v5023
  %v5151 = vadd.f32 %v5150, %v5024
  %v5152 = vadd.f32 %v5151, %v5025
  %v5153 = vadd.f32 %v5152, %v5026
  %v5154 = vadd.f32 %v5153, %v5027
  %v5155 = vadd.f32 %v5154, %v5028
  %v5156 = vadd.f32 %v5155, %v5029
  %v5157 = vadd.f32 %v5156, %v5030
  %v5158 = vadd.f32 %v5157, %v5031
  %v5159 = vadd.f32 %v5158, %v5032
  %v5160 = vadd.f32 %v5159, %v5033
  %v5161 = vadd.f32 %v5160, %v5034
  %v5162 = vadd.f32 %v5161, %v5035
  %v5163 = vadd.f32 %v5162, %v5036
  %v5164 = vadd.f32 %v5163, %v5037
  %v5165 = vadd.f32 %v5164, %v5038
  %v5166 = vadd.f32 %v5165, %v5039
  %v5167 = vadd.f32 %v5166, %v5040
  %v5168 = vadd.f32 %v5167, %v5041
  %v5169 = vadd.f32 %v5168, %v5042
  %v5170 = vadd.f32 %v5169, %v5043
  %v5171 = vadd.f32 %v5170, %v5044
  %v5172 = vadd.f32 %v5171, %v5045
  %v5173 = vadd.f32 %v5172, %v5046
  %v5174 = vadd.f32 %v5173, %v5047
  %v5175 = vadd.f32 %v5174, %v5048
  %v5176 = vadd.f32 %v5175, %v5049
  %v5177 = vadd.f32 %v5176, %v5050
  %v5178 = vadd.f32 %v5177, %v5051
  %v5179 = vadd.f32 %v5178, %v5052
  %v5180 = vadd.f32 %v5179, %v5053
  %v5181 = vadd.f32 %v5180, %v5054
  %v5182 = vadd.f32 %v5181, %v5055
  %v5183 = vadd.f32 %v5182, %v5056
  %v5184 = vadd.f32 %v5183, %v5057
  %v5185 = vadd.f32 %v5184, %v5058
  %v5186 = vadd.f32 %v5185, %v5059
  %v5187 = vadd.f32 %v5186, %v5060
  %v5188 = vadd.f32 %v5187, %v5061
  %v5189 = vadd.f32 %v5188, %v5062
  %v5190 = vadd.f32 %v5189, %v5063
  %v5191 = vadd.f32 %v5190, %v5064
  %v5192 = vrot.slane %v5191, 4
  %v5193 = vadd.f32 %v5191, %v5192
  %v5194 = vrot.slane %v5193, 2
  %v5195 = vadd.f32 %v5193, %v5194
  %v5196 = vrot.slane %v5195, 1
  %v5197 = vadd.f32 %v5195, %v5196
  %v5198 = vmul.f32 %v5001, %v5001
  %v5199 = vmul.f32 %v5002, %v5002
  %v5200 = vmul.f32 %v5003, %v5003
  %v5201 = vmul.f32 %v5004, %v5004
  %v5202 = vmul.f32 %v5005, %v5005
  %v5203 = vmul.f32 %v5006, %v5006
  %v5204 = vmul.f32 %v5007, %v5007
  %v5205 = vmul.f32 %v5008, %v5008
  %v5206 = vmul.f32 %v5009, %v5009
  %v5207 = vmul.f32 %v5010, %v5010
  %v5208 = vmul.f32 %v5011, %v5011
  %v5209 = vmul.f32 %v5012, %v5012
  %v5210 = vmul.f32 %v5013, %v5013
  %v5211 = vmul.f32 %v5014, %v5014
  %v5212 = vmul.f32 %v5015, %v5015
  %v5213 = vmul.f32 %v5016, %v5016
  %v5214 = vmul.f32 %v5017, %v5017
  %v5215 = vmul.f32 %v5018, %v5018
  %v5216 = vmul.f32 %v5019, %v5019
  %v5217 = vmul.f32 %v5020, %v5020
  %v5218 = vmul.f32 %v5021, %v5021
  %v5219 = vmul.f32 %v5022, %v5022
  %v5220 = vmul.f32 %v5023, %v5023
  %v5221 = vmul.f32 %v5024, %v5024
  %v5222 = vmul.f32 %v5025, %v5025
  %v5223 = vmul.f32 %v5026, %v5026
  %v5224 = vmul.f32 %v5027, %v5027
  %v5225 = vmul.f32 %v5028, %v5028
  %v5226 = vmul.f32 %v5029, %v5029
  %v5227 = vmul.f32 %v5030, %v5030
  %v5228 = vmul.f32 %v5031, %v5031
  %v5229 = vmul.f32 %v5032, %v5032
  %v5230 = vmul.f32 %v5033, %v5033
  %v5231 = vmul.f32 %v5034, %v5034
  %v5232 = vmul.f32 %v5035, %v5035
  %v5233 = vmul.f32 %v5036, %v5036
  %v5234 = vmul.f32 %v5037, %v5037
  %v5235 = vmul.f32 %v5038, %v5038
  %v5236 = vmul.f32 %v5039, %v5039
  %v5237 = vmul.f32 %v5040, %v5040
  %v5238 = vmul.f32 %v5041, %v5041
  %v5239 = vmul.f32 %v5042, %v5042
  %v5240 = vmul.f32 %v5043, %v5043
  %v5241 = vmul.f32 %v5044, %v5044
  %v5242 = vmul.f32 %v5045, %v5045
  %v5243 = vmul.f32 %v5046, %v5046
  %v5244 = vmul.f32 %v5047, %v5047
  %v5245 = vmul.f32 %v5048, %v5048
  %v5246 = vmul.f32 %v5049, %v5049
  %v5247 = vmul.f32 %v5050, %v5050
  %v5248 = vmul.f32 %v5051, %v5051
  %v5249 = vmul.f32 %v5052, %v5052
  %v5250 = vmul.f32 %v5053, %v5053
  %v5251 = vmul.f32 %v5054, %v5054
  %v5252 = vmul.f32 %v5055, %v5055
  %v5253 = vmul.f32 %v5056, %v5056
  %v5254 = vmul.f32 %v5057, %v5057
  %v5255 = vmul.f32 %v5058, %v5058
  %v5256 = vmul.f32 %v5059, %v5059
  %v5257 = vmul.f32 %v5060, %v5060
  %v5258 = vmul.f32 %v5061, %v5061
  %v5259 = vmul.f32 %v5062, %v5062
  %v5260 = vmul.f32 %v5063, %v5063
  %v5261 = vmul.f32 %v5064, %v5064
  %v5262 = vadd.f32 %v5198, %v5199
  %v5263 = vadd.f32 %v5262, %v5200
  %v5264 = vadd.f32 %v5263, %v5201
  %v5265 = vadd.f32 %v5264, %v5202
  %v5266 = vadd.f32 %v5265, %v5203
  %v5267 = vadd.f32 %v5266, %v5204
  %v5268 = vadd.f32 %v5267, %v5205
  %v5269 = vadd.f32 %v5268, %v5206
  %v5270 = vadd.f32 %v5269, %v5207
  %v5271 = vadd.f32 %v5270, %v5208
  %v5272 = vadd.f32 %v5271, %v5209
  %v5273 = vadd.f32 %v5272, %v5210
  %v5274 = vadd.f32 %v5273, %v5211
  %v5275 = vadd.f32 %v5274, %v5212
  %v5276 = vadd.f32 %v5275, %v5213
  %v5277 = vadd.f32 %v5276, %v5214
  %v5278 = vadd.f32 %v5277, %v5215
  %v5279 = vadd.f32 %v5278, %v5216
  %v5280 = vadd.f32 %v5279, %v5217
  %v5281 = vadd.f32 %v5280, %v5218
  %v5282 = vadd.f32 %v5281, %v5219
  %v5283 = vadd.f32 %v5282, %v5220
  %v5284 = vadd.f32 %v5283, %v5221
  %v5285 = vadd.f32 %v5284, %v5222
  %v5286 = vadd.f32 %v5285, %v5223
  %v5287 = vadd.f32 %v5286, %v5224
  %v5288 = vadd.f32 %v5287, %v5225
  %v5289 = vadd.f32 %v5288, %v5226
  %v5290 = vadd.f32 %v5289, %v5227
  %v5291 = vadd.f32 %v5290, %v5228
  %v5292 = vadd.f32 %v5291, %v5229
  %v5293 = vadd.f32 %v5292, %v5230
  %v5294 = vadd.f32 %v5293, %v5231
  %v5295 = vadd.f32 %v5294, %v5232
  %v5296 = vadd.f32 %v5295, %v5233
  %v5297 = vadd.f32 %v5296, %v5234
  %v5298 = vadd.f32 %v5297, %v5235
  %v5299 = vadd.f32 %v5298, %v5236
  %v5300 = vadd.f32 %v5299, %v5237
  %v5301 = vadd.f32 %v5300, %v5238
  %v5302 = vadd.f32 %v5301, %v5239
  %v5303 = vadd.f32 %v5302, %v5240
  %v5304 = vadd.f32 %v5303, %v5241
  %v5305 = vadd.f32 %v5304, %v5242
  %v5306 = vadd.f32 %v5305, %v5243
  %v5307 = vadd.f32 %v5306, %v5244
  %v5308 = vadd.f32 %v5307, %v5245
  %v5309 = vadd.f32 %v5308, %v5246
  %v5310 = vadd.f32 %v5309, %v5247
  %v5311 = vadd.f32 %v5310, %v5248
  %v5312 = vadd.f32 %v5311, %v5249
  %v5313 = vadd.f32 %v5312, %v5250
  %v5314 = vadd.f32 %v5313, %v5251
  %v5315 = vadd.f32 %v5314, %v5252
  %v5316 = vadd.f32 %v5315, %v5253
  %v5317 = vadd.f32 %v5316, %v5254
  %v5318 = vadd.f32 %v5317, %v5255
  %v5319 = vadd.f32 %v5318, %v5256
  %v5320 = vadd.f32 %v5319, %v5257
  %v5321 = vadd.f32 %v5320, %v5258
  %v5322 = vadd.f32 %v5321, %v5259
  %v5323 = vadd.f32 %v5322, %v5260
  %v5324 = vadd.f32 %v5323, %v5261
  %v5325 = vrot.slane %v5324, 4
  %v5326 = vadd.f32 %v5324, %v5325
  %v5327 = vrot.slane %v5326, 2
  %v5328 = vadd.f32 %v5326, %v5327
  %v5329 = vrot.slane %v5328, 1
  %v5330 = vadd.f32 %v5328, %v5329
  %vm5331 = vcmask 1040384
  %v5332 = vsel %vm5331, %v5197, %v5330
  %5333 = vst [vmem:[%s5] sm:$0x3] %v5332
  // Predicated region
  $region18: #{residual_block.4} parent=0 // pred_check
    _
  $region19: #{residual_block.4} parent=0 // pred_check_branch
    %5335 = sbr.rel (0) target = $region21
  $region20: #{residual_block.4} parent=0 // pred_region
    _
  $region21: #{residual_block.4} parent=0 // pred_fallthru
    _
  // Predicated region
  $region22: #{residual_block.4} parent=0 // pred_check
    _
  $region23: #{residual_block.4} parent=0 // pred_check_branch
    %5337 = sbr.rel (0) target = $region25
  $region24: #{residual_block.4} parent=0 // pred_region
    _
  $region25: #{residual_block.4} parent=0 // pred_fallthru
    _
  // Predicated region
  $region26: #{residual_block.4} parent=0 // pred_check
    _
  $region27: #{residual_block.4} parent=0 // pred_check_branch
    %5339 = sbr.rel (0) target = $region29
  $region28: #{residual_block.4} parent=0 // pred_region
    _
  $region29: #{residual_block.4} parent=0 // pred_fallthru
    _
  // Predicated region
  $region30: #{residual_block.4} parent=0 // pred_check
    _
  $region31: #{residual_block.4} parent=0 // pred_check_branch
    %5341 = sbr.rel (0) target = $region33
  $region32: #{residual_block.4} parent=0 // pred_region
    _
  $region33: #{residual_block.4} parent=0 // pred_fallthru
    _

</llo_original>
